<compile_context>
chip_gen: v5e
topology: v5e:2x2
jax: 0.10.0
libtpu: 0.0.40
codegen_flags: <defaults>
</compile_context>

<pallas_src>
import functools

import jax
import jax.numpy as jnp
from jax.experimental import pallas as pl
from jax.experimental.pallas import tpu as pltpu

LANE = 128
_EPS = 1e-5
_VMEM_LIMIT = 48 * 1024 * 1024  # <= 64 MiB physical on v7x; ample headroom on v5e/v6e


def _round_up(x, m):
    return (x + m - 1) // m * m


# ---------------------------------------------------------------------------
# in-kernel helpers
# ---------------------------------------------------------------------------
def _fill_padded(pad_ref, interior_bf16, lead, hwp, mbuf, ck):
    """Write the flattened zero-padded activation into VMEM scratch.

    Interior rows already carry the left/right zero columns (width W+2), so only
    the leading slack + top halo row and the bottom halo row + trailing slack get
    zeroed (2 tiny stores, done every step -- see megacore note above).
    """
    pad_ref[0:lead, :] = jnp.zeros((lead, ck), jnp.bfloat16)
    pad_ref[lead:lead + hwp, :] = interior_bf16
    pad_ref[lead + hwp:mbuf, :] = jnp.zeros((mbuf - lead - hwp, ck), jnp.bfloat16)


def _conv3x3_taps(pad_ref, w_ref, acc_ref, base, wp, hwp):
    """3x3 'same' conv as 9 tap-accumulated matmuls (no im2col patch).

    Each tap's LHS is a static row-offset slice of the flattened padded activation;
    accumulation is f32 (maps onto the MXU accumulator / MRB on v7x).
    """
    for t in range(9):
        dy, dx = divmod(t, 3)
        s = base + dy * wp + dx - 1                      # static start
        p = jnp.dot(pad_ref[s:s + hwp, :], w_ref[t],
                    preferred_element_type=jnp.float32)
        if t == 0:
            acc_ref[...] = p
        else:
            acc_ref[...] += p


def _write_stats(st_ref, acc_valid_k):
    # one-pass BN statistics, always from the f32 accumulator (never bf16 values)
    st_ref[0:1, :] = jnp.sum(acc_valid_k, axis=0, keepdims=True)
    st_ref[1:2, :] = jnp.sum(acc_valid_k * acc_valid_k, axis=0, keepdims=True)


# ---------------------------------------------------------------------------
# kernel 1: conv1 + BN1 partial statistics                  (grid over batch)
# ---------------------------------------------------------------------------
def _conv1_kernel(x_ref, mask_ref, w_ref, y_ref, st_ref, pad_ref, acc_ref,
                  *, base, lead, wp, hwp, mbuf, ck):
    _fill_padded(pad_ref, x_ref[...].astype(jnp.bfloat16), lead, hwp, mbuf, ck)
    _conv3x3_taps(pad_ref, w_ref, acc_ref, base, wp, hwp)
    acc = acc_ref[...] * mask_ref[...]           # zero the wrap/halo columns
    _write_stats(st_ref, acc[:, :ck])
    y_ref[...] = acc.astype(jnp.bfloat16)        # lane-dense bf16 intermediate


# ---------------------------------------------------------------------------
# kernel 2: BN1 + ReLU + conv2 + BN2 partial statistics      (grid over batch)
# ---------------------------------------------------------------------------
def _bn_relu_conv2_kernel(y1_ref, mask_ref, s1_ref, b1_ref, w_ref,
                          y2_ref, st_ref, pad_ref, acc_ref,
                          *, base, lead, wp, hwp, mbuf, ck):
    # fused affine BN (scale = gamma*rsqrt(var+eps), shift = beta - mean*scale) + ReLU
    a = y1_ref[:, :ck].astype(jnp.float32) * s1_ref[...] + b1_ref[...]
    a = jnp.maximum(a, 0.0) * mask_ref[...]      # ReLU + re-zero halo columns
    _fill_padded(pad_ref, a.astype(jnp.bfloat16), lead, hwp, mbuf, ck)
    _conv3x3_taps(pad_ref, w_ref, acc_ref, base, wp, hwp)
    acc = acc_ref[...] * mask_ref[...]
    _write_stats(st_ref, acc[:, :ck])
    y2_ref[...] = acc.astype(jnp.bfloat16)


# ---------------------------------------------------------------------------
# kernel 3: BN2 + residual + ReLU (elementwise, whole image per step)
# ---------------------------------------------------------------------------
def _bn_add_relu_kernel(y2_ref, x_ref, s2_ref, b2_ref, o_ref, *, ck):
    v = y2_ref[:, :ck].astype(jnp.float32) * s2_ref[...] + b2_ref[...] + x_ref[...]
    o_ref[...] = jnp.maximum(v, 0.0)


# ---------------------------------------------------------------------------
# wrapper-side helpers
# ---------------------------------------------------------------------------
def _prep_weight(w_oihw, ck, co):
    """(Cout, Cin, 3, 3) PyTorch layout -> (9, Ck, Co) bf16, tap-major."""
    cout, cin, kh, kw = w_oihw.shape
    w = jnp.transpose(w_oihw, (2, 3, 1, 0)).reshape(kh * kw, cin, cout)
    w = jnp.pad(w, ((0, 0), (0, ck - cin), (0, co - cout)))
    return w.astype(jnp.bfloat16)


def _bn_scale_shift(stats, gamma, beta, count):
    """(N, 2, Ck) partial sums -> fused per-channel scale/shift (training BN)."""
    s = jnp.sum(stats, axis=0)                   # (2, Ck)
    mean = s[0] / count
    var = jnp.maximum(s[1] / count - mean * mean, 0.0)   # biased variance
    scale = gamma * jax.lax.rsqrt(var + _EPS)
    shift = beta - mean * scale
    return scale[None, :], shift[None, :]        # (1, Ck) each


@jax.jit
def resblock_forward(x_nchw, params):
    """x_nchw: (N, C, H, W) float32 -> (N, C, H, W) float32."""
    N, C, H, W = x_nchw.shape
    Wp = W + 2
    HWp = H * Wp
    Ck = _round_up(C, 8)                 # contraction / narrow channel pad (NOT 128)
    Co = _round_up(C, LANE)              # lane-dense pad for conv outputs
    BASE = 8                             # leading slack so the (-1) tap offset stays in bounds
    LEAD = BASE + Wp
    Mbuf = _round_up(BASE + (H + 2) * Wp + 8, 8)
    count = jnp.float32(N * H * W)

    # layout plumbing: NCHW -> NHWC, add the two zero columns (width W+2), pad
    # channels to Ck, flatten (H, W+2) into rows.  Vertical halo is built in VMEM.
    x_nhwc = jnp.transpose(x_nchw, (0, 2, 3, 1)).astype(jnp.float32)
    x_flat = jnp.pad(x_nhwc, ((0, 0), (0, 0), (1, 1), (0, Ck - C))
                     ).reshape(N, HWp, Ck)

    # validity mask over flattened rows: column index in [1, W] (precomputed in XLA
    # so the kernels avoid vector integer mod)
    col = jnp.arange(HWp, dtype=jnp.int32) % Wp
    mask = ((col >= 1) & (col <= W)).astype(jnp.float32)[:, None]      # (HWp, 1)

    w1 = _prep_weight(params["w1"], Ck, Co)
    w2 = _prep_weight(params["w2"], Ck, Co)
    # conv biases omitted on purpose: exactly cancelled by training-mode BN mean subtraction
    g1 = jnp.pad(params["g1"], (0, Ck - C))
    g2 = jnp.pad(params["g2"], (0, Ck - C))
    bt1 = jnp.pad(params["bt1"], (0, Ck - C))
    bt2 = jnp.pad(params["bt2"], (0, Ck - C))

    cparams = pltpu.CompilerParams(dimension_semantics=("parallel",),
                                   vmem_limit_bytes=_VMEM_LIMIT)

    img_k_spec = pl.BlockSpec((None, HWp, Ck), lambda n: (n, 0, 0))
    img_o_spec = pl.BlockSpec((None, HWp, Co), lambda n: (n, 0, 0))
    st_spec = pl.BlockSpec((None, 2, Ck), lambda n: (n, 0, 0))
    mask_spec = pl.BlockSpec((HWp, 1), lambda n: (0, 0))
    w_spec = pl.BlockSpec((9, Ck, Co), lambda n: (0, 0, 0))       # resident weight
    vec_spec = pl.BlockSpec((1, Ck), lambda n: (0, 0))            # resident scale/shift

    conv_scratch = [pltpu.VMEM((Mbuf, Ck), jnp.bfloat16),         # padded activation
                    pltpu.VMEM((HWp, Co), jnp.float32)]           # f32 accumulator
    kargs = dict(base=BASE, lead=LEAD, wp=Wp, hwp=HWp, mbuf=Mbuf, ck=Ck)

    # ---- pass 1: conv1 + BN1 partial sums ---------------------------------
    y1, st1 = pl.pallas_call(
        functools.partial(_conv1_kernel, **kargs),
        grid=(N,),
        out_shape=(jax.ShapeDtypeStruct((N, HWp, Co), jnp.bfloat16),
                   jax.ShapeDtypeStruct((N, 2, Ck), jnp.float32)),
        in_specs=[img_k_spec, mask_spec, w_spec],
        out_specs=(img_o_spec, st_spec),
        scratch_shapes=conv_scratch,
        compiler_params=cparams,
    )(x_flat, mask, w1)
    scale1, shift1 = _bn_scale_shift(st1, g1, bt1, count)

    # ---- pass 2: BN1 + ReLU + conv2 + BN2 partial sums --------------------
    y2, st2 = pl.pallas_call(
        functools.partial(_bn_relu_conv2_kernel, **kargs),
        grid=(N,),
        out_shape=(jax.ShapeDtypeStruct((N, HWp, Co), jnp.bfloat16),
                   jax.ShapeDtypeStruct((N, 2, Ck), jnp.float32)),
        in_specs=[img_o_spec, mask_spec, vec_spec, vec_spec, w_spec],
        out_specs=(img_o_spec, st_spec),
        scratch_shapes=conv_scratch,
        compiler_params=cparams,
    )(y1, mask, scale1, shift1, w2)
    scale2, shift2 = _bn_scale_shift(st2, g2, bt2, count)

    # ---- pass 3: BN2 + residual + ReLU (whole image per step) -------------
    out_flat = pl.pallas_call(
        functools.partial(_bn_add_relu_kernel, ck=Ck),
        grid=(N,),
        out_shape=jax.ShapeDtypeStruct((N, HWp, Ck), jnp.float32),
        in_specs=[img_o_spec, img_k_spec, vec_spec, vec_spec],
        out_specs=img_k_spec,
        compiler_params=cparams,
    )(y2, x_flat, scale2, shift2)

    out = out_flat.reshape(N, H, Wp, Ck)[:, :, 1:W + 1, :C]
    return jnp.transpose(out, (0, 3, 1, 2))


# ---------------------------------------------------------------------------
# pure-JAX reference (NCHW), mirrors the PyTorch forward (training-mode BN)
# ---------------------------------------------------------------------------
def resblock_reference(x, params):
    def conv(inp, w, b):
        y = jax.lax.conv_general_dilated(
            inp, w, window_strides=(1, 1), padding="SAME",
            dimension_numbers=("NCHW", "OIHW", "NCHW"),
            precision=jax.lax.Precision.HIGHEST)
        return y + b[None, :, None, None]

    def bn(y, g, bt):
        mean = jnp.mean(y, axis=(0, 2, 3), keepdims=True)
        var = jnp.mean((y - mean) ** 2, axis=(0, 2, 3), keepdims=True)
        return ((y - mean) * jax.lax.rsqrt(var + _EPS)
                * g[None, :, None, None] + bt[None, :, None, None])

    out = jnp.maximum(bn(conv(x, params["w1"], params["b1"]),
                         params["g1"], params["bt1"]), 0.0)
    out = bn(conv(out, params["w2"], params["b2"]),
             params["g2"], params["bt2"])
    return jnp.maximum(out + x, 0.0)


if __name__ == "__main__":
    N, C, H, W = 2, 4, 16, 16   # residual add requires in_channels == out_channels
    key = jax.random.PRNGKey(0)
    kx, kw1, kb1, kw2, kb2, kg1, kbt1, kg2, kbt2 = jax.random.split(key, 9)

    x = jax.random.normal(kx, (N, C, H, W), jnp.float32)
    params = {
        "w1": 0.1 * jax.random.normal(kw1, (C, C, 3, 3), jnp.float32),
        "b1": 0.1 * jax.random.normal(kb1, (C,), jnp.float32),
        "w2": 0.1 * jax.random.normal(kw2, (C, C, 3, 3), jnp.float32),
        "b2": 0.1 * jax.random.normal(kb2, (C,), jnp.float32),
        "g1": 1.0 + 0.1 * jax.random.normal(kg1, (C,), jnp.float32),
        "bt1": 0.1 * jax.random.normal(kbt1, (C,), jnp.float32),
        "g2": 1.0 + 0.1 * jax.random.normal(kg2, (C,), jnp.float32),
        "bt2": 0.1 * jax.random.normal(kbt2, (C,), jnp.float32),
    }

    out = jax.block_until_ready(resblock_forward(x, params))
    ref = jax.block_until_ready(resblock_reference(x, params))

    assert out.shape == (N, C, H, W)
    # kernel uses bf16 MXU + bf16 intermediate storage; reference is f32 HIGHEST
    err = float(jnp.max(jnp.abs(out - ref)))
    assert err < 5e-2, f"max abs err {err}"

    print("KERNEL_OK")
</pallas_src>

<mosaic_0001>
module attributes {stable_mosaic.version = 11 : i64} {
  func.func @_conv1_kernel(%arg0: i32, %arg1: memref<1x288x8xf32, #tpu.memory_space<vmem>>, %arg2: memref<288x1xf32, #tpu.memory_space<vmem>>, %arg3: memref<9x8x128xbf16, #tpu.memory_space<vmem>>, %arg4: memref<1x288x128xbf16, #tpu.memory_space<vmem>>, %arg5: memref<1x2x8xf32, #tpu.memory_space<vmem>>, %arg6: memref<344x8xbf16, #tpu.memory_space<vmem>>, %arg7: memref<288x128xf32, #tpu.memory_space<vmem>>) attributes {dimension_semantics = [#tpu.dimension_semantics<parallel>], iteration_bounds = array<i64: 2>, scalar_prefetch = 0 : i64, scratch_operands = 2 : i64, tpu.core_type = #tpu.core_type<tc>, window_params = [{transform_indices = @transform_0, window_bounds = array<i64: 1, 288, 8>}, {pipeline_mode = #tpu.pipeline_mode<synchronous>, transform_indices = @transform_1, window_bounds = array<i64: 288, 1>}, {pipeline_mode = #tpu.pipeline_mode<synchronous>, transform_indices = @transform_2, window_bounds = array<i64: 9, 8, 128>}, {transform_indices = @transform_3, window_bounds = array<i64: 1, 288, 128>}, {transform_indices = @transform_4, window_bounds = array<i64: 1, 2, 8>}]} {
    %c0 = arith.constant 0 : index
    %c0_0 = arith.constant 0 : index
    %c0_1 = arith.constant 0 : index
    %0 = vector.load %arg1[%c0, %c0_0, %c0_1] : memref<1x288x8xf32, #tpu.memory_space<vmem>>, vector<1x288x8xf32>
    %1 = vector.shape_cast %0 : vector<1x288x8xf32> to vector<288x8xf32>
    %2 = arith.truncf %1 : vector<288x8xf32> to vector<288x8xbf16>
    %cst = arith.constant 0.000000e+00 : bf16
    %3 = vector.broadcast %cst : bf16 to vector<26x8xbf16>
    %c0_2 = arith.constant 0 : index
    %c0_3 = arith.constant 0 : index
    %4 = vector.load %arg6[%c0_2, %c0_3] : memref<344x8xbf16, #tpu.memory_space<vmem>>, vector<26x8xbf16>
    tpu.vector_store %arg6[%c0_2, %c0_3], %3 {strides = array<i32>} : memref<344x8xbf16, #tpu.memory_space<vmem>>, vector<26x8xbf16>,
    %c26 = arith.constant 26 : index
    %c0_4 = arith.constant 0 : index
    %5 = vector.load %arg6[%c26, %c0_4] : memref<344x8xbf16, #tpu.memory_space<vmem>>, vector<288x8xbf16>
    tpu.vector_store %arg6[%c26, %c0_4], %2 {strides = array<i32>} : memref<344x8xbf16, #tpu.memory_space<vmem>>, vector<288x8xbf16>,
    %cst_5 = arith.constant 0.000000e+00 : bf16
    %6 = vector.broadcast %cst_5 : bf16 to vector<30x8xbf16>
    %c314 = arith.constant 314 : index
    %c0_6 = arith.constant 0 : index
    %7 = vector.load %arg6[%c314, %c0_6] : memref<344x8xbf16, #tpu.memory_space<vmem>>, vector<30x8xbf16>
    tpu.vector_store %arg6[%c314, %c0_6], %6 {strides = array<i32>} : memref<344x8xbf16, #tpu.memory_space<vmem>>, vector<30x8xbf16>,
    %c7 = arith.constant 7 : index
    %c0_7 = arith.constant 0 : index
    %8 = vector.load %arg6[%c7, %c0_7] : memref<344x8xbf16, #tpu.memory_space<vmem>>, vector<288x8xbf16>
    %c0_8 = arith.constant 0 : index
    %c0_9 = arith.constant 0 : index
    %c0_10 = arith.constant 0 : index
    %9 = vector.load %arg3[%c0_8, %c0_9, %c0_10] : memref<9x8x128xbf16, #tpu.memory_space<vmem>>, vector<1x8x128xbf16>
    %10 = vector.shape_cast %9 : vector<1x8x128xbf16> to vector<8x128xbf16>
    %cst_11 = arith.constant dense<0.000000e+00> : vector<288x128xf32>
    %11 = tpu.matmul %8, %10, %cst_11 {dimension_numbers = #tpu.dot_dimension_numbers<[1], [0], [0], [1], [0, 0, 1, 1], [], []>} : vector<288x8xbf16>, vector<8x128xbf16>, vector<288x128xf32> -> vector<288x128xf32>
    %c0_12 = arith.constant 0 : index
    %c0_13 = arith.constant 0 : index
    %12 = vector.load %arg7[%c0_12, %c0_13] : memref<288x128xf32, #tpu.memory_space<vmem>>, vector<288x128xf32>
    tpu.vector_store %arg7[%c0_12, %c0_13], %11 {strides = array<i32>} : memref<288x128xf32, #tpu.memory_space<vmem>>, vector<288x128xf32>,
    %c8 = arith.constant 8 : index
    %c0_14 = arith.constant 0 : index
    %13 = vector.load %arg6[%c8, %c0_14] : memref<344x8xbf16, #tpu.memory_space<vmem>>, vector<288x8xbf16>
    %c1 = arith.constant 1 : index
    %c0_15 = arith.constant 0 : index
    %c0_16 = arith.constant 0 : index
    %14 = vector.load %arg3[%c1, %c0_15, %c0_16] : memref<9x8x128xbf16, #tpu.memory_space<vmem>>, vector<1x8x128xbf16>
    %15 = vector.shape_cast %14 : vector<1x8x128xbf16> to vector<8x128xbf16>
    %cst_17 = arith.constant dense<0.000000e+00> : vector<288x128xf32>
    %16 = tpu.matmul %13, %15, %cst_17 {dimension_numbers = #tpu.dot_dimension_numbers<[1], [0], [0], [1], [0, 0, 1, 1], [], []>} : vector<288x8xbf16>, vector<8x128xbf16>, vector<288x128xf32> -> vector<288x128xf32>
    %c0_18 = arith.constant 0 : index
    %c0_19 = arith.constant 0 : index
    %17 = vector.load %arg7[%c0_18, %c0_19] : memref<288x128xf32, #tpu.memory_space<vmem>>, vector<288x128xf32>
    %18 = arith.addf %17, %16 : vector<288x128xf32>
    %c0_20 = arith.constant 0 : index
    %c0_21 = arith.constant 0 : index
    %19 = vector.load %arg7[%c0_20, %c0_21] : memref<288x128xf32, #tpu.memory_space<vmem>>, vector<288x128xf32>
    tpu.vector_store %arg7[%c0_20, %c0_21], %18 {strides = array<i32>} : memref<288x128xf32, #tpu.memory_space<vmem>>, vector<288x128xf32>,
    %c9 = arith.constant 9 : index
    %c0_22 = arith.constant 0 : index
    %20 = vector.load %arg6[%c9, %c0_22] : memref<344x8xbf16, #tpu.memory_space<vmem>>, vector<288x8xbf16>
    %c2 = arith.constant 2 : index
    %c0_23 = arith.constant 0 : index
    %c0_24 = arith.constant 0 : index
    %21 = vector.load %arg3[%c2, %c0_23, %c0_24] : memref<9x8x128xbf16, #tpu.memory_space<vmem>>, vector<1x8x128xbf16>
    %22 = vector.shape_cast %21 : vector<1x8x128xbf16> to vector<8x128xbf16>
    %cst_25 = arith.constant dense<0.000000e+00> : vector<288x128xf32>
    %23 = tpu.matmul %20, %22, %cst_25 {dimension_numbers = #tpu.dot_dimension_numbers<[1], [0], [0], [1], [0, 0, 1, 1], [], []>} : vector<288x8xbf16>, vector<8x128xbf16>, vector<288x128xf32> -> vector<288x128xf32>
    %c0_26 = arith.constant 0 : index
    %c0_27 = arith.constant 0 : index
    %24 = vector.load %arg7[%c0_26, %c0_27] : memref<288x128xf32, #tpu.memory_space<vmem>>, vector<288x128xf32>
    %25 = arith.addf %24, %23 : vector<288x128xf32>
    %c0_28 = arith.constant 0 : index
    %c0_29 = arith.constant 0 : index
    %26 = vector.load %arg7[%c0_28, %c0_29] : memref<288x128xf32, #tpu.memory_space<vmem>>, vector<288x128xf32>
    tpu.vector_store %arg7[%c0_28, %c0_29], %25 {strides = array<i32>} : memref<288x128xf32, #tpu.memory_space<vmem>>, vector<288x128xf32>,
    %c25 = arith.constant 25 : index
    %c0_30 = arith.constant 0 : index
    %27 = vector.load %arg6[%c25, %c0_30] : memref<344x8xbf16, #tpu.memory_space<vmem>>, vector<288x8xbf16>
    %c3 = arith.constant 3 : index
    %c0_31 = arith.constant 0 : index
    %c0_32 = arith.constant 0 : index
    %28 = vector.load %arg3[%c3, %c0_31, %c0_32] : memref<9x8x128xbf16, #tpu.memory_space<vmem>>, vector<1x8x128xbf16>
    %29 = vector.shape_cast %28 : vector<1x8x128xbf16> to vector<8x128xbf16>
    %cst_33 = arith.constant dense<0.000000e+00> : vector<288x128xf32>
    %30 = tpu.matmul %27, %29, %cst_33 {dimension_numbers = #tpu.dot_dimension_numbers<[1], [0], [0], [1], [0, 0, 1, 1], [], []>} : vector<288x8xbf16>, vector<8x128xbf16>, vector<288x128xf32> -> vector<288x128xf32>
    %c0_34 = arith.constant 0 : index
    %c0_35 = arith.constant 0 : index
    %31 = vector.load %arg7[%c0_34, %c0_35] : memref<288x128xf32, #tpu.memory_space<vmem>>, vector<288x128xf32>
    %32 = arith.addf %31, %30 : vector<288x128xf32>
    %c0_36 = arith.constant 0 : index
    %c0_37 = arith.constant 0 : index
    %33 = vector.load %arg7[%c0_36, %c0_37] : memref<288x128xf32, #tpu.memory_space<vmem>>, vector<288x128xf32>
    tpu.vector_store %arg7[%c0_36, %c0_37], %32 {strides = array<i32>} : memref<288x128xf32, #tpu.memory_space<vmem>>, vector<288x128xf32>,
    %c26_38 = arith.constant 26 : index
    %c0_39 = arith.constant 0 : index
    %34 = vector.load %arg6[%c26_38, %c0_39] : memref<344x8xbf16, #tpu.memory_space<vmem>>, vector<288x8xbf16>
    %c4 = arith.constant 4 : index
    %c0_40 = arith.constant 0 : index
    %c0_41 = arith.constant 0 : index
    %35 = vector.load %arg3[%c4, %c0_40, %c0_41] : memref<9x8x128xbf16, #tpu.memory_space<vmem>>, vector<1x8x128xbf16>
    %36 = vector.shape_cast %35 : vector<1x8x128xbf16> to vector<8x128xbf16>
    %cst_42 = arith.constant dense<0.000000e+00> : vector<288x128xf32>
    %37 = tpu.matmul %34, %36, %cst_42 {dimension_numbers = #tpu.dot_dimension_numbers<[1], [0], [0], [1], [0, 0, 1, 1], [], []>} : vector<288x8xbf16>, vector<8x128xbf16>, vector<288x128xf32> -> vector<288x128xf32>
    %c0_43 = arith.constant 0 : index
    %c0_44 = arith.constant 0 : index
    %38 = vector.load %arg7[%c0_43, %c0_44] : memref<288x128xf32, #tpu.memory_space<vmem>>, vector<288x128xf32>
    %39 = arith.addf %38, %37 : vector<288x128xf32>
    %c0_45 = arith.constant 0 : index
    %c0_46 = arith.constant 0 : index
    %40 = vector.load %arg7[%c0_45, %c0_46] : memref<288x128xf32, #tpu.memory_space<vmem>>, vector<288x128xf32>
    tpu.vector_store %arg7[%c0_45, %c0_46], %39 {strides = array<i32>} : memref<288x128xf32, #tpu.memory_space<vmem>>, vector<288x128xf32>,
    %c27 = arith.constant 27 : index
    %c0_47 = arith.constant 0 : index
    %41 = vector.load %arg6[%c27, %c0_47] : memref<344x8xbf16, #tpu.memory_space<vmem>>, vector<288x8xbf16>
    %c5 = arith.constant 5 : index
    %c0_48 = arith.constant 0 : index
    %c0_49 = arith.constant 0 : index
    %42 = vector.load %arg3[%c5, %c0_48, %c0_49] : memref<9x8x128xbf16, #tpu.memory_space<vmem>>, vector<1x8x128xbf16>
    %43 = vector.shape_cast %42 : vector<1x8x128xbf16> to vector<8x128xbf16>
    %cst_50 = arith.constant dense<0.000000e+00> : vector<288x128xf32>
    %44 = tpu.matmul %41, %43, %cst_50 {dimension_numbers = #tpu.dot_dimension_numbers<[1], [0], [0], [1], [0, 0, 1, 1], [], []>} : vector<288x8xbf16>, vector<8x128xbf16>, vector<288x128xf32> -> vector<288x128xf32>
    %c0_51 = arith.constant 0 : index
    %c0_52 = arith.constant 0 : index
    %45 = vector.load %arg7[%c0_51, %c0_52] : memref<288x128xf32, #tpu.memory_space<vmem>>, vector<288x128xf32>
    %46 = arith.addf %45, %44 : vector<288x128xf32>
    %c0_53 = arith.constant 0 : index
    %c0_54 = arith.constant 0 : index
    %47 = vector.load %arg7[%c0_53, %c0_54] : memref<288x128xf32, #tpu.memory_space<vmem>>, vector<288x128xf32>
    tpu.vector_store %arg7[%c0_53, %c0_54], %46 {strides = array<i32>} : memref<288x128xf32, #tpu.memory_space<vmem>>, vector<288x128xf32>,
    %c43 = arith.constant 43 : index
    %c0_55 = arith.constant 0 : index
    %48 = vector.load %arg6[%c43, %c0_55] : memref<344x8xbf16, #tpu.memory_space<vmem>>, vector<288x8xbf16>
    %c6 = arith.constant 6 : index
    %c0_56 = arith.constant 0 : index
    %c0_57 = arith.constant 0 : index
    %49 = vector.load %arg3[%c6, %c0_56, %c0_57] : memref<9x8x128xbf16, #tpu.memory_space<vmem>>, vector<1x8x128xbf16>
    %50 = vector.shape_cast %49 : vector<1x8x128xbf16> to vector<8x128xbf16>
    %cst_58 = arith.constant dense<0.000000e+00> : vector<288x128xf32>
    %51 = tpu.matmul %48, %50, %cst_58 {dimension_numbers = #tpu.dot_dimension_numbers<[1], [0], [0], [1], [0, 0, 1, 1], [], []>} : vector<288x8xbf16>, vector<8x128xbf16>, vector<288x128xf32> -> vector<288x128xf32>
    %c0_59 = arith.constant 0 : index
    %c0_60 = arith.constant 0 : index
    %52 = vector.load %arg7[%c0_59, %c0_60] : memref<288x128xf32, #tpu.memory_space<vmem>>, vector<288x128xf32>
    %53 = arith.addf %52, %51 : vector<288x128xf32>
    %c0_61 = arith.constant 0 : index
    %c0_62 = arith.constant 0 : index
    %54 = vector.load %arg7[%c0_61, %c0_62] : memref<288x128xf32, #tpu.memory_space<vmem>>, vector<288x128xf32>
    tpu.vector_store %arg7[%c0_61, %c0_62], %53 {strides = array<i32>} : memref<288x128xf32, #tpu.memory_space<vmem>>, vector<288x128xf32>,
    %c44 = arith.constant 44 : index
    %c0_63 = arith.constant 0 : index
    %55 = vector.load %arg6[%c44, %c0_63] : memref<344x8xbf16, #tpu.memory_space<vmem>>, vector<288x8xbf16>
    %c7_64 = arith.constant 7 : index
    %c0_65 = arith.constant 0 : index
    %c0_66 = arith.constant 0 : index
    %56 = vector.load %arg3[%c7_64, %c0_65, %c0_66] : memref<9x8x128xbf16, #tpu.memory_space<vmem>>, vector<1x8x128xbf16>
    %57 = vector.shape_cast %56 : vector<1x8x128xbf16> to vector<8x128xbf16>
    %cst_67 = arith.constant dense<0.000000e+00> : vector<288x128xf32>
    %58 = tpu.matmul %55, %57, %cst_67 {dimension_numbers = #tpu.dot_dimension_numbers<[1], [0], [0], [1], [0, 0, 1, 1], [], []>} : vector<288x8xbf16>, vector<8x128xbf16>, vector<288x128xf32> -> vector<288x128xf32>
    %c0_68 = arith.constant 0 : index
    %c0_69 = arith.constant 0 : index
    %59 = vector.load %arg7[%c0_68, %c0_69] : memref<288x128xf32, #tpu.memory_space<vmem>>, vector<288x128xf32>
    %60 = arith.addf %59, %58 : vector<288x128xf32>
    %c0_70 = arith.constant 0 : index
    %c0_71 = arith.constant 0 : index
    %61 = vector.load %arg7[%c0_70, %c0_71] : memref<288x128xf32, #tpu.memory_space<vmem>>, vector<288x128xf32>
    tpu.vector_store %arg7[%c0_70, %c0_71], %60 {strides = array<i32>} : memref<288x128xf32, #tpu.memory_space<vmem>>, vector<288x128xf32>,
    %c45 = arith.constant 45 : index
    %c0_72 = arith.constant 0 : index
    %62 = vector.load %arg6[%c45, %c0_72] : memref<344x8xbf16, #tpu.memory_space<vmem>>, vector<288x8xbf16>
    %c8_73 = arith.constant 8 : index
    %c0_74 = arith.constant 0 : index
    %c0_75 = arith.constant 0 : index
    %63 = vector.load %arg3[%c8_73, %c0_74, %c0_75] : memref<9x8x128xbf16, #tpu.memory_space<vmem>>, vector<1x8x128xbf16>
    %64 = vector.shape_cast %63 : vector<1x8x128xbf16> to vector<8x128xbf16>
    %cst_76 = arith.constant dense<0.000000e+00> : vector<288x128xf32>
    %65 = tpu.matmul %62, %64, %cst_76 {dimension_numbers = #tpu.dot_dimension_numbers<[1], [0], [0], [1], [0, 0, 1, 1], [], []>} : vector<288x8xbf16>, vector<8x128xbf16>, vector<288x128xf32> -> vector<288x128xf32>
    %c0_77 = arith.constant 0 : index
    %c0_78 = arith.constant 0 : index
    %66 = vector.load %arg7[%c0_77, %c0_78] : memref<288x128xf32, #tpu.memory_space<vmem>>, vector<288x128xf32>
    %67 = arith.addf %66, %65 : vector<288x128xf32>
    %c0_79 = arith.constant 0 : index
    %c0_80 = arith.constant 0 : index
    %68 = vector.load %arg7[%c0_79, %c0_80] : memref<288x128xf32, #tpu.memory_space<vmem>>, vector<288x128xf32>
    tpu.vector_store %arg7[%c0_79, %c0_80], %67 {strides = array<i32>} : memref<288x128xf32, #tpu.memory_space<vmem>>, vector<288x128xf32>,
    %c0_81 = arith.constant 0 : index
    %c0_82 = arith.constant 0 : index
    %69 = vector.load %arg7[%c0_81, %c0_82] : memref<288x128xf32, #tpu.memory_space<vmem>>, vector<288x128xf32>
    %c0_83 = arith.constant 0 : index
    %c0_84 = arith.constant 0 : index
    %70 = vector.load %arg2[%c0_83, %c0_84] : memref<288x1xf32, #tpu.memory_space<vmem>>, vector<288x1xf32>
    %71 = vector.broadcast %70 : vector<288x1xf32> to vector<288x128xf32>
    %72 = arith.mulf %69, %71 : vector<288x128xf32>
    %73 = vector.extract_strided_slice %72 {offsets = [0, 0], sizes = [288, 8], strides = [1, 1]} : vector<288x128xf32> to vector<288x8xf32>
    %cst_85 = arith.constant dense<0.000000e+00> : vector<8xf32>
    %74 = vector.multi_reduction <add>, %73, %cst_85 [0] : vector<288x8xf32> to vector<8xf32>
    %75 = vector.shape_cast %74 : vector<8xf32> to vector<1x8xf32>
    %c0_86 = arith.constant 0 : index
    %c0_87 = arith.constant 0 : index
    %c0_88 = arith.constant 0 : index
    %76 = vector.load %arg5[%c0_86, %c0_87, %c0_88] : memref<1x2x8xf32, #tpu.memory_space<vmem>>, vector<1x1x8xf32>
    %77 = vector.shape_cast %76 : vector<1x1x8xf32> to vector<1x8xf32>
    %78 = vector.shape_cast %75 : vector<1x8xf32> to vector<1x1x8xf32>
    tpu.vector_store %arg5[%c0_86, %c0_87, %c0_88], %78 {strides = array<i32>} : memref<1x2x8xf32, #tpu.memory_space<vmem>>, vector<1x1x8xf32>,
    %79 = arith.mulf %73, %73 : vector<288x8xf32>
    %cst_89 = arith.constant dense<0.000000e+00> : vector<8xf32>
    %80 = vector.multi_reduction <add>, %79, %cst_89 [0] : vector<288x8xf32> to vector<8xf32>
    %81 = vector.shape_cast %80 : vector<8xf32> to vector<1x8xf32>
    %c0_90 = arith.constant 0 : index
    %c1_91 = arith.constant 1 : index
    %c0_92 = arith.constant 0 : index
    %82 = vector.load %arg5[%c0_90, %c1_91, %c0_92] : memref<1x2x8xf32, #tpu.memory_space<vmem>>, vector<1x1x8xf32>
    %83 = vector.shape_cast %82 : vector<1x1x8xf32> to vector<1x8xf32>
    %84 = vector.shape_cast %81 : vector<1x8xf32> to vector<1x1x8xf32>
    tpu.vector_store %arg5[%c0_90, %c1_91, %c0_92], %84 {strides = array<i32>} : memref<1x2x8xf32, #tpu.memory_space<vmem>>, vector<1x1x8xf32>,
    %85 = arith.truncf %72 : vector<288x128xf32> to vector<288x128xbf16>
    %c0_93 = arith.constant 0 : index
    %c0_94 = arith.constant 0 : index
    %c0_95 = arith.constant 0 : index
    %86 = vector.load %arg4[%c0_93, %c0_94, %c0_95] : memref<1x288x128xbf16, #tpu.memory_space<vmem>>, vector<1x288x128xbf16>
    %87 = vector.shape_cast %86 : vector<1x288x128xbf16> to vector<288x128xbf16>
    %88 = vector.shape_cast %85 : vector<288x128xbf16> to vector<1x288x128xbf16>
    tpu.vector_store %arg4[%c0_93, %c0_94, %c0_95], %88 {strides = array<i32>} : memref<1x288x128xbf16, #tpu.memory_space<vmem>>, vector<1x288x128xbf16>,
    return
  }
  func.func @transform_0(%arg0: i32) -> (i32, i32, i32) {
    %c0_i32 = arith.constant 0 : i32
    %c0_i32_0 = arith.constant 0 : i32
    %c0_i32_1 = arith.constant 0 : i32
    return %arg0, %c0_i32, %c0_i32_0 : i32, i32, i32
  }
  func.func @transform_1(%arg0: i32) -> (i32, i32) {
    %c0_i32 = arith.constant 0 : i32
    %c0_i32_0 = arith.constant 0 : i32
    %c0_i32_1 = arith.constant 0 : i32
    return %c0_i32, %c0_i32_0 : i32, i32
  }
  func.func @transform_2(%arg0: i32) -> (i32, i32, i32) {
    %c0_i32 = arith.constant 0 : i32
    %c0_i32_0 = arith.constant 0 : i32
    %c0_i32_1 = arith.constant 0 : i32
    %c0_i32_2 = arith.constant 0 : i32
    return %c0_i32, %c0_i32_0, %c0_i32_1 : i32, i32, i32
  }
  func.func @transform_3(%arg0: i32) -> (i32, i32, i32) {
    %c0_i32 = arith.constant 0 : i32
    %c0_i32_0 = arith.constant 0 : i32
    %c0_i32_1 = arith.constant 0 : i32
    return %arg0, %c0_i32, %c0_i32_0 : i32, i32, i32
  }
  func.func @transform_4(%arg0: i32) -> (i32, i32, i32) {
    %c0_i32 = arith.constant 0 : i32
    %c0_i32_0 = arith.constant 0 : i32
    %c0_i32_1 = arith.constant 0 : i32
    return %arg0, %c0_i32, %c0_i32_0 : i32, i32, i32
  }
}

module attributes {stable_mosaic.version = 11 : i64} {
  func.func @_bn_relu_conv2_kernel(%arg0: i32, %arg1: memref<1x288x128xbf16, #tpu.memory_space<vmem>>, %arg2: memref<288x1xf32, #tpu.memory_space<vmem>>, %arg3: memref<1x8xf32, #tpu.memory_space<vmem>>, %arg4: memref<1x8xf32, #tpu.memory_space<vmem>>, %arg5: memref<9x8x128xbf16, #tpu.memory_space<vmem>>, %arg6: memref<1x288x128xbf16, #tpu.memory_space<vmem>>, %arg7: memref<1x2x8xf32, #tpu.memory_space<vmem>>, %arg8: memref<344x8xbf16, #tpu.memory_space<vmem>>, %arg9: memref<288x128xf32, #tpu.memory_space<vmem>>) attributes {dimension_semantics = [#tpu.dimension_semantics<parallel>], iteration_bounds = array<i64: 2>, scalar_prefetch = 0 : i64, scratch_operands = 2 : i64, tpu.core_type = #tpu.core_type<tc>, window_params = [{transform_indices = @transform_0, window_bounds = array<i64: 1, 288, 128>}, {pipeline_mode = #tpu.pipeline_mode<synchronous>, transform_indices = @transform_1, window_bounds = array<i64: 288, 1>}, {pipeline_mode = #tpu.pipeline_mode<synchronous>, transform_indices = @transform_2, window_bounds = array<i64: 1, 8>}, {pipeline_mode = #tpu.pipeline_mode<synchronous>, transform_indices = @transform_3, window_bounds = array<i64: 1, 8>}, {pipeline_mode = #tpu.pipeline_mode<synchronous>, transform_indices = @transform_4, window_bounds = array<i64: 9, 8, 128>}, {transform_indices = @transform_5, window_bounds = array<i64: 1, 288, 128>}, {transform_indices = @transform_6, window_bounds = array<i64: 1, 2, 8>}]} {
    %c0 = arith.constant 0 : index
    %c0_0 = arith.constant 0 : index
    %c0_1 = arith.constant 0 : index
    %0 = vector.load %arg1[%c0, %c0_0, %c0_1] : memref<1x288x128xbf16, #tpu.memory_space<vmem>>, vector<1x288x8xbf16>
    %1 = vector.shape_cast %0 : vector<1x288x8xbf16> to vector<288x8xbf16>
    %2 = arith.extf %1 : vector<288x8xbf16> to vector<288x8xf32>
    %c0_2 = arith.constant 0 : index
    %c0_3 = arith.constant 0 : index
    %3 = vector.load %arg3[%c0_2, %c0_3] : memref<1x8xf32, #tpu.memory_space<vmem>>, vector<1x8xf32>
    %4 = vector.broadcast %3 : vector<1x8xf32> to vector<288x8xf32>
    %5 = arith.mulf %2, %4 : vector<288x8xf32>
    %c0_4 = arith.constant 0 : index
    %c0_5 = arith.constant 0 : index
    %6 = vector.load %arg4[%c0_4, %c0_5] : memref<1x8xf32, #tpu.memory_space<vmem>>, vector<1x8xf32>
    %7 = vector.broadcast %6 : vector<1x8xf32> to vector<288x8xf32>
    %8 = arith.addf %5, %7 : vector<288x8xf32>
    %cst = arith.constant 0.000000e+00 : f32
    %9 = vector.broadcast %cst : f32 to vector<288x8xf32>
    %10 = arith.maximumf %8, %9 : vector<288x8xf32>
    %c0_6 = arith.constant 0 : index
    %c0_7 = arith.constant 0 : index
    %11 = vector.load %arg2[%c0_6, %c0_7] : memref<288x1xf32, #tpu.memory_space<vmem>>, vector<288x1xf32>
    %12 = vector.broadcast %11 : vector<288x1xf32> to vector<288x8xf32>
    %13 = arith.mulf %10, %12 : vector<288x8xf32>
    %14 = arith.truncf %13 : vector<288x8xf32> to vector<288x8xbf16>
    %cst_8 = arith.constant 0.000000e+00 : bf16
    %15 = vector.broadcast %cst_8 : bf16 to vector<26x8xbf16>
    %c0_9 = arith.constant 0 : index
    %c0_10 = arith.constant 0 : index
    %16 = vector.load %arg8[%c0_9, %c0_10] : memref<344x8xbf16, #tpu.memory_space<vmem>>, vector<26x8xbf16>
    tpu.vector_store %arg8[%c0_9, %c0_10], %15 {strides = array<i32>} : memref<344x8xbf16, #tpu.memory_space<vmem>>, vector<26x8xbf16>,
    %c26 = arith.constant 26 : index
    %c0_11 = arith.constant 0 : index
    %17 = vector.load %arg8[%c26, %c0_11] : memref<344x8xbf16, #tpu.memory_space<vmem>>, vector<288x8xbf16>
    tpu.vector_store %arg8[%c26, %c0_11], %14 {strides = array<i32>} : memref<344x8xbf16, #tpu.memory_space<vmem>>, vector<288x8xbf16>,
    %cst_12 = arith.constant 0.000000e+00 : bf16
    %18 = vector.broadcast %cst_12 : bf16 to vector<30x8xbf16>
    %c314 = arith.constant 314 : index
    %c0_13 = arith.constant 0 : index
    %19 = vector.load %arg8[%c314, %c0_13] : memref<344x8xbf16, #tpu.memory_space<vmem>>, vector<30x8xbf16>
    tpu.vector_store %arg8[%c314, %c0_13], %18 {strides = array<i32>} : memref<344x8xbf16, #tpu.memory_space<vmem>>, vector<30x8xbf16>,
    %c7 = arith.constant 7 : index
    %c0_14 = arith.constant 0 : index
    %20 = vector.load %arg8[%c7, %c0_14] : memref<344x8xbf16, #tpu.memory_space<vmem>>, vector<288x8xbf16>
    %c0_15 = arith.constant 0 : index
    %c0_16 = arith.constant 0 : index
    %c0_17 = arith.constant 0 : index
    %21 = vector.load %arg5[%c0_15, %c0_16, %c0_17] : memref<9x8x128xbf16, #tpu.memory_space<vmem>>, vector<1x8x128xbf16>
    %22 = vector.shape_cast %21 : vector<1x8x128xbf16> to vector<8x128xbf16>
    %cst_18 = arith.constant dense<0.000000e+00> : vector<288x128xf32>
    %23 = tpu.matmul %20, %22, %cst_18 {dimension_numbers = #tpu.dot_dimension_numbers<[1], [0], [0], [1], [0, 0, 1, 1], [], []>} : vector<288x8xbf16>, vector<8x128xbf16>, vector<288x128xf32> -> vector<288x128xf32>
    %c0_19 = arith.constant 0 : index
    %c0_20 = arith.constant 0 : index
    %24 = vector.load %arg9[%c0_19, %c0_20] : memref<288x128xf32, #tpu.memory_space<vmem>>, vector<288x128xf32>
    tpu.vector_store %arg9[%c0_19, %c0_20], %23 {strides = array<i32>} : memref<288x128xf32, #tpu.memory_space<vmem>>, vector<288x128xf32>,
    %c8 = arith.constant 8 : index
    %c0_21 = arith.constant 0 : index
    %25 = vector.load %arg8[%c8, %c0_21] : memref<344x8xbf16, #tpu.memory_space<vmem>>, vector<288x8xbf16>
    %c1 = arith.constant 1 : index
    %c0_22 = arith.constant 0 : index
    %c0_23 = arith.constant 0 : index
    %26 = vector.load %arg5[%c1, %c0_22, %c0_23] : memref<9x8x128xbf16, #tpu.memory_space<vmem>>, vector<1x8x128xbf16>
    %27 = vector.shape_cast %26 : vector<1x8x128xbf16> to vector<8x128xbf16>
    %cst_24 = arith.constant dense<0.000000e+00> : vector<288x128xf32>
    %28 = tpu.matmul %25, %27, %cst_24 {dimension_numbers = #tpu.dot_dimension_numbers<[1], [0], [0], [1], [0, 0, 1, 1], [], []>} : vector<288x8xbf16>, vector<8x128xbf16>, vector<288x128xf32> -> vector<288x128xf32>
    %c0_25 = arith.constant 0 : index
    %c0_26 = arith.constant 0 : index
    %29 = vector.load %arg9[%c0_25, %c0_26] : memref<288x128xf32, #tpu.memory_space<vmem>>, vector<288x128xf32>
    %30 = arith.addf %29, %28 : vector<288x128xf32>
    %c0_27 = arith.constant 0 : index
    %c0_28 = arith.constant 0 : index
    %31 = vector.load %arg9[%c0_27, %c0_28] : memref<288x128xf32, #tpu.memory_space<vmem>>, vector<288x128xf32>
    tpu.vector_store %arg9[%c0_27, %c0_28], %30 {strides = array<i32>} : memref<288x128xf32, #tpu.memory_space<vmem>>, vector<288x128xf32>,
    %c9 = arith.constant 9 : index
    %c0_29 = arith.constant 0 : index
    %32 = vector.load %arg8[%c9, %c0_29] : memref<344x8xbf16, #tpu.memory_space<vmem>>, vector<288x8xbf16>
    %c2 = arith.constant 2 : index
    %c0_30 = arith.constant 0 : index
    %c0_31 = arith.constant 0 : index
    %33 = vector.load %arg5[%c2, %c0_30, %c0_31] : memref<9x8x128xbf16, #tpu.memory_space<vmem>>, vector<1x8x128xbf16>
    %34 = vector.shape_cast %33 : vector<1x8x128xbf16> to vector<8x128xbf16>
    %cst_32 = arith.constant dense<0.000000e+00> : vector<288x128xf32>
    %35 = tpu.matmul %32, %34, %cst_32 {dimension_numbers = #tpu.dot_dimension_numbers<[1], [0], [0], [1], [0, 0, 1, 1], [], []>} : vector<288x8xbf16>, vector<8x128xbf16>, vector<288x128xf32> -> vector<288x128xf32>
    %c0_33 = arith.constant 0 : index
    %c0_34 = arith.constant 0 : index
    %36 = vector.load %arg9[%c0_33, %c0_34] : memref<288x128xf32, #tpu.memory_space<vmem>>, vector<288x128xf32>
    %37 = arith.addf %36, %35 : vector<288x128xf32>
    %c0_35 = arith.constant 0 : index
    %c0_36 = arith.constant 0 : index
    %38 = vector.load %arg9[%c0_35, %c0_36] : memref<288x128xf32, #tpu.memory_space<vmem>>, vector<288x128xf32>
    tpu.vector_store %arg9[%c0_35, %c0_36], %37 {strides = array<i32>} : memref<288x128xf32, #tpu.memory_space<vmem>>, vector<288x128xf32>,
    %c25 = arith.constant 25 : index
    %c0_37 = arith.constant 0 : index
    %39 = vector.load %arg8[%c25, %c0_37] : memref<344x8xbf16, #tpu.memory_space<vmem>>, vector<288x8xbf16>
    %c3 = arith.constant 3 : index
    %c0_38 = arith.constant 0 : index
    %c0_39 = arith.constant 0 : index
    %40 = vector.load %arg5[%c3, %c0_38, %c0_39] : memref<9x8x128xbf16, #tpu.memory_space<vmem>>, vector<1x8x128xbf16>
    %41 = vector.shape_cast %40 : vector<1x8x128xbf16> to vector<8x128xbf16>
    %cst_40 = arith.constant dense<0.000000e+00> : vector<288x128xf32>
    %42 = tpu.matmul %39, %41, %cst_40 {dimension_numbers = #tpu.dot_dimension_numbers<[1], [0], [0], [1], [0, 0, 1, 1], [], []>} : vector<288x8xbf16>, vector<8x128xbf16>, vector<288x128xf32> -> vector<288x128xf32>
    %c0_41 = arith.constant 0 : index
    %c0_42 = arith.constant 0 : index
    %43 = vector.load %arg9[%c0_41, %c0_42] : memref<288x128xf32, #tpu.memory_space<vmem>>, vector<288x128xf32>
    %44 = arith.addf %43, %42 : vector<288x128xf32>
    %c0_43 = arith.constant 0 : index
    %c0_44 = arith.constant 0 : index
    %45 = vector.load %arg9[%c0_43, %c0_44] : memref<288x128xf32, #tpu.memory_space<vmem>>, vector<288x128xf32>
    tpu.vector_store %arg9[%c0_43, %c0_44], %44 {strides = array<i32>} : memref<288x128xf32, #tpu.memory_space<vmem>>, vector<288x128xf32>,
    %c26_45 = arith.constant 26 : index
    %c0_46 = arith.constant 0 : index
    %46 = vector.load %arg8[%c26_45, %c0_46] : memref<344x8xbf16, #tpu.memory_space<vmem>>, vector<288x8xbf16>
    %c4 = arith.constant 4 : index
    %c0_47 = arith.constant 0 : index
    %c0_48 = arith.constant 0 : index
    %47 = vector.load %arg5[%c4, %c0_47, %c0_48] : memref<9x8x128xbf16, #tpu.memory_space<vmem>>, vector<1x8x128xbf16>
    %48 = vector.shape_cast %47 : vector<1x8x128xbf16> to vector<8x128xbf16>
    %cst_49 = arith.constant dense<0.000000e+00> : vector<288x128xf32>
    %49 = tpu.matmul %46, %48, %cst_49 {dimension_numbers = #tpu.dot_dimension_numbers<[1], [0], [0], [1], [0, 0, 1, 1], [], []>} : vector<288x8xbf16>, vector<8x128xbf16>, vector<288x128xf32> -> vector<288x128xf32>
    %c0_50 = arith.constant 0 : index
    %c0_51 = arith.constant 0 : index
    %50 = vector.load %arg9[%c0_50, %c0_51] : memref<288x128xf32, #tpu.memory_space<vmem>>, vector<288x128xf32>
    %51 = arith.addf %50, %49 : vector<288x128xf32>
    %c0_52 = arith.constant 0 : index
    %c0_53 = arith.constant 0 : index
    %52 = vector.load %arg9[%c0_52, %c0_53] : memref<288x128xf32, #tpu.memory_space<vmem>>, vector<288x128xf32>
    tpu.vector_store %arg9[%c0_52, %c0_53], %51 {strides = array<i32>} : memref<288x128xf32, #tpu.memory_space<vmem>>, vector<288x128xf32>,
    %c27 = arith.constant 27 : index
    %c0_54 = arith.constant 0 : index
    %53 = vector.load %arg8[%c27, %c0_54] : memref<344x8xbf16, #tpu.memory_space<vmem>>, vector<288x8xbf16>
    %c5 = arith.constant 5 : index
    %c0_55 = arith.constant 0 : index
    %c0_56 = arith.constant 0 : index
    %54 = vector.load %arg5[%c5, %c0_55, %c0_56] : memref<9x8x128xbf16, #tpu.memory_space<vmem>>, vector<1x8x128xbf16>
    %55 = vector.shape_cast %54 : vector<1x8x128xbf16> to vector<8x128xbf16>
    %cst_57 = arith.constant dense<0.000000e+00> : vector<288x128xf32>
    %56 = tpu.matmul %53, %55, %cst_57 {dimension_numbers = #tpu.dot_dimension_numbers<[1], [0], [0], [1], [0, 0, 1, 1], [], []>} : vector<288x8xbf16>, vector<8x128xbf16>, vector<288x128xf32> -> vector<288x128xf32>
    %c0_58 = arith.constant 0 : index
    %c0_59 = arith.constant 0 : index
    %57 = vector.load %arg9[%c0_58, %c0_59] : memref<288x128xf32, #tpu.memory_space<vmem>>, vector<288x128xf32>
    %58 = arith.addf %57, %56 : vector<288x128xf32>
    %c0_60 = arith.constant 0 : index
    %c0_61 = arith.constant 0 : index
    %59 = vector.load %arg9[%c0_60, %c0_61] : memref<288x128xf32, #tpu.memory_space<vmem>>, vector<288x128xf32>
    tpu.vector_store %arg9[%c0_60, %c0_61], %58 {strides = array<i32>} : memref<288x128xf32, #tpu.memory_space<vmem>>, vector<288x128xf32>,
    %c43 = arith.constant 43 : index
    %c0_62 = arith.constant 0 : index
    %60 = vector.load %arg8[%c43, %c0_62] : memref<344x8xbf16, #tpu.memory_space<vmem>>, vector<288x8xbf16>
    %c6 = arith.constant 6 : index
    %c0_63 = arith.constant 0 : index
    %c0_64 = arith.constant 0 : index
    %61 = vector.load %arg5[%c6, %c0_63, %c0_64] : memref<9x8x128xbf16, #tpu.memory_space<vmem>>, vector<1x8x128xbf16>
    %62 = vector.shape_cast %61 : vector<1x8x128xbf16> to vector<8x128xbf16>
    %cst_65 = arith.constant dense<0.000000e+00> : vector<288x128xf32>
    %63 = tpu.matmul %60, %62, %cst_65 {dimension_numbers = #tpu.dot_dimension_numbers<[1], [0], [0], [1], [0, 0, 1, 1], [], []>} : vector<288x8xbf16>, vector<8x128xbf16>, vector<288x128xf32> -> vector<288x128xf32>
    %c0_66 = arith.constant 0 : index
    %c0_67 = arith.constant 0 : index
    %64 = vector.load %arg9[%c0_66, %c0_67] : memref<288x128xf32, #tpu.memory_space<vmem>>, vector<288x128xf32>
    %65 = arith.addf %64, %63 : vector<288x128xf32>
    %c0_68 = arith.constant 0 : index
    %c0_69 = arith.constant 0 : index
    %66 = vector.load %arg9[%c0_68, %c0_69] : memref<288x128xf32, #tpu.memory_space<vmem>>, vector<288x128xf32>
    tpu.vector_store %arg9[%c0_68, %c0_69], %65 {strides = array<i32>} : memref<288x128xf32, #tpu.memory_space<vmem>>, vector<288x128xf32>,
    %c44 = arith.constant 44 : index
    %c0_70 = arith.constant 0 : index
    %67 = vector.load %arg8[%c44, %c0_70] : memref<344x8xbf16, #tpu.memory_space<vmem>>, vector<288x8xbf16>
    %c7_71 = arith.constant 7 : index
    %c0_72 = arith.constant 0 : index
    %c0_73 = arith.constant 0 : index
    %68 = vector.load %arg5[%c7_71, %c0_72, %c0_73] : memref<9x8x128xbf16, #tpu.memory_space<vmem>>, vector<1x8x128xbf16>
    %69 = vector.shape_cast %68 : vector<1x8x128xbf16> to vector<8x128xbf16>
    %cst_74 = arith.constant dense<0.000000e+00> : vector<288x128xf32>
    %70 = tpu.matmul %67, %69, %cst_74 {dimension_numbers = #tpu.dot_dimension_numbers<[1], [0], [0], [1], [0, 0, 1, 1], [], []>} : vector<288x8xbf16>, vector<8x128xbf16>, vector<288x128xf32> -> vector<288x128xf32>
    %c0_75 = arith.constant 0 : index
    %c0_76 = arith.constant 0 : index
    %71 = vector.load %arg9[%c0_75, %c0_76] : memref<288x128xf32, #tpu.memory_space<vmem>>, vector<288x128xf32>
    %72 = arith.addf %71, %70 : vector<288x128xf32>
    %c0_77 = arith.constant 0 : index
    %c0_78 = arith.constant 0 : index
    %73 = vector.load %arg9[%c0_77, %c0_78] : memref<288x128xf32, #tpu.memory_space<vmem>>, vector<288x128xf32>
    tpu.vector_store %arg9[%c0_77, %c0_78], %72 {strides = array<i32>} : memref<288x128xf32, #tpu.memory_space<vmem>>, vector<288x128xf32>,
    %c45 = arith.constant 45 : index
    %c0_79 = arith.constant 0 : index
    %74 = vector.load %arg8[%c45, %c0_79] : memref<344x8xbf16, #tpu.memory_space<vmem>>, vector<288x8xbf16>
    %c8_80 = arith.constant 8 : index
    %c0_81 = arith.constant 0 : index
    %c0_82 = arith.constant 0 : index
    %75 = vector.load %arg5[%c8_80, %c0_81, %c0_82] : memref<9x8x128xbf16, #tpu.memory_space<vmem>>, vector<1x8x128xbf16>
    %76 = vector.shape_cast %75 : vector<1x8x128xbf16> to vector<8x128xbf16>
    %cst_83 = arith.constant dense<0.000000e+00> : vector<288x128xf32>
    %77 = tpu.matmul %74, %76, %cst_83 {dimension_numbers = #tpu.dot_dimension_numbers<[1], [0], [0], [1], [0, 0, 1, 1], [], []>} : vector<288x8xbf16>, vector<8x128xbf16>, vector<288x128xf32> -> vector<288x128xf32>
    %c0_84 = arith.constant 0 : index
    %c0_85 = arith.constant 0 : index
    %78 = vector.load %arg9[%c0_84, %c0_85] : memref<288x128xf32, #tpu.memory_space<vmem>>, vector<288x128xf32>
    %79 = arith.addf %78, %77 : vector<288x128xf32>
    %c0_86 = arith.constant 0 : index
    %c0_87 = arith.constant 0 : index
    %80 = vector.load %arg9[%c0_86, %c0_87] : memref<288x128xf32, #tpu.memory_space<vmem>>, vector<288x128xf32>
    tpu.vector_store %arg9[%c0_86, %c0_87], %79 {strides = array<i32>} : memref<288x128xf32, #tpu.memory_space<vmem>>, vector<288x128xf32>,
    %c0_88 = arith.constant 0 : index
    %c0_89 = arith.constant 0 : index
    %81 = vector.load %arg9[%c0_88, %c0_89] : memref<288x128xf32, #tpu.memory_space<vmem>>, vector<288x128xf32>
    %c0_90 = arith.constant 0 : index
    %c0_91 = arith.constant 0 : index
    %82 = vector.load %arg2[%c0_90, %c0_91] : memref<288x1xf32, #tpu.memory_space<vmem>>, vector<288x1xf32>
    %83 = vector.broadcast %82 : vector<288x1xf32> to vector<288x128xf32>
    %84 = arith.mulf %81, %83 : vector<288x128xf32>
    %85 = vector.extract_strided_slice %84 {offsets = [0, 0], sizes = [288, 8], strides = [1, 1]} : vector<288x128xf32> to vector<288x8xf32>
    %cst_92 = arith.constant dense<0.000000e+00> : vector<8xf32>
    %86 = vector.multi_reduction <add>, %85, %cst_92 [0] : vector<288x8xf32> to vector<8xf32>
    %87 = vector.shape_cast %86 : vector<8xf32> to vector<1x8xf32>
    %c0_93 = arith.constant 0 : index
    %c0_94 = arith.constant 0 : index
    %c0_95 = arith.constant 0 : index
    %88 = vector.load %arg7[%c0_93, %c0_94, %c0_95] : memref<1x2x8xf32, #tpu.memory_space<vmem>>, vector<1x1x8xf32>
    %89 = vector.shape_cast %88 : vector<1x1x8xf32> to vector<1x8xf32>
    %90 = vector.shape_cast %87 : vector<1x8xf32> to vector<1x1x8xf32>
    tpu.vector_store %arg7[%c0_93, %c0_94, %c0_95], %90 {strides = array<i32>} : memref<1x2x8xf32, #tpu.memory_space<vmem>>, vector<1x1x8xf32>,
    %91 = arith.mulf %85, %85 : vector<288x8xf32>
    %cst_96 = arith.constant dense<0.000000e+00> : vector<8xf32>
    %92 = vector.multi_reduction <add>, %91, %cst_96 [0] : vector<288x8xf32> to vector<8xf32>
    %93 = vector.shape_cast %92 : vector<8xf32> to vector<1x8xf32>
    %c0_97 = arith.constant 0 : index
    %c1_98 = arith.constant 1 : index
    %c0_99 = arith.constant 0 : index
    %94 = vector.load %arg7[%c0_97, %c1_98, %c0_99] : memref<1x2x8xf32, #tpu.memory_space<vmem>>, vector<1x1x8xf32>
    %95 = vector.shape_cast %94 : vector<1x1x8xf32> to vector<1x8xf32>
    %96 = vector.shape_cast %93 : vector<1x8xf32> to vector<1x1x8xf32>
    tpu.vector_store %arg7[%c0_97, %c1_98, %c0_99], %96 {strides = array<i32>} : memref<1x2x8xf32, #tpu.memory_space<vmem>>, vector<1x1x8xf32>,
    %97 = arith.truncf %84 : vector<288x128xf32> to vector<288x128xbf16>
    %c0_100 = arith.constant 0 : index
    %c0_101 = arith.constant 0 : index
    %c0_102 = arith.constant 0 : index
    %98 = vector.load %arg6[%c0_100, %c0_101, %c0_102] : memref<1x288x128xbf16, #tpu.memory_space<vmem>>, vector<1x288x128xbf16>
    %99 = vector.shape_cast %98 : vector<1x288x128xbf16> to vector<288x128xbf16>
    %100 = vector.shape_cast %97 : vector<288x128xbf16> to vector<1x288x128xbf16>
    tpu.vector_store %arg6[%c0_100, %c0_101, %c0_102], %100 {strides = array<i32>} : memref<1x288x128xbf16, #tpu.memory_space<vmem>>, vector<1x288x128xbf16>,
    return
  }
  func.func @transform_0(%arg0: i32) -> (i32, i32, i32) {
    %c0_i32 = arith.constant 0 : i32
    %c0_i32_0 = arith.constant 0 : i32
    %c0_i32_1 = arith.constant 0 : i32
    return %arg0, %c0_i32, %c0_i32_0 : i32, i32, i32
  }
  func.func @transform_1(%arg0: i32) -> (i32, i32) {
    %c0_i32 = arith.constant 0 : i32
    %c0_i32_0 = arith.constant 0 : i32
    %c0_i32_1 = arith.constant 0 : i32
    return %c0_i32, %c0_i32_0 : i32, i32
  }
  func.func @transform_2(%arg0: i32) -> (i32, i32) {
    %c0_i32 = arith.constant 0 : i32
    %c0_i32_0 = arith.constant 0 : i32
    %c0_i32_1 = arith.constant 0 : i32
    return %c0_i32, %c0_i32_0 : i32, i32
  }
  func.func @transform_3(%arg0: i32) -> (i32, i32) {
    %c0_i32 = arith.constant 0 : i32
    %c0_i32_0 = arith.constant 0 : i32
    %c0_i32_1 = arith.constant 0 : i32
    return %c0_i32, %c0_i32_0 : i32, i32
  }
  func.func @transform_4(%arg0: i32) -> (i32, i32, i32) {
    %c0_i32 = arith.constant 0 : i32
    %c0_i32_0 = arith.constant 0 : i32
    %c0_i32_1 = arith.constant 0 : i32
    %c0_i32_2 = arith.constant 0 : i32
    return %c0_i32, %c0_i32_0, %c0_i32_1 : i32, i32, i32
  }
  func.func @transform_5(%arg0: i32) -> (i32, i32, i32) {
    %c0_i32 = arith.constant 0 : i32
    %c0_i32_0 = arith.constant 0 : i32
    %c0_i32_1 = arith.constant 0 : i32
    return %arg0, %c0_i32, %c0_i32_0 : i32, i32, i32
  }
  func.func @transform_6(%arg0: i32) -> (i32, i32, i32) {
    %c0_i32 = arith.constant 0 : i32
    %c0_i32_0 = arith.constant 0 : i32
    %c0_i32_1 = arith.constant 0 : i32
    return %arg0, %c0_i32, %c0_i32_0 : i32, i32, i32
  }
}

module attributes {stable_mosaic.version = 11 : i64} {
  func.func @_bn_add_relu_kernel(%arg0: i32, %arg1: memref<1x288x128xbf16, #tpu.memory_space<vmem>>, %arg2: memref<1x288x8xf32, #tpu.memory_space<vmem>>, %arg3: memref<1x8xf32, #tpu.memory_space<vmem>>, %arg4: memref<1x8xf32, #tpu.memory_space<vmem>>, %arg5: memref<1x288x8xf32, #tpu.memory_space<vmem>>) attributes {dimension_semantics = [#tpu.dimension_semantics<parallel>], iteration_bounds = array<i64: 2>, scalar_prefetch = 0 : i64, scratch_operands = 0 : i64, tpu.core_type = #tpu.core_type<tc>, window_params = [{transform_indices = @transform_0, window_bounds = array<i64: 1, 288, 128>}, {transform_indices = @transform_1, window_bounds = array<i64: 1, 288, 8>}, {pipeline_mode = #tpu.pipeline_mode<synchronous>, transform_indices = @transform_2, window_bounds = array<i64: 1, 8>}, {pipeline_mode = #tpu.pipeline_mode<synchronous>, transform_indices = @transform_3, window_bounds = array<i64: 1, 8>}, {transform_indices = @transform_4, window_bounds = array<i64: 1, 288, 8>}]} {
    %c0 = arith.constant 0 : index
    %c0_0 = arith.constant 0 : index
    %c0_1 = arith.constant 0 : index
    %0 = vector.load %arg1[%c0, %c0_0, %c0_1] : memref<1x288x128xbf16, #tpu.memory_space<vmem>>, vector<1x288x8xbf16>
    %1 = vector.shape_cast %0 : vector<1x288x8xbf16> to vector<288x8xbf16>
    %2 = arith.extf %1 : vector<288x8xbf16> to vector<288x8xf32>
    %c0_2 = arith.constant 0 : index
    %c0_3 = arith.constant 0 : index
    %3 = vector.load %arg3[%c0_2, %c0_3] : memref<1x8xf32, #tpu.memory_space<vmem>>, vector<1x8xf32>
    %4 = vector.broadcast %3 : vector<1x8xf32> to vector<288x8xf32>
    %5 = arith.mulf %2, %4 : vector<288x8xf32>
    %c0_4 = arith.constant 0 : index
    %c0_5 = arith.constant 0 : index
    %6 = vector.load %arg4[%c0_4, %c0_5] : memref<1x8xf32, #tpu.memory_space<vmem>>, vector<1x8xf32>
    %7 = vector.broadcast %6 : vector<1x8xf32> to vector<288x8xf32>
    %8 = arith.addf %5, %7 : vector<288x8xf32>
    %c0_6 = arith.constant 0 : index
    %c0_7 = arith.constant 0 : index
    %c0_8 = arith.constant 0 : index
    %9 = vector.load %arg2[%c0_6, %c0_7, %c0_8] : memref<1x288x8xf32, #tpu.memory_space<vmem>>, vector<1x288x8xf32>
    %10 = vector.shape_cast %9 : vector<1x288x8xf32> to vector<288x8xf32>
    %11 = arith.addf %8, %10 : vector<288x8xf32>
    %cst = arith.constant 0.000000e+00 : f32
    %12 = vector.broadcast %cst : f32 to vector<288x8xf32>
    %13 = arith.maximumf %11, %12 : vector<288x8xf32>
    %c0_9 = arith.constant 0 : index
    %c0_10 = arith.constant 0 : index
    %c0_11 = arith.constant 0 : index
    %14 = vector.load %arg5[%c0_9, %c0_10, %c0_11] : memref<1x288x8xf32, #tpu.memory_space<vmem>>, vector<1x288x8xf32>
    %15 = vector.shape_cast %14 : vector<1x288x8xf32> to vector<288x8xf32>
    %16 = vector.shape_cast %13 : vector<288x8xf32> to vector<1x288x8xf32>
    tpu.vector_store %arg5[%c0_9, %c0_10, %c0_11], %16 {strides = array<i32>} : memref<1x288x8xf32, #tpu.memory_space<vmem>>, vector<1x288x8xf32>,
    return
  }
  func.func @transform_0(%arg0: i32) -> (i32, i32, i32) {
    %c0_i32 = arith.constant 0 : i32
    %c0_i32_0 = arith.constant 0 : i32
    %c0_i32_1 = arith.constant 0 : i32
    return %arg0, %c0_i32, %c0_i32_0 : i32, i32, i32
  }
  func.func @transform_1(%arg0: i32) -> (i32, i32, i32) {
    %c0_i32 = arith.constant 0 : i32
    %c0_i32_0 = arith.constant 0 : i32
    %c0_i32_1 = arith.constant 0 : i32
    return %arg0, %c0_i32, %c0_i32_0 : i32, i32, i32
  }
  func.func @transform_2(%arg0: i32) -> (i32, i32) {
    %c0_i32 = arith.constant 0 : i32
    %c0_i32_0 = arith.constant 0 : i32
    %c0_i32_1 = arith.constant 0 : i32
    return %c0_i32, %c0_i32_0 : i32, i32
  }
  func.func @transform_3(%arg0: i32) -> (i32, i32) {
    %c0_i32 = arith.constant 0 : i32
    %c0_i32_0 = arith.constant 0 : i32
    %c0_i32_1 = arith.constant 0 : i32
    return %c0_i32, %c0_i32_0 : i32, i32
  }
  func.func @transform_4(%arg0: i32) -> (i32, i32, i32) {
    %c0_i32 = arith.constant 0 : i32
    %c0_i32_0 = arith.constant 0 : i32
    %c0_i32_1 = arith.constant 0 : i32
    return %arg0, %c0_i32, %c0_i32_0 : i32, i32, i32
  }
}

</mosaic_0001>

<llo_original>
// kernel: resblock_forward.5
$region0: #{resblock_forward.5}
  #allocation0 [shape = 'u32[]', space=smem, size = 0x4, offset = 0x4, fixed_abs, tag = 'smem constant byte address 0x4 - core index']
  #allocation1 [shape = 'u32[72,128]{1,0:T(1,128)}', space=vmem, size = 0x9000, scoped, tag = 'internal scratch']
  %s0 = inlined_call_operand.vmem [shape: bf16[2,288,128], index: 0, kind: input, shape index: {}]
  %s1 = inlined_call_operand.vmem [shape: f32[2,288,8], index: 1, kind: input, shape index: {}]
  %s2 = inlined_call_operand.vmem [shape: f32[1,8], index: 2, kind: input, shape index: {}]
  %s3 = inlined_call_operand.vmem [shape: f32[1,8], index: 3, kind: input, shape index: {}]
  %s4 = inlined_call_operand.vmem [shape: f32[2,288,8], index: 4, kind: output, shape index: {}]
  %s5 = sld [smem:[#allocation0]]
  $region49: #{resblock_forward.5} parent=0
    _
  %s7 = ssub.s32 1, %s5
  %s8 = scalar_select 0, %s7, %s5
  loop: start=0, step=1, limit=4
  $region2: #{resblock_forward.5} parent=0 // loop_pre_header
    _
  $region3: #{resblock_forward.5} parent=0 // loop_header
    %s10 = sphi 0, %s14
    %p11 = scmp.ge.s32.totalorder %s10, 4
    %s20 = sphi 0, %s22
    %s23 = sphi 0, %s20
    %s24 = sphi 0, %s23
    %s40 = sphi 0, %s24
    %s46 = sphi 0, %s48
    %s49 = sphi 0, %s46
    %s50 = sphi 0, %s49
    %s66 = sphi 0, %s50
    %s70 = sphi 0, %s70
    %s72 = sphi 0, %s70
    %s73 = sphi 0, %s72
    %s87 = sphi 0, %s73
    %s91 = sphi 0, %s91
    %s93 = sphi 0, %s91
    %s94 = sphi 0, %s93
    %s108 = sphi 0, %s94
    %s114 = sphi 0, %s116
    %s117 = sphi 0, %s114
    %s118 = sphi 0, %s117
    %s134 = sphi 0, %s118
  $region4: #{resblock_forward.5} parent=0 // loop_header_branch
    %13 = sbr.rel (%p11) target = $region8
  $region5: #{resblock_forward.5} parent=0 // loop_body
    %s15 = ssub.s32 %s10, 1
    %s16 = ssub.s32 %s10, 2
    %s17 = sadd.s32 %s10, 1
    %s18 = ssub.s32 %s10, %s17
    %p19 = scmp.eq.s32.totalorder %s18, 0
    %s21 = sadd.s32 %s20, 1
    %s22 = scalar_select %p19, %s20, %s21
    %p25 = pneg %p19
    %p26 = scmp.eq.s32.totalorder %s10, 1
    %p27 = por %p25, %p26
    %p28 = scmp.ne.s32.totalorder %s20, %s23
    %p29 = scmp.eq.s32.totalorder %s10, 0
    %p30 = por %p28, %p29
    %p31 = scmp.ne.s32.totalorder %s20, %s23
    %p32 = scmp.eq.s32.totalorder %s15, 1
    %p33 = por %p31, %p32
    %p34 = scmp.ne.s32.totalorder %s23, %s24
    %p35 = scmp.eq.s32.totalorder %s15, 0
    %p36 = por %p34, %p35
    %p37 = scmp.ne.s32.totalorder %s23, %s24
    %p38 = scmp.eq.s32.totalorder %s16, 1
    %p39 = por %p37, %p38
    %p41 = scmp.ne.s32.totalorder %s24, %s40
    %p42 = scmp.eq.s32.totalorder %s16, 0
    %p43 = por %p41, %p42
    %s44 = ssub.s32 %s10, %s17
    %p45 = scmp.eq.s32.totalorder %s44, 0
    %s47 = sadd.s32 %s46, 1
    %s48 = scalar_select %p45, %s46, %s47
    %p51 = pneg %p45
    %p52 = scmp.eq.s32.totalorder %s10, 1
    %p53 = por %p51, %p52
    %p54 = scmp.ne.s32.totalorder %s46, %s49
    %p55 = scmp.eq.s32.totalorder %s10, 0
    %p56 = por %p54, %p55
    %p57 = scmp.ne.s32.totalorder %s46, %s49
    %p58 = scmp.eq.s32.totalorder %s15, 1
    %p59 = por %p57, %p58
    %p60 = scmp.ne.s32.totalorder %s49, %s50
    %p61 = scmp.eq.s32.totalorder %s15, 0
    %p62 = por %p60, %p61
    %p63 = scmp.ne.s32.totalorder %s49, %s50
    %p64 = scmp.eq.s32.totalorder %s16, 1
    %p65 = por %p63, %p64
    %p67 = scmp.ne.s32.totalorder %s50, %s66
    %p68 = scmp.eq.s32.totalorder %s16, 0
    %p69 = por %p67, %p68
    %s71 = sadd.s32 %s70, 1
    %p74 = scmp.eq.s32.totalorder %s10, 1
    %p75 = scmp.ne.s32.totalorder %s70, %s72
    %p76 = scmp.eq.s32.totalorder %s10, 0
    %p77 = por %p75, %p76
    %p78 = scmp.ne.s32.totalorder %s70, %s72
    %p79 = scmp.eq.s32.totalorder %s15, 1
    %p80 = por %p78, %p79
    %p81 = scmp.ne.s32.totalorder %s72, %s73
    %p82 = scmp.eq.s32.totalorder %s15, 0
    %p83 = por %p81, %p82
    %p84 = scmp.ne.s32.totalorder %s72, %s73
    %p85 = scmp.eq.s32.totalorder %s16, 1
    %p86 = por %p84, %p85
    %p88 = scmp.ne.s32.totalorder %s73, %s87
    %p89 = scmp.eq.s32.totalorder %s16, 0
    %p90 = por %p88, %p89
    %s92 = sadd.s32 %s91, 1
    %p95 = scmp.eq.s32.totalorder %s10, 1
    %p96 = scmp.ne.s32.totalorder %s91, %s93
    %p97 = scmp.eq.s32.totalorder %s10, 0
    %p98 = por %p96, %p97
    %p99 = scmp.ne.s32.totalorder %s91, %s93
    %p100 = scmp.eq.s32.totalorder %s15, 1
    %p101 = por %p99, %p100
    %p102 = scmp.ne.s32.totalorder %s93, %s94
    %p103 = scmp.eq.s32.totalorder %s15, 0
    %p104 = por %p102, %p103
    %p105 = scmp.ne.s32.totalorder %s93, %s94
    %p106 = scmp.eq.s32.totalorder %s16, 1
    %p107 = por %p105, %p106
    %p109 = scmp.ne.s32.totalorder %s94, %s108
    %p110 = scmp.eq.s32.totalorder %s16, 0
    %p111 = por %p109, %p110
    %s112 = ssub.s32 %s10, %s17
    %p113 = scmp.eq.s32.totalorder %s112, 0
    %s115 = sadd.s32 %s114, 1
    %s116 = scalar_select %p113, %s114, %s115
    %p119 = pneg %p113
    %p120 = scmp.eq.s32.totalorder %s10, 1
    %p121 = por %p119, %p120
    %p122 = scmp.ne.s32.totalorder %s114, %s117
    %p123 = scmp.eq.s32.totalorder %s10, 0
    %p124 = por %p122, %p123
    %p125 = scmp.ne.s32.totalorder %s114, %s117
    %p126 = scmp.eq.s32.totalorder %s15, 1
    %p127 = por %p125, %p126
    %p128 = scmp.ne.s32.totalorder %s117, %s118
    %p129 = scmp.eq.s32.totalorder %s15, 0
    %p130 = por %p128, %p129
    %p131 = scmp.ne.s32.totalorder %s117, %s118
    %p132 = scmp.eq.s32.totalorder %s16, 1
    %p133 = por %p131, %p132
    %p135 = scmp.ne.s32.totalorder %s118, %s134
    %p136 = scmp.eq.s32.totalorder %s16, 0
    %p137 = por %p135, %p136
    %p138 = scmp.le.s32.totalorder 1, %s10
    %p139 = scmp.lt.s32.totalorder %s10, 3
    %p140 = pnand %p138, %p139
    %p141 = pneg %p140
    // Predicated region
    $region9: #{resblock_forward.5} parent=5 // pred_check
      _
    $region10: #{resblock_forward.5} parent=5 // pred_check_branch
      %143 = sbr.rel (%p140) target = $region12
    $region11: #{resblock_forward.5} parent=5 // pred_region
      %s144 = ssub.s32 %s10, 1
      // Predicated region
      $region13: #{resblock_forward.5} parent=11 // pred_check
        %p145 = pneg %p83
      $region14: #{resblock_forward.5} parent=11 // pred_check_branch
        %147 = sbr.rel (%p145) target = $region16
      $region15: #{resblock_forward.5} parent=11 // pred_region
        _
      $region16: #{resblock_forward.5} parent=11 // pred_fallthru
        _
      // Predicated region
      $region17: #{resblock_forward.5} parent=11 // pred_check
        %p148 = pneg %p104
      $region18: #{resblock_forward.5} parent=11 // pred_check_branch
        %150 = sbr.rel (%p148) target = $region20
      $region19: #{resblock_forward.5} parent=11 // pred_region
        _
      $region20: #{resblock_forward.5} parent=11 // pred_fallthru
        _
    $region12: #{resblock_forward.5} parent=5 // pred_fallthru
      _
    %p151 = scmp.lt.s32.totalorder %s10, 2
    // Predicated region
    $region21: #{resblock_forward.5} parent=5 // pred_check
      %p152 = pneg %p151
    $region22: #{resblock_forward.5} parent=5 // pred_check_branch
      %154 = sbr.rel (%p152) target = $region24
    $region23: #{resblock_forward.5} parent=5 // pred_region
      // Predicated region
      $region25: #{resblock_forward.5} parent=23 // pred_check
        %p155 = pneg %p30
      $region26: #{resblock_forward.5} parent=23 // pred_check_branch
        %157 = sbr.rel (%p155) target = $region28
      $region27: #{resblock_forward.5} parent=23 // pred_region
        %p158 = scmp.lt.s32.totalorder %s10, 1
        %s159 = scalar_select %p158, %s10, 1
        %s160 = smul.addr %s159, 36
        %s161 = smul.addr %s160, 4
        %s162 = scalar_lea.vmem %s0, %s161
      $region28: #{resblock_forward.5} parent=23 // pred_fallthru
        _
      // Predicated region
      $region29: #{resblock_forward.5} parent=23 // pred_check
        %p163 = pneg %p56
      $region30: #{resblock_forward.5} parent=23 // pred_check_branch
        %165 = sbr.rel (%p163) target = $region32
      $region31: #{resblock_forward.5} parent=23 // pred_region
        %p166 = scmp.lt.s32.totalorder %s10, 1
        %s167 = scalar_select %p166, %s10, 1
        %s168 = smul.addr %s167, 36
        %s169 = smul.addr %s168, 8
        %s170 = scalar_lea.vmem %s1, %s169
      $region32: #{resblock_forward.5} parent=23 // pred_fallthru
        _
    $region24: #{resblock_forward.5} parent=5 // pred_fallthru
      _
    %p171 = scmp.le.s32.totalorder 1, %s10
    %p172 = scmp.lt.s32.totalorder %s10, 3
    %p173 = pnand %p171, %p172
    %p174 = pneg %p173
    // Predicated region
    $region33: #{resblock_forward.5} parent=5 // pred_check
      _
    $region34: #{resblock_forward.5} parent=5 // pred_check_branch
      %176 = sbr.rel (%p173) target = $region36
    $region35: #{resblock_forward.5} parent=5 // pred_region
      %s177 = ssub.s32 %s10, 1
      %p178 = scmp.lt.s32.totalorder %s15, 1
      %s179 = scalar_select %p178, %s15, 1
      %s180 = smul.addr %s179, 36
      %s181 = smul.addr %s180, 4
      %s182 = scalar_lea.vmem %s0, %s181
      %p183 = pneg %p36
      %p184 = pneg %p33
      %p185 = scmp.lt.s32.totalorder %s15, 1
      %s186 = scalar_select %p185, %s15, 1
      %s187 = smul.addr %s186, 36
      %s188 = smul.addr %s187, 8
      %s189 = scalar_lea.vmem %s1, %s188
      %p190 = pneg %p62
      %p191 = pneg %p59
      %p192 = pneg %p83
      %p193 = pneg %p80
      %p194 = pneg %p104
      %p195 = pneg %p101
      %p196 = pneg %p130
      %p197 = pneg %p127
      %p198 = scmp.lt.s32.totalorder %s15, 1
      %s199 = scalar_select %p198, %s15, 1
      %s200 = smul.addr %s199, 36
      %s201 = smul.addr %s200, 8
      %s202 = scalar_lea.vmem %s4, %s201
      %p203 = scmp.lt.s32.totalorder %s15, 1
      %s204 = scalar_select %p203, %s15, 1
      %s205 = smul.addr %s204, 36
      %s206 = smul.addr %s205, 4
      %s207 = scalar_lea.vmem %s0, %s206
      %p208 = scmp.lt.s32.totalorder %s15, 1
      %s209 = scalar_select %p208, %s15, 1
      %s210 = smul.addr %s209, 36
      %s211 = smul.addr %s210, 8
      %s212 = scalar_lea.vmem %s1, %s211
      %p213 = scmp.lt.s32.totalorder %s15, 1
      %s214 = scalar_select %p213, %s15, 1
      %s215 = smul.addr %s214, 36
      %s216 = smul.addr %s215, 8
      %s217 = scalar_lea.vmem %s4, %s216
      %v218 = vld [vmem:[%s207] sm:$0xf]
      %v219 = vld [vmem:[%s207 + $0x4] sm:$0xf]
      %v220 = vld [vmem:[%s207 + $0x8] sm:$0xf]
      %v221 = vld [vmem:[%s207 + $0xc] sm:$0xf]
      %v222 = vld [vmem:[%s207 + $0x10] sm:$0xf]
      %v223 = vld [vmem:[%s207 + $0x14] sm:$0xf]
      %v224 = vld [vmem:[%s207 + $0x18] sm:$0xf]
      %v225 = vld [vmem:[%s207 + $0x1c] sm:$0xf]
      %v226 = vld [vmem:[%s207 + $0x20] sm:$0xf]
      %v227 = vld [vmem:[%s207 + $0x24] sm:$0xf]
      %v228 = vld [vmem:[%s207 + $0x28] sm:$0xf]
      %v229 = vld [vmem:[%s207 + $0x2c] sm:$0xf]
      %v230 = vld [vmem:[%s207 + $0x30] sm:$0xf]
      %v231 = vld [vmem:[%s207 + $0x34] sm:$0xf]
      %v232 = vld [vmem:[%s207 + $0x38] sm:$0xf]
      %v233 = vld [vmem:[%s207 + $0x3c] sm:$0xf]
      %v234 = vld [vmem:[%s207 + $0x40] sm:$0xf]
      %v235 = vld [vmem:[%s207 + $0x44] sm:$0xf]
      %v236 = vld [vmem:[%s207 + $0x48] sm:$0xf]
      %v237 = vld [vmem:[%s207 + $0x4c] sm:$0xf]
      %v238 = vld [vmem:[%s207 + $0x50] sm:$0xf]
      %v239 = vld [vmem:[%s207 + $0x54] sm:$0xf]
      %v240 = vld [vmem:[%s207 + $0x58] sm:$0xf]
      %v241 = vld [vmem:[%s207 + $0x5c] sm:$0xf]
      %v242 = vld [vmem:[%s207 + $0x60] sm:$0xf]
      %v243 = vld [vmem:[%s207 + $0x64] sm:$0xf]
      %v244 = vld [vmem:[%s207 + $0x68] sm:$0xf]
      %v245 = vld [vmem:[%s207 + $0x6c] sm:$0xf]
      %v246 = vld [vmem:[%s207 + $0x70] sm:$0xf]
      %v247 = vld [vmem:[%s207 + $0x74] sm:$0xf]
      %v248 = vld [vmem:[%s207 + $0x78] sm:$0xf]
      %v249 = vld [vmem:[%s207 + $0x7c] sm:$0xf]
      %v250 = vld [vmem:[%s207 + $0x80] sm:$0xf]
      %v251 = vld [vmem:[%s207 + $0x84] sm:$0xf]
      %v252 = vld [vmem:[%s207 + $0x88] sm:$0xf]
      %v253 = vld [vmem:[%s207 + $0x8c] sm:$0xf]
      %v254 = vunpack.c.l.bf16 %v218
      %v255 = vunpack.c.l.bf16 %v219
      %v256 = vunpack.c.l.bf16 %v220
      %v257 = vunpack.c.l.bf16 %v221
      %v258 = vunpack.c.l.bf16 %v222
      %v259 = vunpack.c.l.bf16 %v223
      %v260 = vunpack.c.l.bf16 %v224
      %v261 = vunpack.c.l.bf16 %v225
      %v262 = vunpack.c.l.bf16 %v226
      %v263 = vunpack.c.l.bf16 %v227
      %v264 = vunpack.c.l.bf16 %v228
      %v265 = vunpack.c.l.bf16 %v229
      %v266 = vunpack.c.l.bf16 %v230
      %v267 = vunpack.c.l.bf16 %v231
      %v268 = vunpack.c.l.bf16 %v232
      %v269 = vunpack.c.l.bf16 %v233
      %v270 = vunpack.c.l.bf16 %v234
      %v271 = vunpack.c.l.bf16 %v235
      %v272 = vunpack.c.l.bf16 %v236
      %v273 = vunpack.c.l.bf16 %v237
      %v274 = vunpack.c.l.bf16 %v238
      %v275 = vunpack.c.l.bf16 %v239
      %v276 = vunpack.c.l.bf16 %v240
      %v277 = vunpack.c.l.bf16 %v241
      %v278 = vunpack.c.l.bf16 %v242
      %v279 = vunpack.c.l.bf16 %v243
      %v280 = vunpack.c.l.bf16 %v244
      %v281 = vunpack.c.l.bf16 %v245
      %v282 = vunpack.c.l.bf16 %v246
      %v283 = vunpack.c.l.bf16 %v247
      %v284 = vunpack.c.l.bf16 %v248
      %v285 = vunpack.c.l.bf16 %v249
      %v286 = vunpack.c.l.bf16 %v250
      %v287 = vunpack.c.l.bf16 %v251
      %v288 = vunpack.c.l.bf16 %v252
      %v289 = vunpack.c.l.bf16 %v253
      %v290 = vld [vmem:[%s2] sm:$0x1]
      %v292 = vperm.slane %v290, 0
      %v294 = vmul.f32 %v254, %v292
      %v295 = vmul.f32 %v255, %v292
      %v296 = vmul.f32 %v256, %v292
      %v297 = vmul.f32 %v257, %v292
      %v298 = vmul.f32 %v258, %v292
      %v299 = vmul.f32 %v259, %v292
      %v300 = vmul.f32 %v260, %v292
      %v301 = vmul.f32 %v261, %v292
      %v302 = vmul.f32 %v262, %v292
      %v303 = vmul.f32 %v263, %v292
      %v304 = vmul.f32 %v264, %v292
      %v305 = vmul.f32 %v265, %v292
      %v306 = vmul.f32 %v266, %v292
      %v307 = vmul.f32 %v267, %v292
      %v308 = vmul.f32 %v268, %v292
      %v309 = vmul.f32 %v269, %v292
      %v310 = vmul.f32 %v270, %v292
      %v311 = vmul.f32 %v271, %v292
      %v312 = vmul.f32 %v272, %v292
      %v313 = vmul.f32 %v273, %v292
      %v314 = vmul.f32 %v274, %v292
      %v315 = vmul.f32 %v275, %v292
      %v316 = vmul.f32 %v276, %v292
      %v317 = vmul.f32 %v277, %v292
      %v318 = vmul.f32 %v278, %v292
      %v319 = vmul.f32 %v279, %v292
      %v320 = vmul.f32 %v280, %v292
      %v321 = vmul.f32 %v281, %v292
      %v322 = vmul.f32 %v282, %v292
      %v323 = vmul.f32 %v283, %v292
      %v324 = vmul.f32 %v284, %v292
      %v325 = vmul.f32 %v285, %v292
      %v326 = vmul.f32 %v286, %v292
      %v327 = vmul.f32 %v287, %v292
      %v328 = vmul.f32 %v288, %v292
      %v329 = vmul.f32 %v289, %v292
      %v330 = vld [vmem:[%s3] sm:$0x1]
      %v332 = vperm.slane %v330, 0
      %v334 = vadd.f32 %v294, %v332
      %v335 = vadd.f32 %v295, %v332
      %v336 = vadd.f32 %v296, %v332
      %v337 = vadd.f32 %v297, %v332
      %v338 = vadd.f32 %v298, %v332
      %v339 = vadd.f32 %v299, %v332
      %v340 = vadd.f32 %v300, %v332
      %v341 = vadd.f32 %v301, %v332
      %v342 = vadd.f32 %v302, %v332
      %v343 = vadd.f32 %v303, %v332
      %v344 = vadd.f32 %v304, %v332
      %v345 = vadd.f32 %v305, %v332
      %v346 = vadd.f32 %v306, %v332
      %v347 = vadd.f32 %v307, %v332
      %v348 = vadd.f32 %v308, %v332
      %v349 = vadd.f32 %v309, %v332
      %v350 = vadd.f32 %v310, %v332
      %v351 = vadd.f32 %v311, %v332
      %v352 = vadd.f32 %v312, %v332
      %v353 = vadd.f32 %v313, %v332
      %v354 = vadd.f32 %v314, %v332
      %v355 = vadd.f32 %v315, %v332
      %v356 = vadd.f32 %v316, %v332
      %v357 = vadd.f32 %v317, %v332
      %v358 = vadd.f32 %v318, %v332
      %v359 = vadd.f32 %v319, %v332
      %v360 = vadd.f32 %v320, %v332
      %v361 = vadd.f32 %v321, %v332
      %v362 = vadd.f32 %v322, %v332
      %v363 = vadd.f32 %v323, %v332
      %v364 = vadd.f32 %v324, %v332
      %v365 = vadd.f32 %v325, %v332
      %v366 = vadd.f32 %v326, %v332
      %v367 = vadd.f32 %v327, %v332
      %v368 = vadd.f32 %v328, %v332
      %v369 = vadd.f32 %v329, %v332
      %v370 = vld [vmem:[%s212] sm:$0xff]
      %v371 = vld [vmem:[%s212 + $0x8] sm:$0xff]
      %v372 = vld [vmem:[%s212 + $0x10] sm:$0xff]
      %v373 = vld [vmem:[%s212 + $0x18] sm:$0xff]
      %v374 = vld [vmem:[%s212 + $0x20] sm:$0xff]
      %v375 = vld [vmem:[%s212 + $0x28] sm:$0xff]
      %v376 = vld [vmem:[%s212 + $0x30] sm:$0xff]
      %v377 = vld [vmem:[%s212 + $0x38] sm:$0xff]
      %v378 = vld [vmem:[%s212 + $0x40] sm:$0xff]
      %v379 = vld [vmem:[%s212 + $0x48] sm:$0xff]
      %v380 = vld [vmem:[%s212 + $0x50] sm:$0xff]
      %v381 = vld [vmem:[%s212 + $0x58] sm:$0xff]
      %v382 = vld [vmem:[%s212 + $0x60] sm:$0xff]
      %v383 = vld [vmem:[%s212 + $0x68] sm:$0xff]
      %v384 = vld [vmem:[%s212 + $0x70] sm:$0xff]
      %v385 = vld [vmem:[%s212 + $0x78] sm:$0xff]
      %v386 = vld [vmem:[%s212 + $0x80] sm:$0xff]
      %v387 = vld [vmem:[%s212 + $0x88] sm:$0xff]
      %v388 = vld [vmem:[%s212 + $0x90] sm:$0xff]
      %v389 = vld [vmem:[%s212 + $0x98] sm:$0xff]
      %v390 = vld [vmem:[%s212 + $0xa0] sm:$0xff]
      %v391 = vld [vmem:[%s212 + $0xa8] sm:$0xff]
      %v392 = vld [vmem:[%s212 + $0xb0] sm:$0xff]
      %v393 = vld [vmem:[%s212 + $0xb8] sm:$0xff]
      %v394 = vld [vmem:[%s212 + $0xc0] sm:$0xff]
      %v395 = vld [vmem:[%s212 + $0xc8] sm:$0xff]
      %v396 = vld [vmem:[%s212 + $0xd0] sm:$0xff]
      %v397 = vld [vmem:[%s212 + $0xd8] sm:$0xff]
      %v398 = vld [vmem:[%s212 + $0xe0] sm:$0xff]
      %v399 = vld [vmem:[%s212 + $0xe8] sm:$0xff]
      %v400 = vld [vmem:[%s212 + $0xf0] sm:$0xff]
      %v401 = vld [vmem:[%s212 + $0xf8] sm:$0xff]
      %v402 = vld [vmem:[%s212 + $0x100] sm:$0xff]
      %v403 = vld [vmem:[%s212 + $0x108] sm:$0xff]
      %v404 = vld [vmem:[%s212 + $0x110] sm:$0xff]
      %v405 = vld [vmem:[%s212 + $0x118] sm:$0xff]
      %v406 = vadd.f32 %v334, %v370
      %v407 = vadd.f32 %v335, %v371
      %v408 = vadd.f32 %v336, %v372
      %v409 = vadd.f32 %v337, %v373
      %v410 = vadd.f32 %v338, %v374
      %v411 = vadd.f32 %v339, %v375
      %v412 = vadd.f32 %v340, %v376
      %v413 = vadd.f32 %v341, %v377
      %v414 = vadd.f32 %v342, %v378
      %v415 = vadd.f32 %v343, %v379
      %v416 = vadd.f32 %v344, %v380
      %v417 = vadd.f32 %v345, %v381
      %v418 = vadd.f32 %v346, %v382
      %v419 = vadd.f32 %v347, %v383
      %v420 = vadd.f32 %v348, %v384
      %v421 = vadd.f32 %v349, %v385
      %v422 = vadd.f32 %v350, %v386
      %v423 = vadd.f32 %v351, %v387
      %v424 = vadd.f32 %v352, %v388
      %v425 = vadd.f32 %v353, %v389
      %v426 = vadd.f32 %v354, %v390
      %v427 = vadd.f32 %v355, %v391
      %v428 = vadd.f32 %v356, %v392
      %v429 = vadd.f32 %v357, %v393
      %v430 = vadd.f32 %v358, %v394
      %v431 = vadd.f32 %v359, %v395
      %v432 = vadd.f32 %v360, %v396
      %v433 = vadd.f32 %v361, %v397
      %v434 = vadd.f32 %v362, %v398
      %v435 = vadd.f32 %v363, %v399
      %v436 = vadd.f32 %v364, %v400
      %v437 = vadd.f32 %v365, %v401
      %v438 = vadd.f32 %v366, %v402
      %v439 = vadd.f32 %v367, %v403
      %v440 = vadd.f32 %v368, %v404
      %v441 = vadd.f32 %v369, %v405
      %v442 = vmax.f32 %v406, 0.0
      %v443 = vmax.f32 %v407, 0.0
      %v444 = vmax.f32 %v408, 0.0
      %v445 = vmax.f32 %v409, 0.0
      %v446 = vmax.f32 %v410, 0.0
      %v447 = vmax.f32 %v411, 0.0
      %v448 = vmax.f32 %v412, 0.0
      %v449 = vmax.f32 %v413, 0.0
      %v450 = vmax.f32 %v414, 0.0
      %v451 = vmax.f32 %v415, 0.0
      %v452 = vmax.f32 %v416, 0.0
      %v453 = vmax.f32 %v417, 0.0
      %v454 = vmax.f32 %v418, 0.0
      %v455 = vmax.f32 %v419, 0.0
      %v456 = vmax.f32 %v420, 0.0
      %v457 = vmax.f32 %v421, 0.0
      %v458 = vmax.f32 %v422, 0.0
      %v459 = vmax.f32 %v423, 0.0
      %v460 = vmax.f32 %v424, 0.0
      %v461 = vmax.f32 %v425, 0.0
      %v462 = vmax.f32 %v426, 0.0
      %v463 = vmax.f32 %v427, 0.0
      %v464 = vmax.f32 %v428, 0.0
      %v465 = vmax.f32 %v429, 0.0
      %v466 = vmax.f32 %v430, 0.0
      %v467 = vmax.f32 %v431, 0.0
      %v468 = vmax.f32 %v432, 0.0
      %v469 = vmax.f32 %v433, 0.0
      %v470 = vmax.f32 %v434, 0.0
      %v471 = vmax.f32 %v435, 0.0
      %v472 = vmax.f32 %v436, 0.0
      %v473 = vmax.f32 %v437, 0.0
      %v474 = vmax.f32 %v438, 0.0
      %v475 = vmax.f32 %v439, 0.0
      %v476 = vmax.f32 %v440, 0.0
      %v477 = vmax.f32 %v441, 0.0
      %vm478 = vcmask 64512
      %479 = vst.msk [vmem:[%s217] sm:$0xff] %vm478, %v442
      %480 = vst.msk [vmem:[%s217 + $0x8] sm:$0xff] %vm478, %v443
      %481 = vst.msk [vmem:[%s217 + $0x10] sm:$0xff] %vm478, %v444
      %482 = vst.msk [vmem:[%s217 + $0x18] sm:$0xff] %vm478, %v445
      %483 = vst.msk [vmem:[%s217 + $0x20] sm:$0xff] %vm478, %v446
      %484 = vst.msk [vmem:[%s217 + $0x28] sm:$0xff] %vm478, %v447
      %485 = vst.msk [vmem:[%s217 + $0x30] sm:$0xff] %vm478, %v448
      %486 = vst.msk [vmem:[%s217 + $0x38] sm:$0xff] %vm478, %v449
      %487 = vst.msk [vmem:[%s217 + $0x40] sm:$0xff] %vm478, %v450
      %488 = vst.msk [vmem:[%s217 + $0x48] sm:$0xff] %vm478, %v451
      %489 = vst.msk [vmem:[%s217 + $0x50] sm:$0xff] %vm478, %v452
      %490 = vst.msk [vmem:[%s217 + $0x58] sm:$0xff] %vm478, %v453
      %491 = vst.msk [vmem:[%s217 + $0x60] sm:$0xff] %vm478, %v454
      %492 = vst.msk [vmem:[%s217 + $0x68] sm:$0xff] %vm478, %v455
      %493 = vst.msk [vmem:[%s217 + $0x70] sm:$0xff] %vm478, %v456
      %494 = vst.msk [vmem:[%s217 + $0x78] sm:$0xff] %vm478, %v457
      %495 = vst.msk [vmem:[%s217 + $0x80] sm:$0xff] %vm478, %v458
      %496 = vst.msk [vmem:[%s217 + $0x88] sm:$0xff] %vm478, %v459
      %497 = vst.msk [vmem:[%s217 + $0x90] sm:$0xff] %vm478, %v460
      %498 = vst.msk [vmem:[%s217 + $0x98] sm:$0xff] %vm478, %v461
      %499 = vst.msk [vmem:[%s217 + $0xa0] sm:$0xff] %vm478, %v462
      %500 = vst.msk [vmem:[%s217 + $0xa8] sm:$0xff] %vm478, %v463
      %501 = vst.msk [vmem:[%s217 + $0xb0] sm:$0xff] %vm478, %v464
      %502 = vst.msk [vmem:[%s217 + $0xb8] sm:$0xff] %vm478, %v465
      %503 = vst.msk [vmem:[%s217 + $0xc0] sm:$0xff] %vm478, %v466
      %504 = vst.msk [vmem:[%s217 + $0xc8] sm:$0xff] %vm478, %v467
      %505 = vst.msk [vmem:[%s217 + $0xd0] sm:$0xff] %vm478, %v468
      %506 = vst.msk [vmem:[%s217 + $0xd8] sm:$0xff] %vm478, %v469
      %507 = vst.msk [vmem:[%s217 + $0xe0] sm:$0xff] %vm478, %v470
      %508 = vst.msk [vmem:[%s217 + $0xe8] sm:$0xff] %vm478, %v471
      %509 = vst.msk [vmem:[%s217 + $0xf0] sm:$0xff] %vm478, %v472
      %510 = vst.msk [vmem:[%s217 + $0xf8] sm:$0xff] %vm478, %v473
      %511 = vst.msk [vmem:[%s217 + $0x100] sm:$0xff] %vm478, %v474
      %512 = vst.msk [vmem:[%s217 + $0x108] sm:$0xff] %vm478, %v475
      %513 = vst.msk [vmem:[%s217 + $0x110] sm:$0xff] %vm478, %v476
      %514 = vst.msk [vmem:[%s217 + $0x118] sm:$0xff] %vm478, %v477
      %p515 = scmp.lt.s32.totalorder %s15, 1
      %s516 = scalar_select %p515, %s15, 1
      %s517 = smul.addr %s516, 36
      %s518 = smul.addr %s517, 8
      %s519 = scalar_lea.vmem %s4, %s518
      // Predicated region
      $region37: #{resblock_forward.5} parent=35 // pred_check
        %p520 = pneg %p127
      $region38: #{resblock_forward.5} parent=35 // pred_check_branch
        %522 = sbr.rel (%p520) target = $region40
      $region39: #{resblock_forward.5} parent=35 // pred_region
        _
      $region40: #{resblock_forward.5} parent=35 // pred_fallthru
        _
    $region36: #{resblock_forward.5} parent=5 // pred_fallthru
      _
    %p523 = scmp.le.s32.totalorder 2, %s10
    // Predicated region
    $region41: #{resblock_forward.5} parent=5 // pred_check
      %p524 = pneg %p523
    $region42: #{resblock_forward.5} parent=5 // pred_check_branch
      %526 = sbr.rel (%p524) target = $region44
    $region43: #{resblock_forward.5} parent=5 // pred_region
      %s527 = ssub.s32 %s10, 2
      // Predicated region
      $region45: #{resblock_forward.5} parent=43 // pred_check
        %p528 = pneg %p133
      $region46: #{resblock_forward.5} parent=43 // pred_check_branch
        %530 = sbr.rel (%p528) target = $region48
      $region47: #{resblock_forward.5} parent=43 // pred_region
        %p531 = scmp.lt.s32.totalorder %s16, 1
        %s532 = scalar_select %p531, %s16, 1
        %s533 = smul.addr %s532, 36
        %s534 = smul.addr %s533, 8
        %s535 = scalar_lea.vmem %s4, %s534
      $region48: #{resblock_forward.5} parent=43 // pred_fallthru
        _
    $region44: #{resblock_forward.5} parent=5 // pred_fallthru
      _
  $region6: #{resblock_forward.5} parent=0 // loop_footer
    %s14 = sadd.s32 1, %s10
  $region7: #{resblock_forward.5} parent=0 // loop_footer_branch
    %9 = sbr.rel target = $region3
  $region8: #{resblock_forward.5} parent=0 // loop_exit
    _

// kernel: resblock_forward.3
$region0: #{resblock_forward.3}
  #allocation0 [shape = 'u32[]', space=smem, size = 0x4, offset = 0x4, fixed_abs, tag = 'smem constant byte address 0x4 - core index']
  #allocation1 [shape = 'u32[72,128]{1,0:T(1,128)}', space=vmem, size = 0x9000, scoped, tag = 'internal scratch']
  #allocation2 [shape = 'bf16[344,8]{1,0:T(8,128)(2,1)}', space=vmem, size = 0x15800, scoped, tag = 'scratch operand']
  #allocation3 [shape = 'f32[288,128]{1,0:T(8,128)}', space=vmem, size = 0x24000, scoped, tag = 'scratch operand']
  %s0 = inlined_call_operand.vmem [shape: f32[2,288,8], index: 0, kind: input, shape index: {}]
  %s1 = inlined_call_operand.vmem [shape: f32[288,1], index: 1, kind: input, shape index: {}]
  %s2 = inlined_call_operand.vmem [shape: bf16[9,8,128], index: 2, kind: input, shape index: {}]
  %s3 = inlined_call_operand.vmem [shape: bf16[2,288,128], index: 3, kind: output, shape index: {0}]
  %s4 = inlined_call_operand.vmem [shape: f32[2,2,8], index: 4, kind: output, shape index: {1}]
  %5 = xla_tuple %s3, %s4
  %s6 = sld [smem:[#allocation0]]
  $region53: #{resblock_forward.3} parent=0
    _
  %s8 = ssub.s32 1, %s6
  %s9 = scalar_select 0, %s8, %s6
  loop: start=0, step=1, limit=4
  $region2: #{resblock_forward.3} parent=0 // loop_pre_header
    _
  $region3: #{resblock_forward.3} parent=0 // loop_header
    %s11 = sphi 0, %s15
    %p12 = scmp.ge.s32.totalorder %s11, 4
    %s21 = sphi 0, %s23
    %s24 = sphi 0, %s21
    %s25 = sphi 0, %s24
    %s41 = sphi 0, %s25
    %s45 = sphi 0, %s45
    %s47 = sphi 0, %s45
    %s48 = sphi 0, %s47
    %s62 = sphi 0, %s48
    %s66 = sphi 0, %s66
    %s68 = sphi 0, %s66
    %s69 = sphi 0, %s68
    %s83 = sphi 0, %s69
    %s89 = sphi 0, %s91
    %s92 = sphi 0, %s89
    %s93 = sphi 0, %s92
    %s109 = sphi 0, %s93
    %s115 = sphi 0, %s117
    %s118 = sphi 0, %s115
    %s119 = sphi 0, %s118
    %s135 = sphi 0, %s119
  $region4: #{resblock_forward.3} parent=0 // loop_header_branch
    %14 = sbr.rel (%p12) target = $region8
  $region5: #{resblock_forward.3} parent=0 // loop_body
    %s16 = ssub.s32 %s11, 1
    %s17 = ssub.s32 %s11, 2
    %s18 = sadd.s32 %s11, 1
    %s19 = ssub.s32 %s11, %s18
    %p20 = scmp.eq.s32.totalorder %s19, 0
    %s22 = sadd.s32 %s21, 1
    %s23 = scalar_select %p20, %s21, %s22
    %p26 = pneg %p20
    %p27 = scmp.eq.s32.totalorder %s11, 1
    %p28 = por %p26, %p27
    %p29 = scmp.ne.s32.totalorder %s21, %s24
    %p30 = scmp.eq.s32.totalorder %s11, 0
    %p31 = por %p29, %p30
    %p32 = scmp.ne.s32.totalorder %s21, %s24
    %p33 = scmp.eq.s32.totalorder %s16, 1
    %p34 = por %p32, %p33
    %p35 = scmp.ne.s32.totalorder %s24, %s25
    %p36 = scmp.eq.s32.totalorder %s16, 0
    %p37 = por %p35, %p36
    %p38 = scmp.ne.s32.totalorder %s24, %s25
    %p39 = scmp.eq.s32.totalorder %s17, 1
    %p40 = por %p38, %p39
    %p42 = scmp.ne.s32.totalorder %s25, %s41
    %p43 = scmp.eq.s32.totalorder %s17, 0
    %p44 = por %p42, %p43
    %s46 = sadd.s32 %s45, 1
    %p49 = scmp.eq.s32.totalorder %s11, 1
    %p50 = scmp.ne.s32.totalorder %s45, %s47
    %p51 = scmp.eq.s32.totalorder %s11, 0
    %p52 = por %p50, %p51
    %p53 = scmp.ne.s32.totalorder %s45, %s47
    %p54 = scmp.eq.s32.totalorder %s16, 1
    %p55 = por %p53, %p54
    %p56 = scmp.ne.s32.totalorder %s47, %s48
    %p57 = scmp.eq.s32.totalorder %s16, 0
    %p58 = por %p56, %p57
    %p59 = scmp.ne.s32.totalorder %s47, %s48
    %p60 = scmp.eq.s32.totalorder %s17, 1
    %p61 = por %p59, %p60
    %p63 = scmp.ne.s32.totalorder %s48, %s62
    %p64 = scmp.eq.s32.totalorder %s17, 0
    %p65 = por %p63, %p64
    %s67 = sadd.s32 %s66, 1
    %p70 = scmp.eq.s32.totalorder %s11, 1
    %p71 = scmp.ne.s32.totalorder %s66, %s68
    %p72 = scmp.eq.s32.totalorder %s11, 0
    %p73 = por %p71, %p72
    %p74 = scmp.ne.s32.totalorder %s66, %s68
    %p75 = scmp.eq.s32.totalorder %s16, 1
    %p76 = por %p74, %p75
    %p77 = scmp.ne.s32.totalorder %s68, %s69
    %p78 = scmp.eq.s32.totalorder %s16, 0
    %p79 = por %p77, %p78
    %p80 = scmp.ne.s32.totalorder %s68, %s69
    %p81 = scmp.eq.s32.totalorder %s17, 1
    %p82 = por %p80, %p81
    %p84 = scmp.ne.s32.totalorder %s69, %s83
    %p85 = scmp.eq.s32.totalorder %s17, 0
    %p86 = por %p84, %p85
    %s87 = ssub.s32 %s11, %s18
    %p88 = scmp.eq.s32.totalorder %s87, 0
    %s90 = sadd.s32 %s89, 1
    %s91 = scalar_select %p88, %s89, %s90
    %p94 = pneg %p88
    %p95 = scmp.eq.s32.totalorder %s11, 1
    %p96 = por %p94, %p95
    %p97 = scmp.ne.s32.totalorder %s89, %s92
    %p98 = scmp.eq.s32.totalorder %s11, 0
    %p99 = por %p97, %p98
    %p100 = scmp.ne.s32.totalorder %s89, %s92
    %p101 = scmp.eq.s32.totalorder %s16, 1
    %p102 = por %p100, %p101
    %p103 = scmp.ne.s32.totalorder %s92, %s93
    %p104 = scmp.eq.s32.totalorder %s16, 0
    %p105 = por %p103, %p104
    %p106 = scmp.ne.s32.totalorder %s92, %s93
    %p107 = scmp.eq.s32.totalorder %s17, 1
    %p108 = por %p106, %p107
    %p110 = scmp.ne.s32.totalorder %s93, %s109
    %p111 = scmp.eq.s32.totalorder %s17, 0
    %p112 = por %p110, %p111
    %s113 = ssub.s32 %s11, %s18
    %p114 = scmp.eq.s32.totalorder %s113, 0
    %s116 = sadd.s32 %s115, 1
    %s117 = scalar_select %p114, %s115, %s116
    %p120 = pneg %p114
    %p121 = scmp.eq.s32.totalorder %s11, 1
    %p122 = por %p120, %p121
    %p123 = scmp.ne.s32.totalorder %s115, %s118
    %p124 = scmp.eq.s32.totalorder %s11, 0
    %p125 = por %p123, %p124
    %p126 = scmp.ne.s32.totalorder %s115, %s118
    %p127 = scmp.eq.s32.totalorder %s16, 1
    %p128 = por %p126, %p127
    %p129 = scmp.ne.s32.totalorder %s118, %s119
    %p130 = scmp.eq.s32.totalorder %s16, 0
    %p131 = por %p129, %p130
    %p132 = scmp.ne.s32.totalorder %s118, %s119
    %p133 = scmp.eq.s32.totalorder %s17, 1
    %p134 = por %p132, %p133
    %p136 = scmp.ne.s32.totalorder %s119, %s135
    %p137 = scmp.eq.s32.totalorder %s17, 0
    %p138 = por %p136, %p137
    %p139 = scmp.le.s32.totalorder 1, %s11
    %p140 = scmp.lt.s32.totalorder %s11, 3
    %p141 = pnand %p139, %p140
    %p142 = pneg %p141
    // Predicated region
    $region9: #{resblock_forward.3} parent=5 // pred_check
      _
    $region10: #{resblock_forward.3} parent=5 // pred_check_branch
      %144 = sbr.rel (%p141) target = $region12
    $region11: #{resblock_forward.3} parent=5 // pred_region
      %s145 = ssub.s32 %s11, 1
      // Predicated region
      $region13: #{resblock_forward.3} parent=11 // pred_check
        %p146 = pneg %p58
      $region14: #{resblock_forward.3} parent=11 // pred_check_branch
        %148 = sbr.rel (%p146) target = $region16
      $region15: #{resblock_forward.3} parent=11 // pred_region
        _
      $region16: #{resblock_forward.3} parent=11 // pred_fallthru
        _
      // Predicated region
      $region17: #{resblock_forward.3} parent=11 // pred_check
        %p149 = pneg %p79
      $region18: #{resblock_forward.3} parent=11 // pred_check_branch
        %151 = sbr.rel (%p149) target = $region20
      $region19: #{resblock_forward.3} parent=11 // pred_region
        _
      $region20: #{resblock_forward.3} parent=11 // pred_fallthru
        _
    $region12: #{resblock_forward.3} parent=5 // pred_fallthru
      _
    %p152 = scmp.lt.s32.totalorder %s11, 2
    // Predicated region
    $region21: #{resblock_forward.3} parent=5 // pred_check
      %p153 = pneg %p152
    $region22: #{resblock_forward.3} parent=5 // pred_check_branch
      %155 = sbr.rel (%p153) target = $region24
    $region23: #{resblock_forward.3} parent=5 // pred_region
      // Predicated region
      $region25: #{resblock_forward.3} parent=23 // pred_check
        %p156 = pneg %p31
      $region26: #{resblock_forward.3} parent=23 // pred_check_branch
        %158 = sbr.rel (%p156) target = $region28
      $region27: #{resblock_forward.3} parent=23 // pred_region
        %p159 = scmp.lt.s32.totalorder %s11, 1
        %s160 = scalar_select %p159, %s11, 1
        %s161 = smul.addr %s160, 36
        %s162 = smul.addr %s161, 8
        %s163 = scalar_lea.vmem %s0, %s162
      $region28: #{resblock_forward.3} parent=23 // pred_fallthru
        _
    $region24: #{resblock_forward.3} parent=5 // pred_fallthru
      _
    %p164 = scmp.le.s32.totalorder 1, %s11
    %p165 = scmp.lt.s32.totalorder %s11, 3
    %p166 = pnand %p164, %p165
    %p167 = pneg %p166
    // Predicated region
    $region29: #{resblock_forward.3} parent=5 // pred_check
      _
    $region30: #{resblock_forward.3} parent=5 // pred_check_branch
      %169 = sbr.rel (%p166) target = $region32
    $region31: #{resblock_forward.3} parent=5 // pred_region
      %s170 = ssub.s32 %s11, 1
      %p171 = scmp.lt.s32.totalorder %s16, 1
      %s172 = scalar_select %p171, %s16, 1
      %s173 = smul.addr %s172, 36
      %s174 = smul.addr %s173, 8
      %s175 = scalar_lea.vmem %s0, %s174
      %p176 = pneg %p37
      %p177 = pneg %p34
      %p178 = pneg %p58
      %p179 = pneg %p55
      %p180 = pneg %p79
      %p181 = pneg %p76
      %p182 = pneg %p105
      %p183 = pneg %p102
      %p184 = scmp.lt.s32.totalorder %s16, 1
      %s185 = scalar_select %p184, %s16, 1
      %s186 = smul.addr %s185, 36
      %s187 = smul.addr %s186, 4
      %s188 = scalar_lea.vmem %s3, %s187
      %p189 = pneg %p131
      %p190 = pneg %p128
      %p191 = scmp.lt.s32.totalorder %s16, 1
      %s192 = scalar_select %p191, %s16, 1
      %s193 = smul.addr %s192, 2
      %s194 = scalar_lea.vmem %s4, %s193
      %p195 = scmp.lt.s32.totalorder %s16, 1
      %s196 = scalar_select %p195, %s16, 1
      %s197 = smul.addr %s196, 36
      %s198 = smul.addr %s197, 8
      %s199 = scalar_lea.vmem %s0, %s198
      %p200 = scmp.lt.s32.totalorder %s16, 1
      %s201 = scalar_select %p200, %s16, 1
      %s202 = smul.addr %s201, 36
      %s203 = smul.addr %s202, 4
      %s204 = scalar_lea.vmem %s3, %s203
      %p205 = scmp.lt.s32.totalorder %s16, 1
      %s206 = scalar_select %p205, %s16, 1
      %s207 = smul.addr %s206, 2
      %s208 = scalar_lea.vmem %s4, %s207
      %v210 = vld [vmem:[%s199] sm:$0xff]
      %v211 = vld [vmem:[%s199 + $0x8] sm:$0xff]
      %v212 = vld [vmem:[%s199 + $0x10] sm:$0xff]
      %v213 = vld [vmem:[%s199 + $0x18] sm:$0xff]
      %v214 = vld [vmem:[%s199 + $0x20] sm:$0xff]
      %v215 = vld [vmem:[%s199 + $0x28] sm:$0xff]
      %v216 = vld [vmem:[%s199 + $0x30] sm:$0xff]
      %v217 = vld [vmem:[%s199 + $0x38] sm:$0xff]
      %v218 = vld [vmem:[%s199 + $0x40] sm:$0xff]
      %v219 = vld [vmem:[%s199 + $0x48] sm:$0xff]
      %v220 = vld [vmem:[%s199 + $0x50] sm:$0xff]
      %v221 = vld [vmem:[%s199 + $0x58] sm:$0xff]
      %v222 = vld [vmem:[%s199 + $0x60] sm:$0xff]
      %v223 = vld [vmem:[%s199 + $0x68] sm:$0xff]
      %v224 = vld [vmem:[%s199 + $0x70] sm:$0xff]
      %v225 = vld [vmem:[%s199 + $0x78] sm:$0xff]
      %v226 = vld [vmem:[%s199 + $0x80] sm:$0xff]
      %v227 = vld [vmem:[%s199 + $0x88] sm:$0xff]
      %v228 = vld [vmem:[%s199 + $0x90] sm:$0xff]
      %v229 = vld [vmem:[%s199 + $0x98] sm:$0xff]
      %v230 = vld [vmem:[%s199 + $0xa0] sm:$0xff]
      %v231 = vld [vmem:[%s199 + $0xa8] sm:$0xff]
      %v232 = vld [vmem:[%s199 + $0xb0] sm:$0xff]
      %v233 = vld [vmem:[%s199 + $0xb8] sm:$0xff]
      %v234 = vld [vmem:[%s199 + $0xc0] sm:$0xff]
      %v235 = vld [vmem:[%s199 + $0xc8] sm:$0xff]
      %v236 = vld [vmem:[%s199 + $0xd0] sm:$0xff]
      %v237 = vld [vmem:[%s199 + $0xd8] sm:$0xff]
      %v238 = vld [vmem:[%s199 + $0xe0] sm:$0xff]
      %v239 = vld [vmem:[%s199 + $0xe8] sm:$0xff]
      %v240 = vld [vmem:[%s199 + $0xf0] sm:$0xff]
      %v241 = vld [vmem:[%s199 + $0xf8] sm:$0xff]
      %v242 = vld [vmem:[%s199 + $0x100] sm:$0xff]
      %v243 = vld [vmem:[%s199 + $0x108] sm:$0xff]
      %v244 = vld [vmem:[%s199 + $0x110] sm:$0xff]
      %v245 = vld [vmem:[%s199 + $0x118] sm:$0xff]
      %v246 = vpack.c.bf16 %v210, %v210
      %v247 = vpack.c.bf16 %v211, %v211
      %v248 = vpack.c.bf16 %v212, %v212
      %v249 = vpack.c.bf16 %v213, %v213
      %v250 = vpack.c.bf16 %v214, %v214
      %v251 = vpack.c.bf16 %v215, %v215
      %v252 = vpack.c.bf16 %v216, %v216
      %v253 = vpack.c.bf16 %v217, %v217
      %v254 = vpack.c.bf16 %v218, %v218
      %v255 = vpack.c.bf16 %v219, %v219
      %v256 = vpack.c.bf16 %v220, %v220
      %v257 = vpack.c.bf16 %v221, %v221
      %v258 = vpack.c.bf16 %v222, %v222
      %v259 = vpack.c.bf16 %v223, %v223
      %v260 = vpack.c.bf16 %v224, %v224
      %v261 = vpack.c.bf16 %v225, %v225
      %v262 = vpack.c.bf16 %v226, %v226
      %v263 = vpack.c.bf16 %v227, %v227
      %v264 = vpack.c.bf16 %v228, %v228
      %v265 = vpack.c.bf16 %v229, %v229
      %v266 = vpack.c.bf16 %v230, %v230
      %v267 = vpack.c.bf16 %v231, %v231
      %v268 = vpack.c.bf16 %v232, %v232
      %v269 = vpack.c.bf16 %v233, %v233
      %v270 = vpack.c.bf16 %v234, %v234
      %v271 = vpack.c.bf16 %v235, %v235
      %v272 = vpack.c.bf16 %v236, %v236
      %v273 = vpack.c.bf16 %v237, %v237
      %v274 = vpack.c.bf16 %v238, %v238
      %v275 = vpack.c.bf16 %v239, %v239
      %v276 = vpack.c.bf16 %v240, %v240
      %v277 = vpack.c.bf16 %v241, %v241
      %v278 = vpack.c.bf16 %v242, %v242
      %v279 = vpack.c.bf16 %v243, %v243
      %v280 = vpack.c.bf16 %v244, %v244
      %v281 = vpack.c.bf16 %v245, %v245
      %vm282 = vcmask 60416
      %283 = vst.msk [vmem:[#allocation2] sm:$0xf] %vm282, 0
      %284 = vst.msk [vmem:[#allocation2 + $0x4] sm:$0xf] %vm282, 0
      %285 = vst.msk [vmem:[#allocation2 + $0x8] sm:$0xf] %vm282, 0
      %vm286 = vcmask 57344
      %287 = vst.msk [vmem:[#allocation2 + $0xc] sm:$0x1] %vm286, 0
      %vm324 = vcmask 1040384
      %vm325 = vcmask 1044484
      %vm326 = vmor %vm324, %vm325
      %v327 = vrot.slane %v246, 7
      %v328 = vrot.slane %v327, 4
      %v329 = vrot.slane %v247, 7
      %v330 = vsel %vm326, %v328, %v329
      %v331 = vrot.slane %v329, 4
      %v332 = vrot.slane %v248, 7
      %v333 = vsel %vm326, %v331, %v332
      %v334 = vrot.slane %v332, 4
      %v335 = vrot.slane %v249, 7
      %v336 = vsel %vm326, %v334, %v335
      %v337 = vrot.slane %v335, 4
      %v338 = vrot.slane %v250, 7
      %v339 = vsel %vm326, %v337, %v338
      %v340 = vrot.slane %v338, 4
      %v341 = vrot.slane %v251, 7
      %v342 = vsel %vm326, %v340, %v341
      %v343 = vrot.slane %v341, 4
      %v344 = vrot.slane %v252, 7
      %v345 = vsel %vm326, %v343, %v344
      %v346 = vrot.slane %v344, 4
      %v347 = vrot.slane %v253, 7
      %v348 = vsel %vm326, %v346, %v347
      %v349 = vrot.slane %v347, 4
      %v350 = vrot.slane %v254, 7
      %v351 = vsel %vm326, %v349, %v350
      %v352 = vrot.slane %v350, 4
      %v353 = vrot.slane %v255, 7
      %v354 = vsel %vm326, %v352, %v353
      %v355 = vrot.slane %v353, 4
      %v356 = vrot.slane %v256, 7
      %v357 = vsel %vm326, %v355, %v356
      %v358 = vrot.slane %v356, 4
      %v359 = vrot.slane %v257, 7
      %v360 = vsel %vm326, %v358, %v359
      %v361 = vrot.slane %v359, 4
      %v362 = vrot.slane %v258, 7
      %v363 = vsel %vm326, %v361, %v362
      %v364 = vrot.slane %v362, 4
      %v365 = vrot.slane %v259, 7
      %v366 = vsel %vm326, %v364, %v365
      %v367 = vrot.slane %v365, 4
      %v368 = vrot.slane %v260, 7
      %v369 = vsel %vm326, %v367, %v368
      %v370 = vrot.slane %v368, 4
      %v371 = vrot.slane %v261, 7
      %v372 = vsel %vm326, %v370, %v371
      %v373 = vrot.slane %v371, 4
      %v374 = vrot.slane %v262, 7
      %v375 = vsel %vm326, %v373, %v374
      %v376 = vrot.slane %v374, 4
      %v377 = vrot.slane %v263, 7
      %v378 = vsel %vm326, %v376, %v377
      %v379 = vrot.slane %v377, 4
      %v380 = vrot.slane %v264, 7
      %v381 = vsel %vm326, %v379, %v380
      %v382 = vrot.slane %v380, 4
      %v383 = vrot.slane %v265, 7
      %v384 = vsel %vm326, %v382, %v383
      %v385 = vrot.slane %v383, 4
      %v386 = vrot.slane %v266, 7
      %v387 = vsel %vm326, %v385, %v386
      %v388 = vrot.slane %v386, 4
      %v389 = vrot.slane %v267, 7
      %v390 = vsel %vm326, %v388, %v389
      %v391 = vrot.slane %v389, 4
      %v392 = vrot.slane %v268, 7
      %v393 = vsel %vm326, %v391, %v392
      %v394 = vrot.slane %v392, 4
      %v395 = vrot.slane %v269, 7
      %v396 = vsel %vm326, %v394, %v395
      %v397 = vrot.slane %v395, 4
      %v398 = vrot.slane %v270, 7
      %v399 = vsel %vm326, %v397, %v398
      %v400 = vrot.slane %v398, 4
      %v401 = vrot.slane %v271, 7
      %v402 = vsel %vm326, %v400, %v401
      %v403 = vrot.slane %v401, 4
      %v404 = vrot.slane %v272, 7
      %v405 = vsel %vm326, %v403, %v404
      %v406 = vrot.slane %v404, 4
      %v407 = vrot.slane %v273, 7
      %v408 = vsel %vm326, %v406, %v407
      %v409 = vrot.slane %v407, 4
      %v410 = vrot.slane %v274, 7
      %v411 = vsel %vm326, %v409, %v410
      %v412 = vrot.slane %v410, 4
      %v413 = vrot.slane %v275, 7
      %v414 = vsel %vm326, %v412, %v413
      %v415 = vrot.slane %v413, 4
      %v416 = vrot.slane %v276, 7
      %v417 = vsel %vm326, %v415, %v416
      %v418 = vrot.slane %v416, 4
      %v419 = vrot.slane %v277, 7
      %v420 = vsel %vm326, %v418, %v419
      %v421 = vrot.slane %v419, 4
      %v422 = vrot.slane %v278, 7
      %v423 = vsel %vm326, %v421, %v422
      %v424 = vrot.slane %v422, 4
      %v425 = vrot.slane %v279, 7
      %v426 = vsel %vm326, %v424, %v425
      %v427 = vrot.slane %v425, 4
      %v428 = vrot.slane %v280, 7
      %v429 = vsel %vm326, %v427, %v428
      %v430 = vrot.slane %v428, 4
      %v431 = vrot.slane %v281, 7
      %v432 = vsel %vm326, %v430, %v431
      %v433 = vrot.slane %v431, 4
      %vm471 = vcmask 60417
      %472 = vst.msk [vmem:[#allocation2 + $0xc] sm:$0xe] %vm471, %v327
      %473 = vst.msk [vmem:[#allocation2 + $0x10] sm:$0xf] %vm282, %v330
      %474 = vst.msk [vmem:[#allocation2 + $0x14] sm:$0xf] %vm282, %v333
      %475 = vst.msk [vmem:[#allocation2 + $0x18] sm:$0xf] %vm282, %v336
      %476 = vst.msk [vmem:[#allocation2 + $0x1c] sm:$0xf] %vm282, %v339
      %477 = vst.msk [vmem:[#allocation2 + $0x20] sm:$0xf] %vm282, %v342
      %478 = vst.msk [vmem:[#allocation2 + $0x24] sm:$0xf] %vm282, %v345
      %479 = vst.msk [vmem:[#allocation2 + $0x28] sm:$0xf] %vm282, %v348
      %480 = vst.msk [vmem:[#allocation2 + $0x2c] sm:$0xf] %vm282, %v351
      %481 = vst.msk [vmem:[#allocation2 + $0x30] sm:$0xf] %vm282, %v354
      %482 = vst.msk [vmem:[#allocation2 + $0x34] sm:$0xf] %vm282, %v357
      %483 = vst.msk [vmem:[#allocation2 + $0x38] sm:$0xf] %vm282, %v360
      %484 = vst.msk [vmem:[#allocation2 + $0x3c] sm:$0xf] %vm282, %v363
      %485 = vst.msk [vmem:[#allocation2 + $0x40] sm:$0xf] %vm282, %v366
      %486 = vst.msk [vmem:[#allocation2 + $0x44] sm:$0xf] %vm282, %v369
      %487 = vst.msk [vmem:[#allocation2 + $0x48] sm:$0xf] %vm282, %v372
      %488 = vst.msk [vmem:[#allocation2 + $0x4c] sm:$0xf] %vm282, %v375
      %489 = vst.msk [vmem:[#allocation2 + $0x50] sm:$0xf] %vm282, %v378
      %490 = vst.msk [vmem:[#allocation2 + $0x54] sm:$0xf] %vm282, %v381
      %491 = vst.msk [vmem:[#allocation2 + $0x58] sm:$0xf] %vm282, %v384
      %492 = vst.msk [vmem:[#allocation2 + $0x5c] sm:$0xf] %vm282, %v387
      %493 = vst.msk [vmem:[#allocation2 + $0x60] sm:$0xf] %vm282, %v390
      %494 = vst.msk [vmem:[#allocation2 + $0x64] sm:$0xf] %vm282, %v393
      %495 = vst.msk [vmem:[#allocation2 + $0x68] sm:$0xf] %vm282, %v396
      %496 = vst.msk [vmem:[#allocation2 + $0x6c] sm:$0xf] %vm282, %v399
      %497 = vst.msk [vmem:[#allocation2 + $0x70] sm:$0xf] %vm282, %v402
      %498 = vst.msk [vmem:[#allocation2 + $0x74] sm:$0xf] %vm282, %v405
      %499 = vst.msk [vmem:[#allocation2 + $0x78] sm:$0xf] %vm282, %v408
      %500 = vst.msk [vmem:[#allocation2 + $0x7c] sm:$0xf] %vm282, %v411
      %501 = vst.msk [vmem:[#allocation2 + $0x80] sm:$0xf] %vm282, %v414
      %502 = vst.msk [vmem:[#allocation2 + $0x84] sm:$0xf] %vm282, %v417
      %503 = vst.msk [vmem:[#allocation2 + $0x88] sm:$0xf] %vm282, %v420
      %504 = vst.msk [vmem:[#allocation2 + $0x8c] sm:$0xf] %vm282, %v423
      %505 = vst.msk [vmem:[#allocation2 + $0x90] sm:$0xf] %vm282, %v426
      %506 = vst.msk [vmem:[#allocation2 + $0x94] sm:$0xf] %vm282, %v429
      %507 = vst.msk [vmem:[#allocation2 + $0x98] sm:$0xf] %vm282, %v432
      %508 = vst.msk [vmem:[#allocation2 + $0x9c] sm:$0x1] %vm286, %v433
      %509 = vst.msk [vmem:[#allocation2 + $0x9c] sm:$0xe] %vm471, 0
      %510 = vst.msk [vmem:[#allocation2 + $0xa0] sm:$0xf] %vm282, 0
      %511 = vst.msk [vmem:[#allocation2 + $0xa4] sm:$0xf] %vm282, 0
      %512 = vst.msk [vmem:[#allocation2 + $0xa8] sm:$0xf] %vm282, 0
      %v513 = vld [vmem:[#allocation2] sm:$0x8]
      %v514 = vld [vmem:[#allocation2 + $0x4] sm:$0xf]
      %v515 = vld [vmem:[#allocation2 + $0x8] sm:$0xf]
      %v516 = vld [vmem:[#allocation2 + $0xc] sm:$0xf]
      %v517 = vld [vmem:[#allocation2 + $0x10] sm:$0xf]
      %v518 = vld [vmem:[#allocation2 + $0x14] sm:$0xf]
      %v519 = vld [vmem:[#allocation2 + $0x18] sm:$0xf]
      %v520 = vld [vmem:[#allocation2 + $0x1c] sm:$0xf]
      %v521 = vld [vmem:[#allocation2 + $0x20] sm:$0xf]
      %v522 = vld [vmem:[#allocation2 + $0x24] sm:$0xf]
      %v523 = vld [vmem:[#allocation2 + $0x28] sm:$0xf]
      %v524 = vld [vmem:[#allocation2 + $0x2c] sm:$0xf]
      %v525 = vld [vmem:[#allocation2 + $0x30] sm:$0xf]
      %v526 = vld [vmem:[#allocation2 + $0x34] sm:$0xf]
      %v527 = vld [vmem:[#allocation2 + $0x38] sm:$0xf]
      %v528 = vld [vmem:[#allocation2 + $0x3c] sm:$0xf]
      %v529 = vld [vmem:[#allocation2 + $0x40] sm:$0xf]
      %v530 = vld [vmem:[#allocation2 + $0x44] sm:$0xf]
      %v531 = vld [vmem:[#allocation2 + $0x48] sm:$0xf]
      %v532 = vld [vmem:[#allocation2 + $0x4c] sm:$0xf]
      %v533 = vld [vmem:[#allocation2 + $0x50] sm:$0xf]
      %v534 = vld [vmem:[#allocation2 + $0x54] sm:$0xf]
      %v535 = vld [vmem:[#allocation2 + $0x58] sm:$0xf]
      %v536 = vld [vmem:[#allocation2 + $0x5c] sm:$0xf]
      %v537 = vld [vmem:[#allocation2 + $0x60] sm:$0xf]
      %v538 = vld [vmem:[#allocation2 + $0x64] sm:$0xf]
      %v539 = vld [vmem:[#allocation2 + $0x68] sm:$0xf]
      %v540 = vld [vmem:[#allocation2 + $0x6c] sm:$0xf]
      %v541 = vld [vmem:[#allocation2 + $0x70] sm:$0xf]
      %v542 = vld [vmem:[#allocation2 + $0x74] sm:$0xf]
      %v543 = vld [vmem:[#allocation2 + $0x78] sm:$0xf]
      %v544 = vld [vmem:[#allocation2 + $0x7c] sm:$0xf]
      %v545 = vld [vmem:[#allocation2 + $0x80] sm:$0xf]
      %v546 = vld [vmem:[#allocation2 + $0x84] sm:$0xf]
      %v547 = vld [vmem:[#allocation2 + $0x88] sm:$0xf]
      %v548 = vld [vmem:[#allocation2 + $0x8c] sm:$0xf]
      %v549 = vld [vmem:[#allocation2 + $0x90] sm:$0xf]
      %v550 = vld [vmem:[%s2] sm:$0xf]
      %v588 = vunpack.c.l.b16 %v513
      %v589 = vunpack.c.l.b16 %v514
      %v590 = vunpack.c.l.b16 %v515
      %v591 = vunpack.c.l.b16 %v516
      %v592 = vunpack.c.l.b16 %v517
      %v593 = vunpack.c.l.b16 %v518
      %v594 = vunpack.c.l.b16 %v519
      %v595 = vunpack.c.l.b16 %v520
      %v596 = vunpack.c.l.b16 %v521
      %v597 = vunpack.c.l.b16 %v522
      %v598 = vunpack.c.l.b16 %v523
      %v599 = vunpack.c.l.b16 %v524
      %v600 = vunpack.c.l.b16 %v525
      %v601 = vunpack.c.l.b16 %v526
      %v602 = vunpack.c.l.b16 %v527
      %v603 = vunpack.c.l.b16 %v528
      %v604 = vunpack.c.l.b16 %v529
      %v605 = vunpack.c.l.b16 %v530
      %v606 = vunpack.c.l.b16 %v531
      %v607 = vunpack.c.l.b16 %v532
      %v608 = vunpack.c.l.b16 %v533
      %v609 = vunpack.c.l.b16 %v534
      %v610 = vunpack.c.l.b16 %v535
      %v611 = vunpack.c.l.b16 %v536
      %v612 = vunpack.c.l.b16 %v537
      %v613 = vunpack.c.l.b16 %v538
      %v614 = vunpack.c.l.b16 %v539
      %v615 = vunpack.c.l.b16 %v540
      %v616 = vunpack.c.l.b16 %v541
      %v617 = vunpack.c.l.b16 %v542
      %v618 = vunpack.c.l.b16 %v543
      %v619 = vunpack.c.l.b16 %v544
      %v620 = vunpack.c.l.b16 %v545
      %v621 = vunpack.c.l.b16 %v546
      %v622 = vunpack.c.l.b16 %v547
      %v623 = vunpack.c.l.b16 %v548
      %v624 = vunpack.c.l.b16 %v549
      %v625 = vpack.c.b16 %v589, %v588
      %v626 = vpack.c.b16 %v591, %v590
      %v627 = vpack.c.b16 %v593, %v592
      %v628 = vpack.c.b16 %v595, %v594
      %v629 = vpack.c.b16 %v597, %v596
      %v630 = vpack.c.b16 %v599, %v598
      %v631 = vpack.c.b16 %v601, %v600
      %v632 = vpack.c.b16 %v603, %v602
      %v633 = vpack.c.b16 %v605, %v604
      %v634 = vpack.c.b16 %v607, %v606
      %v635 = vpack.c.b16 %v609, %v608
      %v636 = vpack.c.b16 %v611, %v610
      %v637 = vpack.c.b16 %v613, %v612
      %v638 = vpack.c.b16 %v615, %v614
      %v639 = vpack.c.b16 %v617, %v616
      %v640 = vpack.c.b16 %v619, %v618
      %v641 = vpack.c.b16 %v621, %v620
      %v642 = vpack.c.b16 %v623, %v622
      %v643 = vpack.c.b16 %v624, %v624
      %vm644 = vsmask.f32 4352
      %v646 = vshrl.u32 %v625, 16
      %v648 = vrot.slane %v646, 3
      %v649 = vshll.u32 %v625, 16
      %v651 = vrot.slane %v649, 4
      %v652 = vor.u32 %v648, %v651
      %v654 = vshrl.u32 %v626, 16
      %v656 = vrot.slane %v654, 3
      %v657 = vshll.u32 %v626, 16
      %v659 = vrot.slane %v657, 4
      %v660 = vor.u32 %v656, %v659
      %v661 = vsel %vm644, %v652, %v660
      %v663 = vshrl.u32 %v627, 16
      %v665 = vrot.slane %v663, 3
      %v666 = vshll.u32 %v627, 16
      %v668 = vrot.slane %v666, 4
      %v669 = vor.u32 %v665, %v668
      %v670 = vsel %vm644, %v660, %v669
      %v672 = vshrl.u32 %v628, 16
      %v674 = vrot.slane %v672, 3
      %v675 = vshll.u32 %v628, 16
      %v677 = vrot.slane %v675, 4
      %v678 = vor.u32 %v674, %v677
      %v679 = vsel %vm644, %v669, %v678
      %v681 = vshrl.u32 %v629, 16
      %v683 = vrot.slane %v681, 3
      %v684 = vshll.u32 %v629, 16
      %v686 = vrot.slane %v684, 4
      %v687 = vor.u32 %v683, %v686
      %v688 = vsel %vm644, %v678, %v687
      %v690 = vshrl.u32 %v630, 16
      %v692 = vrot.slane %v690, 3
      %v693 = vshll.u32 %v630, 16
      %v695 = vrot.slane %v693, 4
      %v696 = vor.u32 %v692, %v695
      %v697 = vsel %vm644, %v687, %v696
      %v699 = vshrl.u32 %v631, 16
      %v701 = vrot.slane %v699, 3
      %v702 = vshll.u32 %v631, 16
      %v704 = vrot.slane %v702, 4
      %v705 = vor.u32 %v701, %v704
      %v706 = vsel %vm644, %v696, %v705
      %v708 = vshrl.u32 %v632, 16
      %v710 = vrot.slane %v708, 3
      %v711 = vshll.u32 %v632, 16
      %v713 = vrot.slane %v711, 4
      %v714 = vor.u32 %v710, %v713
      %v715 = vsel %vm644, %v705, %v714
      %v717 = vshrl.u32 %v633, 16
      %v719 = vrot.slane %v717, 3
      %v720 = vshll.u32 %v633, 16
      %v722 = vrot.slane %v720, 4
      %v723 = vor.u32 %v719, %v722
      %v724 = vsel %vm644, %v714, %v723
      %v726 = vshrl.u32 %v634, 16
      %v728 = vrot.slane %v726, 3
      %v729 = vshll.u32 %v634, 16
      %v731 = vrot.slane %v729, 4
      %v732 = vor.u32 %v728, %v731
      %v733 = vsel %vm644, %v723, %v732
      %v735 = vshrl.u32 %v635, 16
      %v737 = vrot.slane %v735, 3
      %v738 = vshll.u32 %v635, 16
      %v740 = vrot.slane %v738, 4
      %v741 = vor.u32 %v737, %v740
      %v742 = vsel %vm644, %v732, %v741
      %v744 = vshrl.u32 %v636, 16
      %v746 = vrot.slane %v744, 3
      %v747 = vshll.u32 %v636, 16
      %v749 = vrot.slane %v747, 4
      %v750 = vor.u32 %v746, %v749
      %v751 = vsel %vm644, %v741, %v750
      %v753 = vshrl.u32 %v637, 16
      %v755 = vrot.slane %v753, 3
      %v756 = vshll.u32 %v637, 16
      %v758 = vrot.slane %v756, 4
      %v759 = vor.u32 %v755, %v758
      %v760 = vsel %vm644, %v750, %v759
      %v762 = vshrl.u32 %v638, 16
      %v764 = vrot.slane %v762, 3
      %v765 = vshll.u32 %v638, 16
      %v767 = vrot.slane %v765, 4
      %v768 = vor.u32 %v764, %v767
      %v769 = vsel %vm644, %v759, %v768
      %v771 = vshrl.u32 %v639, 16
      %v773 = vrot.slane %v771, 3
      %v774 = vshll.u32 %v639, 16
      %v776 = vrot.slane %v774, 4
      %v777 = vor.u32 %v773, %v776
      %v778 = vsel %vm644, %v768, %v777
      %v780 = vshrl.u32 %v640, 16
      %v782 = vrot.slane %v780, 3
      %v783 = vshll.u32 %v640, 16
      %v785 = vrot.slane %v783, 4
      %v786 = vor.u32 %v782, %v785
      %v787 = vsel %vm644, %v777, %v786
      %v789 = vshrl.u32 %v641, 16
      %v791 = vrot.slane %v789, 3
      %v792 = vshll.u32 %v641, 16
      %v794 = vrot.slane %v792, 4
      %v795 = vor.u32 %v791, %v794
      %v796 = vsel %vm644, %v786, %v795
      %v798 = vshrl.u32 %v642, 16
      %v800 = vrot.slane %v798, 3
      %v801 = vshll.u32 %v642, 16
      %v803 = vrot.slane %v801, 4
      %v804 = vor.u32 %v800, %v803
      %v805 = vsel %vm644, %v795, %v804
      %v807 = vshrl.u32 %v643, 16
      %v809 = vrot.slane %v807, 3
      %v810 = vshll.u32 %v643, 16
      %v812 = vrot.slane %v810, 4
      %v813 = vor.u32 %v809, %v812
      %v814 = vsel %vm644, %v804, %v813
      %vm815 = vcmask 64512
      %v817 = vsel %vm815, %v661, 0
      %v820 = vsel %vm815, %v670, 0
      %v823 = vsel %vm815, %v679, 0
      %v826 = vsel %vm815, %v688, 0
      %v829 = vsel %vm815, %v697, 0
      %v832 = vsel %vm815, %v706, 0
      %v835 = vsel %vm815, %v715, 0
      %v838 = vsel %vm815, %v724, 0
      %v841 = vsel %vm815, %v733, 0
      %v844 = vsel %vm815, %v742, 0
      %v847 = vsel %vm815, %v751, 0
      %v850 = vsel %vm815, %v760, 0
      %v853 = vsel %vm815, %v769, 0
      %v856 = vsel %vm815, %v778, 0
      %v859 = vsel %vm815, %v787, 0
      %v862 = vsel %vm815, %v796, 0
      %v865 = vsel %vm815, %v805, 0
      %v868 = vsel %vm815, %v814, 0
      %vm870 = vcmask 1043456
      %v872 = vsel %vm870, %v550, 0
      %874 = vmatpush.bf16.msra.mxu0 0
      %875 = vmatpush.bf16.msra.mxu0 0
      %876 = vmatpush.bf16.msra.mxu0 0
      %877 = vmatpush.bf16.msra.mxu0 0
      %878 = vmatpush.bf16.msra.mxu0 0
      %879 = vmatpush.bf16.msra.mxu0 0
      %880 = vmatpush.bf16.msra.mxu0 0
      %881 = vmatpush.bf16.msra.mxu0 %v872
      %882 = vmatmul.bf16.gmra.mxu0 %v817
      %v883 = vpop.f32.mrf.mxu0
      %v884 = vadd.f32 0.0, %v883
      %v885 = vpop.f32.mrf.mxu0
      %v886 = vadd.f32 0.0, %v885
      %887 = vmatmul.bf16.gmra.mxu0 %v820
      %v888 = vpop.f32.mrf.mxu0
      %v889 = vadd.f32 0.0, %v888
      %v890 = vpop.f32.mrf.mxu0
      %v891 = vadd.f32 0.0, %v890
      %892 = vmatmul.bf16.gmra.mxu0 %v823
      %v893 = vpop.f32.mrf.mxu0
      %v894 = vadd.f32 0.0, %v893
      %v895 = vpop.f32.mrf.mxu0
      %v896 = vadd.f32 0.0, %v895
      %897 = vmatmul.bf16.gmra.mxu0 %v826
      %v898 = vpop.f32.mrf.mxu0
      %v899 = vadd.f32 0.0, %v898
      %v900 = vpop.f32.mrf.mxu0
      %v901 = vadd.f32 0.0, %v900
      %902 = vmatmul.bf16.gmra.mxu0 %v829
      %v903 = vpop.f32.mrf.mxu0
      %v904 = vadd.f32 0.0, %v903
      %v905 = vpop.f32.mrf.mxu0
      %v906 = vadd.f32 0.0, %v905
      %907 = vmatmul.bf16.gmra.mxu0 %v832
      %v908 = vpop.f32.mrf.mxu0
      %v909 = vadd.f32 0.0, %v908
      %v910 = vpop.f32.mrf.mxu0
      %v911 = vadd.f32 0.0, %v910
      %912 = vmatmul.bf16.gmra.mxu0 %v835
      %v913 = vpop.f32.mrf.mxu0
      %v914 = vadd.f32 0.0, %v913
      %v915 = vpop.f32.mrf.mxu0
      %v916 = vadd.f32 0.0, %v915
      %917 = vmatmul.bf16.gmra.mxu0 %v838
      %v918 = vpop.f32.mrf.mxu0
      %v919 = vadd.f32 0.0, %v918
      %v920 = vpop.f32.mrf.mxu0
      %v921 = vadd.f32 0.0, %v920
      %922 = vmatmul.bf16.gmra.mxu0 %v841
      %v923 = vpop.f32.mrf.mxu0
      %v924 = vadd.f32 0.0, %v923
      %v925 = vpop.f32.mrf.mxu0
      %v926 = vadd.f32 0.0, %v925
      %927 = vmatmul.bf16.gmra.mxu0 %v844
      %v928 = vpop.f32.mrf.mxu0
      %v929 = vadd.f32 0.0, %v928
      %v930 = vpop.f32.mrf.mxu0
      %v931 = vadd.f32 0.0, %v930
      %932 = vmatmul.bf16.gmra.mxu0 %v847
      %v933 = vpop.f32.mrf.mxu0
      %v934 = vadd.f32 0.0, %v933
      %v935 = vpop.f32.mrf.mxu0
      %v936 = vadd.f32 0.0, %v935
      %937 = vmatmul.bf16.gmra.mxu0 %v850
      %v938 = vpop.f32.mrf.mxu0
      %v939 = vadd.f32 0.0, %v938
      %v940 = vpop.f32.mrf.mxu0
      %v941 = vadd.f32 0.0, %v940
      %942 = vmatmul.bf16.gmra.mxu0 %v853
      %v943 = vpop.f32.mrf.mxu0
      %v944 = vadd.f32 0.0, %v943
      %v945 = vpop.f32.mrf.mxu0
      %v946 = vadd.f32 0.0, %v945
      %947 = vmatmul.bf16.gmra.mxu0 %v856
      %v948 = vpop.f32.mrf.mxu0
      %v949 = vadd.f32 0.0, %v948
      %v950 = vpop.f32.mrf.mxu0
      %v951 = vadd.f32 0.0, %v950
      %952 = vmatmul.bf16.gmra.mxu0 %v859
      %v953 = vpop.f32.mrf.mxu0
      %v954 = vadd.f32 0.0, %v953
      %v955 = vpop.f32.mrf.mxu0
      %v956 = vadd.f32 0.0, %v955
      %957 = vmatmul.bf16.gmra.mxu0 %v862
      %v958 = vpop.f32.mrf.mxu0
      %v959 = vadd.f32 0.0, %v958
      %v960 = vpop.f32.mrf.mxu0
      %v961 = vadd.f32 0.0, %v960
      %962 = vmatmul.bf16.gmra.mxu0 %v865
      %v963 = vpop.f32.mrf.mxu0
      %v964 = vadd.f32 0.0, %v963
      %v965 = vpop.f32.mrf.mxu0
      %v966 = vadd.f32 0.0, %v965
      %967 = vmatmul.bf16.gmra.mxu0 %v868
      %v968 = vpop.f32.mrf.mxu0
      %v969 = vadd.f32 0.0, %v968
      %v970 = vpop.f32.mrf.mxu0
      %v971 = vadd.f32 0.0, %v970
      %972 = vdwg.mxu0
      %973 = vst [vmem:[#allocation3] sm:$0xff] %v884
      %974 = vst [vmem:[#allocation3 + $0x8] sm:$0xff] %v886
      %975 = vst [vmem:[#allocation3 + $0x10] sm:$0xff] %v889
      %976 = vst [vmem:[#allocation3 + $0x18] sm:$0xff] %v891
      %977 = vst [vmem:[#allocation3 + $0x20] sm:$0xff] %v894
      %978 = vst [vmem:[#allocation3 + $0x28] sm:$0xff] %v896
      %979 = vst [vmem:[#allocation3 + $0x30] sm:$0xff] %v899
      %980 = vst [vmem:[#allocation3 + $0x38] sm:$0xff] %v901
      %981 = vst [vmem:[#allocation3 + $0x40] sm:$0xff] %v904
      %982 = vst [vmem:[#allocation3 + $0x48] sm:$0xff] %v906
      %983 = vst [vmem:[#allocation3 + $0x50] sm:$0xff] %v909
      %984 = vst [vmem:[#allocation3 + $0x58] sm:$0xff] %v911
      %985 = vst [vmem:[#allocation3 + $0x60] sm:$0xff] %v914
      %986 = vst [vmem:[#allocation3 + $0x68] sm:$0xff] %v916
      %987 = vst [vmem:[#allocation3 + $0x70] sm:$0xff] %v919
      %988 = vst [vmem:[#allocation3 + $0x78] sm:$0xff] %v921
      %989 = vst [vmem:[#allocation3 + $0x80] sm:$0xff] %v924
      %990 = vst [vmem:[#allocation3 + $0x88] sm:$0xff] %v926
      %991 = vst [vmem:[#allocation3 + $0x90] sm:$0xff] %v929
      %992 = vst [vmem:[#allocation3 + $0x98] sm:$0xff] %v931
      %993 = vst [vmem:[#allocation3 + $0xa0] sm:$0xff] %v934
      %994 = vst [vmem:[#allocation3 + $0xa8] sm:$0xff] %v936
      %995 = vst [vmem:[#allocation3 + $0xb0] sm:$0xff] %v939
      %996 = vst [vmem:[#allocation3 + $0xb8] sm:$0xff] %v941
      %997 = vst [vmem:[#allocation3 + $0xc0] sm:$0xff] %v944
      %998 = vst [vmem:[#allocation3 + $0xc8] sm:$0xff] %v946
      %999 = vst [vmem:[#allocation3 + $0xd0] sm:$0xff] %v949
      %1000 = vst [vmem:[#allocation3 + $0xd8] sm:$0xff] %v951
      %1001 = vst [vmem:[#allocation3 + $0xe0] sm:$0xff] %v954
      %1002 = vst [vmem:[#allocation3 + $0xe8] sm:$0xff] %v956
      %1003 = vst [vmem:[#allocation3 + $0xf0] sm:$0xff] %v959
      %1004 = vst [vmem:[#allocation3 + $0xf8] sm:$0xff] %v961
      %1005 = vst [vmem:[#allocation3 + $0x100] sm:$0xff] %v964
      %1006 = vst [vmem:[#allocation3 + $0x108] sm:$0xff] %v966
      %1007 = vst [vmem:[#allocation3 + $0x110] sm:$0xff] %v969
      %1008 = vst [vmem:[#allocation3 + $0x118] sm:$0xff] %v971
      %v1009 = vld [vmem:[#allocation2 + $0x4] sm:$0xf]
      %v1010 = vld [vmem:[#allocation2 + $0x8] sm:$0xf]
      %v1011 = vld [vmem:[#allocation2 + $0xc] sm:$0xf]
      %v1012 = vld [vmem:[#allocation2 + $0x10] sm:$0xf]
      %v1013 = vld [vmem:[#allocation2 + $0x14] sm:$0xf]
      %v1014 = vld [vmem:[#allocation2 + $0x18] sm:$0xf]
      %v1015 = vld [vmem:[#allocation2 + $0x1c] sm:$0xf]
      %v1016 = vld [vmem:[#allocation2 + $0x20] sm:$0xf]
      %v1017 = vld [vmem:[#allocation2 + $0x24] sm:$0xf]
      %v1018 = vld [vmem:[#allocation2 + $0x28] sm:$0xf]
      %v1019 = vld [vmem:[#allocation2 + $0x2c] sm:$0xf]
      %v1020 = vld [vmem:[#allocation2 + $0x30] sm:$0xf]
      %v1021 = vld [vmem:[#allocation2 + $0x34] sm:$0xf]
      %v1022 = vld [vmem:[#allocation2 + $0x38] sm:$0xf]
      %v1023 = vld [vmem:[#allocation2 + $0x3c] sm:$0xf]
      %v1024 = vld [vmem:[#allocation2 + $0x40] sm:$0xf]
      %v1025 = vld [vmem:[#allocation2 + $0x44] sm:$0xf]
      %v1026 = vld [vmem:[#allocation2 + $0x48] sm:$0xf]
      %v1027 = vld [vmem:[#allocation2 + $0x4c] sm:$0xf]
      %v1028 = vld [vmem:[#allocation2 + $0x50] sm:$0xf]
      %v1029 = vld [vmem:[#allocation2 + $0x54] sm:$0xf]
      %v1030 = vld [vmem:[#allocation2 + $0x58] sm:$0xf]
      %v1031 = vld [vmem:[#allocation2 + $0x5c] sm:$0xf]
      %v1032 = vld [vmem:[#allocation2 + $0x60] sm:$0xf]
      %v1033 = vld [vmem:[#allocation2 + $0x64] sm:$0xf]
      %v1034 = vld [vmem:[#allocation2 + $0x68] sm:$0xf]
      %v1035 = vld [vmem:[#allocation2 + $0x6c] sm:$0xf]
      %v1036 = vld [vmem:[#allocation2 + $0x70] sm:$0xf]
      %v1037 = vld [vmem:[#allocation2 + $0x74] sm:$0xf]
      %v1038 = vld [vmem:[#allocation2 + $0x78] sm:$0xf]
      %v1039 = vld [vmem:[#allocation2 + $0x7c] sm:$0xf]
      %v1040 = vld [vmem:[#allocation2 + $0x80] sm:$0xf]
      %v1041 = vld [vmem:[#allocation2 + $0x84] sm:$0xf]
      %v1042 = vld [vmem:[#allocation2 + $0x88] sm:$0xf]
      %v1043 = vld [vmem:[#allocation2 + $0x8c] sm:$0xf]
      %v1044 = vld [vmem:[#allocation2 + $0x90] sm:$0xf]
      %s1045 = scalar_lea.vmem %s2, 4
      %v1046 = vld [vmem:[%s1045] sm:$0xf]
      %v1083 = vunpack.c.l.b16 %v1009
      %v1084 = vunpack.c.l.b16 %v1010
      %v1085 = vunpack.c.l.b16 %v1011
      %v1086 = vunpack.c.l.b16 %v1012
      %v1087 = vunpack.c.l.b16 %v1013
      %v1088 = vunpack.c.l.b16 %v1014
      %v1089 = vunpack.c.l.b16 %v1015
      %v1090 = vunpack.c.l.b16 %v1016
      %v1091 = vunpack.c.l.b16 %v1017
      %v1092 = vunpack.c.l.b16 %v1018
      %v1093 = vunpack.c.l.b16 %v1019
      %v1094 = vunpack.c.l.b16 %v1020
      %v1095 = vunpack.c.l.b16 %v1021
      %v1096 = vunpack.c.l.b16 %v1022
      %v1097 = vunpack.c.l.b16 %v1023
      %v1098 = vunpack.c.l.b16 %v1024
      %v1099 = vunpack.c.l.b16 %v1025
      %v1100 = vunpack.c.l.b16 %v1026
      %v1101 = vunpack.c.l.b16 %v1027
      %v1102 = vunpack.c.l.b16 %v1028
      %v1103 = vunpack.c.l.b16 %v1029
      %v1104 = vunpack.c.l.b16 %v1030
      %v1105 = vunpack.c.l.b16 %v1031
      %v1106 = vunpack.c.l.b16 %v1032
      %v1107 = vunpack.c.l.b16 %v1033
      %v1108 = vunpack.c.l.b16 %v1034
      %v1109 = vunpack.c.l.b16 %v1035
      %v1110 = vunpack.c.l.b16 %v1036
      %v1111 = vunpack.c.l.b16 %v1037
      %v1112 = vunpack.c.l.b16 %v1038
      %v1113 = vunpack.c.l.b16 %v1039
      %v1114 = vunpack.c.l.b16 %v1040
      %v1115 = vunpack.c.l.b16 %v1041
      %v1116 = vunpack.c.l.b16 %v1042
      %v1117 = vunpack.c.l.b16 %v1043
      %v1118 = vunpack.c.l.b16 %v1044
      %v1119 = vpack.c.b16 %v1084, %v1083
      %v1120 = vpack.c.b16 %v1086, %v1085
      %v1121 = vpack.c.b16 %v1088, %v1087
      %v1122 = vpack.c.b16 %v1090, %v1089
      %v1123 = vpack.c.b16 %v1092, %v1091
      %v1124 = vpack.c.b16 %v1094, %v1093
      %v1125 = vpack.c.b16 %v1096, %v1095
      %v1126 = vpack.c.b16 %v1098, %v1097
      %v1127 = vpack.c.b16 %v1100, %v1099
      %v1128 = vpack.c.b16 %v1102, %v1101
      %v1129 = vpack.c.b16 %v1104, %v1103
      %v1130 = vpack.c.b16 %v1106, %v1105
      %v1131 = vpack.c.b16 %v1108, %v1107
      %v1132 = vpack.c.b16 %v1110, %v1109
      %v1133 = vpack.c.b16 %v1112, %v1111
      %v1134 = vpack.c.b16 %v1114, %v1113
      %v1135 = vpack.c.b16 %v1116, %v1115
      %v1136 = vpack.c.b16 %v1118, %v1117
      %v1138 = vsel %vm815, %v1119, 0
      %v1141 = vsel %vm815, %v1120, 0
      %v1144 = vsel %vm815, %v1121, 0
      %v1147 = vsel %vm815, %v1122, 0
      %v1150 = vsel %vm815, %v1123, 0
      %v1153 = vsel %vm815, %v1124, 0
      %v1156 = vsel %vm815, %v1125, 0
      %v1159 = vsel %vm815, %v1126, 0
      %v1162 = vsel %vm815, %v1127, 0
      %v1165 = vsel %vm815, %v1128, 0
      %v1168 = vsel %vm815, %v1129, 0
      %v1171 = vsel %vm815, %v1130, 0
      %v1174 = vsel %vm815, %v1131, 0
      %v1177 = vsel %vm815, %v1132, 0
      %v1180 = vsel %vm815, %v1133, 0
      %v1183 = vsel %vm815, %v1134, 0
      %v1186 = vsel %vm815, %v1135, 0
      %v1189 = vsel %vm815, %v1136, 0
      %v1192 = vsel %vm870, %v1046, 0
      %1194 = vmatpush.bf16.msra.mxu0 0
      %1195 = vmatpush.bf16.msra.mxu0 0
      %1196 = vmatpush.bf16.msra.mxu0 0
      %1197 = vmatpush.bf16.msra.mxu0 0
      %1198 = vmatpush.bf16.msra.mxu0 0
      %1199 = vmatpush.bf16.msra.mxu0 0
      %1200 = vmatpush.bf16.msra.mxu0 0
      %1201 = vmatpush.bf16.msra.mxu0 %v1192
      %1202 = vmatmul.bf16.gmra.mxu0 %v1138
      %v1203 = vpop.f32.mrf.mxu0
      %v1204 = vadd.f32 0.0, %v1203
      %v1205 = vpop.f32.mrf.mxu0
      %v1206 = vadd.f32 0.0, %v1205
      %1207 = vmatmul.bf16.gmra.mxu0 %v1141
      %v1208 = vpop.f32.mrf.mxu0
      %v1209 = vadd.f32 0.0, %v1208
      %v1210 = vpop.f32.mrf.mxu0
      %v1211 = vadd.f32 0.0, %v1210
      %1212 = vmatmul.bf16.gmra.mxu0 %v1144
      %v1213 = vpop.f32.mrf.mxu0
      %v1214 = vadd.f32 0.0, %v1213
      %v1215 = vpop.f32.mrf.mxu0
      %v1216 = vadd.f32 0.0, %v1215
      %1217 = vmatmul.bf16.gmra.mxu0 %v1147
      %v1218 = vpop.f32.mrf.mxu0
      %v1219 = vadd.f32 0.0, %v1218
      %v1220 = vpop.f32.mrf.mxu0
      %v1221 = vadd.f32 0.0, %v1220
      %1222 = vmatmul.bf16.gmra.mxu0 %v1150
      %v1223 = vpop.f32.mrf.mxu0
      %v1224 = vadd.f32 0.0, %v1223
      %v1225 = vpop.f32.mrf.mxu0
      %v1226 = vadd.f32 0.0, %v1225
      %1227 = vmatmul.bf16.gmra.mxu0 %v1153
      %v1228 = vpop.f32.mrf.mxu0
      %v1229 = vadd.f32 0.0, %v1228
      %v1230 = vpop.f32.mrf.mxu0
      %v1231 = vadd.f32 0.0, %v1230
      %1232 = vmatmul.bf16.gmra.mxu0 %v1156
      %v1233 = vpop.f32.mrf.mxu0
      %v1234 = vadd.f32 0.0, %v1233
      %v1235 = vpop.f32.mrf.mxu0
      %v1236 = vadd.f32 0.0, %v1235
      %1237 = vmatmul.bf16.gmra.mxu0 %v1159
      %v1238 = vpop.f32.mrf.mxu0
      %v1239 = vadd.f32 0.0, %v1238
      %v1240 = vpop.f32.mrf.mxu0
      %v1241 = vadd.f32 0.0, %v1240
      %1242 = vmatmul.bf16.gmra.mxu0 %v1162
      %v1243 = vpop.f32.mrf.mxu0
      %v1244 = vadd.f32 0.0, %v1243
      %v1245 = vpop.f32.mrf.mxu0
      %v1246 = vadd.f32 0.0, %v1245
      %1247 = vmatmul.bf16.gmra.mxu0 %v1165
      %v1248 = vpop.f32.mrf.mxu0
      %v1249 = vadd.f32 0.0, %v1248
      %v1250 = vpop.f32.mrf.mxu0
      %v1251 = vadd.f32 0.0, %v1250
      %1252 = vmatmul.bf16.gmra.mxu0 %v1168
      %v1253 = vpop.f32.mrf.mxu0
      %v1254 = vadd.f32 0.0, %v1253
      %v1255 = vpop.f32.mrf.mxu0
      %v1256 = vadd.f32 0.0, %v1255
      %1257 = vmatmul.bf16.gmra.mxu0 %v1171
      %v1258 = vpop.f32.mrf.mxu0
      %v1259 = vadd.f32 0.0, %v1258
      %v1260 = vpop.f32.mrf.mxu0
      %v1261 = vadd.f32 0.0, %v1260
      %1262 = vmatmul.bf16.gmra.mxu0 %v1174
      %v1263 = vpop.f32.mrf.mxu0
      %v1264 = vadd.f32 0.0, %v1263
      %v1265 = vpop.f32.mrf.mxu0
      %v1266 = vadd.f32 0.0, %v1265
      %1267 = vmatmul.bf16.gmra.mxu0 %v1177
      %v1268 = vpop.f32.mrf.mxu0
      %v1269 = vadd.f32 0.0, %v1268
      %v1270 = vpop.f32.mrf.mxu0
      %v1271 = vadd.f32 0.0, %v1270
      %1272 = vmatmul.bf16.gmra.mxu0 %v1180
      %v1273 = vpop.f32.mrf.mxu0
      %v1274 = vadd.f32 0.0, %v1273
      %v1275 = vpop.f32.mrf.mxu0
      %v1276 = vadd.f32 0.0, %v1275
      %1277 = vmatmul.bf16.gmra.mxu0 %v1183
      %v1278 = vpop.f32.mrf.mxu0
      %v1279 = vadd.f32 0.0, %v1278
      %v1280 = vpop.f32.mrf.mxu0
      %v1281 = vadd.f32 0.0, %v1280
      %1282 = vmatmul.bf16.gmra.mxu0 %v1186
      %v1283 = vpop.f32.mrf.mxu0
      %v1284 = vadd.f32 0.0, %v1283
      %v1285 = vpop.f32.mrf.mxu0
      %v1286 = vadd.f32 0.0, %v1285
      %1287 = vmatmul.bf16.gmra.mxu0 %v1189
      %v1288 = vpop.f32.mrf.mxu0
      %v1289 = vadd.f32 0.0, %v1288
      %v1290 = vpop.f32.mrf.mxu0
      %v1291 = vadd.f32 0.0, %v1290
      %1292 = vdwg.mxu0
      %v1293 = vld [vmem:[#allocation3] sm:$0xff]
      %v1294 = vld [vmem:[#allocation3 + $0x8] sm:$0xff]
      %v1295 = vld [vmem:[#allocation3 + $0x10] sm:$0xff]
      %v1296 = vld [vmem:[#allocation3 + $0x18] sm:$0xff]
      %v1297 = vld [vmem:[#allocation3 + $0x20] sm:$0xff]
      %v1298 = vld [vmem:[#allocation3 + $0x28] sm:$0xff]
      %v1299 = vld [vmem:[#allocation3 + $0x30] sm:$0xff]
      %v1300 = vld [vmem:[#allocation3 + $0x38] sm:$0xff]
      %v1301 = vld [vmem:[#allocation3 + $0x40] sm:$0xff]
      %v1302 = vld [vmem:[#allocation3 + $0x48] sm:$0xff]
      %v1303 = vld [vmem:[#allocation3 + $0x50] sm:$0xff]
      %v1304 = vld [vmem:[#allocation3 + $0x58] sm:$0xff]
      %v1305 = vld [vmem:[#allocation3 + $0x60] sm:$0xff]
      %v1306 = vld [vmem:[#allocation3 + $0x68] sm:$0xff]
      %v1307 = vld [vmem:[#allocation3 + $0x70] sm:$0xff]
      %v1308 = vld [vmem:[#allocation3 + $0x78] sm:$0xff]
      %v1309 = vld [vmem:[#allocation3 + $0x80] sm:$0xff]
      %v1310 = vld [vmem:[#allocation3 + $0x88] sm:$0xff]
      %v1311 = vld [vmem:[#allocation3 + $0x90] sm:$0xff]
      %v1312 = vld [vmem:[#allocation3 + $0x98] sm:$0xff]
      %v1313 = vld [vmem:[#allocation3 + $0xa0] sm:$0xff]
      %v1314 = vld [vmem:[#allocation3 + $0xa8] sm:$0xff]
      %v1315 = vld [vmem:[#allocation3 + $0xb0] sm:$0xff]
      %v1316 = vld [vmem:[#allocation3 + $0xb8] sm:$0xff]
      %v1317 = vld [vmem:[#allocation3 + $0xc0] sm:$0xff]
      %v1318 = vld [vmem:[#allocation3 + $0xc8] sm:$0xff]
      %v1319 = vld [vmem:[#allocation3 + $0xd0] sm:$0xff]
      %v1320 = vld [vmem:[#allocation3 + $0xd8] sm:$0xff]
      %v1321 = vld [vmem:[#allocation3 + $0xe0] sm:$0xff]
      %v1322 = vld [vmem:[#allocation3 + $0xe8] sm:$0xff]
      %v1323 = vld [vmem:[#allocation3 + $0xf0] sm:$0xff]
      %v1324 = vld [vmem:[#allocation3 + $0xf8] sm:$0xff]
      %v1325 = vld [vmem:[#allocation3 + $0x100] sm:$0xff]
      %v1326 = vld [vmem:[#allocation3 + $0x108] sm:$0xff]
      %v1327 = vld [vmem:[#allocation3 + $0x110] sm:$0xff]
      %v1328 = vld [vmem:[#allocation3 + $0x118] sm:$0xff]
      %v1329 = vadd.f32 %v1293, %v1204
      %v1330 = vadd.f32 %v1294, %v1206
      %v1331 = vadd.f32 %v1295, %v1209
      %v1332 = vadd.f32 %v1296, %v1211
      %v1333 = vadd.f32 %v1297, %v1214
      %v1334 = vadd.f32 %v1298, %v1216
      %v1335 = vadd.f32 %v1299, %v1219
      %v1336 = vadd.f32 %v1300, %v1221
      %v1337 = vadd.f32 %v1301, %v1224
      %v1338 = vadd.f32 %v1302, %v1226
      %v1339 = vadd.f32 %v1303, %v1229
      %v1340 = vadd.f32 %v1304, %v1231
      %v1341 = vadd.f32 %v1305, %v1234
      %v1342 = vadd.f32 %v1306, %v1236
      %v1343 = vadd.f32 %v1307, %v1239
      %v1344 = vadd.f32 %v1308, %v1241
      %v1345 = vadd.f32 %v1309, %v1244
      %v1346 = vadd.f32 %v1310, %v1246
      %v1347 = vadd.f32 %v1311, %v1249
      %v1348 = vadd.f32 %v1312, %v1251
      %v1349 = vadd.f32 %v1313, %v1254
      %v1350 = vadd.f32 %v1314, %v1256
      %v1351 = vadd.f32 %v1315, %v1259
      %v1352 = vadd.f32 %v1316, %v1261
      %v1353 = vadd.f32 %v1317, %v1264
      %v1354 = vadd.f32 %v1318, %v1266
      %v1355 = vadd.f32 %v1319, %v1269
      %v1356 = vadd.f32 %v1320, %v1271
      %v1357 = vadd.f32 %v1321, %v1274
      %v1358 = vadd.f32 %v1322, %v1276
      %v1359 = vadd.f32 %v1323, %v1279
      %v1360 = vadd.f32 %v1324, %v1281
      %v1361 = vadd.f32 %v1325, %v1284
      %v1362 = vadd.f32 %v1326, %v1286
      %v1363 = vadd.f32 %v1327, %v1289
      %v1364 = vadd.f32 %v1328, %v1291
      %1365 = vst [vmem:[#allocation3] sm:$0xff] %v1329
      %1366 = vst [vmem:[#allocation3 + $0x8] sm:$0xff] %v1330
      %1367 = vst [vmem:[#allocation3 + $0x10] sm:$0xff] %v1331
      %1368 = vst [vmem:[#allocation3 + $0x18] sm:$0xff] %v1332
      %1369 = vst [vmem:[#allocation3 + $0x20] sm:$0xff] %v1333
      %1370 = vst [vmem:[#allocation3 + $0x28] sm:$0xff] %v1334
      %1371 = vst [vmem:[#allocation3 + $0x30] sm:$0xff] %v1335
      %1372 = vst [vmem:[#allocation3 + $0x38] sm:$0xff] %v1336
      %1373 = vst [vmem:[#allocation3 + $0x40] sm:$0xff] %v1337
      %1374 = vst [vmem:[#allocation3 + $0x48] sm:$0xff] %v1338
      %1375 = vst [vmem:[#allocation3 + $0x50] sm:$0xff] %v1339
      %1376 = vst [vmem:[#allocation3 + $0x58] sm:$0xff] %v1340
      %1377 = vst [vmem:[#allocation3 + $0x60] sm:$0xff] %v1341
      %1378 = vst [vmem:[#allocation3 + $0x68] sm:$0xff] %v1342
      %1379 = vst [vmem:[#allocation3 + $0x70] sm:$0xff] %v1343
      %1380 = vst [vmem:[#allocation3 + $0x78] sm:$0xff] %v1344
      %1381 = vst [vmem:[#allocation3 + $0x80] sm:$0xff] %v1345
      %1382 = vst [vmem:[#allocation3 + $0x88] sm:$0xff] %v1346
      %1383 = vst [vmem:[#allocation3 + $0x90] sm:$0xff] %v1347
      %1384 = vst [vmem:[#allocation3 + $0x98] sm:$0xff] %v1348
      %1385 = vst [vmem:[#allocation3 + $0xa0] sm:$0xff] %v1349
      %1386 = vst [vmem:[#allocation3 + $0xa8] sm:$0xff] %v1350
      %1387 = vst [vmem:[#allocation3 + $0xb0] sm:$0xff] %v1351
      %1388 = vst [vmem:[#allocation3 + $0xb8] sm:$0xff] %v1352
      %1389 = vst [vmem:[#allocation3 + $0xc0] sm:$0xff] %v1353
      %1390 = vst [vmem:[#allocation3 + $0xc8] sm:$0xff] %v1354
      %1391 = vst [vmem:[#allocation3 + $0xd0] sm:$0xff] %v1355
      %1392 = vst [vmem:[#allocation3 + $0xd8] sm:$0xff] %v1356
      %1393 = vst [vmem:[#allocation3 + $0xe0] sm:$0xff] %v1357
      %1394 = vst [vmem:[#allocation3 + $0xe8] sm:$0xff] %v1358
      %1395 = vst [vmem:[#allocation3 + $0xf0] sm:$0xff] %v1359
      %1396 = vst [vmem:[#allocation3 + $0xf8] sm:$0xff] %v1360
      %1397 = vst [vmem:[#allocation3 + $0x100] sm:$0xff] %v1361
      %1398 = vst [vmem:[#allocation3 + $0x108] sm:$0xff] %v1362
      %1399 = vst [vmem:[#allocation3 + $0x110] sm:$0xff] %v1363
      %1400 = vst [vmem:[#allocation3 + $0x118] sm:$0xff] %v1364
      %v1401 = vld [vmem:[#allocation2 + $0x4] sm:$0xf]
      %v1402 = vld [vmem:[#allocation2 + $0x8] sm:$0xf]
      %v1403 = vld [vmem:[#allocation2 + $0xc] sm:$0xf]
      %v1404 = vld [vmem:[#allocation2 + $0x10] sm:$0xf]
      %v1405 = vld [vmem:[#allocation2 + $0x14] sm:$0xf]
      %v1406 = vld [vmem:[#allocation2 + $0x18] sm:$0xf]
      %v1407 = vld [vmem:[#allocation2 + $0x1c] sm:$0xf]
      %v1408 = vld [vmem:[#allocation2 + $0x20] sm:$0xf]
      %v1409 = vld [vmem:[#allocation2 + $0x24] sm:$0xf]
      %v1410 = vld [vmem:[#allocation2 + $0x28] sm:$0xf]
      %v1411 = vld [vmem:[#allocation2 + $0x2c] sm:$0xf]
      %v1412 = vld [vmem:[#allocation2 + $0x30] sm:$0xf]
      %v1413 = vld [vmem:[#allocation2 + $0x34] sm:$0xf]
      %v1414 = vld [vmem:[#allocation2 + $0x38] sm:$0xf]
      %v1415 = vld [vmem:[#allocation2 + $0x3c] sm:$0xf]
      %v1416 = vld [vmem:[#allocation2 + $0x40] sm:$0xf]
      %v1417 = vld [vmem:[#allocation2 + $0x44] sm:$0xf]
      %v1418 = vld [vmem:[#allocation2 + $0x48] sm:$0xf]
      %v1419 = vld [vmem:[#allocation2 + $0x4c] sm:$0xf]
      %v1420 = vld [vmem:[#allocation2 + $0x50] sm:$0xf]
      %v1421 = vld [vmem:[#allocation2 + $0x54] sm:$0xf]
      %v1422 = vld [vmem:[#allocation2 + $0x58] sm:$0xf]
      %v1423 = vld [vmem:[#allocation2 + $0x5c] sm:$0xf]
      %v1424 = vld [vmem:[#allocation2 + $0x60] sm:$0xf]
      %v1425 = vld [vmem:[#allocation2 + $0x64] sm:$0xf]
      %v1426 = vld [vmem:[#allocation2 + $0x68] sm:$0xf]
      %v1427 = vld [vmem:[#allocation2 + $0x6c] sm:$0xf]
      %v1428 = vld [vmem:[#allocation2 + $0x70] sm:$0xf]
      %v1429 = vld [vmem:[#allocation2 + $0x74] sm:$0xf]
      %v1430 = vld [vmem:[#allocation2 + $0x78] sm:$0xf]
      %v1431 = vld [vmem:[#allocation2 + $0x7c] sm:$0xf]
      %v1432 = vld [vmem:[#allocation2 + $0x80] sm:$0xf]
      %v1433 = vld [vmem:[#allocation2 + $0x84] sm:$0xf]
      %v1434 = vld [vmem:[#allocation2 + $0x88] sm:$0xf]
      %v1435 = vld [vmem:[#allocation2 + $0x8c] sm:$0xf]
      %v1436 = vld [vmem:[#allocation2 + $0x90] sm:$0xf]
      %v1437 = vld [vmem:[#allocation2 + $0x94] sm:$0x1]
      %s1438 = scalar_lea.vmem %s2, 8
      %v1439 = vld [vmem:[%s1438] sm:$0xf]
      %v1477 = vunpack.c.l.b16 %v1401
      %v1478 = vunpack.c.l.b16 %v1402
      %v1479 = vunpack.c.l.b16 %v1403
      %v1480 = vunpack.c.l.b16 %v1404
      %v1481 = vunpack.c.l.b16 %v1405
      %v1482 = vunpack.c.l.b16 %v1406
      %v1483 = vunpack.c.l.b16 %v1407
      %v1484 = vunpack.c.l.b16 %v1408
      %v1485 = vunpack.c.l.b16 %v1409
      %v1486 = vunpack.c.l.b16 %v1410
      %v1487 = vunpack.c.l.b16 %v1411
      %v1488 = vunpack.c.l.b16 %v1412
      %v1489 = vunpack.c.l.b16 %v1413
      %v1490 = vunpack.c.l.b16 %v1414
      %v1491 = vunpack.c.l.b16 %v1415
      %v1492 = vunpack.c.l.b16 %v1416
      %v1493 = vunpack.c.l.b16 %v1417
      %v1494 = vunpack.c.l.b16 %v1418
      %v1495 = vunpack.c.l.b16 %v1419
      %v1496 = vunpack.c.l.b16 %v1420
      %v1497 = vunpack.c.l.b16 %v1421
      %v1498 = vunpack.c.l.b16 %v1422
      %v1499 = vunpack.c.l.b16 %v1423
      %v1500 = vunpack.c.l.b16 %v1424
      %v1501 = vunpack.c.l.b16 %v1425
      %v1502 = vunpack.c.l.b16 %v1426
      %v1503 = vunpack.c.l.b16 %v1427
      %v1504 = vunpack.c.l.b16 %v1428
      %v1505 = vunpack.c.l.b16 %v1429
      %v1506 = vunpack.c.l.b16 %v1430
      %v1507 = vunpack.c.l.b16 %v1431
      %v1508 = vunpack.c.l.b16 %v1432
      %v1509 = vunpack.c.l.b16 %v1433
      %v1510 = vunpack.c.l.b16 %v1434
      %v1511 = vunpack.c.l.b16 %v1435
      %v1512 = vunpack.c.l.b16 %v1436
      %v1513 = vunpack.c.l.b16 %v1437
      %v1514 = vpack.c.b16 %v1478, %v1477
      %v1515 = vpack.c.b16 %v1480, %v1479
      %v1516 = vpack.c.b16 %v1482, %v1481
      %v1517 = vpack.c.b16 %v1484, %v1483
      %v1518 = vpack.c.b16 %v1486, %v1485
      %v1519 = vpack.c.b16 %v1488, %v1487
      %v1520 = vpack.c.b16 %v1490, %v1489
      %v1521 = vpack.c.b16 %v1492, %v1491
      %v1522 = vpack.c.b16 %v1494, %v1493
      %v1523 = vpack.c.b16 %v1496, %v1495
      %v1524 = vpack.c.b16 %v1498, %v1497
      %v1525 = vpack.c.b16 %v1500, %v1499
      %v1526 = vpack.c.b16 %v1502, %v1501
      %v1527 = vpack.c.b16 %v1504, %v1503
      %v1528 = vpack.c.b16 %v1506, %v1505
      %v1529 = vpack.c.b16 %v1508, %v1507
      %v1530 = vpack.c.b16 %v1510, %v1509
      %v1531 = vpack.c.b16 %v1512, %v1511
      %v1532 = vpack.c.b16 %v1513, %v1513
      %vm1533 = vsmask.f32 7424
      %v1535 = vshrl.u32 %v1514, 16
      %v1537 = vshll.u32 %v1514, 16
      %v1539 = vrot.slane %v1537, 1
      %v1540 = vor.u32 %v1535, %v1539
      %v1542 = vshll.u32 %v1515, 16
      %v1544 = vrot.slane %v1542, 1
      %v1545 = vsel %vm1533, %v1540, %v1544
      %v1546 = vshrl.u32 %v1515, 16
      %v1548 = vor.u32 %v1546, %v1544
      %v1550 = vshll.u32 %v1516, 16
      %v1552 = vrot.slane %v1550, 1
      %v1553 = vsel %vm1533, %v1548, %v1552
      %v1554 = vshrl.u32 %v1516, 16
      %v1556 = vor.u32 %v1554, %v1552
      %v1558 = vshll.u32 %v1517, 16
      %v1560 = vrot.slane %v1558, 1
      %v1561 = vsel %vm1533, %v1556, %v1560
      %v1562 = vshrl.u32 %v1517, 16
      %v1564 = vor.u32 %v1562, %v1560
      %v1566 = vshll.u32 %v1518, 16
      %v1568 = vrot.slane %v1566, 1
      %v1569 = vsel %vm1533, %v1564, %v1568
      %v1570 = vshrl.u32 %v1518, 16
      %v1572 = vor.u32 %v1570, %v1568
      %v1574 = vshll.u32 %v1519, 16
      %v1576 = vrot.slane %v1574, 1
      %v1577 = vsel %vm1533, %v1572, %v1576
      %v1578 = vshrl.u32 %v1519, 16
      %v1580 = vor.u32 %v1578, %v1576
      %v1582 = vshll.u32 %v1520, 16
      %v1584 = vrot.slane %v1582, 1
      %v1585 = vsel %vm1533, %v1580, %v1584
      %v1586 = vshrl.u32 %v1520, 16
      %v1588 = vor.u32 %v1586, %v1584
      %v1590 = vshll.u32 %v1521, 16
      %v1592 = vrot.slane %v1590, 1
      %v1593 = vsel %vm1533, %v1588, %v1592
      %v1594 = vshrl.u32 %v1521, 16
      %v1596 = vor.u32 %v1594, %v1592
      %v1598 = vshll.u32 %v1522, 16
      %v1600 = vrot.slane %v1598, 1
      %v1601 = vsel %vm1533, %v1596, %v1600
      %v1602 = vshrl.u32 %v1522, 16
      %v1604 = vor.u32 %v1602, %v1600
      %v1606 = vshll.u32 %v1523, 16
      %v1608 = vrot.slane %v1606, 1
      %v1609 = vsel %vm1533, %v1604, %v1608
      %v1610 = vshrl.u32 %v1523, 16
      %v1612 = vor.u32 %v1610, %v1608
      %v1614 = vshll.u32 %v1524, 16
      %v1616 = vrot.slane %v1614, 1
      %v1617 = vsel %vm1533, %v1612, %v1616
      %v1618 = vshrl.u32 %v1524, 16
      %v1620 = vor.u32 %v1618, %v1616
      %v1622 = vshll.u32 %v1525, 16
      %v1624 = vrot.slane %v1622, 1
      %v1625 = vsel %vm1533, %v1620, %v1624
      %v1626 = vshrl.u32 %v1525, 16
      %v1628 = vor.u32 %v1626, %v1624
      %v1630 = vshll.u32 %v1526, 16
      %v1632 = vrot.slane %v1630, 1
      %v1633 = vsel %vm1533, %v1628, %v1632
      %v1634 = vshrl.u32 %v1526, 16
      %v1636 = vor.u32 %v1634, %v1632
      %v1638 = vshll.u32 %v1527, 16
      %v1640 = vrot.slane %v1638, 1
      %v1641 = vsel %vm1533, %v1636, %v1640
      %v1642 = vshrl.u32 %v1527, 16
      %v1644 = vor.u32 %v1642, %v1640
      %v1646 = vshll.u32 %v1528, 16
      %v1648 = vrot.slane %v1646, 1
      %v1649 = vsel %vm1533, %v1644, %v1648
      %v1650 = vshrl.u32 %v1528, 16
      %v1652 = vor.u32 %v1650, %v1648
      %v1654 = vshll.u32 %v1529, 16
      %v1656 = vrot.slane %v1654, 1
      %v1657 = vsel %vm1533, %v1652, %v1656
      %v1658 = vshrl.u32 %v1529, 16
      %v1660 = vor.u32 %v1658, %v1656
      %v1662 = vshll.u32 %v1530, 16
      %v1664 = vrot.slane %v1662, 1
      %v1665 = vsel %vm1533, %v1660, %v1664
      %v1666 = vshrl.u32 %v1530, 16
      %v1668 = vor.u32 %v1666, %v1664
      %v1670 = vshll.u32 %v1531, 16
      %v1672 = vrot.slane %v1670, 1
      %v1673 = vsel %vm1533, %v1668, %v1672
      %v1674 = vshrl.u32 %v1531, 16
      %v1676 = vor.u32 %v1674, %v1672
      %v1678 = vshll.u32 %v1532, 16
      %v1680 = vrot.slane %v1678, 1
      %v1681 = vsel %vm1533, %v1676, %v1680
      %v1683 = vsel %vm815, %v1545, 0
      %v1686 = vsel %vm815, %v1553, 0
      %v1689 = vsel %vm815, %v1561, 0
      %v1692 = vsel %vm815, %v1569, 0
      %v1695 = vsel %vm815, %v1577, 0
      %v1698 = vsel %vm815, %v1585, 0
      %v1701 = vsel %vm815, %v1593, 0
      %v1704 = vsel %vm815, %v1601, 0
      %v1707 = vsel %vm815, %v1609, 0
      %v1710 = vsel %vm815, %v1617, 0
      %v1713 = vsel %vm815, %v1625, 0
      %v1716 = vsel %vm815, %v1633, 0
      %v1719 = vsel %vm815, %v1641, 0
      %v1722 = vsel %vm815, %v1649, 0
      %v1725 = vsel %vm815, %v1657, 0
      %v1728 = vsel %vm815, %v1665, 0
      %v1731 = vsel %vm815, %v1673, 0
      %v1734 = vsel %vm815, %v1681, 0
      %v1737 = vsel %vm870, %v1439, 0
      %1739 = vmatpush.bf16.msra.mxu0 0
      %1740 = vmatpush.bf16.msra.mxu0 0
      %1741 = vmatpush.bf16.msra.mxu0 0
      %1742 = vmatpush.bf16.msra.mxu0 0
      %1743 = vmatpush.bf16.msra.mxu0 0
      %1744 = vmatpush.bf16.msra.mxu0 0
      %1745 = vmatpush.bf16.msra.mxu0 0
      %1746 = vmatpush.bf16.msra.mxu0 %v1737
      %1747 = vmatmul.bf16.gmra.mxu0 %v1683
      %v1748 = vpop.f32.mrf.mxu0
      %v1749 = vadd.f32 0.0, %v1748
      %v1750 = vpop.f32.mrf.mxu0
      %v1751 = vadd.f32 0.0, %v1750
      %1752 = vmatmul.bf16.gmra.mxu0 %v1686
      %v1753 = vpop.f32.mrf.mxu0
      %v1754 = vadd.f32 0.0, %v1753
      %v1755 = vpop.f32.mrf.mxu0
      %v1756 = vadd.f32 0.0, %v1755
      %1757 = vmatmul.bf16.gmra.mxu0 %v1689
      %v1758 = vpop.f32.mrf.mxu0
      %v1759 = vadd.f32 0.0, %v1758
      %v1760 = vpop.f32.mrf.mxu0
      %v1761 = vadd.f32 0.0, %v1760
      %1762 = vmatmul.bf16.gmra.mxu0 %v1692
      %v1763 = vpop.f32.mrf.mxu0
      %v1764 = vadd.f32 0.0, %v1763
      %v1765 = vpop.f32.mrf.mxu0
      %v1766 = vadd.f32 0.0, %v1765
      %1767 = vmatmul.bf16.gmra.mxu0 %v1695
      %v1768 = vpop.f32.mrf.mxu0
      %v1769 = vadd.f32 0.0, %v1768
      %v1770 = vpop.f32.mrf.mxu0
      %v1771 = vadd.f32 0.0, %v1770
      %1772 = vmatmul.bf16.gmra.mxu0 %v1698
      %v1773 = vpop.f32.mrf.mxu0
      %v1774 = vadd.f32 0.0, %v1773
      %v1775 = vpop.f32.mrf.mxu0
      %v1776 = vadd.f32 0.0, %v1775
      %1777 = vmatmul.bf16.gmra.mxu0 %v1701
      %v1778 = vpop.f32.mrf.mxu0
      %v1779 = vadd.f32 0.0, %v1778
      %v1780 = vpop.f32.mrf.mxu0
      %v1781 = vadd.f32 0.0, %v1780
      %1782 = vmatmul.bf16.gmra.mxu0 %v1704
      %v1783 = vpop.f32.mrf.mxu0
      %v1784 = vadd.f32 0.0, %v1783
      %v1785 = vpop.f32.mrf.mxu0
      %v1786 = vadd.f32 0.0, %v1785
      %1787 = vmatmul.bf16.gmra.mxu0 %v1707
      %v1788 = vpop.f32.mrf.mxu0
      %v1789 = vadd.f32 0.0, %v1788
      %v1790 = vpop.f32.mrf.mxu0
      %v1791 = vadd.f32 0.0, %v1790
      %1792 = vmatmul.bf16.gmra.mxu0 %v1710
      %v1793 = vpop.f32.mrf.mxu0
      %v1794 = vadd.f32 0.0, %v1793
      %v1795 = vpop.f32.mrf.mxu0
      %v1796 = vadd.f32 0.0, %v1795
      %1797 = vmatmul.bf16.gmra.mxu0 %v1713
      %v1798 = vpop.f32.mrf.mxu0
      %v1799 = vadd.f32 0.0, %v1798
      %v1800 = vpop.f32.mrf.mxu0
      %v1801 = vadd.f32 0.0, %v1800
      %1802 = vmatmul.bf16.gmra.mxu0 %v1716
      %v1803 = vpop.f32.mrf.mxu0
      %v1804 = vadd.f32 0.0, %v1803
      %v1805 = vpop.f32.mrf.mxu0
      %v1806 = vadd.f32 0.0, %v1805
      %1807 = vmatmul.bf16.gmra.mxu0 %v1719
      %v1808 = vpop.f32.mrf.mxu0
      %v1809 = vadd.f32 0.0, %v1808
      %v1810 = vpop.f32.mrf.mxu0
      %v1811 = vadd.f32 0.0, %v1810
      %1812 = vmatmul.bf16.gmra.mxu0 %v1722
      %v1813 = vpop.f32.mrf.mxu0
      %v1814 = vadd.f32 0.0, %v1813
      %v1815 = vpop.f32.mrf.mxu0
      %v1816 = vadd.f32 0.0, %v1815
      %1817 = vmatmul.bf16.gmra.mxu0 %v1725
      %v1818 = vpop.f32.mrf.mxu0
      %v1819 = vadd.f32 0.0, %v1818
      %v1820 = vpop.f32.mrf.mxu0
      %v1821 = vadd.f32 0.0, %v1820
      %1822 = vmatmul.bf16.gmra.mxu0 %v1728
      %v1823 = vpop.f32.mrf.mxu0
      %v1824 = vadd.f32 0.0, %v1823
      %v1825 = vpop.f32.mrf.mxu0
      %v1826 = vadd.f32 0.0, %v1825
      %1827 = vmatmul.bf16.gmra.mxu0 %v1731
      %v1828 = vpop.f32.mrf.mxu0
      %v1829 = vadd.f32 0.0, %v1828
      %v1830 = vpop.f32.mrf.mxu0
      %v1831 = vadd.f32 0.0, %v1830
      %1832 = vmatmul.bf16.gmra.mxu0 %v1734
      %v1833 = vpop.f32.mrf.mxu0
      %v1834 = vadd.f32 0.0, %v1833
      %v1835 = vpop.f32.mrf.mxu0
      %v1836 = vadd.f32 0.0, %v1835
      %1837 = vdwg.mxu0
      %v1838 = vld [vmem:[#allocation3] sm:$0xff]
      %v1839 = vld [vmem:[#allocation3 + $0x8] sm:$0xff]
      %v1840 = vld [vmem:[#allocation3 + $0x10] sm:$0xff]
      %v1841 = vld [vmem:[#allocation3 + $0x18] sm:$0xff]
      %v1842 = vld [vmem:[#allocation3 + $0x20] sm:$0xff]
      %v1843 = vld [vmem:[#allocation3 + $0x28] sm:$0xff]
      %v1844 = vld [vmem:[#allocation3 + $0x30] sm:$0xff]
      %v1845 = vld [vmem:[#allocation3 + $0x38] sm:$0xff]
      %v1846 = vld [vmem:[#allocation3 + $0x40] sm:$0xff]
      %v1847 = vld [vmem:[#allocation3 + $0x48] sm:$0xff]
      %v1848 = vld [vmem:[#allocation3 + $0x50] sm:$0xff]
      %v1849 = vld [vmem:[#allocation3 + $0x58] sm:$0xff]
      %v1850 = vld [vmem:[#allocation3 + $0x60] sm:$0xff]
      %v1851 = vld [vmem:[#allocation3 + $0x68] sm:$0xff]
      %v1852 = vld [vmem:[#allocation3 + $0x70] sm:$0xff]
      %v1853 = vld [vmem:[#allocation3 + $0x78] sm:$0xff]
      %v1854 = vld [vmem:[#allocation3 + $0x80] sm:$0xff]
      %v1855 = vld [vmem:[#allocation3 + $0x88] sm:$0xff]
      %v1856 = vld [vmem:[#allocation3 + $0x90] sm:$0xff]
      %v1857 = vld [vmem:[#allocation3 + $0x98] sm:$0xff]
      %v1858 = vld [vmem:[#allocation3 + $0xa0] sm:$0xff]
      %v1859 = vld [vmem:[#allocation3 + $0xa8] sm:$0xff]
      %v1860 = vld [vmem:[#allocation3 + $0xb0] sm:$0xff]
      %v1861 = vld [vmem:[#allocation3 + $0xb8] sm:$0xff]
      %v1862 = vld [vmem:[#allocation3 + $0xc0] sm:$0xff]
      %v1863 = vld [vmem:[#allocation3 + $0xc8] sm:$0xff]
      %v1864 = vld [vmem:[#allocation3 + $0xd0] sm:$0xff]
      %v1865 = vld [vmem:[#allocation3 + $0xd8] sm:$0xff]
      %v1866 = vld [vmem:[#allocation3 + $0xe0] sm:$0xff]
      %v1867 = vld [vmem:[#allocation3 + $0xe8] sm:$0xff]
      %v1868 = vld [vmem:[#allocation3 + $0xf0] sm:$0xff]
      %v1869 = vld [vmem:[#allocation3 + $0xf8] sm:$0xff]
      %v1870 = vld [vmem:[#allocation3 + $0x100] sm:$0xff]
      %v1871 = vld [vmem:[#allocation3 + $0x108] sm:$0xff]
      %v1872 = vld [vmem:[#allocation3 + $0x110] sm:$0xff]
      %v1873 = vld [vmem:[#allocation3 + $0x118] sm:$0xff]
      %v1874 = vadd.f32 %v1838, %v1749
      %v1875 = vadd.f32 %v1839, %v1751
      %v1876 = vadd.f32 %v1840, %v1754
      %v1877 = vadd.f32 %v1841, %v1756
      %v1878 = vadd.f32 %v1842, %v1759
      %v1879 = vadd.f32 %v1843, %v1761
      %v1880 = vadd.f32 %v1844, %v1764
      %v1881 = vadd.f32 %v1845, %v1766
      %v1882 = vadd.f32 %v1846, %v1769
      %v1883 = vadd.f32 %v1847, %v1771
      %v1884 = vadd.f32 %v1848, %v1774
      %v1885 = vadd.f32 %v1849, %v1776
      %v1886 = vadd.f32 %v1850, %v1779
      %v1887 = vadd.f32 %v1851, %v1781
      %v1888 = vadd.f32 %v1852, %v1784
      %v1889 = vadd.f32 %v1853, %v1786
      %v1890 = vadd.f32 %v1854, %v1789
      %v1891 = vadd.f32 %v1855, %v1791
      %v1892 = vadd.f32 %v1856, %v1794
      %v1893 = vadd.f32 %v1857, %v1796
      %v1894 = vadd.f32 %v1858, %v1799
      %v1895 = vadd.f32 %v1859, %v1801
      %v1896 = vadd.f32 %v1860, %v1804
      %v1897 = vadd.f32 %v1861, %v1806
      %v1898 = vadd.f32 %v1862, %v1809
      %v1899 = vadd.f32 %v1863, %v1811
      %v1900 = vadd.f32 %v1864, %v1814
      %v1901 = vadd.f32 %v1865, %v1816
      %v1902 = vadd.f32 %v1866, %v1819
      %v1903 = vadd.f32 %v1867, %v1821
      %v1904 = vadd.f32 %v1868, %v1824
      %v1905 = vadd.f32 %v1869, %v1826
      %v1906 = vadd.f32 %v1870, %v1829
      %v1907 = vadd.f32 %v1871, %v1831
      %v1908 = vadd.f32 %v1872, %v1834
      %v1909 = vadd.f32 %v1873, %v1836
      %1910 = vst [vmem:[#allocation3] sm:$0xff] %v1874
      %1911 = vst [vmem:[#allocation3 + $0x8] sm:$0xff] %v1875
      %1912 = vst [vmem:[#allocation3 + $0x10] sm:$0xff] %v1876
      %1913 = vst [vmem:[#allocation3 + $0x18] sm:$0xff] %v1877
      %1914 = vst [vmem:[#allocation3 + $0x20] sm:$0xff] %v1878
      %1915 = vst [vmem:[#allocation3 + $0x28] sm:$0xff] %v1879
      %1916 = vst [vmem:[#allocation3 + $0x30] sm:$0xff] %v1880
      %1917 = vst [vmem:[#allocation3 + $0x38] sm:$0xff] %v1881
      %1918 = vst [vmem:[#allocation3 + $0x40] sm:$0xff] %v1882
      %1919 = vst [vmem:[#allocation3 + $0x48] sm:$0xff] %v1883
      %1920 = vst [vmem:[#allocation3 + $0x50] sm:$0xff] %v1884
      %1921 = vst [vmem:[#allocation3 + $0x58] sm:$0xff] %v1885
      %1922 = vst [vmem:[#allocation3 + $0x60] sm:$0xff] %v1886
      %1923 = vst [vmem:[#allocation3 + $0x68] sm:$0xff] %v1887
      %1924 = vst [vmem:[#allocation3 + $0x70] sm:$0xff] %v1888
      %1925 = vst [vmem:[#allocation3 + $0x78] sm:$0xff] %v1889
      %1926 = vst [vmem:[#allocation3 + $0x80] sm:$0xff] %v1890
      %1927 = vst [vmem:[#allocation3 + $0x88] sm:$0xff] %v1891
      %1928 = vst [vmem:[#allocation3 + $0x90] sm:$0xff] %v1892
      %1929 = vst [vmem:[#allocation3 + $0x98] sm:$0xff] %v1893
      %1930 = vst [vmem:[#allocation3 + $0xa0] sm:$0xff] %v1894
      %1931 = vst [vmem:[#allocation3 + $0xa8] sm:$0xff] %v1895
      %1932 = vst [vmem:[#allocation3 + $0xb0] sm:$0xff] %v1896
      %1933 = vst [vmem:[#allocation3 + $0xb8] sm:$0xff] %v1897
      %1934 = vst [vmem:[#allocation3 + $0xc0] sm:$0xff] %v1898
      %1935 = vst [vmem:[#allocation3 + $0xc8] sm:$0xff] %v1899
      %1936 = vst [vmem:[#allocation3 + $0xd0] sm:$0xff] %v1900
      %1937 = vst [vmem:[#allocation3 + $0xd8] sm:$0xff] %v1901
      %1938 = vst [vmem:[#allocation3 + $0xe0] sm:$0xff] %v1902
      %1939 = vst [vmem:[#allocation3 + $0xe8] sm:$0xff] %v1903
      %1940 = vst [vmem:[#allocation3 + $0xf0] sm:$0xff] %v1904
      %1941 = vst [vmem:[#allocation3 + $0xf8] sm:$0xff] %v1905
      %1942 = vst [vmem:[#allocation3 + $0x100] sm:$0xff] %v1906
      %1943 = vst [vmem:[#allocation3 + $0x108] sm:$0xff] %v1907
      %1944 = vst [vmem:[#allocation3 + $0x110] sm:$0xff] %v1908
      %1945 = vst [vmem:[#allocation3 + $0x118] sm:$0xff] %v1909
      %v1946 = vld [vmem:[#allocation2 + $0xc] sm:$0xf]
      %v1947 = vld [vmem:[#allocation2 + $0x10] sm:$0xf]
      %v1948 = vld [vmem:[#allocation2 + $0x14] sm:$0xf]
      %v1949 = vld [vmem:[#allocation2 + $0x18] sm:$0xf]
      %v1950 = vld [vmem:[#allocation2 + $0x1c] sm:$0xf]
      %v1951 = vld [vmem:[#allocation2 + $0x20] sm:$0xf]
      %v1952 = vld [vmem:[#allocation2 + $0x24] sm:$0xf]
      %v1953 = vld [vmem:[#allocation2 + $0x28] sm:$0xf]
      %v1954 = vld [vmem:[#allocation2 + $0x2c] sm:$0xf]
      %v1955 = vld [vmem:[#allocation2 + $0x30] sm:$0xf]
      %v1956 = vld [vmem:[#allocation2 + $0x34] sm:$0xf]
      %v1957 = vld [vmem:[#allocation2 + $0x38] sm:$0xf]
      %v1958 = vld [vmem:[#allocation2 + $0x3c] sm:$0xf]
      %v1959 = vld [vmem:[#allocation2 + $0x40] sm:$0xf]
      %v1960 = vld [vmem:[#allocation2 + $0x44] sm:$0xf]
      %v1961 = vld [vmem:[#allocation2 + $0x48] sm:$0xf]
      %v1962 = vld [vmem:[#allocation2 + $0x4c] sm:$0xf]
      %v1963 = vld [vmem:[#allocation2 + $0x50] sm:$0xf]
      %v1964 = vld [vmem:[#allocation2 + $0x54] sm:$0xf]
      %v1965 = vld [vmem:[#allocation2 + $0x58] sm:$0xf]
      %v1966 = vld [vmem:[#allocation2 + $0x5c] sm:$0xf]
      %v1967 = vld [vmem:[#allocation2 + $0x60] sm:$0xf]
      %v1968 = vld [vmem:[#allocation2 + $0x64] sm:$0xf]
      %v1969 = vld [vmem:[#allocation2 + $0x68] sm:$0xf]
      %v1970 = vld [vmem:[#allocation2 + $0x6c] sm:$0xf]
      %v1971 = vld [vmem:[#allocation2 + $0x70] sm:$0xf]
      %v1972 = vld [vmem:[#allocation2 + $0x74] sm:$0xf]
      %v1973 = vld [vmem:[#allocation2 + $0x78] sm:$0xf]
      %v1974 = vld [vmem:[#allocation2 + $0x7c] sm:$0xf]
      %v1975 = vld [vmem:[#allocation2 + $0x80] sm:$0xf]
      %v1976 = vld [vmem:[#allocation2 + $0x84] sm:$0xf]
      %v1977 = vld [vmem:[#allocation2 + $0x88] sm:$0xf]
      %v1978 = vld [vmem:[#allocation2 + $0x8c] sm:$0xf]
      %v1979 = vld [vmem:[#allocation2 + $0x90] sm:$0xf]
      %v1980 = vld [vmem:[#allocation2 + $0x94] sm:$0xf]
      %v1981 = vld [vmem:[#allocation2 + $0x98] sm:$0xf]
      %v1982 = vld [vmem:[#allocation2 + $0x9c] sm:$0x1]
      %s1983 = scalar_lea.vmem %s2, 12
      %v1984 = vld [vmem:[%s1983] sm:$0xf]
      %v2022 = vunpack.c.l.b16 %v1946
      %v2023 = vunpack.c.l.b16 %v1947
      %v2024 = vunpack.c.l.b16 %v1948
      %v2025 = vunpack.c.l.b16 %v1949
      %v2026 = vunpack.c.l.b16 %v1950
      %v2027 = vunpack.c.l.b16 %v1951
      %v2028 = vunpack.c.l.b16 %v1952
      %v2029 = vunpack.c.l.b16 %v1953
      %v2030 = vunpack.c.l.b16 %v1954
      %v2031 = vunpack.c.l.b16 %v1955
      %v2032 = vunpack.c.l.b16 %v1956
      %v2033 = vunpack.c.l.b16 %v1957
      %v2034 = vunpack.c.l.b16 %v1958
      %v2035 = vunpack.c.l.b16 %v1959
      %v2036 = vunpack.c.l.b16 %v1960
      %v2037 = vunpack.c.l.b16 %v1961
      %v2038 = vunpack.c.l.b16 %v1962
      %v2039 = vunpack.c.l.b16 %v1963
      %v2040 = vunpack.c.l.b16 %v1964
      %v2041 = vunpack.c.l.b16 %v1965
      %v2042 = vunpack.c.l.b16 %v1966
      %v2043 = vunpack.c.l.b16 %v1967
      %v2044 = vunpack.c.l.b16 %v1968
      %v2045 = vunpack.c.l.b16 %v1969
      %v2046 = vunpack.c.l.b16 %v1970
      %v2047 = vunpack.c.l.b16 %v1971
      %v2048 = vunpack.c.l.b16 %v1972
      %v2049 = vunpack.c.l.b16 %v1973
      %v2050 = vunpack.c.l.b16 %v1974
      %v2051 = vunpack.c.l.b16 %v1975
      %v2052 = vunpack.c.l.b16 %v1976
      %v2053 = vunpack.c.l.b16 %v1977
      %v2054 = vunpack.c.l.b16 %v1978
      %v2055 = vunpack.c.l.b16 %v1979
      %v2056 = vunpack.c.l.b16 %v1980
      %v2057 = vunpack.c.l.b16 %v1981
      %v2058 = vunpack.c.l.b16 %v1982
      %v2059 = vpack.c.b16 %v2023, %v2022
      %v2060 = vpack.c.b16 %v2025, %v2024
      %v2061 = vpack.c.b16 %v2027, %v2026
      %v2062 = vpack.c.b16 %v2029, %v2028
      %v2063 = vpack.c.b16 %v2031, %v2030
      %v2064 = vpack.c.b16 %v2033, %v2032
      %v2065 = vpack.c.b16 %v2035, %v2034
      %v2066 = vpack.c.b16 %v2037, %v2036
      %v2067 = vpack.c.b16 %v2039, %v2038
      %v2068 = vpack.c.b16 %v2041, %v2040
      %v2069 = vpack.c.b16 %v2043, %v2042
      %v2070 = vpack.c.b16 %v2045, %v2044
      %v2071 = vpack.c.b16 %v2047, %v2046
      %v2072 = vpack.c.b16 %v2049, %v2048
      %v2073 = vpack.c.b16 %v2051, %v2050
      %v2074 = vpack.c.b16 %v2053, %v2052
      %v2075 = vpack.c.b16 %v2055, %v2054
      %v2076 = vpack.c.b16 %v2057, %v2056
      %v2077 = vpack.c.b16 %v2058, %v2058
      %v2079 = vshrl.u32 %v2059, 16
      %v2081 = vshll.u32 %v2059, 16
      %v2083 = vrot.slane %v2081, 1
      %v2084 = vor.u32 %v2079, %v2083
      %v2086 = vshll.u32 %v2060, 16
      %v2088 = vrot.slane %v2086, 1
      %v2089 = vsel %vm1533, %v2084, %v2088
      %v2090 = vshrl.u32 %v2060, 16
      %v2092 = vor.u32 %v2090, %v2088
      %v2094 = vshll.u32 %v2061, 16
      %v2096 = vrot.slane %v2094, 1
      %v2097 = vsel %vm1533, %v2092, %v2096
      %v2098 = vshrl.u32 %v2061, 16
      %v2100 = vor.u32 %v2098, %v2096
      %v2102 = vshll.u32 %v2062, 16
      %v2104 = vrot.slane %v2102, 1
      %v2105 = vsel %vm1533, %v2100, %v2104
      %v2106 = vshrl.u32 %v2062, 16
      %v2108 = vor.u32 %v2106, %v2104
      %v2110 = vshll.u32 %v2063, 16
      %v2112 = vrot.slane %v2110, 1
      %v2113 = vsel %vm1533, %v2108, %v2112
      %v2114 = vshrl.u32 %v2063, 16
      %v2116 = vor.u32 %v2114, %v2112
      %v2118 = vshll.u32 %v2064, 16
      %v2120 = vrot.slane %v2118, 1
      %v2121 = vsel %vm1533, %v2116, %v2120
      %v2122 = vshrl.u32 %v2064, 16
      %v2124 = vor.u32 %v2122, %v2120
      %v2126 = vshll.u32 %v2065, 16
      %v2128 = vrot.slane %v2126, 1
      %v2129 = vsel %vm1533, %v2124, %v2128
      %v2130 = vshrl.u32 %v2065, 16
      %v2132 = vor.u32 %v2130, %v2128
      %v2134 = vshll.u32 %v2066, 16
      %v2136 = vrot.slane %v2134, 1
      %v2137 = vsel %vm1533, %v2132, %v2136
      %v2138 = vshrl.u32 %v2066, 16
      %v2140 = vor.u32 %v2138, %v2136
      %v2142 = vshll.u32 %v2067, 16
      %v2144 = vrot.slane %v2142, 1
      %v2145 = vsel %vm1533, %v2140, %v2144
      %v2146 = vshrl.u32 %v2067, 16
      %v2148 = vor.u32 %v2146, %v2144
      %v2150 = vshll.u32 %v2068, 16
      %v2152 = vrot.slane %v2150, 1
      %v2153 = vsel %vm1533, %v2148, %v2152
      %v2154 = vshrl.u32 %v2068, 16
      %v2156 = vor.u32 %v2154, %v2152
      %v2158 = vshll.u32 %v2069, 16
      %v2160 = vrot.slane %v2158, 1
      %v2161 = vsel %vm1533, %v2156, %v2160
      %v2162 = vshrl.u32 %v2069, 16
      %v2164 = vor.u32 %v2162, %v2160
      %v2166 = vshll.u32 %v2070, 16
      %v2168 = vrot.slane %v2166, 1
      %v2169 = vsel %vm1533, %v2164, %v2168
      %v2170 = vshrl.u32 %v2070, 16
      %v2172 = vor.u32 %v2170, %v2168
      %v2174 = vshll.u32 %v2071, 16
      %v2176 = vrot.slane %v2174, 1
      %v2177 = vsel %vm1533, %v2172, %v2176
      %v2178 = vshrl.u32 %v2071, 16
      %v2180 = vor.u32 %v2178, %v2176
      %v2182 = vshll.u32 %v2072, 16
      %v2184 = vrot.slane %v2182, 1
      %v2185 = vsel %vm1533, %v2180, %v2184
      %v2186 = vshrl.u32 %v2072, 16
      %v2188 = vor.u32 %v2186, %v2184
      %v2190 = vshll.u32 %v2073, 16
      %v2192 = vrot.slane %v2190, 1
      %v2193 = vsel %vm1533, %v2188, %v2192
      %v2194 = vshrl.u32 %v2073, 16
      %v2196 = vor.u32 %v2194, %v2192
      %v2198 = vshll.u32 %v2074, 16
      %v2200 = vrot.slane %v2198, 1
      %v2201 = vsel %vm1533, %v2196, %v2200
      %v2202 = vshrl.u32 %v2074, 16
      %v2204 = vor.u32 %v2202, %v2200
      %v2206 = vshll.u32 %v2075, 16
      %v2208 = vrot.slane %v2206, 1
      %v2209 = vsel %vm1533, %v2204, %v2208
      %v2210 = vshrl.u32 %v2075, 16
      %v2212 = vor.u32 %v2210, %v2208
      %v2214 = vshll.u32 %v2076, 16
      %v2216 = vrot.slane %v2214, 1
      %v2217 = vsel %vm1533, %v2212, %v2216
      %v2218 = vshrl.u32 %v2076, 16
      %v2220 = vor.u32 %v2218, %v2216
      %v2222 = vshll.u32 %v2077, 16
      %v2224 = vrot.slane %v2222, 1
      %v2225 = vsel %vm1533, %v2220, %v2224
      %v2227 = vsel %vm815, %v2089, 0
      %v2230 = vsel %vm815, %v2097, 0
      %v2233 = vsel %vm815, %v2105, 0
      %v2236 = vsel %vm815, %v2113, 0
      %v2239 = vsel %vm815, %v2121, 0
      %v2242 = vsel %vm815, %v2129, 0
      %v2245 = vsel %vm815, %v2137, 0
      %v2248 = vsel %vm815, %v2145, 0
      %v2251 = vsel %vm815, %v2153, 0
      %v2254 = vsel %vm815, %v2161, 0
      %v2257 = vsel %vm815, %v2169, 0
      %v2260 = vsel %vm815, %v2177, 0
      %v2263 = vsel %vm815, %v2185, 0
      %v2266 = vsel %vm815, %v2193, 0
      %v2269 = vsel %vm815, %v2201, 0
      %v2272 = vsel %vm815, %v2209, 0
      %v2275 = vsel %vm815, %v2217, 0
      %v2278 = vsel %vm815, %v2225, 0
      %v2281 = vsel %vm870, %v1984, 0
      %2283 = vmatpush.bf16.msra.mxu0 0
      %2284 = vmatpush.bf16.msra.mxu0 0
      %2285 = vmatpush.bf16.msra.mxu0 0
      %2286 = vmatpush.bf16.msra.mxu0 0
      %2287 = vmatpush.bf16.msra.mxu0 0
      %2288 = vmatpush.bf16.msra.mxu0 0
      %2289 = vmatpush.bf16.msra.mxu0 0
      %2290 = vmatpush.bf16.msra.mxu0 %v2281
      %2291 = vmatmul.bf16.gmra.mxu0 %v2227
      %v2292 = vpop.f32.mrf.mxu0
      %v2293 = vadd.f32 0.0, %v2292
      %v2294 = vpop.f32.mrf.mxu0
      %v2295 = vadd.f32 0.0, %v2294
      %2296 = vmatmul.bf16.gmra.mxu0 %v2230
      %v2297 = vpop.f32.mrf.mxu0
      %v2298 = vadd.f32 0.0, %v2297
      %v2299 = vpop.f32.mrf.mxu0
      %v2300 = vadd.f32 0.0, %v2299
      %2301 = vmatmul.bf16.gmra.mxu0 %v2233
      %v2302 = vpop.f32.mrf.mxu0
      %v2303 = vadd.f32 0.0, %v2302
      %v2304 = vpop.f32.mrf.mxu0
      %v2305 = vadd.f32 0.0, %v2304
      %2306 = vmatmul.bf16.gmra.mxu0 %v2236
      %v2307 = vpop.f32.mrf.mxu0
      %v2308 = vadd.f32 0.0, %v2307
      %v2309 = vpop.f32.mrf.mxu0
      %v2310 = vadd.f32 0.0, %v2309
      %2311 = vmatmul.bf16.gmra.mxu0 %v2239
      %v2312 = vpop.f32.mrf.mxu0
      %v2313 = vadd.f32 0.0, %v2312
      %v2314 = vpop.f32.mrf.mxu0
      %v2315 = vadd.f32 0.0, %v2314
      %2316 = vmatmul.bf16.gmra.mxu0 %v2242
      %v2317 = vpop.f32.mrf.mxu0
      %v2318 = vadd.f32 0.0, %v2317
      %v2319 = vpop.f32.mrf.mxu0
      %v2320 = vadd.f32 0.0, %v2319
      %2321 = vmatmul.bf16.gmra.mxu0 %v2245
      %v2322 = vpop.f32.mrf.mxu0
      %v2323 = vadd.f32 0.0, %v2322
      %v2324 = vpop.f32.mrf.mxu0
      %v2325 = vadd.f32 0.0, %v2324
      %2326 = vmatmul.bf16.gmra.mxu0 %v2248
      %v2327 = vpop.f32.mrf.mxu0
      %v2328 = vadd.f32 0.0, %v2327
      %v2329 = vpop.f32.mrf.mxu0
      %v2330 = vadd.f32 0.0, %v2329
      %2331 = vmatmul.bf16.gmra.mxu0 %v2251
      %v2332 = vpop.f32.mrf.mxu0
      %v2333 = vadd.f32 0.0, %v2332
      %v2334 = vpop.f32.mrf.mxu0
      %v2335 = vadd.f32 0.0, %v2334
      %2336 = vmatmul.bf16.gmra.mxu0 %v2254
      %v2337 = vpop.f32.mrf.mxu0
      %v2338 = vadd.f32 0.0, %v2337
      %v2339 = vpop.f32.mrf.mxu0
      %v2340 = vadd.f32 0.0, %v2339
      %2341 = vmatmul.bf16.gmra.mxu0 %v2257
      %v2342 = vpop.f32.mrf.mxu0
      %v2343 = vadd.f32 0.0, %v2342
      %v2344 = vpop.f32.mrf.mxu0
      %v2345 = vadd.f32 0.0, %v2344
      %2346 = vmatmul.bf16.gmra.mxu0 %v2260
      %v2347 = vpop.f32.mrf.mxu0
      %v2348 = vadd.f32 0.0, %v2347
      %v2349 = vpop.f32.mrf.mxu0
      %v2350 = vadd.f32 0.0, %v2349
      %2351 = vmatmul.bf16.gmra.mxu0 %v2263
      %v2352 = vpop.f32.mrf.mxu0
      %v2353 = vadd.f32 0.0, %v2352
      %v2354 = vpop.f32.mrf.mxu0
      %v2355 = vadd.f32 0.0, %v2354
      %2356 = vmatmul.bf16.gmra.mxu0 %v2266
      %v2357 = vpop.f32.mrf.mxu0
      %v2358 = vadd.f32 0.0, %v2357
      %v2359 = vpop.f32.mrf.mxu0
      %v2360 = vadd.f32 0.0, %v2359
      %2361 = vmatmul.bf16.gmra.mxu0 %v2269
      %v2362 = vpop.f32.mrf.mxu0
      %v2363 = vadd.f32 0.0, %v2362
      %v2364 = vpop.f32.mrf.mxu0
      %v2365 = vadd.f32 0.0, %v2364
      %2366 = vmatmul.bf16.gmra.mxu0 %v2272
      %v2367 = vpop.f32.mrf.mxu0
      %v2368 = vadd.f32 0.0, %v2367
      %v2369 = vpop.f32.mrf.mxu0
      %v2370 = vadd.f32 0.0, %v2369
      %2371 = vmatmul.bf16.gmra.mxu0 %v2275
      %v2372 = vpop.f32.mrf.mxu0
      %v2373 = vadd.f32 0.0, %v2372
      %v2374 = vpop.f32.mrf.mxu0
      %v2375 = vadd.f32 0.0, %v2374
      %2376 = vmatmul.bf16.gmra.mxu0 %v2278
      %v2377 = vpop.f32.mrf.mxu0
      %v2378 = vadd.f32 0.0, %v2377
      %v2379 = vpop.f32.mrf.mxu0
      %v2380 = vadd.f32 0.0, %v2379
      %2381 = vdwg.mxu0
      %v2382 = vld [vmem:[#allocation3] sm:$0xff]
      %v2383 = vld [vmem:[#allocation3 + $0x8] sm:$0xff]
      %v2384 = vld [vmem:[#allocation3 + $0x10] sm:$0xff]
      %v2385 = vld [vmem:[#allocation3 + $0x18] sm:$0xff]
      %v2386 = vld [vmem:[#allocation3 + $0x20] sm:$0xff]
      %v2387 = vld [vmem:[#allocation3 + $0x28] sm:$0xff]
      %v2388 = vld [vmem:[#allocation3 + $0x30] sm:$0xff]
      %v2389 = vld [vmem:[#allocation3 + $0x38] sm:$0xff]
      %v2390 = vld [vmem:[#allocation3 + $0x40] sm:$0xff]
      %v2391 = vld [vmem:[#allocation3 + $0x48] sm:$0xff]
      %v2392 = vld [vmem:[#allocation3 + $0x50] sm:$0xff]
      %v2393 = vld [vmem:[#allocation3 + $0x58] sm:$0xff]
      %v2394 = vld [vmem:[#allocation3 + $0x60] sm:$0xff]
      %v2395 = vld [vmem:[#allocation3 + $0x68] sm:$0xff]
      %v2396 = vld [vmem:[#allocation3 + $0x70] sm:$0xff]
      %v2397 = vld [vmem:[#allocation3 + $0x78] sm:$0xff]
      %v2398 = vld [vmem:[#allocation3 + $0x80] sm:$0xff]
      %v2399 = vld [vmem:[#allocation3 + $0x88] sm:$0xff]
      %v2400 = vld [vmem:[#allocation3 + $0x90] sm:$0xff]
      %v2401 = vld [vmem:[#allocation3 + $0x98] sm:$0xff]
      %v2402 = vld [vmem:[#allocation3 + $0xa0] sm:$0xff]
      %v2403 = vld [vmem:[#allocation3 + $0xa8] sm:$0xff]
      %v2404 = vld [vmem:[#allocation3 + $0xb0] sm:$0xff]
      %v2405 = vld [vmem:[#allocation3 + $0xb8] sm:$0xff]
      %v2406 = vld [vmem:[#allocation3 + $0xc0] sm:$0xff]
      %v2407 = vld [vmem:[#allocation3 + $0xc8] sm:$0xff]
      %v2408 = vld [vmem:[#allocation3 + $0xd0] sm:$0xff]
      %v2409 = vld [vmem:[#allocation3 + $0xd8] sm:$0xff]
      %v2410 = vld [vmem:[#allocation3 + $0xe0] sm:$0xff]
      %v2411 = vld [vmem:[#allocation3 + $0xe8] sm:$0xff]
      %v2412 = vld [vmem:[#allocation3 + $0xf0] sm:$0xff]
      %v2413 = vld [vmem:[#allocation3 + $0xf8] sm:$0xff]
      %v2414 = vld [vmem:[#allocation3 + $0x100] sm:$0xff]
      %v2415 = vld [vmem:[#allocation3 + $0x108] sm:$0xff]
      %v2416 = vld [vmem:[#allocation3 + $0x110] sm:$0xff]
      %v2417 = vld [vmem:[#allocation3 + $0x118] sm:$0xff]
      %v2418 = vadd.f32 %v2382, %v2293
      %v2419 = vadd.f32 %v2383, %v2295
      %v2420 = vadd.f32 %v2384, %v2298
      %v2421 = vadd.f32 %v2385, %v2300
      %v2422 = vadd.f32 %v2386, %v2303
      %v2423 = vadd.f32 %v2387, %v2305
      %v2424 = vadd.f32 %v2388, %v2308
      %v2425 = vadd.f32 %v2389, %v2310
      %v2426 = vadd.f32 %v2390, %v2313
      %v2427 = vadd.f32 %v2391, %v2315
      %v2428 = vadd.f32 %v2392, %v2318
      %v2429 = vadd.f32 %v2393, %v2320
      %v2430 = vadd.f32 %v2394, %v2323
      %v2431 = vadd.f32 %v2395, %v2325
      %v2432 = vadd.f32 %v2396, %v2328
      %v2433 = vadd.f32 %v2397, %v2330
      %v2434 = vadd.f32 %v2398, %v2333
      %v2435 = vadd.f32 %v2399, %v2335
      %v2436 = vadd.f32 %v2400, %v2338
      %v2437 = vadd.f32 %v2401, %v2340
      %v2438 = vadd.f32 %v2402, %v2343
      %v2439 = vadd.f32 %v2403, %v2345
      %v2440 = vadd.f32 %v2404, %v2348
      %v2441 = vadd.f32 %v2405, %v2350
      %v2442 = vadd.f32 %v2406, %v2353
      %v2443 = vadd.f32 %v2407, %v2355
      %v2444 = vadd.f32 %v2408, %v2358
      %v2445 = vadd.f32 %v2409, %v2360
      %v2446 = vadd.f32 %v2410, %v2363
      %v2447 = vadd.f32 %v2411, %v2365
      %v2448 = vadd.f32 %v2412, %v2368
      %v2449 = vadd.f32 %v2413, %v2370
      %v2450 = vadd.f32 %v2414, %v2373
      %v2451 = vadd.f32 %v2415, %v2375
      %v2452 = vadd.f32 %v2416, %v2378
      %v2453 = vadd.f32 %v2417, %v2380
      %2454 = vst [vmem:[#allocation3] sm:$0xff] %v2418
      %2455 = vst [vmem:[#allocation3 + $0x8] sm:$0xff] %v2419
      %2456 = vst [vmem:[#allocation3 + $0x10] sm:$0xff] %v2420
      %2457 = vst [vmem:[#allocation3 + $0x18] sm:$0xff] %v2421
      %2458 = vst [vmem:[#allocation3 + $0x20] sm:$0xff] %v2422
      %2459 = vst [vmem:[#allocation3 + $0x28] sm:$0xff] %v2423
      %2460 = vst [vmem:[#allocation3 + $0x30] sm:$0xff] %v2424
      %2461 = vst [vmem:[#allocation3 + $0x38] sm:$0xff] %v2425
      %2462 = vst [vmem:[#allocation3 + $0x40] sm:$0xff] %v2426
      %2463 = vst [vmem:[#allocation3 + $0x48] sm:$0xff] %v2427
      %2464 = vst [vmem:[#allocation3 + $0x50] sm:$0xff] %v2428
      %2465 = vst [vmem:[#allocation3 + $0x58] sm:$0xff] %v2429
      %2466 = vst [vmem:[#allocation3 + $0x60] sm:$0xff] %v2430
      %2467 = vst [vmem:[#allocation3 + $0x68] sm:$0xff] %v2431
      %2468 = vst [vmem:[#allocation3 + $0x70] sm:$0xff] %v2432
      %2469 = vst [vmem:[#allocation3 + $0x78] sm:$0xff] %v2433
      %2470 = vst [vmem:[#allocation3 + $0x80] sm:$0xff] %v2434
      %2471 = vst [vmem:[#allocation3 + $0x88] sm:$0xff] %v2435
      %2472 = vst [vmem:[#allocation3 + $0x90] sm:$0xff] %v2436
      %2473 = vst [vmem:[#allocation3 + $0x98] sm:$0xff] %v2437
      %2474 = vst [vmem:[#allocation3 + $0xa0] sm:$0xff] %v2438
      %2475 = vst [vmem:[#allocation3 + $0xa8] sm:$0xff] %v2439
      %2476 = vst [vmem:[#allocation3 + $0xb0] sm:$0xff] %v2440
      %2477 = vst [vmem:[#allocation3 + $0xb8] sm:$0xff] %v2441
      %2478 = vst [vmem:[#allocation3 + $0xc0] sm:$0xff] %v2442
      %2479 = vst [vmem:[#allocation3 + $0xc8] sm:$0xff] %v2443
      %2480 = vst [vmem:[#allocation3 + $0xd0] sm:$0xff] %v2444
      %2481 = vst [vmem:[#allocation3 + $0xd8] sm:$0xff] %v2445
      %2482 = vst [vmem:[#allocation3 + $0xe0] sm:$0xff] %v2446
      %2483 = vst [vmem:[#allocation3 + $0xe8] sm:$0xff] %v2447
      %2484 = vst [vmem:[#allocation3 + $0xf0] sm:$0xff] %v2448
      %2485 = vst [vmem:[#allocation3 + $0xf8] sm:$0xff] %v2449
      %2486 = vst [vmem:[#allocation3 + $0x100] sm:$0xff] %v2450
      %2487 = vst [vmem:[#allocation3 + $0x108] sm:$0xff] %v2451
      %2488 = vst [vmem:[#allocation3 + $0x110] sm:$0xff] %v2452
      %2489 = vst [vmem:[#allocation3 + $0x118] sm:$0xff] %v2453
      %v2490 = vld [vmem:[#allocation2 + $0xc] sm:$0xe]
      %v2491 = vld [vmem:[#allocation2 + $0x10] sm:$0xf]
      %v2492 = vld [vmem:[#allocation2 + $0x14] sm:$0xf]
      %v2493 = vld [vmem:[#allocation2 + $0x18] sm:$0xf]
      %v2494 = vld [vmem:[#allocation2 + $0x1c] sm:$0xf]
      %v2495 = vld [vmem:[#allocation2 + $0x20] sm:$0xf]
      %v2496 = vld [vmem:[#allocation2 + $0x24] sm:$0xf]
      %v2497 = vld [vmem:[#allocation2 + $0x28] sm:$0xf]
      %v2498 = vld [vmem:[#allocation2 + $0x2c] sm:$0xf]
      %v2499 = vld [vmem:[#allocation2 + $0x30] sm:$0xf]
      %v2500 = vld [vmem:[#allocation2 + $0x34] sm:$0xf]
      %v2501 = vld [vmem:[#allocation2 + $0x38] sm:$0xf]
      %v2502 = vld [vmem:[#allocation2 + $0x3c] sm:$0xf]
      %v2503 = vld [vmem:[#allocation2 + $0x40] sm:$0xf]
      %v2504 = vld [vmem:[#allocation2 + $0x44] sm:$0xf]
      %v2505 = vld [vmem:[#allocation2 + $0x48] sm:$0xf]
      %v2506 = vld [vmem:[#allocation2 + $0x4c] sm:$0xf]
      %v2507 = vld [vmem:[#allocation2 + $0x50] sm:$0xf]
      %v2508 = vld [vmem:[#allocation2 + $0x54] sm:$0xf]
      %v2509 = vld [vmem:[#allocation2 + $0x58] sm:$0xf]
      %v2510 = vld [vmem:[#allocation2 + $0x5c] sm:$0xf]
      %v2511 = vld [vmem:[#allocation2 + $0x60] sm:$0xf]
      %v2512 = vld [vmem:[#allocation2 + $0x64] sm:$0xf]
      %v2513 = vld [vmem:[#allocation2 + $0x68] sm:$0xf]
      %v2514 = vld [vmem:[#allocation2 + $0x6c] sm:$0xf]
      %v2515 = vld [vmem:[#allocation2 + $0x70] sm:$0xf]
      %v2516 = vld [vmem:[#allocation2 + $0x74] sm:$0xf]
      %v2517 = vld [vmem:[#allocation2 + $0x78] sm:$0xf]
      %v2518 = vld [vmem:[#allocation2 + $0x7c] sm:$0xf]
      %v2519 = vld [vmem:[#allocation2 + $0x80] sm:$0xf]
      %v2520 = vld [vmem:[#allocation2 + $0x84] sm:$0xf]
      %v2521 = vld [vmem:[#allocation2 + $0x88] sm:$0xf]
      %v2522 = vld [vmem:[#allocation2 + $0x8c] sm:$0xf]
      %v2523 = vld [vmem:[#allocation2 + $0x90] sm:$0xf]
      %v2524 = vld [vmem:[#allocation2 + $0x94] sm:$0xf]
      %v2525 = vld [vmem:[#allocation2 + $0x98] sm:$0xf]
      %v2526 = vld [vmem:[#allocation2 + $0x9c] sm:$0x1]
      %s2527 = scalar_lea.vmem %s2, 16
      %v2528 = vld [vmem:[%s2527] sm:$0xf]
      %v2566 = vunpack.c.l.b16 %v2490
      %v2567 = vunpack.c.l.b16 %v2491
      %v2568 = vunpack.c.l.b16 %v2492
      %v2569 = vunpack.c.l.b16 %v2493
      %v2570 = vunpack.c.l.b16 %v2494
      %v2571 = vunpack.c.l.b16 %v2495
      %v2572 = vunpack.c.l.b16 %v2496
      %v2573 = vunpack.c.l.b16 %v2497
      %v2574 = vunpack.c.l.b16 %v2498
      %v2575 = vunpack.c.l.b16 %v2499
      %v2576 = vunpack.c.l.b16 %v2500
      %v2577 = vunpack.c.l.b16 %v2501
      %v2578 = vunpack.c.l.b16 %v2502
      %v2579 = vunpack.c.l.b16 %v2503
      %v2580 = vunpack.c.l.b16 %v2504
      %v2581 = vunpack.c.l.b16 %v2505
      %v2582 = vunpack.c.l.b16 %v2506
      %v2583 = vunpack.c.l.b16 %v2507
      %v2584 = vunpack.c.l.b16 %v2508
      %v2585 = vunpack.c.l.b16 %v2509
      %v2586 = vunpack.c.l.b16 %v2510
      %v2587 = vunpack.c.l.b16 %v2511
      %v2588 = vunpack.c.l.b16 %v2512
      %v2589 = vunpack.c.l.b16 %v2513
      %v2590 = vunpack.c.l.b16 %v2514
      %v2591 = vunpack.c.l.b16 %v2515
      %v2592 = vunpack.c.l.b16 %v2516
      %v2593 = vunpack.c.l.b16 %v2517
      %v2594 = vunpack.c.l.b16 %v2518
      %v2595 = vunpack.c.l.b16 %v2519
      %v2596 = vunpack.c.l.b16 %v2520
      %v2597 = vunpack.c.l.b16 %v2521
      %v2598 = vunpack.c.l.b16 %v2522
      %v2599 = vunpack.c.l.b16 %v2523
      %v2600 = vunpack.c.l.b16 %v2524
      %v2601 = vunpack.c.l.b16 %v2525
      %v2602 = vunpack.c.l.b16 %v2526
      %v2603 = vpack.c.b16 %v2567, %v2566
      %v2604 = vpack.c.b16 %v2569, %v2568
      %v2605 = vpack.c.b16 %v2571, %v2570
      %v2606 = vpack.c.b16 %v2573, %v2572
      %v2607 = vpack.c.b16 %v2575, %v2574
      %v2608 = vpack.c.b16 %v2577, %v2576
      %v2609 = vpack.c.b16 %v2579, %v2578
      %v2610 = vpack.c.b16 %v2581, %v2580
      %v2611 = vpack.c.b16 %v2583, %v2582
      %v2612 = vpack.c.b16 %v2585, %v2584
      %v2613 = vpack.c.b16 %v2587, %v2586
      %v2614 = vpack.c.b16 %v2589, %v2588
      %v2615 = vpack.c.b16 %v2591, %v2590
      %v2616 = vpack.c.b16 %v2593, %v2592
      %v2617 = vpack.c.b16 %v2595, %v2594
      %v2618 = vpack.c.b16 %v2597, %v2596
      %v2619 = vpack.c.b16 %v2599, %v2598
      %v2620 = vpack.c.b16 %v2601, %v2600
      %v2621 = vpack.c.b16 %v2602, %v2602
      %vm2622 = vcmask 1046528
      %v2623 = vrot.slane %v2603, 1
      %v2624 = vrot.slane %v2604, 1
      %v2625 = vsel %vm2622, %v2623, %v2624
      %v2626 = vrot.slane %v2605, 1
      %v2627 = vsel %vm2622, %v2624, %v2626
      %v2628 = vrot.slane %v2606, 1
      %v2629 = vsel %vm2622, %v2626, %v2628
      %v2630 = vrot.slane %v2607, 1
      %v2631 = vsel %vm2622, %v2628, %v2630
      %v2632 = vrot.slane %v2608, 1
      %v2633 = vsel %vm2622, %v2630, %v2632
      %v2634 = vrot.slane %v2609, 1
      %v2635 = vsel %vm2622, %v2632, %v2634
      %v2636 = vrot.slane %v2610, 1
      %v2637 = vsel %vm2622, %v2634, %v2636
      %v2638 = vrot.slane %v2611, 1
      %v2639 = vsel %vm2622, %v2636, %v2638
      %v2640 = vrot.slane %v2612, 1
      %v2641 = vsel %vm2622, %v2638, %v2640
      %v2642 = vrot.slane %v2613, 1
      %v2643 = vsel %vm2622, %v2640, %v2642
      %v2644 = vrot.slane %v2614, 1
      %v2645 = vsel %vm2622, %v2642, %v2644
      %v2646 = vrot.slane %v2615, 1
      %v2647 = vsel %vm2622, %v2644, %v2646
      %v2648 = vrot.slane %v2616, 1
      %v2649 = vsel %vm2622, %v2646, %v2648
      %v2650 = vrot.slane %v2617, 1
      %v2651 = vsel %vm2622, %v2648, %v2650
      %v2652 = vrot.slane %v2618, 1
      %v2653 = vsel %vm2622, %v2650, %v2652
      %v2654 = vrot.slane %v2619, 1
      %v2655 = vsel %vm2622, %v2652, %v2654
      %v2656 = vrot.slane %v2620, 1
      %v2657 = vsel %vm2622, %v2654, %v2656
      %v2658 = vrot.slane %v2621, 1
      %v2659 = vsel %vm2622, %v2656, %v2658
      %v2661 = vsel %vm815, %v2625, 0
      %v2664 = vsel %vm815, %v2627, 0
      %v2667 = vsel %vm815, %v2629, 0
      %v2670 = vsel %vm815, %v2631, 0
      %v2673 = vsel %vm815, %v2633, 0
      %v2676 = vsel %vm815, %v2635, 0
      %v2679 = vsel %vm815, %v2637, 0
      %v2682 = vsel %vm815, %v2639, 0
      %v2685 = vsel %vm815, %v2641, 0
      %v2688 = vsel %vm815, %v2643, 0
      %v2691 = vsel %vm815, %v2645, 0
      %v2694 = vsel %vm815, %v2647, 0
      %v2697 = vsel %vm815, %v2649, 0
      %v2700 = vsel %vm815, %v2651, 0
      %v2703 = vsel %vm815, %v2653, 0
      %v2706 = vsel %vm815, %v2655, 0
      %v2709 = vsel %vm815, %v2657, 0
      %v2712 = vsel %vm815, %v2659, 0
      %v2715 = vsel %vm870, %v2528, 0
      %2717 = vmatpush.bf16.msra.mxu0 0
      %2718 = vmatpush.bf16.msra.mxu0 0
      %2719 = vmatpush.bf16.msra.mxu0 0
      %2720 = vmatpush.bf16.msra.mxu0 0
      %2721 = vmatpush.bf16.msra.mxu0 0
      %2722 = vmatpush.bf16.msra.mxu0 0
      %2723 = vmatpush.bf16.msra.mxu0 0
      %2724 = vmatpush.bf16.msra.mxu0 %v2715
      %2725 = vmatmul.bf16.gmra.mxu0 %v2661
      %v2726 = vpop.f32.mrf.mxu0
      %v2727 = vadd.f32 0.0, %v2726
      %v2728 = vpop.f32.mrf.mxu0
      %v2729 = vadd.f32 0.0, %v2728
      %2730 = vmatmul.bf16.gmra.mxu0 %v2664
      %v2731 = vpop.f32.mrf.mxu0
      %v2732 = vadd.f32 0.0, %v2731
      %v2733 = vpop.f32.mrf.mxu0
      %v2734 = vadd.f32 0.0, %v2733
      %2735 = vmatmul.bf16.gmra.mxu0 %v2667
      %v2736 = vpop.f32.mrf.mxu0
      %v2737 = vadd.f32 0.0, %v2736
      %v2738 = vpop.f32.mrf.mxu0
      %v2739 = vadd.f32 0.0, %v2738
      %2740 = vmatmul.bf16.gmra.mxu0 %v2670
      %v2741 = vpop.f32.mrf.mxu0
      %v2742 = vadd.f32 0.0, %v2741
      %v2743 = vpop.f32.mrf.mxu0
      %v2744 = vadd.f32 0.0, %v2743
      %2745 = vmatmul.bf16.gmra.mxu0 %v2673
      %v2746 = vpop.f32.mrf.mxu0
      %v2747 = vadd.f32 0.0, %v2746
      %v2748 = vpop.f32.mrf.mxu0
      %v2749 = vadd.f32 0.0, %v2748
      %2750 = vmatmul.bf16.gmra.mxu0 %v2676
      %v2751 = vpop.f32.mrf.mxu0
      %v2752 = vadd.f32 0.0, %v2751
      %v2753 = vpop.f32.mrf.mxu0
      %v2754 = vadd.f32 0.0, %v2753
      %2755 = vmatmul.bf16.gmra.mxu0 %v2679
      %v2756 = vpop.f32.mrf.mxu0
      %v2757 = vadd.f32 0.0, %v2756
      %v2758 = vpop.f32.mrf.mxu0
      %v2759 = vadd.f32 0.0, %v2758
      %2760 = vmatmul.bf16.gmra.mxu0 %v2682
      %v2761 = vpop.f32.mrf.mxu0
      %v2762 = vadd.f32 0.0, %v2761
      %v2763 = vpop.f32.mrf.mxu0
      %v2764 = vadd.f32 0.0, %v2763
      %2765 = vmatmul.bf16.gmra.mxu0 %v2685
      %v2766 = vpop.f32.mrf.mxu0
      %v2767 = vadd.f32 0.0, %v2766
      %v2768 = vpop.f32.mrf.mxu0
      %v2769 = vadd.f32 0.0, %v2768
      %2770 = vmatmul.bf16.gmra.mxu0 %v2688
      %v2771 = vpop.f32.mrf.mxu0
      %v2772 = vadd.f32 0.0, %v2771
      %v2773 = vpop.f32.mrf.mxu0
      %v2774 = vadd.f32 0.0, %v2773
      %2775 = vmatmul.bf16.gmra.mxu0 %v2691
      %v2776 = vpop.f32.mrf.mxu0
      %v2777 = vadd.f32 0.0, %v2776
      %v2778 = vpop.f32.mrf.mxu0
      %v2779 = vadd.f32 0.0, %v2778
      %2780 = vmatmul.bf16.gmra.mxu0 %v2694
      %v2781 = vpop.f32.mrf.mxu0
      %v2782 = vadd.f32 0.0, %v2781
      %v2783 = vpop.f32.mrf.mxu0
      %v2784 = vadd.f32 0.0, %v2783
      %2785 = vmatmul.bf16.gmra.mxu0 %v2697
      %v2786 = vpop.f32.mrf.mxu0
      %v2787 = vadd.f32 0.0, %v2786
      %v2788 = vpop.f32.mrf.mxu0
      %v2789 = vadd.f32 0.0, %v2788
      %2790 = vmatmul.bf16.gmra.mxu0 %v2700
      %v2791 = vpop.f32.mrf.mxu0
      %v2792 = vadd.f32 0.0, %v2791
      %v2793 = vpop.f32.mrf.mxu0
      %v2794 = vadd.f32 0.0, %v2793
      %2795 = vmatmul.bf16.gmra.mxu0 %v2703
      %v2796 = vpop.f32.mrf.mxu0
      %v2797 = vadd.f32 0.0, %v2796
      %v2798 = vpop.f32.mrf.mxu0
      %v2799 = vadd.f32 0.0, %v2798
      %2800 = vmatmul.bf16.gmra.mxu0 %v2706
      %v2801 = vpop.f32.mrf.mxu0
      %v2802 = vadd.f32 0.0, %v2801
      %v2803 = vpop.f32.mrf.mxu0
      %v2804 = vadd.f32 0.0, %v2803
      %2805 = vmatmul.bf16.gmra.mxu0 %v2709
      %v2806 = vpop.f32.mrf.mxu0
      %v2807 = vadd.f32 0.0, %v2806
      %v2808 = vpop.f32.mrf.mxu0
      %v2809 = vadd.f32 0.0, %v2808
      %2810 = vmatmul.bf16.gmra.mxu0 %v2712
      %v2811 = vpop.f32.mrf.mxu0
      %v2812 = vadd.f32 0.0, %v2811
      %v2813 = vpop.f32.mrf.mxu0
      %v2814 = vadd.f32 0.0, %v2813
      %2815 = vdwg.mxu0
      %v2816 = vld [vmem:[#allocation3] sm:$0xff]
      %v2817 = vld [vmem:[#allocation3 + $0x8] sm:$0xff]
      %v2818 = vld [vmem:[#allocation3 + $0x10] sm:$0xff]
      %v2819 = vld [vmem:[#allocation3 + $0x18] sm:$0xff]
      %v2820 = vld [vmem:[#allocation3 + $0x20] sm:$0xff]
      %v2821 = vld [vmem:[#allocation3 + $0x28] sm:$0xff]
      %v2822 = vld [vmem:[#allocation3 + $0x30] sm:$0xff]
      %v2823 = vld [vmem:[#allocation3 + $0x38] sm:$0xff]
      %v2824 = vld [vmem:[#allocation3 + $0x40] sm:$0xff]
      %v2825 = vld [vmem:[#allocation3 + $0x48] sm:$0xff]
      %v2826 = vld [vmem:[#allocation3 + $0x50] sm:$0xff]
      %v2827 = vld [vmem:[#allocation3 + $0x58] sm:$0xff]
      %v2828 = vld [vmem:[#allocation3 + $0x60] sm:$0xff]
      %v2829 = vld [vmem:[#allocation3 + $0x68] sm:$0xff]
      %v2830 = vld [vmem:[#allocation3 + $0x70] sm:$0xff]
      %v2831 = vld [vmem:[#allocation3 + $0x78] sm:$0xff]
      %v2832 = vld [vmem:[#allocation3 + $0x80] sm:$0xff]
      %v2833 = vld [vmem:[#allocation3 + $0x88] sm:$0xff]
      %v2834 = vld [vmem:[#allocation3 + $0x90] sm:$0xff]
      %v2835 = vld [vmem:[#allocation3 + $0x98] sm:$0xff]
      %v2836 = vld [vmem:[#allocation3 + $0xa0] sm:$0xff]
      %v2837 = vld [vmem:[#allocation3 + $0xa8] sm:$0xff]
      %v2838 = vld [vmem:[#allocation3 + $0xb0] sm:$0xff]
      %v2839 = vld [vmem:[#allocation3 + $0xb8] sm:$0xff]
      %v2840 = vld [vmem:[#allocation3 + $0xc0] sm:$0xff]
      %v2841 = vld [vmem:[#allocation3 + $0xc8] sm:$0xff]
      %v2842 = vld [vmem:[#allocation3 + $0xd0] sm:$0xff]
      %v2843 = vld [vmem:[#allocation3 + $0xd8] sm:$0xff]
      %v2844 = vld [vmem:[#allocation3 + $0xe0] sm:$0xff]
      %v2845 = vld [vmem:[#allocation3 + $0xe8] sm:$0xff]
      %v2846 = vld [vmem:[#allocation3 + $0xf0] sm:$0xff]
      %v2847 = vld [vmem:[#allocation3 + $0xf8] sm:$0xff]
      %v2848 = vld [vmem:[#allocation3 + $0x100] sm:$0xff]
      %v2849 = vld [vmem:[#allocation3 + $0x108] sm:$0xff]
      %v2850 = vld [vmem:[#allocation3 + $0x110] sm:$0xff]
      %v2851 = vld [vmem:[#allocation3 + $0x118] sm:$0xff]
      %v2852 = vadd.f32 %v2816, %v2727
      %v2853 = vadd.f32 %v2817, %v2729
      %v2854 = vadd.f32 %v2818, %v2732
      %v2855 = vadd.f32 %v2819, %v2734
      %v2856 = vadd.f32 %v2820, %v2737
      %v2857 = vadd.f32 %v2821, %v2739
      %v2858 = vadd.f32 %v2822, %v2742
      %v2859 = vadd.f32 %v2823, %v2744
      %v2860 = vadd.f32 %v2824, %v2747
      %v2861 = vadd.f32 %v2825, %v2749
      %v2862 = vadd.f32 %v2826, %v2752
      %v2863 = vadd.f32 %v2827, %v2754
      %v2864 = vadd.f32 %v2828, %v2757
      %v2865 = vadd.f32 %v2829, %v2759
      %v2866 = vadd.f32 %v2830, %v2762
      %v2867 = vadd.f32 %v2831, %v2764
      %v2868 = vadd.f32 %v2832, %v2767
      %v2869 = vadd.f32 %v2833, %v2769
      %v2870 = vadd.f32 %v2834, %v2772
      %v2871 = vadd.f32 %v2835, %v2774
      %v2872 = vadd.f32 %v2836, %v2777
      %v2873 = vadd.f32 %v2837, %v2779
      %v2874 = vadd.f32 %v2838, %v2782
      %v2875 = vadd.f32 %v2839, %v2784
      %v2876 = vadd.f32 %v2840, %v2787
      %v2877 = vadd.f32 %v2841, %v2789
      %v2878 = vadd.f32 %v2842, %v2792
      %v2879 = vadd.f32 %v2843, %v2794
      %v2880 = vadd.f32 %v2844, %v2797
      %v2881 = vadd.f32 %v2845, %v2799
      %v2882 = vadd.f32 %v2846, %v2802
      %v2883 = vadd.f32 %v2847, %v2804
      %v2884 = vadd.f32 %v2848, %v2807
      %v2885 = vadd.f32 %v2849, %v2809
      %v2886 = vadd.f32 %v2850, %v2812
      %v2887 = vadd.f32 %v2851, %v2814
      %2888 = vst [vmem:[#allocation3] sm:$0xff] %v2852
      %2889 = vst [vmem:[#allocation3 + $0x8] sm:$0xff] %v2853
      %2890 = vst [vmem:[#allocation3 + $0x10] sm:$0xff] %v2854
      %2891 = vst [vmem:[#allocation3 + $0x18] sm:$0xff] %v2855
      %2892 = vst [vmem:[#allocation3 + $0x20] sm:$0xff] %v2856
      %2893 = vst [vmem:[#allocation3 + $0x28] sm:$0xff] %v2857
      %2894 = vst [vmem:[#allocation3 + $0x30] sm:$0xff] %v2858
      %2895 = vst [vmem:[#allocation3 + $0x38] sm:$0xff] %v2859
      %2896 = vst [vmem:[#allocation3 + $0x40] sm:$0xff] %v2860
      %2897 = vst [vmem:[#allocation3 + $0x48] sm:$0xff] %v2861
      %2898 = vst [vmem:[#allocation3 + $0x50] sm:$0xff] %v2862
      %2899 = vst [vmem:[#allocation3 + $0x58] sm:$0xff] %v2863
      %2900 = vst [vmem:[#allocation3 + $0x60] sm:$0xff] %v2864
      %2901 = vst [vmem:[#allocation3 + $0x68] sm:$0xff] %v2865
      %2902 = vst [vmem:[#allocation3 + $0x70] sm:$0xff] %v2866
      %2903 = vst [vmem:[#allocation3 + $0x78] sm:$0xff] %v2867
      %2904 = vst [vmem:[#allocation3 + $0x80] sm:$0xff] %v2868
      %2905 = vst [vmem:[#allocation3 + $0x88] sm:$0xff] %v2869
      %2906 = vst [vmem:[#allocation3 + $0x90] sm:$0xff] %v2870
      %2907 = vst [vmem:[#allocation3 + $0x98] sm:$0xff] %v2871
      %2908 = vst [vmem:[#allocation3 + $0xa0] sm:$0xff] %v2872
      %2909 = vst [vmem:[#allocation3 + $0xa8] sm:$0xff] %v2873
      %2910 = vst [vmem:[#allocation3 + $0xb0] sm:$0xff] %v2874
      %2911 = vst [vmem:[#allocation3 + $0xb8] sm:$0xff] %v2875
      %2912 = vst [vmem:[#allocation3 + $0xc0] sm:$0xff] %v2876
      %2913 = vst [vmem:[#allocation3 + $0xc8] sm:$0xff] %v2877
      %2914 = vst [vmem:[#allocation3 + $0xd0] sm:$0xff] %v2878
      %2915 = vst [vmem:[#allocation3 + $0xd8] sm:$0xff] %v2879
      %2916 = vst [vmem:[#allocation3 + $0xe0] sm:$0xff] %v2880
      %2917 = vst [vmem:[#allocation3 + $0xe8] sm:$0xff] %v2881
      %2918 = vst [vmem:[#allocation3 + $0xf0] sm:$0xff] %v2882
      %2919 = vst [vmem:[#allocation3 + $0xf8] sm:$0xff] %v2883
      %2920 = vst [vmem:[#allocation3 + $0x100] sm:$0xff] %v2884
      %2921 = vst [vmem:[#allocation3 + $0x108] sm:$0xff] %v2885
      %2922 = vst [vmem:[#allocation3 + $0x110] sm:$0xff] %v2886
      %2923 = vst [vmem:[#allocation3 + $0x118] sm:$0xff] %v2887
      %v2924 = vld [vmem:[#allocation2 + $0xc] sm:$0xe]
      %v2925 = vld [vmem:[#allocation2 + $0x10] sm:$0xf]
      %v2926 = vld [vmem:[#allocation2 + $0x14] sm:$0xf]
      %v2927 = vld [vmem:[#allocation2 + $0x18] sm:$0xf]
      %v2928 = vld [vmem:[#allocation2 + $0x1c] sm:$0xf]
      %v2929 = vld [vmem:[#allocation2 + $0x20] sm:$0xf]
      %v2930 = vld [vmem:[#allocation2 + $0x24] sm:$0xf]
      %v2931 = vld [vmem:[#allocation2 + $0x28] sm:$0xf]
      %v2932 = vld [vmem:[#allocation2 + $0x2c] sm:$0xf]
      %v2933 = vld [vmem:[#allocation2 + $0x30] sm:$0xf]
      %v2934 = vld [vmem:[#allocation2 + $0x34] sm:$0xf]
      %v2935 = vld [vmem:[#allocation2 + $0x38] sm:$0xf]
      %v2936 = vld [vmem:[#allocation2 + $0x3c] sm:$0xf]
      %v2937 = vld [vmem:[#allocation2 + $0x40] sm:$0xf]
      %v2938 = vld [vmem:[#allocation2 + $0x44] sm:$0xf]
      %v2939 = vld [vmem:[#allocation2 + $0x48] sm:$0xf]
      %v2940 = vld [vmem:[#allocation2 + $0x4c] sm:$0xf]
      %v2941 = vld [vmem:[#allocation2 + $0x50] sm:$0xf]
      %v2942 = vld [vmem:[#allocation2 + $0x54] sm:$0xf]
      %v2943 = vld [vmem:[#allocation2 + $0x58] sm:$0xf]
      %v2944 = vld [vmem:[#allocation2 + $0x5c] sm:$0xf]
      %v2945 = vld [vmem:[#allocation2 + $0x60] sm:$0xf]
      %v2946 = vld [vmem:[#allocation2 + $0x64] sm:$0xf]
      %v2947 = vld [vmem:[#allocation2 + $0x68] sm:$0xf]
      %v2948 = vld [vmem:[#allocation2 + $0x6c] sm:$0xf]
      %v2949 = vld [vmem:[#allocation2 + $0x70] sm:$0xf]
      %v2950 = vld [vmem:[#allocation2 + $0x74] sm:$0xf]
      %v2951 = vld [vmem:[#allocation2 + $0x78] sm:$0xf]
      %v2952 = vld [vmem:[#allocation2 + $0x7c] sm:$0xf]
      %v2953 = vld [vmem:[#allocation2 + $0x80] sm:$0xf]
      %v2954 = vld [vmem:[#allocation2 + $0x84] sm:$0xf]
      %v2955 = vld [vmem:[#allocation2 + $0x88] sm:$0xf]
      %v2956 = vld [vmem:[#allocation2 + $0x8c] sm:$0xf]
      %v2957 = vld [vmem:[#allocation2 + $0x90] sm:$0xf]
      %v2958 = vld [vmem:[#allocation2 + $0x94] sm:$0xf]
      %v2959 = vld [vmem:[#allocation2 + $0x98] sm:$0xf]
      %v2960 = vld [vmem:[#allocation2 + $0x9c] sm:$0x3]
      %s2961 = scalar_lea.vmem %s2, 20
      %v2962 = vld [vmem:[%s2961] sm:$0xf]
      %v3000 = vunpack.c.l.b16 %v2924
      %v3001 = vunpack.c.l.b16 %v2925
      %v3002 = vunpack.c.l.b16 %v2926
      %v3003 = vunpack.c.l.b16 %v2927
      %v3004 = vunpack.c.l.b16 %v2928
      %v3005 = vunpack.c.l.b16 %v2929
      %v3006 = vunpack.c.l.b16 %v2930
      %v3007 = vunpack.c.l.b16 %v2931
      %v3008 = vunpack.c.l.b16 %v2932
      %v3009 = vunpack.c.l.b16 %v2933
      %v3010 = vunpack.c.l.b16 %v2934
      %v3011 = vunpack.c.l.b16 %v2935
      %v3012 = vunpack.c.l.b16 %v2936
      %v3013 = vunpack.c.l.b16 %v2937
      %v3014 = vunpack.c.l.b16 %v2938
      %v3015 = vunpack.c.l.b16 %v2939
      %v3016 = vunpack.c.l.b16 %v2940
      %v3017 = vunpack.c.l.b16 %v2941
      %v3018 = vunpack.c.l.b16 %v2942
      %v3019 = vunpack.c.l.b16 %v2943
      %v3020 = vunpack.c.l.b16 %v2944
      %v3021 = vunpack.c.l.b16 %v2945
      %v3022 = vunpack.c.l.b16 %v2946
      %v3023 = vunpack.c.l.b16 %v2947
      %v3024 = vunpack.c.l.b16 %v2948
      %v3025 = vunpack.c.l.b16 %v2949
      %v3026 = vunpack.c.l.b16 %v2950
      %v3027 = vunpack.c.l.b16 %v2951
      %v3028 = vunpack.c.l.b16 %v2952
      %v3029 = vunpack.c.l.b16 %v2953
      %v3030 = vunpack.c.l.b16 %v2954
      %v3031 = vunpack.c.l.b16 %v2955
      %v3032 = vunpack.c.l.b16 %v2956
      %v3033 = vunpack.c.l.b16 %v2957
      %v3034 = vunpack.c.l.b16 %v2958
      %v3035 = vunpack.c.l.b16 %v2959
      %v3036 = vunpack.c.l.b16 %v2960
      %v3037 = vpack.c.b16 %v3001, %v3000
      %v3038 = vpack.c.b16 %v3003, %v3002
      %v3039 = vpack.c.b16 %v3005, %v3004
      %v3040 = vpack.c.b16 %v3007, %v3006
      %v3041 = vpack.c.b16 %v3009, %v3008
      %v3042 = vpack.c.b16 %v3011, %v3010
      %v3043 = vpack.c.b16 %v3013, %v3012
      %v3044 = vpack.c.b16 %v3015, %v3014
      %v3045 = vpack.c.b16 %v3017, %v3016
      %v3046 = vpack.c.b16 %v3019, %v3018
      %v3047 = vpack.c.b16 %v3021, %v3020
      %v3048 = vpack.c.b16 %v3023, %v3022
      %v3049 = vpack.c.b16 %v3025, %v3024
      %v3050 = vpack.c.b16 %v3027, %v3026
      %v3051 = vpack.c.b16 %v3029, %v3028
      %v3052 = vpack.c.b16 %v3031, %v3030
      %v3053 = vpack.c.b16 %v3033, %v3032
      %v3054 = vpack.c.b16 %v3035, %v3034
      %v3055 = vpack.c.b16 %v3036, %v3036
      %vm3056 = vsmask.f32 6400
      %v3058 = vshrl.u32 %v3037, 16
      %v3060 = vrot.slane %v3058, 1
      %v3061 = vshll.u32 %v3037, 16
      %v3063 = vrot.slane %v3061, 2
      %v3064 = vor.u32 %v3060, %v3063
      %v3066 = vshrl.u32 %v3038, 16
      %v3068 = vrot.slane %v3066, 1
      %v3069 = vshll.u32 %v3038, 16
      %v3071 = vrot.slane %v3069, 2
      %v3072 = vor.u32 %v3068, %v3071
      %v3073 = vsel %vm3056, %v3064, %v3072
      %v3075 = vshrl.u32 %v3039, 16
      %v3077 = vrot.slane %v3075, 1
      %v3078 = vshll.u32 %v3039, 16
      %v3080 = vrot.slane %v3078, 2
      %v3081 = vor.u32 %v3077, %v3080
      %v3082 = vsel %vm3056, %v3072, %v3081
      %v3084 = vshrl.u32 %v3040, 16
      %v3086 = vrot.slane %v3084, 1
      %v3087 = vshll.u32 %v3040, 16
      %v3089 = vrot.slane %v3087, 2
      %v3090 = vor.u32 %v3086, %v3089
      %v3091 = vsel %vm3056, %v3081, %v3090
      %v3093 = vshrl.u32 %v3041, 16
      %v3095 = vrot.slane %v3093, 1
      %v3096 = vshll.u32 %v3041, 16
      %v3098 = vrot.slane %v3096, 2
      %v3099 = vor.u32 %v3095, %v3098
      %v3100 = vsel %vm3056, %v3090, %v3099
      %v3102 = vshrl.u32 %v3042, 16
      %v3104 = vrot.slane %v3102, 1
      %v3105 = vshll.u32 %v3042, 16
      %v3107 = vrot.slane %v3105, 2
      %v3108 = vor.u32 %v3104, %v3107
      %v3109 = vsel %vm3056, %v3099, %v3108
      %v3111 = vshrl.u32 %v3043, 16
      %v3113 = vrot.slane %v3111, 1
      %v3114 = vshll.u32 %v3043, 16
      %v3116 = vrot.slane %v3114, 2
      %v3117 = vor.u32 %v3113, %v3116
      %v3118 = vsel %vm3056, %v3108, %v3117
      %v3120 = vshrl.u32 %v3044, 16
      %v3122 = vrot.slane %v3120, 1
      %v3123 = vshll.u32 %v3044, 16
      %v3125 = vrot.slane %v3123, 2
      %v3126 = vor.u32 %v3122, %v3125
      %v3127 = vsel %vm3056, %v3117, %v3126
      %v3129 = vshrl.u32 %v3045, 16
      %v3131 = vrot.slane %v3129, 1
      %v3132 = vshll.u32 %v3045, 16
      %v3134 = vrot.slane %v3132, 2
      %v3135 = vor.u32 %v3131, %v3134
      %v3136 = vsel %vm3056, %v3126, %v3135
      %v3138 = vshrl.u32 %v3046, 16
      %v3140 = vrot.slane %v3138, 1
      %v3141 = vshll.u32 %v3046, 16
      %v3143 = vrot.slane %v3141, 2
      %v3144 = vor.u32 %v3140, %v3143
      %v3145 = vsel %vm3056, %v3135, %v3144
      %v3147 = vshrl.u32 %v3047, 16
      %v3149 = vrot.slane %v3147, 1
      %v3150 = vshll.u32 %v3047, 16
      %v3152 = vrot.slane %v3150, 2
      %v3153 = vor.u32 %v3149, %v3152
      %v3154 = vsel %vm3056, %v3144, %v3153
      %v3156 = vshrl.u32 %v3048, 16
      %v3158 = vrot.slane %v3156, 1
      %v3159 = vshll.u32 %v3048, 16
      %v3161 = vrot.slane %v3159, 2
      %v3162 = vor.u32 %v3158, %v3161
      %v3163 = vsel %vm3056, %v3153, %v3162
      %v3165 = vshrl.u32 %v3049, 16
      %v3167 = vrot.slane %v3165, 1
      %v3168 = vshll.u32 %v3049, 16
      %v3170 = vrot.slane %v3168, 2
      %v3171 = vor.u32 %v3167, %v3170
      %v3172 = vsel %vm3056, %v3162, %v3171
      %v3174 = vshrl.u32 %v3050, 16
      %v3176 = vrot.slane %v3174, 1
      %v3177 = vshll.u32 %v3050, 16
      %v3179 = vrot.slane %v3177, 2
      %v3180 = vor.u32 %v3176, %v3179
      %v3181 = vsel %vm3056, %v3171, %v3180
      %v3183 = vshrl.u32 %v3051, 16
      %v3185 = vrot.slane %v3183, 1
      %v3186 = vshll.u32 %v3051, 16
      %v3188 = vrot.slane %v3186, 2
      %v3189 = vor.u32 %v3185, %v3188
      %v3190 = vsel %vm3056, %v3180, %v3189
      %v3192 = vshrl.u32 %v3052, 16
      %v3194 = vrot.slane %v3192, 1
      %v3195 = vshll.u32 %v3052, 16
      %v3197 = vrot.slane %v3195, 2
      %v3198 = vor.u32 %v3194, %v3197
      %v3199 = vsel %vm3056, %v3189, %v3198
      %v3201 = vshrl.u32 %v3053, 16
      %v3203 = vrot.slane %v3201, 1
      %v3204 = vshll.u32 %v3053, 16
      %v3206 = vrot.slane %v3204, 2
      %v3207 = vor.u32 %v3203, %v3206
      %v3208 = vsel %vm3056, %v3198, %v3207
      %v3210 = vshrl.u32 %v3054, 16
      %v3212 = vrot.slane %v3210, 1
      %v3213 = vshll.u32 %v3054, 16
      %v3215 = vrot.slane %v3213, 2
      %v3216 = vor.u32 %v3212, %v3215
      %v3217 = vsel %vm3056, %v3207, %v3216
      %v3219 = vshrl.u32 %v3055, 16
      %v3221 = vrot.slane %v3219, 1
      %v3222 = vshll.u32 %v3055, 16
      %v3224 = vrot.slane %v3222, 2
      %v3225 = vor.u32 %v3221, %v3224
      %v3226 = vsel %vm3056, %v3216, %v3225
      %v3228 = vsel %vm815, %v3073, 0
      %v3231 = vsel %vm815, %v3082, 0
      %v3234 = vsel %vm815, %v3091, 0
      %v3237 = vsel %vm815, %v3100, 0
      %v3240 = vsel %vm815, %v3109, 0
      %v3243 = vsel %vm815, %v3118, 0
      %v3246 = vsel %vm815, %v3127, 0
      %v3249 = vsel %vm815, %v3136, 0
      %v3252 = vsel %vm815, %v3145, 0
      %v3255 = vsel %vm815, %v3154, 0
      %v3258 = vsel %vm815, %v3163, 0
      %v3261 = vsel %vm815, %v3172, 0
      %v3264 = vsel %vm815, %v3181, 0
      %v3267 = vsel %vm815, %v3190, 0
      %v3270 = vsel %vm815, %v3199, 0
      %v3273 = vsel %vm815, %v3208, 0
      %v3276 = vsel %vm815, %v3217, 0
      %v3279 = vsel %vm815, %v3226, 0
      %v3282 = vsel %vm870, %v2962, 0
      %3284 = vmatpush.bf16.msra.mxu0 0
      %3285 = vmatpush.bf16.msra.mxu0 0
      %3286 = vmatpush.bf16.msra.mxu0 0
      %3287 = vmatpush.bf16.msra.mxu0 0
      %3288 = vmatpush.bf16.msra.mxu0 0
      %3289 = vmatpush.bf16.msra.mxu0 0
      %3290 = vmatpush.bf16.msra.mxu0 0
      %3291 = vmatpush.bf16.msra.mxu0 %v3282
      %3292 = vmatmul.bf16.gmra.mxu0 %v3228
      %v3293 = vpop.f32.mrf.mxu0
      %v3294 = vadd.f32 0.0, %v3293
      %v3295 = vpop.f32.mrf.mxu0
      %v3296 = vadd.f32 0.0, %v3295
      %3297 = vmatmul.bf16.gmra.mxu0 %v3231
      %v3298 = vpop.f32.mrf.mxu0
      %v3299 = vadd.f32 0.0, %v3298
      %v3300 = vpop.f32.mrf.mxu0
      %v3301 = vadd.f32 0.0, %v3300
      %3302 = vmatmul.bf16.gmra.mxu0 %v3234
      %v3303 = vpop.f32.mrf.mxu0
      %v3304 = vadd.f32 0.0, %v3303
      %v3305 = vpop.f32.mrf.mxu0
      %v3306 = vadd.f32 0.0, %v3305
      %3307 = vmatmul.bf16.gmra.mxu0 %v3237
      %v3308 = vpop.f32.mrf.mxu0
      %v3309 = vadd.f32 0.0, %v3308
      %v3310 = vpop.f32.mrf.mxu0
      %v3311 = vadd.f32 0.0, %v3310
      %3312 = vmatmul.bf16.gmra.mxu0 %v3240
      %v3313 = vpop.f32.mrf.mxu0
      %v3314 = vadd.f32 0.0, %v3313
      %v3315 = vpop.f32.mrf.mxu0
      %v3316 = vadd.f32 0.0, %v3315
      %3317 = vmatmul.bf16.gmra.mxu0 %v3243
      %v3318 = vpop.f32.mrf.mxu0
      %v3319 = vadd.f32 0.0, %v3318
      %v3320 = vpop.f32.mrf.mxu0
      %v3321 = vadd.f32 0.0, %v3320
      %3322 = vmatmul.bf16.gmra.mxu0 %v3246
      %v3323 = vpop.f32.mrf.mxu0
      %v3324 = vadd.f32 0.0, %v3323
      %v3325 = vpop.f32.mrf.mxu0
      %v3326 = vadd.f32 0.0, %v3325
      %3327 = vmatmul.bf16.gmra.mxu0 %v3249
      %v3328 = vpop.f32.mrf.mxu0
      %v3329 = vadd.f32 0.0, %v3328
      %v3330 = vpop.f32.mrf.mxu0
      %v3331 = vadd.f32 0.0, %v3330
      %3332 = vmatmul.bf16.gmra.mxu0 %v3252
      %v3333 = vpop.f32.mrf.mxu0
      %v3334 = vadd.f32 0.0, %v3333
      %v3335 = vpop.f32.mrf.mxu0
      %v3336 = vadd.f32 0.0, %v3335
      %3337 = vmatmul.bf16.gmra.mxu0 %v3255
      %v3338 = vpop.f32.mrf.mxu0
      %v3339 = vadd.f32 0.0, %v3338
      %v3340 = vpop.f32.mrf.mxu0
      %v3341 = vadd.f32 0.0, %v3340
      %3342 = vmatmul.bf16.gmra.mxu0 %v3258
      %v3343 = vpop.f32.mrf.mxu0
      %v3344 = vadd.f32 0.0, %v3343
      %v3345 = vpop.f32.mrf.mxu0
      %v3346 = vadd.f32 0.0, %v3345
      %3347 = vmatmul.bf16.gmra.mxu0 %v3261
      %v3348 = vpop.f32.mrf.mxu0
      %v3349 = vadd.f32 0.0, %v3348
      %v3350 = vpop.f32.mrf.mxu0
      %v3351 = vadd.f32 0.0, %v3350
      %3352 = vmatmul.bf16.gmra.mxu0 %v3264
      %v3353 = vpop.f32.mrf.mxu0
      %v3354 = vadd.f32 0.0, %v3353
      %v3355 = vpop.f32.mrf.mxu0
      %v3356 = vadd.f32 0.0, %v3355
      %3357 = vmatmul.bf16.gmra.mxu0 %v3267
      %v3358 = vpop.f32.mrf.mxu0
      %v3359 = vadd.f32 0.0, %v3358
      %v3360 = vpop.f32.mrf.mxu0
      %v3361 = vadd.f32 0.0, %v3360
      %3362 = vmatmul.bf16.gmra.mxu0 %v3270
      %v3363 = vpop.f32.mrf.mxu0
      %v3364 = vadd.f32 0.0, %v3363
      %v3365 = vpop.f32.mrf.mxu0
      %v3366 = vadd.f32 0.0, %v3365
      %3367 = vmatmul.bf16.gmra.mxu0 %v3273
      %v3368 = vpop.f32.mrf.mxu0
      %v3369 = vadd.f32 0.0, %v3368
      %v3370 = vpop.f32.mrf.mxu0
      %v3371 = vadd.f32 0.0, %v3370
      %3372 = vmatmul.bf16.gmra.mxu0 %v3276
      %v3373 = vpop.f32.mrf.mxu0
      %v3374 = vadd.f32 0.0, %v3373
      %v3375 = vpop.f32.mrf.mxu0
      %v3376 = vadd.f32 0.0, %v3375
      %3377 = vmatmul.bf16.gmra.mxu0 %v3279
      %v3378 = vpop.f32.mrf.mxu0
      %v3379 = vadd.f32 0.0, %v3378
      %v3380 = vpop.f32.mrf.mxu0
      %v3381 = vadd.f32 0.0, %v3380
      %3382 = vdwg.mxu0
      %v3383 = vld [vmem:[#allocation3] sm:$0xff]
      %v3384 = vld [vmem:[#allocation3 + $0x8] sm:$0xff]
      %v3385 = vld [vmem:[#allocation3 + $0x10] sm:$0xff]
      %v3386 = vld [vmem:[#allocation3 + $0x18] sm:$0xff]
      %v3387 = vld [vmem:[#allocation3 + $0x20] sm:$0xff]
      %v3388 = vld [vmem:[#allocation3 + $0x28] sm:$0xff]
      %v3389 = vld [vmem:[#allocation3 + $0x30] sm:$0xff]
      %v3390 = vld [vmem:[#allocation3 + $0x38] sm:$0xff]
      %v3391 = vld [vmem:[#allocation3 + $0x40] sm:$0xff]
      %v3392 = vld [vmem:[#allocation3 + $0x48] sm:$0xff]
      %v3393 = vld [vmem:[#allocation3 + $0x50] sm:$0xff]
      %v3394 = vld [vmem:[#allocation3 + $0x58] sm:$0xff]
      %v3395 = vld [vmem:[#allocation3 + $0x60] sm:$0xff]
      %v3396 = vld [vmem:[#allocation3 + $0x68] sm:$0xff]
      %v3397 = vld [vmem:[#allocation3 + $0x70] sm:$0xff]
      %v3398 = vld [vmem:[#allocation3 + $0x78] sm:$0xff]
      %v3399 = vld [vmem:[#allocation3 + $0x80] sm:$0xff]
      %v3400 = vld [vmem:[#allocation3 + $0x88] sm:$0xff]
      %v3401 = vld [vmem:[#allocation3 + $0x90] sm:$0xff]
      %v3402 = vld [vmem:[#allocation3 + $0x98] sm:$0xff]
      %v3403 = vld [vmem:[#allocation3 + $0xa0] sm:$0xff]
      %v3404 = vld [vmem:[#allocation3 + $0xa8] sm:$0xff]
      %v3405 = vld [vmem:[#allocation3 + $0xb0] sm:$0xff]
      %v3406 = vld [vmem:[#allocation3 + $0xb8] sm:$0xff]
      %v3407 = vld [vmem:[#allocation3 + $0xc0] sm:$0xff]
      %v3408 = vld [vmem:[#allocation3 + $0xc8] sm:$0xff]
      %v3409 = vld [vmem:[#allocation3 + $0xd0] sm:$0xff]
      %v3410 = vld [vmem:[#allocation3 + $0xd8] sm:$0xff]
      %v3411 = vld [vmem:[#allocation3 + $0xe0] sm:$0xff]
      %v3412 = vld [vmem:[#allocation3 + $0xe8] sm:$0xff]
      %v3413 = vld [vmem:[#allocation3 + $0xf0] sm:$0xff]
      %v3414 = vld [vmem:[#allocation3 + $0xf8] sm:$0xff]
      %v3415 = vld [vmem:[#allocation3 + $0x100] sm:$0xff]
      %v3416 = vld [vmem:[#allocation3 + $0x108] sm:$0xff]
      %v3417 = vld [vmem:[#allocation3 + $0x110] sm:$0xff]
      %v3418 = vld [vmem:[#allocation3 + $0x118] sm:$0xff]
      %v3419 = vadd.f32 %v3383, %v3294
      %v3420 = vadd.f32 %v3384, %v3296
      %v3421 = vadd.f32 %v3385, %v3299
      %v3422 = vadd.f32 %v3386, %v3301
      %v3423 = vadd.f32 %v3387, %v3304
      %v3424 = vadd.f32 %v3388, %v3306
      %v3425 = vadd.f32 %v3389, %v3309
      %v3426 = vadd.f32 %v3390, %v3311
      %v3427 = vadd.f32 %v3391, %v3314
      %v3428 = vadd.f32 %v3392, %v3316
      %v3429 = vadd.f32 %v3393, %v3319
      %v3430 = vadd.f32 %v3394, %v3321
      %v3431 = vadd.f32 %v3395, %v3324
      %v3432 = vadd.f32 %v3396, %v3326
      %v3433 = vadd.f32 %v3397, %v3329
      %v3434 = vadd.f32 %v3398, %v3331
      %v3435 = vadd.f32 %v3399, %v3334
      %v3436 = vadd.f32 %v3400, %v3336
      %v3437 = vadd.f32 %v3401, %v3339
      %v3438 = vadd.f32 %v3402, %v3341
      %v3439 = vadd.f32 %v3403, %v3344
      %v3440 = vadd.f32 %v3404, %v3346
      %v3441 = vadd.f32 %v3405, %v3349
      %v3442 = vadd.f32 %v3406, %v3351
      %v3443 = vadd.f32 %v3407, %v3354
      %v3444 = vadd.f32 %v3408, %v3356
      %v3445 = vadd.f32 %v3409, %v3359
      %v3446 = vadd.f32 %v3410, %v3361
      %v3447 = vadd.f32 %v3411, %v3364
      %v3448 = vadd.f32 %v3412, %v3366
      %v3449 = vadd.f32 %v3413, %v3369
      %v3450 = vadd.f32 %v3414, %v3371
      %v3451 = vadd.f32 %v3415, %v3374
      %v3452 = vadd.f32 %v3416, %v3376
      %v3453 = vadd.f32 %v3417, %v3379
      %v3454 = vadd.f32 %v3418, %v3381
      %3455 = vst [vmem:[#allocation3] sm:$0xff] %v3419
      %3456 = vst [vmem:[#allocation3 + $0x8] sm:$0xff] %v3420
      %3457 = vst [vmem:[#allocation3 + $0x10] sm:$0xff] %v3421
      %3458 = vst [vmem:[#allocation3 + $0x18] sm:$0xff] %v3422
      %3459 = vst [vmem:[#allocation3 + $0x20] sm:$0xff] %v3423
      %3460 = vst [vmem:[#allocation3 + $0x28] sm:$0xff] %v3424
      %3461 = vst [vmem:[#allocation3 + $0x30] sm:$0xff] %v3425
      %3462 = vst [vmem:[#allocation3 + $0x38] sm:$0xff] %v3426
      %3463 = vst [vmem:[#allocation3 + $0x40] sm:$0xff] %v3427
      %3464 = vst [vmem:[#allocation3 + $0x48] sm:$0xff] %v3428
      %3465 = vst [vmem:[#allocation3 + $0x50] sm:$0xff] %v3429
      %3466 = vst [vmem:[#allocation3 + $0x58] sm:$0xff] %v3430
      %3467 = vst [vmem:[#allocation3 + $0x60] sm:$0xff] %v3431
      %3468 = vst [vmem:[#allocation3 + $0x68] sm:$0xff] %v3432
      %3469 = vst [vmem:[#allocation3 + $0x70] sm:$0xff] %v3433
      %3470 = vst [vmem:[#allocation3 + $0x78] sm:$0xff] %v3434
      %3471 = vst [vmem:[#allocation3 + $0x80] sm:$0xff] %v3435
      %3472 = vst [vmem:[#allocation3 + $0x88] sm:$0xff] %v3436
      %3473 = vst [vmem:[#allocation3 + $0x90] sm:$0xff] %v3437
      %3474 = vst [vmem:[#allocation3 + $0x98] sm:$0xff] %v3438
      %3475 = vst [vmem:[#allocation3 + $0xa0] sm:$0xff] %v3439
      %3476 = vst [vmem:[#allocation3 + $0xa8] sm:$0xff] %v3440
      %3477 = vst [vmem:[#allocation3 + $0xb0] sm:$0xff] %v3441
      %3478 = vst [vmem:[#allocation3 + $0xb8] sm:$0xff] %v3442
      %3479 = vst [vmem:[#allocation3 + $0xc0] sm:$0xff] %v3443
      %3480 = vst [vmem:[#allocation3 + $0xc8] sm:$0xff] %v3444
      %3481 = vst [vmem:[#allocation3 + $0xd0] sm:$0xff] %v3445
      %3482 = vst [vmem:[#allocation3 + $0xd8] sm:$0xff] %v3446
      %3483 = vst [vmem:[#allocation3 + $0xe0] sm:$0xff] %v3447
      %3484 = vst [vmem:[#allocation3 + $0xe8] sm:$0xff] %v3448
      %3485 = vst [vmem:[#allocation3 + $0xf0] sm:$0xff] %v3449
      %3486 = vst [vmem:[#allocation3 + $0xf8] sm:$0xff] %v3450
      %3487 = vst [vmem:[#allocation3 + $0x100] sm:$0xff] %v3451
      %3488 = vst [vmem:[#allocation3 + $0x108] sm:$0xff] %v3452
      %3489 = vst [vmem:[#allocation3 + $0x110] sm:$0xff] %v3453
      %3490 = vst [vmem:[#allocation3 + $0x118] sm:$0xff] %v3454
      %v3491 = vld [vmem:[#allocation2 + $0x14] sm:$0xe]
      %v3492 = vld [vmem:[#allocation2 + $0x18] sm:$0xf]
      %v3493 = vld [vmem:[#allocation2 + $0x1c] sm:$0xf]
      %v3494 = vld [vmem:[#allocation2 + $0x20] sm:$0xf]
      %v3495 = vld [vmem:[#allocation2 + $0x24] sm:$0xf]
      %v3496 = vld [vmem:[#allocation2 + $0x28] sm:$0xf]
      %v3497 = vld [vmem:[#allocation2 + $0x2c] sm:$0xf]
      %v3498 = vld [vmem:[#allocation2 + $0x30] sm:$0xf]
      %v3499 = vld [vmem:[#allocation2 + $0x34] sm:$0xf]
      %v3500 = vld [vmem:[#allocation2 + $0x38] sm:$0xf]
      %v3501 = vld [vmem:[#allocation2 + $0x3c] sm:$0xf]
      %v3502 = vld [vmem:[#allocation2 + $0x40] sm:$0xf]
      %v3503 = vld [vmem:[#allocation2 + $0x44] sm:$0xf]
      %v3504 = vld [vmem:[#allocation2 + $0x48] sm:$0xf]
      %v3505 = vld [vmem:[#allocation2 + $0x4c] sm:$0xf]
      %v3506 = vld [vmem:[#allocation2 + $0x50] sm:$0xf]
      %v3507 = vld [vmem:[#allocation2 + $0x54] sm:$0xf]
      %v3508 = vld [vmem:[#allocation2 + $0x58] sm:$0xf]
      %v3509 = vld [vmem:[#allocation2 + $0x5c] sm:$0xf]
      %v3510 = vld [vmem:[#allocation2 + $0x60] sm:$0xf]
      %v3511 = vld [vmem:[#allocation2 + $0x64] sm:$0xf]
      %v3512 = vld [vmem:[#allocation2 + $0x68] sm:$0xf]
      %v3513 = vld [vmem:[#allocation2 + $0x6c] sm:$0xf]
      %v3514 = vld [vmem:[#allocation2 + $0x70] sm:$0xf]
      %v3515 = vld [vmem:[#allocation2 + $0x74] sm:$0xf]
      %v3516 = vld [vmem:[#allocation2 + $0x78] sm:$0xf]
      %v3517 = vld [vmem:[#allocation2 + $0x7c] sm:$0xf]
      %v3518 = vld [vmem:[#allocation2 + $0x80] sm:$0xf]
      %v3519 = vld [vmem:[#allocation2 + $0x84] sm:$0xf]
      %v3520 = vld [vmem:[#allocation2 + $0x88] sm:$0xf]
      %v3521 = vld [vmem:[#allocation2 + $0x8c] sm:$0xf]
      %v3522 = vld [vmem:[#allocation2 + $0x90] sm:$0xf]
      %v3523 = vld [vmem:[#allocation2 + $0x94] sm:$0xf]
      %v3524 = vld [vmem:[#allocation2 + $0x98] sm:$0xf]
      %v3525 = vld [vmem:[#allocation2 + $0x9c] sm:$0xf]
      %v3526 = vld [vmem:[#allocation2 + $0xa0] sm:$0xf]
      %v3527 = vld [vmem:[#allocation2 + $0xa4] sm:$0x3]
      %s3528 = scalar_lea.vmem %s2, 24
      %v3529 = vld [vmem:[%s3528] sm:$0xf]
      %v3567 = vunpack.c.l.b16 %v3491
      %v3568 = vunpack.c.l.b16 %v3492
      %v3569 = vunpack.c.l.b16 %v3493
      %v3570 = vunpack.c.l.b16 %v3494
      %v3571 = vunpack.c.l.b16 %v3495
      %v3572 = vunpack.c.l.b16 %v3496
      %v3573 = vunpack.c.l.b16 %v3497
      %v3574 = vunpack.c.l.b16 %v3498
      %v3575 = vunpack.c.l.b16 %v3499
      %v3576 = vunpack.c.l.b16 %v3500
      %v3577 = vunpack.c.l.b16 %v3501
      %v3578 = vunpack.c.l.b16 %v3502
      %v3579 = vunpack.c.l.b16 %v3503
      %v3580 = vunpack.c.l.b16 %v3504
      %v3581 = vunpack.c.l.b16 %v3505
      %v3582 = vunpack.c.l.b16 %v3506
      %v3583 = vunpack.c.l.b16 %v3507
      %v3584 = vunpack.c.l.b16 %v3508
      %v3585 = vunpack.c.l.b16 %v3509
      %v3586 = vunpack.c.l.b16 %v3510
      %v3587 = vunpack.c.l.b16 %v3511
      %v3588 = vunpack.c.l.b16 %v3512
      %v3589 = vunpack.c.l.b16 %v3513
      %v3590 = vunpack.c.l.b16 %v3514
      %v3591 = vunpack.c.l.b16 %v3515
      %v3592 = vunpack.c.l.b16 %v3516
      %v3593 = vunpack.c.l.b16 %v3517
      %v3594 = vunpack.c.l.b16 %v3518
      %v3595 = vunpack.c.l.b16 %v3519
      %v3596 = vunpack.c.l.b16 %v3520
      %v3597 = vunpack.c.l.b16 %v3521
      %v3598 = vunpack.c.l.b16 %v3522
      %v3599 = vunpack.c.l.b16 %v3523
      %v3600 = vunpack.c.l.b16 %v3524
      %v3601 = vunpack.c.l.b16 %v3525
      %v3602 = vunpack.c.l.b16 %v3526
      %v3603 = vunpack.c.l.b16 %v3527
      %v3604 = vpack.c.b16 %v3568, %v3567
      %v3605 = vpack.c.b16 %v3570, %v3569
      %v3606 = vpack.c.b16 %v3572, %v3571
      %v3607 = vpack.c.b16 %v3574, %v3573
      %v3608 = vpack.c.b16 %v3576, %v3575
      %v3609 = vpack.c.b16 %v3578, %v3577
      %v3610 = vpack.c.b16 %v3580, %v3579
      %v3611 = vpack.c.b16 %v3582, %v3581
      %v3612 = vpack.c.b16 %v3584, %v3583
      %v3613 = vpack.c.b16 %v3586, %v3585
      %v3614 = vpack.c.b16 %v3588, %v3587
      %v3615 = vpack.c.b16 %v3590, %v3589
      %v3616 = vpack.c.b16 %v3592, %v3591
      %v3617 = vpack.c.b16 %v3594, %v3593
      %v3618 = vpack.c.b16 %v3596, %v3595
      %v3619 = vpack.c.b16 %v3598, %v3597
      %v3620 = vpack.c.b16 %v3600, %v3599
      %v3621 = vpack.c.b16 %v3602, %v3601
      %v3622 = vpack.c.b16 %v3603, %v3603
      %v3624 = vshrl.u32 %v3604, 16
      %v3626 = vrot.slane %v3624, 1
      %v3627 = vshll.u32 %v3604, 16
      %v3629 = vrot.slane %v3627, 2
      %v3630 = vor.u32 %v3626, %v3629
      %v3632 = vshrl.u32 %v3605, 16
      %v3634 = vrot.slane %v3632, 1
      %v3635 = vshll.u32 %v3605, 16
      %v3637 = vrot.slane %v3635, 2
      %v3638 = vor.u32 %v3634, %v3637
      %v3639 = vsel %vm3056, %v3630, %v3638
      %v3641 = vshrl.u32 %v3606, 16
      %v3643 = vrot.slane %v3641, 1
      %v3644 = vshll.u32 %v3606, 16
      %v3646 = vrot.slane %v3644, 2
      %v3647 = vor.u32 %v3643, %v3646
      %v3648 = vsel %vm3056, %v3638, %v3647
      %v3650 = vshrl.u32 %v3607, 16
      %v3652 = vrot.slane %v3650, 1
      %v3653 = vshll.u32 %v3607, 16
      %v3655 = vrot.slane %v3653, 2
      %v3656 = vor.u32 %v3652, %v3655
      %v3657 = vsel %vm3056, %v3647, %v3656
      %v3659 = vshrl.u32 %v3608, 16
      %v3661 = vrot.slane %v3659, 1
      %v3662 = vshll.u32 %v3608, 16
      %v3664 = vrot.slane %v3662, 2
      %v3665 = vor.u32 %v3661, %v3664
      %v3666 = vsel %vm3056, %v3656, %v3665
      %v3668 = vshrl.u32 %v3609, 16
      %v3670 = vrot.slane %v3668, 1
      %v3671 = vshll.u32 %v3609, 16
      %v3673 = vrot.slane %v3671, 2
      %v3674 = vor.u32 %v3670, %v3673
      %v3675 = vsel %vm3056, %v3665, %v3674
      %v3677 = vshrl.u32 %v3610, 16
      %v3679 = vrot.slane %v3677, 1
      %v3680 = vshll.u32 %v3610, 16
      %v3682 = vrot.slane %v3680, 2
      %v3683 = vor.u32 %v3679, %v3682
      %v3684 = vsel %vm3056, %v3674, %v3683
      %v3686 = vshrl.u32 %v3611, 16
      %v3688 = vrot.slane %v3686, 1
      %v3689 = vshll.u32 %v3611, 16
      %v3691 = vrot.slane %v3689, 2
      %v3692 = vor.u32 %v3688, %v3691
      %v3693 = vsel %vm3056, %v3683, %v3692
      %v3695 = vshrl.u32 %v3612, 16
      %v3697 = vrot.slane %v3695, 1
      %v3698 = vshll.u32 %v3612, 16
      %v3700 = vrot.slane %v3698, 2
      %v3701 = vor.u32 %v3697, %v3700
      %v3702 = vsel %vm3056, %v3692, %v3701
      %v3704 = vshrl.u32 %v3613, 16
      %v3706 = vrot.slane %v3704, 1
      %v3707 = vshll.u32 %v3613, 16
      %v3709 = vrot.slane %v3707, 2
      %v3710 = vor.u32 %v3706, %v3709
      %v3711 = vsel %vm3056, %v3701, %v3710
      %v3713 = vshrl.u32 %v3614, 16
      %v3715 = vrot.slane %v3713, 1
      %v3716 = vshll.u32 %v3614, 16
      %v3718 = vrot.slane %v3716, 2
      %v3719 = vor.u32 %v3715, %v3718
      %v3720 = vsel %vm3056, %v3710, %v3719
      %v3722 = vshrl.u32 %v3615, 16
      %v3724 = vrot.slane %v3722, 1
      %v3725 = vshll.u32 %v3615, 16
      %v3727 = vrot.slane %v3725, 2
      %v3728 = vor.u32 %v3724, %v3727
      %v3729 = vsel %vm3056, %v3719, %v3728
      %v3731 = vshrl.u32 %v3616, 16
      %v3733 = vrot.slane %v3731, 1
      %v3734 = vshll.u32 %v3616, 16
      %v3736 = vrot.slane %v3734, 2
      %v3737 = vor.u32 %v3733, %v3736
      %v3738 = vsel %vm3056, %v3728, %v3737
      %v3740 = vshrl.u32 %v3617, 16
      %v3742 = vrot.slane %v3740, 1
      %v3743 = vshll.u32 %v3617, 16
      %v3745 = vrot.slane %v3743, 2
      %v3746 = vor.u32 %v3742, %v3745
      %v3747 = vsel %vm3056, %v3737, %v3746
      %v3749 = vshrl.u32 %v3618, 16
      %v3751 = vrot.slane %v3749, 1
      %v3752 = vshll.u32 %v3618, 16
      %v3754 = vrot.slane %v3752, 2
      %v3755 = vor.u32 %v3751, %v3754
      %v3756 = vsel %vm3056, %v3746, %v3755
      %v3758 = vshrl.u32 %v3619, 16
      %v3760 = vrot.slane %v3758, 1
      %v3761 = vshll.u32 %v3619, 16
      %v3763 = vrot.slane %v3761, 2
      %v3764 = vor.u32 %v3760, %v3763
      %v3765 = vsel %vm3056, %v3755, %v3764
      %v3767 = vshrl.u32 %v3620, 16
      %v3769 = vrot.slane %v3767, 1
      %v3770 = vshll.u32 %v3620, 16
      %v3772 = vrot.slane %v3770, 2
      %v3773 = vor.u32 %v3769, %v3772
      %v3774 = vsel %vm3056, %v3764, %v3773
      %v3776 = vshrl.u32 %v3621, 16
      %v3778 = vrot.slane %v3776, 1
      %v3779 = vshll.u32 %v3621, 16
      %v3781 = vrot.slane %v3779, 2
      %v3782 = vor.u32 %v3778, %v3781
      %v3783 = vsel %vm3056, %v3773, %v3782
      %v3785 = vshrl.u32 %v3622, 16
      %v3787 = vrot.slane %v3785, 1
      %v3788 = vshll.u32 %v3622, 16
      %v3790 = vrot.slane %v3788, 2
      %v3791 = vor.u32 %v3787, %v3790
      %v3792 = vsel %vm3056, %v3782, %v3791
      %v3794 = vsel %vm815, %v3639, 0
      %v3797 = vsel %vm815, %v3648, 0
      %v3800 = vsel %vm815, %v3657, 0
      %v3803 = vsel %vm815, %v3666, 0
      %v3806 = vsel %vm815, %v3675, 0
      %v3809 = vsel %vm815, %v3684, 0
      %v3812 = vsel %vm815, %v3693, 0
      %v3815 = vsel %vm815, %v3702, 0
      %v3818 = vsel %vm815, %v3711, 0
      %v3821 = vsel %vm815, %v3720, 0
      %v3824 = vsel %vm815, %v3729, 0
      %v3827 = vsel %vm815, %v3738, 0
      %v3830 = vsel %vm815, %v3747, 0
      %v3833 = vsel %vm815, %v3756, 0
      %v3836 = vsel %vm815, %v3765, 0
      %v3839 = vsel %vm815, %v3774, 0
      %v3842 = vsel %vm815, %v3783, 0
      %v3845 = vsel %vm815, %v3792, 0
      %v3848 = vsel %vm870, %v3529, 0
      %3850 = vmatpush.bf16.msra.mxu0 0
      %3851 = vmatpush.bf16.msra.mxu0 0
      %3852 = vmatpush.bf16.msra.mxu0 0
      %3853 = vmatpush.bf16.msra.mxu0 0
      %3854 = vmatpush.bf16.msra.mxu0 0
      %3855 = vmatpush.bf16.msra.mxu0 0
      %3856 = vmatpush.bf16.msra.mxu0 0
      %3857 = vmatpush.bf16.msra.mxu0 %v3848
      %3858 = vmatmul.bf16.gmra.mxu0 %v3794
      %v3859 = vpop.f32.mrf.mxu0
      %v3860 = vadd.f32 0.0, %v3859
      %v3861 = vpop.f32.mrf.mxu0
      %v3862 = vadd.f32 0.0, %v3861
      %3863 = vmatmul.bf16.gmra.mxu0 %v3797
      %v3864 = vpop.f32.mrf.mxu0
      %v3865 = vadd.f32 0.0, %v3864
      %v3866 = vpop.f32.mrf.mxu0
      %v3867 = vadd.f32 0.0, %v3866
      %3868 = vmatmul.bf16.gmra.mxu0 %v3800
      %v3869 = vpop.f32.mrf.mxu0
      %v3870 = vadd.f32 0.0, %v3869
      %v3871 = vpop.f32.mrf.mxu0
      %v3872 = vadd.f32 0.0, %v3871
      %3873 = vmatmul.bf16.gmra.mxu0 %v3803
      %v3874 = vpop.f32.mrf.mxu0
      %v3875 = vadd.f32 0.0, %v3874
      %v3876 = vpop.f32.mrf.mxu0
      %v3877 = vadd.f32 0.0, %v3876
      %3878 = vmatmul.bf16.gmra.mxu0 %v3806
      %v3879 = vpop.f32.mrf.mxu0
      %v3880 = vadd.f32 0.0, %v3879
      %v3881 = vpop.f32.mrf.mxu0
      %v3882 = vadd.f32 0.0, %v3881
      %3883 = vmatmul.bf16.gmra.mxu0 %v3809
      %v3884 = vpop.f32.mrf.mxu0
      %v3885 = vadd.f32 0.0, %v3884
      %v3886 = vpop.f32.mrf.mxu0
      %v3887 = vadd.f32 0.0, %v3886
      %3888 = vmatmul.bf16.gmra.mxu0 %v3812
      %v3889 = vpop.f32.mrf.mxu0
      %v3890 = vadd.f32 0.0, %v3889
      %v3891 = vpop.f32.mrf.mxu0
      %v3892 = vadd.f32 0.0, %v3891
      %3893 = vmatmul.bf16.gmra.mxu0 %v3815
      %v3894 = vpop.f32.mrf.mxu0
      %v3895 = vadd.f32 0.0, %v3894
      %v3896 = vpop.f32.mrf.mxu0
      %v3897 = vadd.f32 0.0, %v3896
      %3898 = vmatmul.bf16.gmra.mxu0 %v3818
      %v3899 = vpop.f32.mrf.mxu0
      %v3900 = vadd.f32 0.0, %v3899
      %v3901 = vpop.f32.mrf.mxu0
      %v3902 = vadd.f32 0.0, %v3901
      %3903 = vmatmul.bf16.gmra.mxu0 %v3821
      %v3904 = vpop.f32.mrf.mxu0
      %v3905 = vadd.f32 0.0, %v3904
      %v3906 = vpop.f32.mrf.mxu0
      %v3907 = vadd.f32 0.0, %v3906
      %3908 = vmatmul.bf16.gmra.mxu0 %v3824
      %v3909 = vpop.f32.mrf.mxu0
      %v3910 = vadd.f32 0.0, %v3909
      %v3911 = vpop.f32.mrf.mxu0
      %v3912 = vadd.f32 0.0, %v3911
      %3913 = vmatmul.bf16.gmra.mxu0 %v3827
      %v3914 = vpop.f32.mrf.mxu0
      %v3915 = vadd.f32 0.0, %v3914
      %v3916 = vpop.f32.mrf.mxu0
      %v3917 = vadd.f32 0.0, %v3916
      %3918 = vmatmul.bf16.gmra.mxu0 %v3830
      %v3919 = vpop.f32.mrf.mxu0
      %v3920 = vadd.f32 0.0, %v3919
      %v3921 = vpop.f32.mrf.mxu0
      %v3922 = vadd.f32 0.0, %v3921
      %3923 = vmatmul.bf16.gmra.mxu0 %v3833
      %v3924 = vpop.f32.mrf.mxu0
      %v3925 = vadd.f32 0.0, %v3924
      %v3926 = vpop.f32.mrf.mxu0
      %v3927 = vadd.f32 0.0, %v3926
      %3928 = vmatmul.bf16.gmra.mxu0 %v3836
      %v3929 = vpop.f32.mrf.mxu0
      %v3930 = vadd.f32 0.0, %v3929
      %v3931 = vpop.f32.mrf.mxu0
      %v3932 = vadd.f32 0.0, %v3931
      %3933 = vmatmul.bf16.gmra.mxu0 %v3839
      %v3934 = vpop.f32.mrf.mxu0
      %v3935 = vadd.f32 0.0, %v3934
      %v3936 = vpop.f32.mrf.mxu0
      %v3937 = vadd.f32 0.0, %v3936
      %3938 = vmatmul.bf16.gmra.mxu0 %v3842
      %v3939 = vpop.f32.mrf.mxu0
      %v3940 = vadd.f32 0.0, %v3939
      %v3941 = vpop.f32.mrf.mxu0
      %v3942 = vadd.f32 0.0, %v3941
      %3943 = vmatmul.bf16.gmra.mxu0 %v3845
      %v3944 = vpop.f32.mrf.mxu0
      %v3945 = vadd.f32 0.0, %v3944
      %v3946 = vpop.f32.mrf.mxu0
      %v3947 = vadd.f32 0.0, %v3946
      %3948 = vdwg.mxu0
      %v3949 = vld [vmem:[#allocation3] sm:$0xff]
      %v3950 = vld [vmem:[#allocation3 + $0x8] sm:$0xff]
      %v3951 = vld [vmem:[#allocation3 + $0x10] sm:$0xff]
      %v3952 = vld [vmem:[#allocation3 + $0x18] sm:$0xff]
      %v3953 = vld [vmem:[#allocation3 + $0x20] sm:$0xff]
      %v3954 = vld [vmem:[#allocation3 + $0x28] sm:$0xff]
      %v3955 = vld [vmem:[#allocation3 + $0x30] sm:$0xff]
      %v3956 = vld [vmem:[#allocation3 + $0x38] sm:$0xff]
      %v3957 = vld [vmem:[#allocation3 + $0x40] sm:$0xff]
      %v3958 = vld [vmem:[#allocation3 + $0x48] sm:$0xff]
      %v3959 = vld [vmem:[#allocation3 + $0x50] sm:$0xff]
      %v3960 = vld [vmem:[#allocation3 + $0x58] sm:$0xff]
      %v3961 = vld [vmem:[#allocation3 + $0x60] sm:$0xff]
      %v3962 = vld [vmem:[#allocation3 + $0x68] sm:$0xff]
      %v3963 = vld [vmem:[#allocation3 + $0x70] sm:$0xff]
      %v3964 = vld [vmem:[#allocation3 + $0x78] sm:$0xff]
      %v3965 = vld [vmem:[#allocation3 + $0x80] sm:$0xff]
      %v3966 = vld [vmem:[#allocation3 + $0x88] sm:$0xff]
      %v3967 = vld [vmem:[#allocation3 + $0x90] sm:$0xff]
      %v3968 = vld [vmem:[#allocation3 + $0x98] sm:$0xff]
      %v3969 = vld [vmem:[#allocation3 + $0xa0] sm:$0xff]
      %v3970 = vld [vmem:[#allocation3 + $0xa8] sm:$0xff]
      %v3971 = vld [vmem:[#allocation3 + $0xb0] sm:$0xff]
      %v3972 = vld [vmem:[#allocation3 + $0xb8] sm:$0xff]
      %v3973 = vld [vmem:[#allocation3 + $0xc0] sm:$0xff]
      %v3974 = vld [vmem:[#allocation3 + $0xc8] sm:$0xff]
      %v3975 = vld [vmem:[#allocation3 + $0xd0] sm:$0xff]
      %v3976 = vld [vmem:[#allocation3 + $0xd8] sm:$0xff]
      %v3977 = vld [vmem:[#allocation3 + $0xe0] sm:$0xff]
      %v3978 = vld [vmem:[#allocation3 + $0xe8] sm:$0xff]
      %v3979 = vld [vmem:[#allocation3 + $0xf0] sm:$0xff]
      %v3980 = vld [vmem:[#allocation3 + $0xf8] sm:$0xff]
      %v3981 = vld [vmem:[#allocation3 + $0x100] sm:$0xff]
      %v3982 = vld [vmem:[#allocation3 + $0x108] sm:$0xff]
      %v3983 = vld [vmem:[#allocation3 + $0x110] sm:$0xff]
      %v3984 = vld [vmem:[#allocation3 + $0x118] sm:$0xff]
      %v3985 = vadd.f32 %v3949, %v3860
      %v3986 = vadd.f32 %v3950, %v3862
      %v3987 = vadd.f32 %v3951, %v3865
      %v3988 = vadd.f32 %v3952, %v3867
      %v3989 = vadd.f32 %v3953, %v3870
      %v3990 = vadd.f32 %v3954, %v3872
      %v3991 = vadd.f32 %v3955, %v3875
      %v3992 = vadd.f32 %v3956, %v3877
      %v3993 = vadd.f32 %v3957, %v3880
      %v3994 = vadd.f32 %v3958, %v3882
      %v3995 = vadd.f32 %v3959, %v3885
      %v3996 = vadd.f32 %v3960, %v3887
      %v3997 = vadd.f32 %v3961, %v3890
      %v3998 = vadd.f32 %v3962, %v3892
      %v3999 = vadd.f32 %v3963, %v3895
      %v4000 = vadd.f32 %v3964, %v3897
      %v4001 = vadd.f32 %v3965, %v3900
      %v4002 = vadd.f32 %v3966, %v3902
      %v4003 = vadd.f32 %v3967, %v3905
      %v4004 = vadd.f32 %v3968, %v3907
      %v4005 = vadd.f32 %v3969, %v3910
      %v4006 = vadd.f32 %v3970, %v3912
      %v4007 = vadd.f32 %v3971, %v3915
      %v4008 = vadd.f32 %v3972, %v3917
      %v4009 = vadd.f32 %v3973, %v3920
      %v4010 = vadd.f32 %v3974, %v3922
      %v4011 = vadd.f32 %v3975, %v3925
      %v4012 = vadd.f32 %v3976, %v3927
      %v4013 = vadd.f32 %v3977, %v3930
      %v4014 = vadd.f32 %v3978, %v3932
      %v4015 = vadd.f32 %v3979, %v3935
      %v4016 = vadd.f32 %v3980, %v3937
      %v4017 = vadd.f32 %v3981, %v3940
      %v4018 = vadd.f32 %v3982, %v3942
      %v4019 = vadd.f32 %v3983, %v3945
      %v4020 = vadd.f32 %v3984, %v3947
      %4021 = vst [vmem:[#allocation3] sm:$0xff] %v3985
      %4022 = vst [vmem:[#allocation3 + $0x8] sm:$0xff] %v3986
      %4023 = vst [vmem:[#allocation3 + $0x10] sm:$0xff] %v3987
      %4024 = vst [vmem:[#allocation3 + $0x18] sm:$0xff] %v3988
      %4025 = vst [vmem:[#allocation3 + $0x20] sm:$0xff] %v3989
      %4026 = vst [vmem:[#allocation3 + $0x28] sm:$0xff] %v3990
      %4027 = vst [vmem:[#allocation3 + $0x30] sm:$0xff] %v3991
      %4028 = vst [vmem:[#allocation3 + $0x38] sm:$0xff] %v3992
      %4029 = vst [vmem:[#allocation3 + $0x40] sm:$0xff] %v3993
      %4030 = vst [vmem:[#allocation3 + $0x48] sm:$0xff] %v3994
      %4031 = vst [vmem:[#allocation3 + $0x50] sm:$0xff] %v3995
      %4032 = vst [vmem:[#allocation3 + $0x58] sm:$0xff] %v3996
      %4033 = vst [vmem:[#allocation3 + $0x60] sm:$0xff] %v3997
      %4034 = vst [vmem:[#allocation3 + $0x68] sm:$0xff] %v3998
      %4035 = vst [vmem:[#allocation3 + $0x70] sm:$0xff] %v3999
      %4036 = vst [vmem:[#allocation3 + $0x78] sm:$0xff] %v4000
      %4037 = vst [vmem:[#allocation3 + $0x80] sm:$0xff] %v4001
      %4038 = vst [vmem:[#allocation3 + $0x88] sm:$0xff] %v4002
      %4039 = vst [vmem:[#allocation3 + $0x90] sm:$0xff] %v4003
      %4040 = vst [vmem:[#allocation3 + $0x98] sm:$0xff] %v4004
      %4041 = vst [vmem:[#allocation3 + $0xa0] sm:$0xff] %v4005
      %4042 = vst [vmem:[#allocation3 + $0xa8] sm:$0xff] %v4006
      %4043 = vst [vmem:[#allocation3 + $0xb0] sm:$0xff] %v4007
      %4044 = vst [vmem:[#allocation3 + $0xb8] sm:$0xff] %v4008
      %4045 = vst [vmem:[#allocation3 + $0xc0] sm:$0xff] %v4009
      %4046 = vst [vmem:[#allocation3 + $0xc8] sm:$0xff] %v4010
      %4047 = vst [vmem:[#allocation3 + $0xd0] sm:$0xff] %v4011
      %4048 = vst [vmem:[#allocation3 + $0xd8] sm:$0xff] %v4012
      %4049 = vst [vmem:[#allocation3 + $0xe0] sm:$0xff] %v4013
      %4050 = vst [vmem:[#allocation3 + $0xe8] sm:$0xff] %v4014
      %4051 = vst [vmem:[#allocation3 + $0xf0] sm:$0xff] %v4015
      %4052 = vst [vmem:[#allocation3 + $0xf8] sm:$0xff] %v4016
      %4053 = vst [vmem:[#allocation3 + $0x100] sm:$0xff] %v4017
      %4054 = vst [vmem:[#allocation3 + $0x108] sm:$0xff] %v4018
      %4055 = vst [vmem:[#allocation3 + $0x110] sm:$0xff] %v4019
      %4056 = vst [vmem:[#allocation3 + $0x118] sm:$0xff] %v4020
      %v4057 = vld [vmem:[#allocation2 + $0x14] sm:$0xc]
      %v4058 = vld [vmem:[#allocation2 + $0x18] sm:$0xf]
      %v4059 = vld [vmem:[#allocation2 + $0x1c] sm:$0xf]
      %v4060 = vld [vmem:[#allocation2 + $0x20] sm:$0xf]
      %v4061 = vld [vmem:[#allocation2 + $0x24] sm:$0xf]
      %v4062 = vld [vmem:[#allocation2 + $0x28] sm:$0xf]
      %v4063 = vld [vmem:[#allocation2 + $0x2c] sm:$0xf]
      %v4064 = vld [vmem:[#allocation2 + $0x30] sm:$0xf]
      %v4065 = vld [vmem:[#allocation2 + $0x34] sm:$0xf]
      %v4066 = vld [vmem:[#allocation2 + $0x38] sm:$0xf]
      %v4067 = vld [vmem:[#allocation2 + $0x3c] sm:$0xf]
      %v4068 = vld [vmem:[#allocation2 + $0x40] sm:$0xf]
      %v4069 = vld [vmem:[#allocation2 + $0x44] sm:$0xf]
      %v4070 = vld [vmem:[#allocation2 + $0x48] sm:$0xf]
      %v4071 = vld [vmem:[#allocation2 + $0x4c] sm:$0xf]
      %v4072 = vld [vmem:[#allocation2 + $0x50] sm:$0xf]
      %v4073 = vld [vmem:[#allocation2 + $0x54] sm:$0xf]
      %v4074 = vld [vmem:[#allocation2 + $0x58] sm:$0xf]
      %v4075 = vld [vmem:[#allocation2 + $0x5c] sm:$0xf]
      %v4076 = vld [vmem:[#allocation2 + $0x60] sm:$0xf]
      %v4077 = vld [vmem:[#allocation2 + $0x64] sm:$0xf]
      %v4078 = vld [vmem:[#allocation2 + $0x68] sm:$0xf]
      %v4079 = vld [vmem:[#allocation2 + $0x6c] sm:$0xf]
      %v4080 = vld [vmem:[#allocation2 + $0x70] sm:$0xf]
      %v4081 = vld [vmem:[#allocation2 + $0x74] sm:$0xf]
      %v4082 = vld [vmem:[#allocation2 + $0x78] sm:$0xf]
      %v4083 = vld [vmem:[#allocation2 + $0x7c] sm:$0xf]
      %v4084 = vld [vmem:[#allocation2 + $0x80] sm:$0xf]
      %v4085 = vld [vmem:[#allocation2 + $0x84] sm:$0xf]
      %v4086 = vld [vmem:[#allocation2 + $0x88] sm:$0xf]
      %v4087 = vld [vmem:[#allocation2 + $0x8c] sm:$0xf]
      %v4088 = vld [vmem:[#allocation2 + $0x90] sm:$0xf]
      %v4089 = vld [vmem:[#allocation2 + $0x94] sm:$0xf]
      %v4090 = vld [vmem:[#allocation2 + $0x98] sm:$0xf]
      %v4091 = vld [vmem:[#allocation2 + $0x9c] sm:$0xf]
      %v4092 = vld [vmem:[#allocation2 + $0xa0] sm:$0xf]
      %v4093 = vld [vmem:[#allocation2 + $0xa4] sm:$0x3]
      %s4094 = scalar_lea.vmem %s2, 28
      %v4095 = vld [vmem:[%s4094] sm:$0xf]
      %v4133 = vunpack.c.l.b16 %v4057
      %v4134 = vunpack.c.l.b16 %v4058
      %v4135 = vunpack.c.l.b16 %v4059
      %v4136 = vunpack.c.l.b16 %v4060
      %v4137 = vunpack.c.l.b16 %v4061
      %v4138 = vunpack.c.l.b16 %v4062
      %v4139 = vunpack.c.l.b16 %v4063
      %v4140 = vunpack.c.l.b16 %v4064
      %v4141 = vunpack.c.l.b16 %v4065
      %v4142 = vunpack.c.l.b16 %v4066
      %v4143 = vunpack.c.l.b16 %v4067
      %v4144 = vunpack.c.l.b16 %v4068
      %v4145 = vunpack.c.l.b16 %v4069
      %v4146 = vunpack.c.l.b16 %v4070
      %v4147 = vunpack.c.l.b16 %v4071
      %v4148 = vunpack.c.l.b16 %v4072
      %v4149 = vunpack.c.l.b16 %v4073
      %v4150 = vunpack.c.l.b16 %v4074
      %v4151 = vunpack.c.l.b16 %v4075
      %v4152 = vunpack.c.l.b16 %v4076
      %v4153 = vunpack.c.l.b16 %v4077
      %v4154 = vunpack.c.l.b16 %v4078
      %v4155 = vunpack.c.l.b16 %v4079
      %v4156 = vunpack.c.l.b16 %v4080
      %v4157 = vunpack.c.l.b16 %v4081
      %v4158 = vunpack.c.l.b16 %v4082
      %v4159 = vunpack.c.l.b16 %v4083
      %v4160 = vunpack.c.l.b16 %v4084
      %v4161 = vunpack.c.l.b16 %v4085
      %v4162 = vunpack.c.l.b16 %v4086
      %v4163 = vunpack.c.l.b16 %v4087
      %v4164 = vunpack.c.l.b16 %v4088
      %v4165 = vunpack.c.l.b16 %v4089
      %v4166 = vunpack.c.l.b16 %v4090
      %v4167 = vunpack.c.l.b16 %v4091
      %v4168 = vunpack.c.l.b16 %v4092
      %v4169 = vunpack.c.l.b16 %v4093
      %v4170 = vpack.c.b16 %v4134, %v4133
      %v4171 = vpack.c.b16 %v4136, %v4135
      %v4172 = vpack.c.b16 %v4138, %v4137
      %v4173 = vpack.c.b16 %v4140, %v4139
      %v4174 = vpack.c.b16 %v4142, %v4141
      %v4175 = vpack.c.b16 %v4144, %v4143
      %v4176 = vpack.c.b16 %v4146, %v4145
      %v4177 = vpack.c.b16 %v4148, %v4147
      %v4178 = vpack.c.b16 %v4150, %v4149
      %v4179 = vpack.c.b16 %v4152, %v4151
      %v4180 = vpack.c.b16 %v4154, %v4153
      %v4181 = vpack.c.b16 %v4156, %v4155
      %v4182 = vpack.c.b16 %v4158, %v4157
      %v4183 = vpack.c.b16 %v4160, %v4159
      %v4184 = vpack.c.b16 %v4162, %v4161
      %v4185 = vpack.c.b16 %v4164, %v4163
      %v4186 = vpack.c.b16 %v4166, %v4165
      %v4187 = vpack.c.b16 %v4168, %v4167
      %v4188 = vpack.c.b16 %v4169, %v4169
      %vm4189 = vcmask 1045504
      %v4190 = vrot.slane %v4170, 2
      %v4191 = vrot.slane %v4171, 2
      %v4192 = vsel %vm4189, %v4190, %v4191
      %v4193 = vrot.slane %v4172, 2
      %v4194 = vsel %vm4189, %v4191, %v4193
      %v4195 = vrot.slane %v4173, 2
      %v4196 = vsel %vm4189, %v4193, %v4195
      %v4197 = vrot.slane %v4174, 2
      %v4198 = vsel %vm4189, %v4195, %v4197
      %v4199 = vrot.slane %v4175, 2
      %v4200 = vsel %vm4189, %v4197, %v4199
      %v4201 = vrot.slane %v4176, 2
      %v4202 = vsel %vm4189, %v4199, %v4201
      %v4203 = vrot.slane %v4177, 2
      %v4204 = vsel %vm4189, %v4201, %v4203
      %v4205 = vrot.slane %v4178, 2
      %v4206 = vsel %vm4189, %v4203, %v4205
      %v4207 = vrot.slane %v4179, 2
      %v4208 = vsel %vm4189, %v4205, %v4207
      %v4209 = vrot.slane %v4180, 2
      %v4210 = vsel %vm4189, %v4207, %v4209
      %v4211 = vrot.slane %v4181, 2
      %v4212 = vsel %vm4189, %v4209, %v4211
      %v4213 = vrot.slane %v4182, 2
      %v4214 = vsel %vm4189, %v4211, %v4213
      %v4215 = vrot.slane %v4183, 2
      %v4216 = vsel %vm4189, %v4213, %v4215
      %v4217 = vrot.slane %v4184, 2
      %v4218 = vsel %vm4189, %v4215, %v4217
      %v4219 = vrot.slane %v4185, 2
      %v4220 = vsel %vm4189, %v4217, %v4219
      %v4221 = vrot.slane %v4186, 2
      %v4222 = vsel %vm4189, %v4219, %v4221
      %v4223 = vrot.slane %v4187, 2
      %v4224 = vsel %vm4189, %v4221, %v4223
      %v4225 = vrot.slane %v4188, 2
      %v4226 = vsel %vm4189, %v4223, %v4225
      %v4228 = vsel %vm815, %v4192, 0
      %v4231 = vsel %vm815, %v4194, 0
      %v4234 = vsel %vm815, %v4196, 0
      %v4237 = vsel %vm815, %v4198, 0
      %v4240 = vsel %vm815, %v4200, 0
      %v4243 = vsel %vm815, %v4202, 0
      %v4246 = vsel %vm815, %v4204, 0
      %v4249 = vsel %vm815, %v4206, 0
      %v4252 = vsel %vm815, %v4208, 0
      %v4255 = vsel %vm815, %v4210, 0
      %v4258 = vsel %vm815, %v4212, 0
      %v4261 = vsel %vm815, %v4214, 0
      %v4264 = vsel %vm815, %v4216, 0
      %v4267 = vsel %vm815, %v4218, 0
      %v4270 = vsel %vm815, %v4220, 0
      %v4273 = vsel %vm815, %v4222, 0
      %v4276 = vsel %vm815, %v4224, 0
      %v4279 = vsel %vm815, %v4226, 0
      %v4282 = vsel %vm870, %v4095, 0
      %4284 = vmatpush.bf16.msra.mxu0 0
      %4285 = vmatpush.bf16.msra.mxu0 0
      %4286 = vmatpush.bf16.msra.mxu0 0
      %4287 = vmatpush.bf16.msra.mxu0 0
      %4288 = vmatpush.bf16.msra.mxu0 0
      %4289 = vmatpush.bf16.msra.mxu0 0
      %4290 = vmatpush.bf16.msra.mxu0 0
      %4291 = vmatpush.bf16.msra.mxu0 %v4282
      %4292 = vmatmul.bf16.gmra.mxu0 %v4228
      %v4293 = vpop.f32.mrf.mxu0
      %v4294 = vadd.f32 0.0, %v4293
      %v4295 = vpop.f32.mrf.mxu0
      %v4296 = vadd.f32 0.0, %v4295
      %4297 = vmatmul.bf16.gmra.mxu0 %v4231
      %v4298 = vpop.f32.mrf.mxu0
      %v4299 = vadd.f32 0.0, %v4298
      %v4300 = vpop.f32.mrf.mxu0
      %v4301 = vadd.f32 0.0, %v4300
      %4302 = vmatmul.bf16.gmra.mxu0 %v4234
      %v4303 = vpop.f32.mrf.mxu0
      %v4304 = vadd.f32 0.0, %v4303
      %v4305 = vpop.f32.mrf.mxu0
      %v4306 = vadd.f32 0.0, %v4305
      %4307 = vmatmul.bf16.gmra.mxu0 %v4237
      %v4308 = vpop.f32.mrf.mxu0
      %v4309 = vadd.f32 0.0, %v4308
      %v4310 = vpop.f32.mrf.mxu0
      %v4311 = vadd.f32 0.0, %v4310
      %4312 = vmatmul.bf16.gmra.mxu0 %v4240
      %v4313 = vpop.f32.mrf.mxu0
      %v4314 = vadd.f32 0.0, %v4313
      %v4315 = vpop.f32.mrf.mxu0
      %v4316 = vadd.f32 0.0, %v4315
      %4317 = vmatmul.bf16.gmra.mxu0 %v4243
      %v4318 = vpop.f32.mrf.mxu0
      %v4319 = vadd.f32 0.0, %v4318
      %v4320 = vpop.f32.mrf.mxu0
      %v4321 = vadd.f32 0.0, %v4320
      %4322 = vmatmul.bf16.gmra.mxu0 %v4246
      %v4323 = vpop.f32.mrf.mxu0
      %v4324 = vadd.f32 0.0, %v4323
      %v4325 = vpop.f32.mrf.mxu0
      %v4326 = vadd.f32 0.0, %v4325
      %4327 = vmatmul.bf16.gmra.mxu0 %v4249
      %v4328 = vpop.f32.mrf.mxu0
      %v4329 = vadd.f32 0.0, %v4328
      %v4330 = vpop.f32.mrf.mxu0
      %v4331 = vadd.f32 0.0, %v4330
      %4332 = vmatmul.bf16.gmra.mxu0 %v4252
      %v4333 = vpop.f32.mrf.mxu0
      %v4334 = vadd.f32 0.0, %v4333
      %v4335 = vpop.f32.mrf.mxu0
      %v4336 = vadd.f32 0.0, %v4335
      %4337 = vmatmul.bf16.gmra.mxu0 %v4255
      %v4338 = vpop.f32.mrf.mxu0
      %v4339 = vadd.f32 0.0, %v4338
      %v4340 = vpop.f32.mrf.mxu0
      %v4341 = vadd.f32 0.0, %v4340
      %4342 = vmatmul.bf16.gmra.mxu0 %v4258
      %v4343 = vpop.f32.mrf.mxu0
      %v4344 = vadd.f32 0.0, %v4343
      %v4345 = vpop.f32.mrf.mxu0
      %v4346 = vadd.f32 0.0, %v4345
      %4347 = vmatmul.bf16.gmra.mxu0 %v4261
      %v4348 = vpop.f32.mrf.mxu0
      %v4349 = vadd.f32 0.0, %v4348
      %v4350 = vpop.f32.mrf.mxu0
      %v4351 = vadd.f32 0.0, %v4350
      %4352 = vmatmul.bf16.gmra.mxu0 %v4264
      %v4353 = vpop.f32.mrf.mxu0
      %v4354 = vadd.f32 0.0, %v4353
      %v4355 = vpop.f32.mrf.mxu0
      %v4356 = vadd.f32 0.0, %v4355
      %4357 = vmatmul.bf16.gmra.mxu0 %v4267
      %v4358 = vpop.f32.mrf.mxu0
      %v4359 = vadd.f32 0.0, %v4358
      %v4360 = vpop.f32.mrf.mxu0
      %v4361 = vadd.f32 0.0, %v4360
      %4362 = vmatmul.bf16.gmra.mxu0 %v4270
      %v4363 = vpop.f32.mrf.mxu0
      %v4364 = vadd.f32 0.0, %v4363
      %v4365 = vpop.f32.mrf.mxu0
      %v4366 = vadd.f32 0.0, %v4365
      %4367 = vmatmul.bf16.gmra.mxu0 %v4273
      %v4368 = vpop.f32.mrf.mxu0
      %v4369 = vadd.f32 0.0, %v4368
      %v4370 = vpop.f32.mrf.mxu0
      %v4371 = vadd.f32 0.0, %v4370
      %4372 = vmatmul.bf16.gmra.mxu0 %v4276
      %v4373 = vpop.f32.mrf.mxu0
      %v4374 = vadd.f32 0.0, %v4373
      %v4375 = vpop.f32.mrf.mxu0
      %v4376 = vadd.f32 0.0, %v4375
      %4377 = vmatmul.bf16.gmra.mxu0 %v4279
      %v4378 = vpop.f32.mrf.mxu0
      %v4379 = vadd.f32 0.0, %v4378
      %v4380 = vpop.f32.mrf.mxu0
      %v4381 = vadd.f32 0.0, %v4380
      %4382 = vdwg.mxu0
      %v4383 = vld [vmem:[#allocation3] sm:$0xff]
      %v4384 = vld [vmem:[#allocation3 + $0x8] sm:$0xff]
      %v4385 = vld [vmem:[#allocation3 + $0x10] sm:$0xff]
      %v4386 = vld [vmem:[#allocation3 + $0x18] sm:$0xff]
      %v4387 = vld [vmem:[#allocation3 + $0x20] sm:$0xff]
      %v4388 = vld [vmem:[#allocation3 + $0x28] sm:$0xff]
      %v4389 = vld [vmem:[#allocation3 + $0x30] sm:$0xff]
      %v4390 = vld [vmem:[#allocation3 + $0x38] sm:$0xff]
      %v4391 = vld [vmem:[#allocation3 + $0x40] sm:$0xff]
      %v4392 = vld [vmem:[#allocation3 + $0x48] sm:$0xff]
      %v4393 = vld [vmem:[#allocation3 + $0x50] sm:$0xff]
      %v4394 = vld [vmem:[#allocation3 + $0x58] sm:$0xff]
      %v4395 = vld [vmem:[#allocation3 + $0x60] sm:$0xff]
      %v4396 = vld [vmem:[#allocation3 + $0x68] sm:$0xff]
      %v4397 = vld [vmem:[#allocation3 + $0x70] sm:$0xff]
      %v4398 = vld [vmem:[#allocation3 + $0x78] sm:$0xff]
      %v4399 = vld [vmem:[#allocation3 + $0x80] sm:$0xff]
      %v4400 = vld [vmem:[#allocation3 + $0x88] sm:$0xff]
      %v4401 = vld [vmem:[#allocation3 + $0x90] sm:$0xff]
      %v4402 = vld [vmem:[#allocation3 + $0x98] sm:$0xff]
      %v4403 = vld [vmem:[#allocation3 + $0xa0] sm:$0xff]
      %v4404 = vld [vmem:[#allocation3 + $0xa8] sm:$0xff]
      %v4405 = vld [vmem:[#allocation3 + $0xb0] sm:$0xff]
      %v4406 = vld [vmem:[#allocation3 + $0xb8] sm:$0xff]
      %v4407 = vld [vmem:[#allocation3 + $0xc0] sm:$0xff]
      %v4408 = vld [vmem:[#allocation3 + $0xc8] sm:$0xff]
      %v4409 = vld [vmem:[#allocation3 + $0xd0] sm:$0xff]
      %v4410 = vld [vmem:[#allocation3 + $0xd8] sm:$0xff]
      %v4411 = vld [vmem:[#allocation3 + $0xe0] sm:$0xff]
      %v4412 = vld [vmem:[#allocation3 + $0xe8] sm:$0xff]
      %v4413 = vld [vmem:[#allocation3 + $0xf0] sm:$0xff]
      %v4414 = vld [vmem:[#allocation3 + $0xf8] sm:$0xff]
      %v4415 = vld [vmem:[#allocation3 + $0x100] sm:$0xff]
      %v4416 = vld [vmem:[#allocation3 + $0x108] sm:$0xff]
      %v4417 = vld [vmem:[#allocation3 + $0x110] sm:$0xff]
      %v4418 = vld [vmem:[#allocation3 + $0x118] sm:$0xff]
      %v4419 = vadd.f32 %v4383, %v4294
      %v4420 = vadd.f32 %v4384, %v4296
      %v4421 = vadd.f32 %v4385, %v4299
      %v4422 = vadd.f32 %v4386, %v4301
      %v4423 = vadd.f32 %v4387, %v4304
      %v4424 = vadd.f32 %v4388, %v4306
      %v4425 = vadd.f32 %v4389, %v4309
      %v4426 = vadd.f32 %v4390, %v4311
      %v4427 = vadd.f32 %v4391, %v4314
      %v4428 = vadd.f32 %v4392, %v4316
      %v4429 = vadd.f32 %v4393, %v4319
      %v4430 = vadd.f32 %v4394, %v4321
      %v4431 = vadd.f32 %v4395, %v4324
      %v4432 = vadd.f32 %v4396, %v4326
      %v4433 = vadd.f32 %v4397, %v4329
      %v4434 = vadd.f32 %v4398, %v4331
      %v4435 = vadd.f32 %v4399, %v4334
      %v4436 = vadd.f32 %v4400, %v4336
      %v4437 = vadd.f32 %v4401, %v4339
      %v4438 = vadd.f32 %v4402, %v4341
      %v4439 = vadd.f32 %v4403, %v4344
      %v4440 = vadd.f32 %v4404, %v4346
      %v4441 = vadd.f32 %v4405, %v4349
      %v4442 = vadd.f32 %v4406, %v4351
      %v4443 = vadd.f32 %v4407, %v4354
      %v4444 = vadd.f32 %v4408, %v4356
      %v4445 = vadd.f32 %v4409, %v4359
      %v4446 = vadd.f32 %v4410, %v4361
      %v4447 = vadd.f32 %v4411, %v4364
      %v4448 = vadd.f32 %v4412, %v4366
      %v4449 = vadd.f32 %v4413, %v4369
      %v4450 = vadd.f32 %v4414, %v4371
      %v4451 = vadd.f32 %v4415, %v4374
      %v4452 = vadd.f32 %v4416, %v4376
      %v4453 = vadd.f32 %v4417, %v4379
      %v4454 = vadd.f32 %v4418, %v4381
      %4455 = vst [vmem:[#allocation3] sm:$0xff] %v4419
      %4456 = vst [vmem:[#allocation3 + $0x8] sm:$0xff] %v4420
      %4457 = vst [vmem:[#allocation3 + $0x10] sm:$0xff] %v4421
      %4458 = vst [vmem:[#allocation3 + $0x18] sm:$0xff] %v4422
      %4459 = vst [vmem:[#allocation3 + $0x20] sm:$0xff] %v4423
      %4460 = vst [vmem:[#allocation3 + $0x28] sm:$0xff] %v4424
      %4461 = vst [vmem:[#allocation3 + $0x30] sm:$0xff] %v4425
      %4462 = vst [vmem:[#allocation3 + $0x38] sm:$0xff] %v4426
      %4463 = vst [vmem:[#allocation3 + $0x40] sm:$0xff] %v4427
      %4464 = vst [vmem:[#allocation3 + $0x48] sm:$0xff] %v4428
      %4465 = vst [vmem:[#allocation3 + $0x50] sm:$0xff] %v4429
      %4466 = vst [vmem:[#allocation3 + $0x58] sm:$0xff] %v4430
      %4467 = vst [vmem:[#allocation3 + $0x60] sm:$0xff] %v4431
      %4468 = vst [vmem:[#allocation3 + $0x68] sm:$0xff] %v4432
      %4469 = vst [vmem:[#allocation3 + $0x70] sm:$0xff] %v4433
      %4470 = vst [vmem:[#allocation3 + $0x78] sm:$0xff] %v4434
      %4471 = vst [vmem:[#allocation3 + $0x80] sm:$0xff] %v4435
      %4472 = vst [vmem:[#allocation3 + $0x88] sm:$0xff] %v4436
      %4473 = vst [vmem:[#allocation3 + $0x90] sm:$0xff] %v4437
      %4474 = vst [vmem:[#allocation3 + $0x98] sm:$0xff] %v4438
      %4475 = vst [vmem:[#allocation3 + $0xa0] sm:$0xff] %v4439
      %4476 = vst [vmem:[#allocation3 + $0xa8] sm:$0xff] %v4440
      %4477 = vst [vmem:[#allocation3 + $0xb0] sm:$0xff] %v4441
      %4478 = vst [vmem:[#allocation3 + $0xb8] sm:$0xff] %v4442
      %4479 = vst [vmem:[#allocation3 + $0xc0] sm:$0xff] %v4443
      %4480 = vst [vmem:[#allocation3 + $0xc8] sm:$0xff] %v4444
      %4481 = vst [vmem:[#allocation3 + $0xd0] sm:$0xff] %v4445
      %4482 = vst [vmem:[#allocation3 + $0xd8] sm:$0xff] %v4446
      %4483 = vst [vmem:[#allocation3 + $0xe0] sm:$0xff] %v4447
      %4484 = vst [vmem:[#allocation3 + $0xe8] sm:$0xff] %v4448
      %4485 = vst [vmem:[#allocation3 + $0xf0] sm:$0xff] %v4449
      %4486 = vst [vmem:[#allocation3 + $0xf8] sm:$0xff] %v4450
      %4487 = vst [vmem:[#allocation3 + $0x100] sm:$0xff] %v4451
      %4488 = vst [vmem:[#allocation3 + $0x108] sm:$0xff] %v4452
      %4489 = vst [vmem:[#allocation3 + $0x110] sm:$0xff] %v4453
      %4490 = vst [vmem:[#allocation3 + $0x118] sm:$0xff] %v4454
      %v4491 = vld [vmem:[#allocation2 + $0x14] sm:$0xc]
      %v4492 = vld [vmem:[#allocation2 + $0x18] sm:$0xf]
      %v4493 = vld [vmem:[#allocation2 + $0x1c] sm:$0xf]
      %v4494 = vld [vmem:[#allocation2 + $0x20] sm:$0xf]
      %v4495 = vld [vmem:[#allocation2 + $0x24] sm:$0xf]
      %v4496 = vld [vmem:[#allocation2 + $0x28] sm:$0xf]
      %v4497 = vld [vmem:[#allocation2 + $0x2c] sm:$0xf]
      %v4498 = vld [vmem:[#allocation2 + $0x30] sm:$0xf]
      %v4499 = vld [vmem:[#allocation2 + $0x34] sm:$0xf]
      %v4500 = vld [vmem:[#allocation2 + $0x38] sm:$0xf]
      %v4501 = vld [vmem:[#allocation2 + $0x3c] sm:$0xf]
      %v4502 = vld [vmem:[#allocation2 + $0x40] sm:$0xf]
      %v4503 = vld [vmem:[#allocation2 + $0x44] sm:$0xf]
      %v4504 = vld [vmem:[#allocation2 + $0x48] sm:$0xf]
      %v4505 = vld [vmem:[#allocation2 + $0x4c] sm:$0xf]
      %v4506 = vld [vmem:[#allocation2 + $0x50] sm:$0xf]
      %v4507 = vld [vmem:[#allocation2 + $0x54] sm:$0xf]
      %v4508 = vld [vmem:[#allocation2 + $0x58] sm:$0xf]
      %v4509 = vld [vmem:[#allocation2 + $0x5c] sm:$0xf]
      %v4510 = vld [vmem:[#allocation2 + $0x60] sm:$0xf]
      %v4511 = vld [vmem:[#allocation2 + $0x64] sm:$0xf]
      %v4512 = vld [vmem:[#allocation2 + $0x68] sm:$0xf]
      %v4513 = vld [vmem:[#allocation2 + $0x6c] sm:$0xf]
      %v4514 = vld [vmem:[#allocation2 + $0x70] sm:$0xf]
      %v4515 = vld [vmem:[#allocation2 + $0x74] sm:$0xf]
      %v4516 = vld [vmem:[#allocation2 + $0x78] sm:$0xf]
      %v4517 = vld [vmem:[#allocation2 + $0x7c] sm:$0xf]
      %v4518 = vld [vmem:[#allocation2 + $0x80] sm:$0xf]
      %v4519 = vld [vmem:[#allocation2 + $0x84] sm:$0xf]
      %v4520 = vld [vmem:[#allocation2 + $0x88] sm:$0xf]
      %v4521 = vld [vmem:[#allocation2 + $0x8c] sm:$0xf]
      %v4522 = vld [vmem:[#allocation2 + $0x90] sm:$0xf]
      %v4523 = vld [vmem:[#allocation2 + $0x94] sm:$0xf]
      %v4524 = vld [vmem:[#allocation2 + $0x98] sm:$0xf]
      %v4525 = vld [vmem:[#allocation2 + $0x9c] sm:$0xf]
      %v4526 = vld [vmem:[#allocation2 + $0xa0] sm:$0xf]
      %v4527 = vld [vmem:[#allocation2 + $0xa4] sm:$0x7]
      %s4528 = scalar_lea.vmem %s2, 32
      %v4529 = vld [vmem:[%s4528] sm:$0xf]
      %v4567 = vunpack.c.l.b16 %v4491
      %v4568 = vunpack.c.l.b16 %v4492
      %v4569 = vunpack.c.l.b16 %v4493
      %v4570 = vunpack.c.l.b16 %v4494
      %v4571 = vunpack.c.l.b16 %v4495
      %v4572 = vunpack.c.l.b16 %v4496
      %v4573 = vunpack.c.l.b16 %v4497
      %v4574 = vunpack.c.l.b16 %v4498
      %v4575 = vunpack.c.l.b16 %v4499
      %v4576 = vunpack.c.l.b16 %v4500
      %v4577 = vunpack.c.l.b16 %v4501
      %v4578 = vunpack.c.l.b16 %v4502
      %v4579 = vunpack.c.l.b16 %v4503
      %v4580 = vunpack.c.l.b16 %v4504
      %v4581 = vunpack.c.l.b16 %v4505
      %v4582 = vunpack.c.l.b16 %v4506
      %v4583 = vunpack.c.l.b16 %v4507
      %v4584 = vunpack.c.l.b16 %v4508
      %v4585 = vunpack.c.l.b16 %v4509
      %v4586 = vunpack.c.l.b16 %v4510
      %v4587 = vunpack.c.l.b16 %v4511
      %v4588 = vunpack.c.l.b16 %v4512
      %v4589 = vunpack.c.l.b16 %v4513
      %v4590 = vunpack.c.l.b16 %v4514
      %v4591 = vunpack.c.l.b16 %v4515
      %v4592 = vunpack.c.l.b16 %v4516
      %v4593 = vunpack.c.l.b16 %v4517
      %v4594 = vunpack.c.l.b16 %v4518
      %v4595 = vunpack.c.l.b16 %v4519
      %v4596 = vunpack.c.l.b16 %v4520
      %v4597 = vunpack.c.l.b16 %v4521
      %v4598 = vunpack.c.l.b16 %v4522
      %v4599 = vunpack.c.l.b16 %v4523
      %v4600 = vunpack.c.l.b16 %v4524
      %v4601 = vunpack.c.l.b16 %v4525
      %v4602 = vunpack.c.l.b16 %v4526
      %v4603 = vunpack.c.l.b16 %v4527
      %v4604 = vpack.c.b16 %v4568, %v4567
      %v4605 = vpack.c.b16 %v4570, %v4569
      %v4606 = vpack.c.b16 %v4572, %v4571
      %v4607 = vpack.c.b16 %v4574, %v4573
      %v4608 = vpack.c.b16 %v4576, %v4575
      %v4609 = vpack.c.b16 %v4578, %v4577
      %v4610 = vpack.c.b16 %v4580, %v4579
      %v4611 = vpack.c.b16 %v4582, %v4581
      %v4612 = vpack.c.b16 %v4584, %v4583
      %v4613 = vpack.c.b16 %v4586, %v4585
      %v4614 = vpack.c.b16 %v4588, %v4587
      %v4615 = vpack.c.b16 %v4590, %v4589
      %v4616 = vpack.c.b16 %v4592, %v4591
      %v4617 = vpack.c.b16 %v4594, %v4593
      %v4618 = vpack.c.b16 %v4596, %v4595
      %v4619 = vpack.c.b16 %v4598, %v4597
      %v4620 = vpack.c.b16 %v4600, %v4599
      %v4621 = vpack.c.b16 %v4602, %v4601
      %v4622 = vpack.c.b16 %v4603, %v4603
      %vm4623 = vsmask.f32 5376
      %v4625 = vshrl.u32 %v4604, 16
      %v4627 = vrot.slane %v4625, 2
      %v4628 = vshll.u32 %v4604, 16
      %v4630 = vrot.slane %v4628, 3
      %v4631 = vor.u32 %v4627, %v4630
      %v4633 = vshrl.u32 %v4605, 16
      %v4635 = vrot.slane %v4633, 2
      %v4636 = vshll.u32 %v4605, 16
      %v4638 = vrot.slane %v4636, 3
      %v4639 = vor.u32 %v4635, %v4638
      %v4640 = vsel %vm4623, %v4631, %v4639
      %v4642 = vshrl.u32 %v4606, 16
      %v4644 = vrot.slane %v4642, 2
      %v4645 = vshll.u32 %v4606, 16
      %v4647 = vrot.slane %v4645, 3
      %v4648 = vor.u32 %v4644, %v4647
      %v4649 = vsel %vm4623, %v4639, %v4648
      %v4651 = vshrl.u32 %v4607, 16
      %v4653 = vrot.slane %v4651, 2
      %v4654 = vshll.u32 %v4607, 16
      %v4656 = vrot.slane %v4654, 3
      %v4657 = vor.u32 %v4653, %v4656
      %v4658 = vsel %vm4623, %v4648, %v4657
      %v4660 = vshrl.u32 %v4608, 16
      %v4662 = vrot.slane %v4660, 2
      %v4663 = vshll.u32 %v4608, 16
      %v4665 = vrot.slane %v4663, 3
      %v4666 = vor.u32 %v4662, %v4665
      %v4667 = vsel %vm4623, %v4657, %v4666
      %v4669 = vshrl.u32 %v4609, 16
      %v4671 = vrot.slane %v4669, 2
      %v4672 = vshll.u32 %v4609, 16
      %v4674 = vrot.slane %v4672, 3
      %v4675 = vor.u32 %v4671, %v4674
      %v4676 = vsel %vm4623, %v4666, %v4675
      %v4678 = vshrl.u32 %v4610, 16
      %v4680 = vrot.slane %v4678, 2
      %v4681 = vshll.u32 %v4610, 16
      %v4683 = vrot.slane %v4681, 3
      %v4684 = vor.u32 %v4680, %v4683
      %v4685 = vsel %vm4623, %v4675, %v4684
      %v4687 = vshrl.u32 %v4611, 16
      %v4689 = vrot.slane %v4687, 2
      %v4690 = vshll.u32 %v4611, 16
      %v4692 = vrot.slane %v4690, 3
      %v4693 = vor.u32 %v4689, %v4692
      %v4694 = vsel %vm4623, %v4684, %v4693
      %v4696 = vshrl.u32 %v4612, 16
      %v4698 = vrot.slane %v4696, 2
      %v4699 = vshll.u32 %v4612, 16
      %v4701 = vrot.slane %v4699, 3
      %v4702 = vor.u32 %v4698, %v4701
      %v4703 = vsel %vm4623, %v4693, %v4702
      %v4705 = vshrl.u32 %v4613, 16
      %v4707 = vrot.slane %v4705, 2
      %v4708 = vshll.u32 %v4613, 16
      %v4710 = vrot.slane %v4708, 3
      %v4711 = vor.u32 %v4707, %v4710
      %v4712 = vsel %vm4623, %v4702, %v4711
      %v4714 = vshrl.u32 %v4614, 16
      %v4716 = vrot.slane %v4714, 2
      %v4717 = vshll.u32 %v4614, 16
      %v4719 = vrot.slane %v4717, 3
      %v4720 = vor.u32 %v4716, %v4719
      %v4721 = vsel %vm4623, %v4711, %v4720
      %v4723 = vshrl.u32 %v4615, 16
      %v4725 = vrot.slane %v4723, 2
      %v4726 = vshll.u32 %v4615, 16
      %v4728 = vrot.slane %v4726, 3
      %v4729 = vor.u32 %v4725, %v4728
      %v4730 = vsel %vm4623, %v4720, %v4729
      %v4732 = vshrl.u32 %v4616, 16
      %v4734 = vrot.slane %v4732, 2
      %v4735 = vshll.u32 %v4616, 16
      %v4737 = vrot.slane %v4735, 3
      %v4738 = vor.u32 %v4734, %v4737
      %v4739 = vsel %vm4623, %v4729, %v4738
      %v4741 = vshrl.u32 %v4617, 16
      %v4743 = vrot.slane %v4741, 2
      %v4744 = vshll.u32 %v4617, 16
      %v4746 = vrot.slane %v4744, 3
      %v4747 = vor.u32 %v4743, %v4746
      %v4748 = vsel %vm4623, %v4738, %v4747
      %v4750 = vshrl.u32 %v4618, 16
      %v4752 = vrot.slane %v4750, 2
      %v4753 = vshll.u32 %v4618, 16
      %v4755 = vrot.slane %v4753, 3
      %v4756 = vor.u32 %v4752, %v4755
      %v4757 = vsel %vm4623, %v4747, %v4756
      %v4759 = vshrl.u32 %v4619, 16
      %v4761 = vrot.slane %v4759, 2
      %v4762 = vshll.u32 %v4619, 16
      %v4764 = vrot.slane %v4762, 3
      %v4765 = vor.u32 %v4761, %v4764
      %v4766 = vsel %vm4623, %v4756, %v4765
      %v4768 = vshrl.u32 %v4620, 16
      %v4770 = vrot.slane %v4768, 2
      %v4771 = vshll.u32 %v4620, 16
      %v4773 = vrot.slane %v4771, 3
      %v4774 = vor.u32 %v4770, %v4773
      %v4775 = vsel %vm4623, %v4765, %v4774
      %v4777 = vshrl.u32 %v4621, 16
      %v4779 = vrot.slane %v4777, 2
      %v4780 = vshll.u32 %v4621, 16
      %v4782 = vrot.slane %v4780, 3
      %v4783 = vor.u32 %v4779, %v4782
      %v4784 = vsel %vm4623, %v4774, %v4783
      %v4786 = vshrl.u32 %v4622, 16
      %v4788 = vrot.slane %v4786, 2
      %v4789 = vshll.u32 %v4622, 16
      %v4791 = vrot.slane %v4789, 3
      %v4792 = vor.u32 %v4788, %v4791
      %v4793 = vsel %vm4623, %v4783, %v4792
      %v4795 = vsel %vm815, %v4640, 0
      %v4798 = vsel %vm815, %v4649, 0
      %v4801 = vsel %vm815, %v4658, 0
      %v4804 = vsel %vm815, %v4667, 0
      %v4807 = vsel %vm815, %v4676, 0
      %v4810 = vsel %vm815, %v4685, 0
      %v4813 = vsel %vm815, %v4694, 0
      %v4816 = vsel %vm815, %v4703, 0
      %v4819 = vsel %vm815, %v4712, 0
      %v4822 = vsel %vm815, %v4721, 0
      %v4825 = vsel %vm815, %v4730, 0
      %v4828 = vsel %vm815, %v4739, 0
      %v4831 = vsel %vm815, %v4748, 0
      %v4834 = vsel %vm815, %v4757, 0
      %v4837 = vsel %vm815, %v4766, 0
      %v4840 = vsel %vm815, %v4775, 0
      %v4843 = vsel %vm815, %v4784, 0
      %v4846 = vsel %vm815, %v4793, 0
      %v4849 = vsel %vm870, %v4529, 0
      %4851 = vmatpush.bf16.msra.mxu0 0
      %4852 = vmatpush.bf16.msra.mxu0 0
      %4853 = vmatpush.bf16.msra.mxu0 0
      %4854 = vmatpush.bf16.msra.mxu0 0
      %4855 = vmatpush.bf16.msra.mxu0 0
      %4856 = vmatpush.bf16.msra.mxu0 0
      %4857 = vmatpush.bf16.msra.mxu0 0
      %4858 = vmatpush.bf16.msra.mxu0 %v4849
      %4859 = vmatmul.bf16.gmra.mxu0 %v4795
      %v4860 = vpop.f32.mrf.mxu0
      %v4861 = vadd.f32 0.0, %v4860
      %v4862 = vpop.f32.mrf.mxu0
      %v4863 = vadd.f32 0.0, %v4862
      %4864 = vmatmul.bf16.gmra.mxu0 %v4798
      %v4865 = vpop.f32.mrf.mxu0
      %v4866 = vadd.f32 0.0, %v4865
      %v4867 = vpop.f32.mrf.mxu0
      %v4868 = vadd.f32 0.0, %v4867
      %4869 = vmatmul.bf16.gmra.mxu0 %v4801
      %v4870 = vpop.f32.mrf.mxu0
      %v4871 = vadd.f32 0.0, %v4870
      %v4872 = vpop.f32.mrf.mxu0
      %v4873 = vadd.f32 0.0, %v4872
      %4874 = vmatmul.bf16.gmra.mxu0 %v4804
      %v4875 = vpop.f32.mrf.mxu0
      %v4876 = vadd.f32 0.0, %v4875
      %v4877 = vpop.f32.mrf.mxu0
      %v4878 = vadd.f32 0.0, %v4877
      %4879 = vmatmul.bf16.gmra.mxu0 %v4807
      %v4880 = vpop.f32.mrf.mxu0
      %v4881 = vadd.f32 0.0, %v4880
      %v4882 = vpop.f32.mrf.mxu0
      %v4883 = vadd.f32 0.0, %v4882
      %4884 = vmatmul.bf16.gmra.mxu0 %v4810
      %v4885 = vpop.f32.mrf.mxu0
      %v4886 = vadd.f32 0.0, %v4885
      %v4887 = vpop.f32.mrf.mxu0
      %v4888 = vadd.f32 0.0, %v4887
      %4889 = vmatmul.bf16.gmra.mxu0 %v4813
      %v4890 = vpop.f32.mrf.mxu0
      %v4891 = vadd.f32 0.0, %v4890
      %v4892 = vpop.f32.mrf.mxu0
      %v4893 = vadd.f32 0.0, %v4892
      %4894 = vmatmul.bf16.gmra.mxu0 %v4816
      %v4895 = vpop.f32.mrf.mxu0
      %v4896 = vadd.f32 0.0, %v4895
      %v4897 = vpop.f32.mrf.mxu0
      %v4898 = vadd.f32 0.0, %v4897
      %4899 = vmatmul.bf16.gmra.mxu0 %v4819
      %v4900 = vpop.f32.mrf.mxu0
      %v4901 = vadd.f32 0.0, %v4900
      %v4902 = vpop.f32.mrf.mxu0
      %v4903 = vadd.f32 0.0, %v4902
      %4904 = vmatmul.bf16.gmra.mxu0 %v4822
      %v4905 = vpop.f32.mrf.mxu0
      %v4906 = vadd.f32 0.0, %v4905
      %v4907 = vpop.f32.mrf.mxu0
      %v4908 = vadd.f32 0.0, %v4907
      %4909 = vmatmul.bf16.gmra.mxu0 %v4825
      %v4910 = vpop.f32.mrf.mxu0
      %v4911 = vadd.f32 0.0, %v4910
      %v4912 = vpop.f32.mrf.mxu0
      %v4913 = vadd.f32 0.0, %v4912
      %4914 = vmatmul.bf16.gmra.mxu0 %v4828
      %v4915 = vpop.f32.mrf.mxu0
      %v4916 = vadd.f32 0.0, %v4915
      %v4917 = vpop.f32.mrf.mxu0
      %v4918 = vadd.f32 0.0, %v4917
      %4919 = vmatmul.bf16.gmra.mxu0 %v4831
      %v4920 = vpop.f32.mrf.mxu0
      %v4921 = vadd.f32 0.0, %v4920
      %v4922 = vpop.f32.mrf.mxu0
      %v4923 = vadd.f32 0.0, %v4922
      %4924 = vmatmul.bf16.gmra.mxu0 %v4834
      %v4925 = vpop.f32.mrf.mxu0
      %v4926 = vadd.f32 0.0, %v4925
      %v4927 = vpop.f32.mrf.mxu0
      %v4928 = vadd.f32 0.0, %v4927
      %4929 = vmatmul.bf16.gmra.mxu0 %v4837
      %v4930 = vpop.f32.mrf.mxu0
      %v4931 = vadd.f32 0.0, %v4930
      %v4932 = vpop.f32.mrf.mxu0
      %v4933 = vadd.f32 0.0, %v4932
      %4934 = vmatmul.bf16.gmra.mxu0 %v4840
      %v4935 = vpop.f32.mrf.mxu0
      %v4936 = vadd.f32 0.0, %v4935
      %v4937 = vpop.f32.mrf.mxu0
      %v4938 = vadd.f32 0.0, %v4937
      %4939 = vmatmul.bf16.gmra.mxu0 %v4843
      %v4940 = vpop.f32.mrf.mxu0
      %v4941 = vadd.f32 0.0, %v4940
      %v4942 = vpop.f32.mrf.mxu0
      %v4943 = vadd.f32 0.0, %v4942
      %4944 = vmatmul.bf16.gmra.mxu0 %v4846
      %v4945 = vpop.f32.mrf.mxu0
      %v4946 = vadd.f32 0.0, %v4945
      %v4947 = vpop.f32.mrf.mxu0
      %v4948 = vadd.f32 0.0, %v4947
      %4949 = vdwg.mxu0
      %v4950 = vld [vmem:[#allocation3] sm:$0xff]
      %v4951 = vld [vmem:[#allocation3 + $0x8] sm:$0xff]
      %v4952 = vld [vmem:[#allocation3 + $0x10] sm:$0xff]
      %v4953 = vld [vmem:[#allocation3 + $0x18] sm:$0xff]
      %v4954 = vld [vmem:[#allocation3 + $0x20] sm:$0xff]
      %v4955 = vld [vmem:[#allocation3 + $0x28] sm:$0xff]
      %v4956 = vld [vmem:[#allocation3 + $0x30] sm:$0xff]
      %v4957 = vld [vmem:[#allocation3 + $0x38] sm:$0xff]
      %v4958 = vld [vmem:[#allocation3 + $0x40] sm:$0xff]
      %v4959 = vld [vmem:[#allocation3 + $0x48] sm:$0xff]
      %v4960 = vld [vmem:[#allocation3 + $0x50] sm:$0xff]
      %v4961 = vld [vmem:[#allocation3 + $0x58] sm:$0xff]
      %v4962 = vld [vmem:[#allocation3 + $0x60] sm:$0xff]
      %v4963 = vld [vmem:[#allocation3 + $0x68] sm:$0xff]
      %v4964 = vld [vmem:[#allocation3 + $0x70] sm:$0xff]
      %v4965 = vld [vmem:[#allocation3 + $0x78] sm:$0xff]
      %v4966 = vld [vmem:[#allocation3 + $0x80] sm:$0xff]
      %v4967 = vld [vmem:[#allocation3 + $0x88] sm:$0xff]
      %v4968 = vld [vmem:[#allocation3 + $0x90] sm:$0xff]
      %v4969 = vld [vmem:[#allocation3 + $0x98] sm:$0xff]
      %v4970 = vld [vmem:[#allocation3 + $0xa0] sm:$0xff]
      %v4971 = vld [vmem:[#allocation3 + $0xa8] sm:$0xff]
      %v4972 = vld [vmem:[#allocation3 + $0xb0] sm:$0xff]
      %v4973 = vld [vmem:[#allocation3 + $0xb8] sm:$0xff]
      %v4974 = vld [vmem:[#allocation3 + $0xc0] sm:$0xff]
      %v4975 = vld [vmem:[#allocation3 + $0xc8] sm:$0xff]
      %v4976 = vld [vmem:[#allocation3 + $0xd0] sm:$0xff]
      %v4977 = vld [vmem:[#allocation3 + $0xd8] sm:$0xff]
      %v4978 = vld [vmem:[#allocation3 + $0xe0] sm:$0xff]
      %v4979 = vld [vmem:[#allocation3 + $0xe8] sm:$0xff]
      %v4980 = vld [vmem:[#allocation3 + $0xf0] sm:$0xff]
      %v4981 = vld [vmem:[#allocation3 + $0xf8] sm:$0xff]
      %v4982 = vld [vmem:[#allocation3 + $0x100] sm:$0xff]
      %v4983 = vld [vmem:[#allocation3 + $0x108] sm:$0xff]
      %v4984 = vld [vmem:[#allocation3 + $0x110] sm:$0xff]
      %v4985 = vld [vmem:[#allocation3 + $0x118] sm:$0xff]
      %v4986 = vadd.f32 %v4950, %v4861
      %v4987 = vadd.f32 %v4951, %v4863
      %v4988 = vadd.f32 %v4952, %v4866
      %v4989 = vadd.f32 %v4953, %v4868
      %v4990 = vadd.f32 %v4954, %v4871
      %v4991 = vadd.f32 %v4955, %v4873
      %v4992 = vadd.f32 %v4956, %v4876
      %v4993 = vadd.f32 %v4957, %v4878
      %v4994 = vadd.f32 %v4958, %v4881
      %v4995 = vadd.f32 %v4959, %v4883
      %v4996 = vadd.f32 %v4960, %v4886
      %v4997 = vadd.f32 %v4961, %v4888
      %v4998 = vadd.f32 %v4962, %v4891
      %v4999 = vadd.f32 %v4963, %v4893
      %v5000 = vadd.f32 %v4964, %v4896
      %v5001 = vadd.f32 %v4965, %v4898
      %v5002 = vadd.f32 %v4966, %v4901
      %v5003 = vadd.f32 %v4967, %v4903
      %v5004 = vadd.f32 %v4968, %v4906
      %v5005 = vadd.f32 %v4969, %v4908
      %v5006 = vadd.f32 %v4970, %v4911
      %v5007 = vadd.f32 %v4971, %v4913
      %v5008 = vadd.f32 %v4972, %v4916
      %v5009 = vadd.f32 %v4973, %v4918
      %v5010 = vadd.f32 %v4974, %v4921
      %v5011 = vadd.f32 %v4975, %v4923
      %v5012 = vadd.f32 %v4976, %v4926
      %v5013 = vadd.f32 %v4977, %v4928
      %v5014 = vadd.f32 %v4978, %v4931
      %v5015 = vadd.f32 %v4979, %v4933
      %v5016 = vadd.f32 %v4980, %v4936
      %v5017 = vadd.f32 %v4981, %v4938
      %v5018 = vadd.f32 %v4982, %v4941
      %v5019 = vadd.f32 %v4983, %v4943
      %v5020 = vadd.f32 %v4984, %v4946
      %v5021 = vadd.f32 %v4985, %v4948
      %5022 = vst [vmem:[#allocation3] sm:$0xff] %v4986
      %5023 = vst [vmem:[#allocation3 + $0x8] sm:$0xff] %v4987
      %5024 = vst [vmem:[#allocation3 + $0x10] sm:$0xff] %v4988
      %5025 = vst [vmem:[#allocation3 + $0x18] sm:$0xff] %v4989
      %5026 = vst [vmem:[#allocation3 + $0x20] sm:$0xff] %v4990
      %5027 = vst [vmem:[#allocation3 + $0x28] sm:$0xff] %v4991
      %5028 = vst [vmem:[#allocation3 + $0x30] sm:$0xff] %v4992
      %5029 = vst [vmem:[#allocation3 + $0x38] sm:$0xff] %v4993
      %5030 = vst [vmem:[#allocation3 + $0x40] sm:$0xff] %v4994
      %5031 = vst [vmem:[#allocation3 + $0x48] sm:$0xff] %v4995
      %5032 = vst [vmem:[#allocation3 + $0x50] sm:$0xff] %v4996
      %5033 = vst [vmem:[#allocation3 + $0x58] sm:$0xff] %v4997
      %5034 = vst [vmem:[#allocation3 + $0x60] sm:$0xff] %v4998
      %5035 = vst [vmem:[#allocation3 + $0x68] sm:$0xff] %v4999
      %5036 = vst [vmem:[#allocation3 + $0x70] sm:$0xff] %v5000
      %5037 = vst [vmem:[#allocation3 + $0x78] sm:$0xff] %v5001
      %5038 = vst [vmem:[#allocation3 + $0x80] sm:$0xff] %v5002
      %5039 = vst [vmem:[#allocation3 + $0x88] sm:$0xff] %v5003
      %5040 = vst [vmem:[#allocation3 + $0x90] sm:$0xff] %v5004
      %5041 = vst [vmem:[#allocation3 + $0x98] sm:$0xff] %v5005
      %5042 = vst [vmem:[#allocation3 + $0xa0] sm:$0xff] %v5006
      %5043 = vst [vmem:[#allocation3 + $0xa8] sm:$0xff] %v5007
      %5044 = vst [vmem:[#allocation3 + $0xb0] sm:$0xff] %v5008
      %5045 = vst [vmem:[#allocation3 + $0xb8] sm:$0xff] %v5009
      %5046 = vst [vmem:[#allocation3 + $0xc0] sm:$0xff] %v5010
      %5047 = vst [vmem:[#allocation3 + $0xc8] sm:$0xff] %v5011
      %5048 = vst [vmem:[#allocation3 + $0xd0] sm:$0xff] %v5012
      %5049 = vst [vmem:[#allocation3 + $0xd8] sm:$0xff] %v5013
      %5050 = vst [vmem:[#allocation3 + $0xe0] sm:$0xff] %v5014
      %5051 = vst [vmem:[#allocation3 + $0xe8] sm:$0xff] %v5015
      %5052 = vst [vmem:[#allocation3 + $0xf0] sm:$0xff] %v5016
      %5053 = vst [vmem:[#allocation3 + $0xf8] sm:$0xff] %v5017
      %5054 = vst [vmem:[#allocation3 + $0x100] sm:$0xff] %v5018
      %5055 = vst [vmem:[#allocation3 + $0x108] sm:$0xff] %v5019
      %5056 = vst [vmem:[#allocation3 + $0x110] sm:$0xff] %v5020
      %5057 = vst [vmem:[#allocation3 + $0x118] sm:$0xff] %v5021
      %v5058 = vld [vmem:[#allocation3] sm:$0xff]
      %v5059 = vld [vmem:[#allocation3 + $0x8] sm:$0xff]
      %v5060 = vld [vmem:[#allocation3 + $0x10] sm:$0xff]
      %v5061 = vld [vmem:[#allocation3 + $0x18] sm:$0xff]
      %v5062 = vld [vmem:[#allocation3 + $0x20] sm:$0xff]
      %v5063 = vld [vmem:[#allocation3 + $0x28] sm:$0xff]
      %v5064 = vld [vmem:[#allocation3 + $0x30] sm:$0xff]
      %v5065 = vld [vmem:[#allocation3 + $0x38] sm:$0xff]
      %v5066 = vld [vmem:[#allocation3 + $0x40] sm:$0xff]
      %v5067 = vld [vmem:[#allocation3 + $0x48] sm:$0xff]
      %v5068 = vld [vmem:[#allocation3 + $0x50] sm:$0xff]
      %v5069 = vld [vmem:[#allocation3 + $0x58] sm:$0xff]
      %v5070 = vld [vmem:[#allocation3 + $0x60] sm:$0xff]
      %v5071 = vld [vmem:[#allocation3 + $0x68] sm:$0xff]
      %v5072 = vld [vmem:[#allocation3 + $0x70] sm:$0xff]
      %v5073 = vld [vmem:[#allocation3 + $0x78] sm:$0xff]
      %v5074 = vld [vmem:[#allocation3 + $0x80] sm:$0xff]
      %v5075 = vld [vmem:[#allocation3 + $0x88] sm:$0xff]
      %v5076 = vld [vmem:[#allocation3 + $0x90] sm:$0xff]
      %v5077 = vld [vmem:[#allocation3 + $0x98] sm:$0xff]
      %v5078 = vld [vmem:[#allocation3 + $0xa0] sm:$0xff]
      %v5079 = vld [vmem:[#allocation3 + $0xa8] sm:$0xff]
      %v5080 = vld [vmem:[#allocation3 + $0xb0] sm:$0xff]
      %v5081 = vld [vmem:[#allocation3 + $0xb8] sm:$0xff]
      %v5082 = vld [vmem:[#allocation3 + $0xc0] sm:$0xff]
      %v5083 = vld [vmem:[#allocation3 + $0xc8] sm:$0xff]
      %v5084 = vld [vmem:[#allocation3 + $0xd0] sm:$0xff]
      %v5085 = vld [vmem:[#allocation3 + $0xd8] sm:$0xff]
      %v5086 = vld [vmem:[#allocation3 + $0xe0] sm:$0xff]
      %v5087 = vld [vmem:[#allocation3 + $0xe8] sm:$0xff]
      %v5088 = vld [vmem:[#allocation3 + $0xf0] sm:$0xff]
      %v5089 = vld [vmem:[#allocation3 + $0xf8] sm:$0xff]
      %v5090 = vld [vmem:[#allocation3 + $0x100] sm:$0xff]
      %v5091 = vld [vmem:[#allocation3 + $0x108] sm:$0xff]
      %v5092 = vld [vmem:[#allocation3 + $0x110] sm:$0xff]
      %v5093 = vld [vmem:[#allocation3 + $0x118] sm:$0xff]
      %v5094 = vld [vmem:[%s1] sm:$0xff]
      %v5095 = vld [vmem:[%s1 + $0x8] sm:$0xff]
      %v5096 = vld [vmem:[%s1 + $0x10] sm:$0xff]
      %v5097 = vld [vmem:[%s1 + $0x18] sm:$0xff]
      %v5098 = vld [vmem:[%s1 + $0x20] sm:$0xff]
      %v5099 = vld [vmem:[%s1 + $0x28] sm:$0xff]
      %v5100 = vld [vmem:[%s1 + $0x30] sm:$0xff]
      %v5101 = vld [vmem:[%s1 + $0x38] sm:$0xff]
      %v5102 = vld [vmem:[%s1 + $0x40] sm:$0xff]
      %v5103 = vld [vmem:[%s1 + $0x48] sm:$0xff]
      %v5104 = vld [vmem:[%s1 + $0x50] sm:$0xff]
      %v5105 = vld [vmem:[%s1 + $0x58] sm:$0xff]
      %v5106 = vld [vmem:[%s1 + $0x60] sm:$0xff]
      %v5107 = vld [vmem:[%s1 + $0x68] sm:$0xff]
      %v5108 = vld [vmem:[%s1 + $0x70] sm:$0xff]
      %v5109 = vld [vmem:[%s1 + $0x78] sm:$0xff]
      %v5110 = vld [vmem:[%s1 + $0x80] sm:$0xff]
      %v5111 = vld [vmem:[%s1 + $0x88] sm:$0xff]
      %v5112 = vld [vmem:[%s1 + $0x90] sm:$0xff]
      %v5113 = vld [vmem:[%s1 + $0x98] sm:$0xff]
      %v5114 = vld [vmem:[%s1 + $0xa0] sm:$0xff]
      %v5115 = vld [vmem:[%s1 + $0xa8] sm:$0xff]
      %v5116 = vld [vmem:[%s1 + $0xb0] sm:$0xff]
      %v5117 = vld [vmem:[%s1 + $0xb8] sm:$0xff]
      %v5118 = vld [vmem:[%s1 + $0xc0] sm:$0xff]
      %v5119 = vld [vmem:[%s1 + $0xc8] sm:$0xff]
      %v5120 = vld [vmem:[%s1 + $0xd0] sm:$0xff]
      %v5121 = vld [vmem:[%s1 + $0xd8] sm:$0xff]
      %v5122 = vld [vmem:[%s1 + $0xe0] sm:$0xff]
      %v5123 = vld [vmem:[%s1 + $0xe8] sm:$0xff]
      %v5124 = vld [vmem:[%s1 + $0xf0] sm:$0xff]
      %v5125 = vld [vmem:[%s1 + $0xf8] sm:$0xff]
      %v5126 = vld [vmem:[%s1 + $0x100] sm:$0xff]
      %v5127 = vld [vmem:[%s1 + $0x108] sm:$0xff]
      %v5128 = vld [vmem:[%s1 + $0x110] sm:$0xff]
      %v5129 = vld [vmem:[%s1 + $0x118] sm:$0xff]
      %5131 = vset.pattern.permute.xlu0 0
      %5132 = vperm.xlu0 %5131, %v5094
      %v5133 = vpop.permute.xlu0 %5132
      %5136 = vset.pattern.permute.xlu0 0
      %5137 = vperm.xlu0 %5136, %v5095
      %v5138 = vpop.permute.xlu0 %5137
      %5141 = vset.pattern.permute.xlu0 0
      %5142 = vperm.xlu0 %5141, %v5096
      %v5143 = vpop.permute.xlu0 %5142
      %5146 = vset.pattern.permute.xlu0 0
      %5147 = vperm.xlu0 %5146, %v5097
      %v5148 = vpop.permute.xlu0 %5147
      %5151 = vset.pattern.permute.xlu0 0
      %5152 = vperm.xlu0 %5151, %v5098
      %v5153 = vpop.permute.xlu0 %5152
      %5156 = vset.pattern.permute.xlu0 0
      %5157 = vperm.xlu0 %5156, %v5099
      %v5158 = vpop.permute.xlu0 %5157
      %5161 = vset.pattern.permute.xlu0 0
      %5162 = vperm.xlu0 %5161, %v5100
      %v5163 = vpop.permute.xlu0 %5162
      %5166 = vset.pattern.permute.xlu0 0
      %5167 = vperm.xlu0 %5166, %v5101
      %v5168 = vpop.permute.xlu0 %5167
      %5171 = vset.pattern.permute.xlu0 0
      %5172 = vperm.xlu0 %5171, %v5102
      %v5173 = vpop.permute.xlu0 %5172
      %5176 = vset.pattern.permute.xlu0 0
      %5177 = vperm.xlu0 %5176, %v5103
      %v5178 = vpop.permute.xlu0 %5177
      %5181 = vset.pattern.permute.xlu0 0
      %5182 = vperm.xlu0 %5181, %v5104
      %v5183 = vpop.permute.xlu0 %5182
      %5186 = vset.pattern.permute.xlu0 0
      %5187 = vperm.xlu0 %5186, %v5105
      %v5188 = vpop.permute.xlu0 %5187
      %5191 = vset.pattern.permute.xlu0 0
      %5192 = vperm.xlu0 %5191, %v5106
      %v5193 = vpop.permute.xlu0 %5192
      %5196 = vset.pattern.permute.xlu0 0
      %5197 = vperm.xlu0 %5196, %v5107
      %v5198 = vpop.permute.xlu0 %5197
      %5201 = vset.pattern.permute.xlu0 0
      %5202 = vperm.xlu0 %5201, %v5108
      %v5203 = vpop.permute.xlu0 %5202
      %5206 = vset.pattern.permute.xlu0 0
      %5207 = vperm.xlu0 %5206, %v5109
      %v5208 = vpop.permute.xlu0 %5207
      %5211 = vset.pattern.permute.xlu0 0
      %5212 = vperm.xlu0 %5211, %v5110
      %v5213 = vpop.permute.xlu0 %5212
      %5216 = vset.pattern.permute.xlu0 0
      %5217 = vperm.xlu0 %5216, %v5111
      %v5218 = vpop.permute.xlu0 %5217
      %5221 = vset.pattern.permute.xlu0 0
      %5222 = vperm.xlu0 %5221, %v5112
      %v5223 = vpop.permute.xlu0 %5222
      %5226 = vset.pattern.permute.xlu0 0
      %5227 = vperm.xlu0 %5226, %v5113
      %v5228 = vpop.permute.xlu0 %5227
      %5231 = vset.pattern.permute.xlu0 0
      %5232 = vperm.xlu0 %5231, %v5114
      %v5233 = vpop.permute.xlu0 %5232
      %5236 = vset.pattern.permute.xlu0 0
      %5237 = vperm.xlu0 %5236, %v5115
      %v5238 = vpop.permute.xlu0 %5237
      %5241 = vset.pattern.permute.xlu0 0
      %5242 = vperm.xlu0 %5241, %v5116
      %v5243 = vpop.permute.xlu0 %5242
      %5246 = vset.pattern.permute.xlu0 0
      %5247 = vperm.xlu0 %5246, %v5117
      %v5248 = vpop.permute.xlu0 %5247
      %5251 = vset.pattern.permute.xlu0 0
      %5252 = vperm.xlu0 %5251, %v5118
      %v5253 = vpop.permute.xlu0 %5252
      %5256 = vset.pattern.permute.xlu0 0
      %5257 = vperm.xlu0 %5256, %v5119
      %v5258 = vpop.permute.xlu0 %5257
      %5261 = vset.pattern.permute.xlu0 0
      %5262 = vperm.xlu0 %5261, %v5120
      %v5263 = vpop.permute.xlu0 %5262
      %5266 = vset.pattern.permute.xlu0 0
      %5267 = vperm.xlu0 %5266, %v5121
      %v5268 = vpop.permute.xlu0 %5267
      %5271 = vset.pattern.permute.xlu0 0
      %5272 = vperm.xlu0 %5271, %v5122
      %v5273 = vpop.permute.xlu0 %5272
      %5276 = vset.pattern.permute.xlu0 0
      %5277 = vperm.xlu0 %5276, %v5123
      %v5278 = vpop.permute.xlu0 %5277
      %5281 = vset.pattern.permute.xlu0 0
      %5282 = vperm.xlu0 %5281, %v5124
      %v5283 = vpop.permute.xlu0 %5282
      %5286 = vset.pattern.permute.xlu0 0
      %5287 = vperm.xlu0 %5286, %v5125
      %v5288 = vpop.permute.xlu0 %5287
      %5291 = vset.pattern.permute.xlu0 0
      %5292 = vperm.xlu0 %5291, %v5126
      %v5293 = vpop.permute.xlu0 %5292
      %5296 = vset.pattern.permute.xlu0 0
      %5297 = vperm.xlu0 %5296, %v5127
      %v5298 = vpop.permute.xlu0 %5297
      %5301 = vset.pattern.permute.xlu0 0
      %5302 = vperm.xlu0 %5301, %v5128
      %v5303 = vpop.permute.xlu0 %5302
      %5306 = vset.pattern.permute.xlu0 0
      %5307 = vperm.xlu0 %5306, %v5129
      %v5308 = vpop.permute.xlu0 %5307
      %v5310 = vmul.f32 %v5058, %v5133
      %v5311 = vmul.f32 %v5059, %v5138
      %v5312 = vmul.f32 %v5060, %v5143
      %v5313 = vmul.f32 %v5061, %v5148
      %v5314 = vmul.f32 %v5062, %v5153
      %v5315 = vmul.f32 %v5063, %v5158
      %v5316 = vmul.f32 %v5064, %v5163
      %v5317 = vmul.f32 %v5065, %v5168
      %v5318 = vmul.f32 %v5066, %v5173
      %v5319 = vmul.f32 %v5067, %v5178
      %v5320 = vmul.f32 %v5068, %v5183
      %v5321 = vmul.f32 %v5069, %v5188
      %v5322 = vmul.f32 %v5070, %v5193
      %v5323 = vmul.f32 %v5071, %v5198
      %v5324 = vmul.f32 %v5072, %v5203
      %v5325 = vmul.f32 %v5073, %v5208
      %v5326 = vmul.f32 %v5074, %v5213
      %v5327 = vmul.f32 %v5075, %v5218
      %v5328 = vmul.f32 %v5076, %v5223
      %v5329 = vmul.f32 %v5077, %v5228
      %v5330 = vmul.f32 %v5078, %v5233
      %v5331 = vmul.f32 %v5079, %v5238
      %v5332 = vmul.f32 %v5080, %v5243
      %v5333 = vmul.f32 %v5081, %v5248
      %v5334 = vmul.f32 %v5082, %v5253
      %v5335 = vmul.f32 %v5083, %v5258
      %v5336 = vmul.f32 %v5084, %v5263
      %v5337 = vmul.f32 %v5085, %v5268
      %v5338 = vmul.f32 %v5086, %v5273
      %v5339 = vmul.f32 %v5087, %v5278
      %v5340 = vmul.f32 %v5088, %v5283
      %v5341 = vmul.f32 %v5089, %v5288
      %v5342 = vmul.f32 %v5090, %v5293
      %v5343 = vmul.f32 %v5091, %v5298
      %v5344 = vmul.f32 %v5092, %v5303
      %v5345 = vmul.f32 %v5093, %v5308
      %v5346 = vsel %vm815, %v5310, 0.0
      %v5347 = vsel %vm815, %v5311, 0.0
      %v5348 = vadd.f32 %v5346, %v5347
      %v5349 = vsel %vm815, %v5312, 0.0
      %v5350 = vadd.f32 %v5348, %v5349
      %v5351 = vsel %vm815, %v5313, 0.0
      %v5352 = vadd.f32 %v5350, %v5351
      %v5353 = vsel %vm815, %v5314, 0.0
      %v5354 = vadd.f32 %v5352, %v5353
      %v5355 = vsel %vm815, %v5315, 0.0
      %v5356 = vadd.f32 %v5354, %v5355
      %v5357 = vsel %vm815, %v5316, 0.0
      %v5358 = vadd.f32 %v5356, %v5357
      %v5359 = vsel %vm815, %v5317, 0.0
      %v5360 = vadd.f32 %v5358, %v5359
      %v5361 = vsel %vm815, %v5318, 0.0
      %v5362 = vadd.f32 %v5360, %v5361
      %v5363 = vsel %vm815, %v5319, 0.0
      %v5364 = vadd.f32 %v5362, %v5363
      %v5365 = vsel %vm815, %v5320, 0.0
      %v5366 = vadd.f32 %v5364, %v5365
      %v5367 = vsel %vm815, %v5321, 0.0
      %v5368 = vadd.f32 %v5366, %v5367
      %v5369 = vsel %vm815, %v5322, 0.0
      %v5370 = vadd.f32 %v5368, %v5369
      %v5371 = vsel %vm815, %v5323, 0.0
      %v5372 = vadd.f32 %v5370, %v5371
      %v5373 = vsel %vm815, %v5324, 0.0
      %v5374 = vadd.f32 %v5372, %v5373
      %v5375 = vsel %vm815, %v5325, 0.0
      %v5376 = vadd.f32 %v5374, %v5375
      %v5377 = vsel %vm815, %v5326, 0.0
      %v5378 = vadd.f32 %v5376, %v5377
      %v5379 = vsel %vm815, %v5327, 0.0
      %v5380 = vadd.f32 %v5378, %v5379
      %v5381 = vsel %vm815, %v5328, 0.0
      %v5382 = vadd.f32 %v5380, %v5381
      %v5383 = vsel %vm815, %v5329, 0.0
      %v5384 = vadd.f32 %v5382, %v5383
      %v5385 = vsel %vm815, %v5330, 0.0
      %v5386 = vadd.f32 %v5384, %v5385
      %v5387 = vsel %vm815, %v5331, 0.0
      %v5388 = vadd.f32 %v5386, %v5387
      %v5389 = vsel %vm815, %v5332, 0.0
      %v5390 = vadd.f32 %v5388, %v5389
      %v5391 = vsel %vm815, %v5333, 0.0
      %v5392 = vadd.f32 %v5390, %v5391
      %v5393 = vsel %vm815, %v5334, 0.0
      %v5394 = vadd.f32 %v5392, %v5393
      %v5395 = vsel %vm815, %v5335, 0.0
      %v5396 = vadd.f32 %v5394, %v5395
      %v5397 = vsel %vm815, %v5336, 0.0
      %v5398 = vadd.f32 %v5396, %v5397
      %v5399 = vsel %vm815, %v5337, 0.0
      %v5400 = vadd.f32 %v5398, %v5399
      %v5401 = vsel %vm815, %v5338, 0.0
      %v5402 = vadd.f32 %v5400, %v5401
      %v5403 = vsel %vm815, %v5339, 0.0
      %v5404 = vadd.f32 %v5402, %v5403
      %v5405 = vsel %vm815, %v5340, 0.0
      %v5406 = vadd.f32 %v5404, %v5405
      %v5407 = vsel %vm815, %v5341, 0.0
      %v5408 = vadd.f32 %v5406, %v5407
      %v5409 = vsel %vm815, %v5342, 0.0
      %v5410 = vadd.f32 %v5408, %v5409
      %v5411 = vsel %vm815, %v5343, 0.0
      %v5412 = vadd.f32 %v5410, %v5411
      %v5413 = vsel %vm815, %v5344, 0.0
      %v5414 = vadd.f32 %v5412, %v5413
      %v5415 = vsel %vm815, %v5345, 0.0
      %v5416 = vadd.f32 %v5414, %v5415
      %v5417 = vrot.slane %v5416, 4
      %v5418 = vadd.f32 %v5416, %v5417
      %v5419 = vrot.slane %v5418, 2
      %v5420 = vadd.f32 %v5418, %v5419
      %v5421 = vrot.slane %v5420, 1
      %v5422 = vadd.f32 %v5420, %v5421
      %5423 = vst.msk [vmem:[%s208] sm:$0x1] %vm286, %v5422
      %v5424 = vmul.f32 %v5310, %v5310
      %v5425 = vmul.f32 %v5311, %v5311
      %v5426 = vmul.f32 %v5312, %v5312
      %v5427 = vmul.f32 %v5313, %v5313
      %v5428 = vmul.f32 %v5314, %v5314
      %v5429 = vmul.f32 %v5315, %v5315
      %v5430 = vmul.f32 %v5316, %v5316
      %v5431 = vmul.f32 %v5317, %v5317
      %v5432 = vmul.f32 %v5318, %v5318
      %v5433 = vmul.f32 %v5319, %v5319
      %v5434 = vmul.f32 %v5320, %v5320
      %v5435 = vmul.f32 %v5321, %v5321
      %v5436 = vmul.f32 %v5322, %v5322
      %v5437 = vmul.f32 %v5323, %v5323
      %v5438 = vmul.f32 %v5324, %v5324
      %v5439 = vmul.f32 %v5325, %v5325
      %v5440 = vmul.f32 %v5326, %v5326
      %v5441 = vmul.f32 %v5327, %v5327
      %v5442 = vmul.f32 %v5328, %v5328
      %v5443 = vmul.f32 %v5329, %v5329
      %v5444 = vmul.f32 %v5330, %v5330
      %v5445 = vmul.f32 %v5331, %v5331
      %v5446 = vmul.f32 %v5332, %v5332
      %v5447 = vmul.f32 %v5333, %v5333
      %v5448 = vmul.f32 %v5334, %v5334
      %v5449 = vmul.f32 %v5335, %v5335
      %v5450 = vmul.f32 %v5336, %v5336
      %v5451 = vmul.f32 %v5337, %v5337
      %v5452 = vmul.f32 %v5338, %v5338
      %v5453 = vmul.f32 %v5339, %v5339
      %v5454 = vmul.f32 %v5340, %v5340
      %v5455 = vmul.f32 %v5341, %v5341
      %v5456 = vmul.f32 %v5342, %v5342
      %v5457 = vmul.f32 %v5343, %v5343
      %v5458 = vmul.f32 %v5344, %v5344
      %v5459 = vmul.f32 %v5345, %v5345
      %v5460 = vsel %vm815, %v5424, 0.0
      %v5461 = vsel %vm815, %v5425, 0.0
      %v5462 = vadd.f32 %v5460, %v5461
      %v5463 = vsel %vm815, %v5426, 0.0
      %v5464 = vadd.f32 %v5462, %v5463
      %v5465 = vsel %vm815, %v5427, 0.0
      %v5466 = vadd.f32 %v5464, %v5465
      %v5467 = vsel %vm815, %v5428, 0.0
      %v5468 = vadd.f32 %v5466, %v5467
      %v5469 = vsel %vm815, %v5429, 0.0
      %v5470 = vadd.f32 %v5468, %v5469
      %v5471 = vsel %vm815, %v5430, 0.0
      %v5472 = vadd.f32 %v5470, %v5471
      %v5473 = vsel %vm815, %v5431, 0.0
      %v5474 = vadd.f32 %v5472, %v5473
      %v5475 = vsel %vm815, %v5432, 0.0
      %v5476 = vadd.f32 %v5474, %v5475
      %v5477 = vsel %vm815, %v5433, 0.0
      %v5478 = vadd.f32 %v5476, %v5477
      %v5479 = vsel %vm815, %v5434, 0.0
      %v5480 = vadd.f32 %v5478, %v5479
      %v5481 = vsel %vm815, %v5435, 0.0
      %v5482 = vadd.f32 %v5480, %v5481
      %v5483 = vsel %vm815, %v5436, 0.0
      %v5484 = vadd.f32 %v5482, %v5483
      %v5485 = vsel %vm815, %v5437, 0.0
      %v5486 = vadd.f32 %v5484, %v5485
      %v5487 = vsel %vm815, %v5438, 0.0
      %v5488 = vadd.f32 %v5486, %v5487
      %v5489 = vsel %vm815, %v5439, 0.0
      %v5490 = vadd.f32 %v5488, %v5489
      %v5491 = vsel %vm815, %v5440, 0.0
      %v5492 = vadd.f32 %v5490, %v5491
      %v5493 = vsel %vm815, %v5441, 0.0
      %v5494 = vadd.f32 %v5492, %v5493
      %v5495 = vsel %vm815, %v5442, 0.0
      %v5496 = vadd.f32 %v5494, %v5495
      %v5497 = vsel %vm815, %v5443, 0.0
      %v5498 = vadd.f32 %v5496, %v5497
      %v5499 = vsel %vm815, %v5444, 0.0
      %v5500 = vadd.f32 %v5498, %v5499
      %v5501 = vsel %vm815, %v5445, 0.0
      %v5502 = vadd.f32 %v5500, %v5501
      %v5503 = vsel %vm815, %v5446, 0.0
      %v5504 = vadd.f32 %v5502, %v5503
      %v5505 = vsel %vm815, %v5447, 0.0
      %v5506 = vadd.f32 %v5504, %v5505
      %v5507 = vsel %vm815, %v5448, 0.0
      %v5508 = vadd.f32 %v5506, %v5507
      %v5509 = vsel %vm815, %v5449, 0.0
      %v5510 = vadd.f32 %v5508, %v5509
      %v5511 = vsel %vm815, %v5450, 0.0
      %v5512 = vadd.f32 %v5510, %v5511
      %v5513 = vsel %vm815, %v5451, 0.0
      %v5514 = vadd.f32 %v5512, %v5513
      %v5515 = vsel %vm815, %v5452, 0.0
      %v5516 = vadd.f32 %v5514, %v5515
      %v5517 = vsel %vm815, %v5453, 0.0
      %v5518 = vadd.f32 %v5516, %v5517
      %v5519 = vsel %vm815, %v5454, 0.0
      %v5520 = vadd.f32 %v5518, %v5519
      %v5521 = vsel %vm815, %v5455, 0.0
      %v5522 = vadd.f32 %v5520, %v5521
      %v5523 = vsel %vm815, %v5456, 0.0
      %v5524 = vadd.f32 %v5522, %v5523
      %v5525 = vsel %vm815, %v5457, 0.0
      %v5526 = vadd.f32 %v5524, %v5525
      %v5527 = vsel %vm815, %v5458, 0.0
      %v5528 = vadd.f32 %v5526, %v5527
      %v5529 = vsel %vm815, %v5459, 0.0
      %v5530 = vadd.f32 %v5528, %v5529
      %v5531 = vrot.slane %v5530, 4
      %v5532 = vadd.f32 %v5530, %v5531
      %v5533 = vrot.slane %v5532, 2
      %v5534 = vadd.f32 %v5532, %v5533
      %v5535 = vrot.slane %v5534, 1
      %v5536 = vadd.f32 %v5534, %v5535
      %5537 = vst.msk [vmem:[%s208 + $0x1] sm:$0x1] %vm286, %v5536
      %v5538 = vpack.c.bf16 %v5310, %v5310
      %v5539 = vpack.c.bf16 %v5311, %v5311
      %v5540 = vpack.c.bf16 %v5312, %v5312
      %v5541 = vpack.c.bf16 %v5313, %v5313
      %v5542 = vpack.c.bf16 %v5314, %v5314
      %v5543 = vpack.c.bf16 %v5315, %v5315
      %v5544 = vpack.c.bf16 %v5316, %v5316
      %v5545 = vpack.c.bf16 %v5317, %v5317
      %v5546 = vpack.c.bf16 %v5318, %v5318
      %v5547 = vpack.c.bf16 %v5319, %v5319
      %v5548 = vpack.c.bf16 %v5320, %v5320
      %v5549 = vpack.c.bf16 %v5321, %v5321
      %v5550 = vpack.c.bf16 %v5322, %v5322
      %v5551 = vpack.c.bf16 %v5323, %v5323
      %v5552 = vpack.c.bf16 %v5324, %v5324
      %v5553 = vpack.c.bf16 %v5325, %v5325
      %v5554 = vpack.c.bf16 %v5326, %v5326
      %v5555 = vpack.c.bf16 %v5327, %v5327
      %v5556 = vpack.c.bf16 %v5328, %v5328
      %v5557 = vpack.c.bf16 %v5329, %v5329
      %v5558 = vpack.c.bf16 %v5330, %v5330
      %v5559 = vpack.c.bf16 %v5331, %v5331
      %v5560 = vpack.c.bf16 %v5332, %v5332
      %v5561 = vpack.c.bf16 %v5333, %v5333
      %v5562 = vpack.c.bf16 %v5334, %v5334
      %v5563 = vpack.c.bf16 %v5335, %v5335
      %v5564 = vpack.c.bf16 %v5336, %v5336
      %v5565 = vpack.c.bf16 %v5337, %v5337
      %v5566 = vpack.c.bf16 %v5338, %v5338
      %v5567 = vpack.c.bf16 %v5339, %v5339
      %v5568 = vpack.c.bf16 %v5340, %v5340
      %v5569 = vpack.c.bf16 %v5341, %v5341
      %v5570 = vpack.c.bf16 %v5342, %v5342
      %v5571 = vpack.c.bf16 %v5343, %v5343
      %v5572 = vpack.c.bf16 %v5344, %v5344
      %v5573 = vpack.c.bf16 %v5345, %v5345
      %5574 = vst [vmem:[%s204] sm:$0xf] %v5538
      %5575 = vst [vmem:[%s204 + $0x4] sm:$0xf] %v5539
      %5576 = vst [vmem:[%s204 + $0x8] sm:$0xf] %v5540
      %5577 = vst [vmem:[%s204 + $0xc] sm:$0xf] %v5541
      %5578 = vst [vmem:[%s204 + $0x10] sm:$0xf] %v5542
      %5579 = vst [vmem:[%s204 + $0x14] sm:$0xf] %v5543
      %5580 = vst [vmem:[%s204 + $0x18] sm:$0xf] %v5544
      %5581 = vst [vmem:[%s204 + $0x1c] sm:$0xf] %v5545
      %5582 = vst [vmem:[%s204 + $0x20] sm:$0xf] %v5546
      %5583 = vst [vmem:[%s204 + $0x24] sm:$0xf] %v5547
      %5584 = vst [vmem:[%s204 + $0x28] sm:$0xf] %v5548
      %5585 = vst [vmem:[%s204 + $0x2c] sm:$0xf] %v5549
      %5586 = vst [vmem:[%s204 + $0x30] sm:$0xf] %v5550
      %5587 = vst [vmem:[%s204 + $0x34] sm:$0xf] %v5551
      %5588 = vst [vmem:[%s204 + $0x38] sm:$0xf] %v5552
      %5589 = vst [vmem:[%s204 + $0x3c] sm:$0xf] %v5553
      %5590 = vst [vmem:[%s204 + $0x40] sm:$0xf] %v5554
      %5591 = vst [vmem:[%s204 + $0x44] sm:$0xf] %v5555
      %5592 = vst [vmem:[%s204 + $0x48] sm:$0xf] %v5556
      %5593 = vst [vmem:[%s204 + $0x4c] sm:$0xf] %v5557
      %5594 = vst [vmem:[%s204 + $0x50] sm:$0xf] %v5558
      %5595 = vst [vmem:[%s204 + $0x54] sm:$0xf] %v5559
      %5596 = vst [vmem:[%s204 + $0x58] sm:$0xf] %v5560
      %5597 = vst [vmem:[%s204 + $0x5c] sm:$0xf] %v5561
      %5598 = vst [vmem:[%s204 + $0x60] sm:$0xf] %v5562
      %5599 = vst [vmem:[%s204 + $0x64] sm:$0xf] %v5563
      %5600 = vst [vmem:[%s204 + $0x68] sm:$0xf] %v5564
      %5601 = vst [vmem:[%s204 + $0x6c] sm:$0xf] %v5565
      %5602 = vst [vmem:[%s204 + $0x70] sm:$0xf] %v5566
      %5603 = vst [vmem:[%s204 + $0x74] sm:$0xf] %v5567
      %5604 = vst [vmem:[%s204 + $0x78] sm:$0xf] %v5568
      %5605 = vst [vmem:[%s204 + $0x7c] sm:$0xf] %v5569
      %5606 = vst [vmem:[%s204 + $0x80] sm:$0xf] %v5570
      %5607 = vst [vmem:[%s204 + $0x84] sm:$0xf] %v5571
      %5608 = vst [vmem:[%s204 + $0x88] sm:$0xf] %v5572
      %5609 = vst [vmem:[%s204 + $0x8c] sm:$0xf] %v5573
      %p5610 = scmp.lt.s32.totalorder %s16, 1
      %s5611 = scalar_select %p5610, %s16, 1
      %s5612 = smul.addr %s5611, 36
      %s5613 = smul.addr %s5612, 4
      %s5614 = scalar_lea.vmem %s3, %s5613
      %p5615 = scmp.lt.s32.totalorder %s16, 1
      %s5616 = scalar_select %p5615, %s16, 1
      %s5617 = smul.addr %s5616, 2
      %s5618 = scalar_lea.vmem %s4, %s5617
      // Predicated region
      $region33: #{resblock_forward.3} parent=31 // pred_check
        %p5619 = pneg %p102
      $region34: #{resblock_forward.3} parent=31 // pred_check_branch
        %5621 = sbr.rel (%p5619) target = $region36
      $region35: #{resblock_forward.3} parent=31 // pred_region
        _
      $region36: #{resblock_forward.3} parent=31 // pred_fallthru
        _
      // Predicated region
      $region37: #{resblock_forward.3} parent=31 // pred_check
        %p5622 = pneg %p128
      $region38: #{resblock_forward.3} parent=31 // pred_check_branch
        %5624 = sbr.rel (%p5622) target = $region40
      $region39: #{resblock_forward.3} parent=31 // pred_region
        _
      $region40: #{resblock_forward.3} parent=31 // pred_fallthru
        _
    $region32: #{resblock_forward.3} parent=5 // pred_fallthru
      _
    %p5625 = scmp.le.s32.totalorder 2, %s11
    // Predicated region
    $region41: #{resblock_forward.3} parent=5 // pred_check
      %p5626 = pneg %p5625
    $region42: #{resblock_forward.3} parent=5 // pred_check_branch
      %5628 = sbr.rel (%p5626) target = $region44
    $region43: #{resblock_forward.3} parent=5 // pred_region
      %s5629 = ssub.s32 %s11, 2
      // Predicated region
      $region45: #{resblock_forward.3} parent=43 // pred_check
        %p5630 = pneg %p108
      $region46: #{resblock_forward.3} parent=43 // pred_check_branch
        %5632 = sbr.rel (%p5630) target = $region48
      $region47: #{resblock_forward.3} parent=43 // pred_region
        %p5633 = scmp.lt.s32.totalorder %s17, 1
        %s5634 = scalar_select %p5633, %s17, 1
        %s5635 = smul.addr %s5634, 36
        %s5636 = smul.addr %s5635, 4
        %s5637 = scalar_lea.vmem %s3, %s5636
      $region48: #{resblock_forward.3} parent=43 // pred_fallthru
        _
      // Predicated region
      $region49: #{resblock_forward.3} parent=43 // pred_check
        %p5638 = pneg %p134
      $region50: #{resblock_forward.3} parent=43 // pred_check_branch
        %5640 = sbr.rel (%p5638) target = $region52
      $region51: #{resblock_forward.3} parent=43 // pred_region
        %p5641 = scmp.lt.s32.totalorder %s17, 1
        %s5642 = scalar_select %p5641, %s17, 1
        %s5643 = smul.addr %s5642, 2
        %s5644 = scalar_lea.vmem %s4, %s5643
      $region52: #{resblock_forward.3} parent=43 // pred_fallthru
        _
    $region44: #{resblock_forward.3} parent=5 // pred_fallthru
      _
  $region6: #{resblock_forward.3} parent=0 // loop_footer
    %s15 = sadd.s32 1, %s11
  $region7: #{resblock_forward.3} parent=0 // loop_footer_branch
    %10 = sbr.rel target = $region3
  $region8: #{resblock_forward.3} parent=0 // loop_exit
    _

// kernel: resblock_forward.4
$region0: #{resblock_forward.4}
  #allocation0 [shape = 'u32[]', space=smem, size = 0x4, offset = 0x4, fixed_abs, tag = 'smem constant byte address 0x4 - core index']
  #allocation1 [shape = 'u32[72,128]{1,0:T(1,128)}', space=vmem, size = 0x9000, scoped, tag = 'internal scratch']
  #allocation2 [shape = 'bf16[344,8]{1,0:T(8,128)(2,1)}', space=vmem, size = 0x15800, scoped, tag = 'scratch operand']
  #allocation3 [shape = 'f32[288,128]{1,0:T(8,128)}', space=vmem, size = 0x24000, scoped, tag = 'scratch operand']
  %s0 = inlined_call_operand.vmem [shape: bf16[2,288,128], index: 0, kind: input, shape index: {}]
  %s1 = inlined_call_operand.vmem [shape: f32[288,1], index: 1, kind: input, shape index: {}]
  %s2 = inlined_call_operand.vmem [shape: f32[1,8], index: 2, kind: input, shape index: {}]
  %s3 = inlined_call_operand.vmem [shape: f32[1,8], index: 3, kind: input, shape index: {}]
  %s4 = inlined_call_operand.vmem [shape: bf16[9,8,128], index: 4, kind: input, shape index: {}]
  %s5 = inlined_call_operand.vmem [shape: bf16[2,288,128], index: 5, kind: output, shape index: {0}]
  %s6 = inlined_call_operand.vmem [shape: f32[2,2,8], index: 6, kind: output, shape index: {1}]
  %7 = xla_tuple %s5, %s6
  %s8 = sld [smem:[#allocation0]]
  $region61: #{resblock_forward.4} parent=0
    _
  %s10 = ssub.s32 1, %s8
  %s11 = scalar_select 0, %s10, %s8
  loop: start=0, step=1, limit=4
  $region2: #{resblock_forward.4} parent=0 // loop_pre_header
    _
  $region3: #{resblock_forward.4} parent=0 // loop_header
    %s13 = sphi 0, %s17
    %p14 = scmp.ge.s32.totalorder %s13, 4
    %s23 = sphi 0, %s25
    %s26 = sphi 0, %s23
    %s27 = sphi 0, %s26
    %s43 = sphi 0, %s27
    %s47 = sphi 0, %s47
    %s49 = sphi 0, %s47
    %s50 = sphi 0, %s49
    %s64 = sphi 0, %s50
    %s68 = sphi 0, %s68
    %s70 = sphi 0, %s68
    %s71 = sphi 0, %s70
    %s85 = sphi 0, %s71
    %s89 = sphi 0, %s89
    %s91 = sphi 0, %s89
    %s92 = sphi 0, %s91
    %s106 = sphi 0, %s92
    %s110 = sphi 0, %s110
    %s112 = sphi 0, %s110
    %s113 = sphi 0, %s112
    %s127 = sphi 0, %s113
    %s133 = sphi 0, %s135
    %s136 = sphi 0, %s133
    %s137 = sphi 0, %s136
    %s153 = sphi 0, %s137
    %s159 = sphi 0, %s161
    %s162 = sphi 0, %s159
    %s163 = sphi 0, %s162
    %s179 = sphi 0, %s163
  $region4: #{resblock_forward.4} parent=0 // loop_header_branch
    %16 = sbr.rel (%p14) target = $region8
  $region5: #{resblock_forward.4} parent=0 // loop_body
    %s18 = ssub.s32 %s13, 1
    %s19 = ssub.s32 %s13, 2
    %s20 = sadd.s32 %s13, 1
    %s21 = ssub.s32 %s13, %s20
    %p22 = scmp.eq.s32.totalorder %s21, 0
    %s24 = sadd.s32 %s23, 1
    %s25 = scalar_select %p22, %s23, %s24
    %p28 = pneg %p22
    %p29 = scmp.eq.s32.totalorder %s13, 1
    %p30 = por %p28, %p29
    %p31 = scmp.ne.s32.totalorder %s23, %s26
    %p32 = scmp.eq.s32.totalorder %s13, 0
    %p33 = por %p31, %p32
    %p34 = scmp.ne.s32.totalorder %s23, %s26
    %p35 = scmp.eq.s32.totalorder %s18, 1
    %p36 = por %p34, %p35
    %p37 = scmp.ne.s32.totalorder %s26, %s27
    %p38 = scmp.eq.s32.totalorder %s18, 0
    %p39 = por %p37, %p38
    %p40 = scmp.ne.s32.totalorder %s26, %s27
    %p41 = scmp.eq.s32.totalorder %s19, 1
    %p42 = por %p40, %p41
    %p44 = scmp.ne.s32.totalorder %s27, %s43
    %p45 = scmp.eq.s32.totalorder %s19, 0
    %p46 = por %p44, %p45
    %s48 = sadd.s32 %s47, 1
    %p51 = scmp.eq.s32.totalorder %s13, 1
    %p52 = scmp.ne.s32.totalorder %s47, %s49
    %p53 = scmp.eq.s32.totalorder %s13, 0
    %p54 = por %p52, %p53
    %p55 = scmp.ne.s32.totalorder %s47, %s49
    %p56 = scmp.eq.s32.totalorder %s18, 1
    %p57 = por %p55, %p56
    %p58 = scmp.ne.s32.totalorder %s49, %s50
    %p59 = scmp.eq.s32.totalorder %s18, 0
    %p60 = por %p58, %p59
    %p61 = scmp.ne.s32.totalorder %s49, %s50
    %p62 = scmp.eq.s32.totalorder %s19, 1
    %p63 = por %p61, %p62
    %p65 = scmp.ne.s32.totalorder %s50, %s64
    %p66 = scmp.eq.s32.totalorder %s19, 0
    %p67 = por %p65, %p66
    %s69 = sadd.s32 %s68, 1
    %p72 = scmp.eq.s32.totalorder %s13, 1
    %p73 = scmp.ne.s32.totalorder %s68, %s70
    %p74 = scmp.eq.s32.totalorder %s13, 0
    %p75 = por %p73, %p74
    %p76 = scmp.ne.s32.totalorder %s68, %s70
    %p77 = scmp.eq.s32.totalorder %s18, 1
    %p78 = por %p76, %p77
    %p79 = scmp.ne.s32.totalorder %s70, %s71
    %p80 = scmp.eq.s32.totalorder %s18, 0
    %p81 = por %p79, %p80
    %p82 = scmp.ne.s32.totalorder %s70, %s71
    %p83 = scmp.eq.s32.totalorder %s19, 1
    %p84 = por %p82, %p83
    %p86 = scmp.ne.s32.totalorder %s71, %s85
    %p87 = scmp.eq.s32.totalorder %s19, 0
    %p88 = por %p86, %p87
    %s90 = sadd.s32 %s89, 1
    %p93 = scmp.eq.s32.totalorder %s13, 1
    %p94 = scmp.ne.s32.totalorder %s89, %s91
    %p95 = scmp.eq.s32.totalorder %s13, 0
    %p96 = por %p94, %p95
    %p97 = scmp.ne.s32.totalorder %s89, %s91
    %p98 = scmp.eq.s32.totalorder %s18, 1
    %p99 = por %p97, %p98
    %p100 = scmp.ne.s32.totalorder %s91, %s92
    %p101 = scmp.eq.s32.totalorder %s18, 0
    %p102 = por %p100, %p101
    %p103 = scmp.ne.s32.totalorder %s91, %s92
    %p104 = scmp.eq.s32.totalorder %s19, 1
    %p105 = por %p103, %p104
    %p107 = scmp.ne.s32.totalorder %s92, %s106
    %p108 = scmp.eq.s32.totalorder %s19, 0
    %p109 = por %p107, %p108
    %s111 = sadd.s32 %s110, 1
    %p114 = scmp.eq.s32.totalorder %s13, 1
    %p115 = scmp.ne.s32.totalorder %s110, %s112
    %p116 = scmp.eq.s32.totalorder %s13, 0
    %p117 = por %p115, %p116
    %p118 = scmp.ne.s32.totalorder %s110, %s112
    %p119 = scmp.eq.s32.totalorder %s18, 1
    %p120 = por %p118, %p119
    %p121 = scmp.ne.s32.totalorder %s112, %s113
    %p122 = scmp.eq.s32.totalorder %s18, 0
    %p123 = por %p121, %p122
    %p124 = scmp.ne.s32.totalorder %s112, %s113
    %p125 = scmp.eq.s32.totalorder %s19, 1
    %p126 = por %p124, %p125
    %p128 = scmp.ne.s32.totalorder %s113, %s127
    %p129 = scmp.eq.s32.totalorder %s19, 0
    %p130 = por %p128, %p129
    %s131 = ssub.s32 %s13, %s20
    %p132 = scmp.eq.s32.totalorder %s131, 0
    %s134 = sadd.s32 %s133, 1
    %s135 = scalar_select %p132, %s133, %s134
    %p138 = pneg %p132
    %p139 = scmp.eq.s32.totalorder %s13, 1
    %p140 = por %p138, %p139
    %p141 = scmp.ne.s32.totalorder %s133, %s136
    %p142 = scmp.eq.s32.totalorder %s13, 0
    %p143 = por %p141, %p142
    %p144 = scmp.ne.s32.totalorder %s133, %s136
    %p145 = scmp.eq.s32.totalorder %s18, 1
    %p146 = por %p144, %p145
    %p147 = scmp.ne.s32.totalorder %s136, %s137
    %p148 = scmp.eq.s32.totalorder %s18, 0
    %p149 = por %p147, %p148
    %p150 = scmp.ne.s32.totalorder %s136, %s137
    %p151 = scmp.eq.s32.totalorder %s19, 1
    %p152 = por %p150, %p151
    %p154 = scmp.ne.s32.totalorder %s137, %s153
    %p155 = scmp.eq.s32.totalorder %s19, 0
    %p156 = por %p154, %p155
    %s157 = ssub.s32 %s13, %s20
    %p158 = scmp.eq.s32.totalorder %s157, 0
    %s160 = sadd.s32 %s159, 1
    %s161 = scalar_select %p158, %s159, %s160
    %p164 = pneg %p158
    %p165 = scmp.eq.s32.totalorder %s13, 1
    %p166 = por %p164, %p165
    %p167 = scmp.ne.s32.totalorder %s159, %s162
    %p168 = scmp.eq.s32.totalorder %s13, 0
    %p169 = por %p167, %p168
    %p170 = scmp.ne.s32.totalorder %s159, %s162
    %p171 = scmp.eq.s32.totalorder %s18, 1
    %p172 = por %p170, %p171
    %p173 = scmp.ne.s32.totalorder %s162, %s163
    %p174 = scmp.eq.s32.totalorder %s18, 0
    %p175 = por %p173, %p174
    %p176 = scmp.ne.s32.totalorder %s162, %s163
    %p177 = scmp.eq.s32.totalorder %s19, 1
    %p178 = por %p176, %p177
    %p180 = scmp.ne.s32.totalorder %s163, %s179
    %p181 = scmp.eq.s32.totalorder %s19, 0
    %p182 = por %p180, %p181
    %p183 = scmp.le.s32.totalorder 1, %s13
    %p184 = scmp.lt.s32.totalorder %s13, 3
    %p185 = pnand %p183, %p184
    %p186 = pneg %p185
    // Predicated region
    $region9: #{resblock_forward.4} parent=5 // pred_check
      _
    $region10: #{resblock_forward.4} parent=5 // pred_check_branch
      %188 = sbr.rel (%p185) target = $region12
    $region11: #{resblock_forward.4} parent=5 // pred_region
      %s189 = ssub.s32 %s13, 1
      // Predicated region
      $region13: #{resblock_forward.4} parent=11 // pred_check
        %p190 = pneg %p60
      $region14: #{resblock_forward.4} parent=11 // pred_check_branch
        %192 = sbr.rel (%p190) target = $region16
      $region15: #{resblock_forward.4} parent=11 // pred_region
        _
      $region16: #{resblock_forward.4} parent=11 // pred_fallthru
        _
      // Predicated region
      $region17: #{resblock_forward.4} parent=11 // pred_check
        %p193 = pneg %p81
      $region18: #{resblock_forward.4} parent=11 // pred_check_branch
        %195 = sbr.rel (%p193) target = $region20
      $region19: #{resblock_forward.4} parent=11 // pred_region
        _
      $region20: #{resblock_forward.4} parent=11 // pred_fallthru
        _
      // Predicated region
      $region21: #{resblock_forward.4} parent=11 // pred_check
        %p196 = pneg %p102
      $region22: #{resblock_forward.4} parent=11 // pred_check_branch
        %198 = sbr.rel (%p196) target = $region24
      $region23: #{resblock_forward.4} parent=11 // pred_region
        _
      $region24: #{resblock_forward.4} parent=11 // pred_fallthru
        _
      // Predicated region
      $region25: #{resblock_forward.4} parent=11 // pred_check
        %p199 = pneg %p123
      $region26: #{resblock_forward.4} parent=11 // pred_check_branch
        %201 = sbr.rel (%p199) target = $region28
      $region27: #{resblock_forward.4} parent=11 // pred_region
        _
      $region28: #{resblock_forward.4} parent=11 // pred_fallthru
        _
    $region12: #{resblock_forward.4} parent=5 // pred_fallthru
      _
    %p202 = scmp.lt.s32.totalorder %s13, 2
    // Predicated region
    $region29: #{resblock_forward.4} parent=5 // pred_check
      %p203 = pneg %p202
    $region30: #{resblock_forward.4} parent=5 // pred_check_branch
      %205 = sbr.rel (%p203) target = $region32
    $region31: #{resblock_forward.4} parent=5 // pred_region
      // Predicated region
      $region33: #{resblock_forward.4} parent=31 // pred_check
        %p206 = pneg %p33
      $region34: #{resblock_forward.4} parent=31 // pred_check_branch
        %208 = sbr.rel (%p206) target = $region36
      $region35: #{resblock_forward.4} parent=31 // pred_region
        %p209 = scmp.lt.s32.totalorder %s13, 1
        %s210 = scalar_select %p209, %s13, 1
        %s211 = smul.addr %s210, 36
        %s212 = smul.addr %s211, 4
        %s213 = scalar_lea.vmem %s0, %s212
      $region36: #{resblock_forward.4} parent=31 // pred_fallthru
        _
    $region32: #{resblock_forward.4} parent=5 // pred_fallthru
      _
    %p214 = scmp.le.s32.totalorder 1, %s13
    %p215 = scmp.lt.s32.totalorder %s13, 3
    %p216 = pnand %p214, %p215
    %p217 = pneg %p216
    // Predicated region
    $region37: #{resblock_forward.4} parent=5 // pred_check
      _
    $region38: #{resblock_forward.4} parent=5 // pred_check_branch
      %219 = sbr.rel (%p216) target = $region40
    $region39: #{resblock_forward.4} parent=5 // pred_region
      %s220 = ssub.s32 %s13, 1
      %p221 = scmp.lt.s32.totalorder %s18, 1
      %s222 = scalar_select %p221, %s18, 1
      %s223 = smul.addr %s222, 36
      %s224 = smul.addr %s223, 4
      %s225 = scalar_lea.vmem %s0, %s224
      %p226 = pneg %p39
      %p227 = pneg %p36
      %p228 = pneg %p60
      %p229 = pneg %p57
      %p230 = pneg %p81
      %p231 = pneg %p78
      %p232 = pneg %p102
      %p233 = pneg %p99
      %p234 = pneg %p123
      %p235 = pneg %p120
      %p236 = pneg %p149
      %p237 = pneg %p146
      %p238 = scmp.lt.s32.totalorder %s18, 1
      %s239 = scalar_select %p238, %s18, 1
      %s240 = smul.addr %s239, 36
      %s241 = smul.addr %s240, 4
      %s242 = scalar_lea.vmem %s5, %s241
      %p243 = pneg %p175
      %p244 = pneg %p172
      %p245 = scmp.lt.s32.totalorder %s18, 1
      %s246 = scalar_select %p245, %s18, 1
      %s247 = smul.addr %s246, 2
      %s248 = scalar_lea.vmem %s6, %s247
      %p249 = scmp.lt.s32.totalorder %s18, 1
      %s250 = scalar_select %p249, %s18, 1
      %s251 = smul.addr %s250, 36
      %s252 = smul.addr %s251, 4
      %s253 = scalar_lea.vmem %s0, %s252
      %p254 = scmp.lt.s32.totalorder %s18, 1
      %s255 = scalar_select %p254, %s18, 1
      %s256 = smul.addr %s255, 36
      %s257 = smul.addr %s256, 4
      %s258 = scalar_lea.vmem %s5, %s257
      %p259 = scmp.lt.s32.totalorder %s18, 1
      %s260 = scalar_select %p259, %s18, 1
      %s261 = smul.addr %s260, 2
      %s262 = scalar_lea.vmem %s6, %s261
      %v264 = vld [vmem:[%s253] sm:$0xf]
      %v265 = vld [vmem:[%s253 + $0x4] sm:$0xf]
      %v266 = vld [vmem:[%s253 + $0x8] sm:$0xf]
      %v267 = vld [vmem:[%s253 + $0xc] sm:$0xf]
      %v268 = vld [vmem:[%s253 + $0x10] sm:$0xf]
      %v269 = vld [vmem:[%s253 + $0x14] sm:$0xf]
      %v270 = vld [vmem:[%s253 + $0x18] sm:$0xf]
      %v271 = vld [vmem:[%s253 + $0x1c] sm:$0xf]
      %v272 = vld [vmem:[%s253 + $0x20] sm:$0xf]
      %v273 = vld [vmem:[%s253 + $0x24] sm:$0xf]
      %v274 = vld [vmem:[%s253 + $0x28] sm:$0xf]
      %v275 = vld [vmem:[%s253 + $0x2c] sm:$0xf]
      %v276 = vld [vmem:[%s253 + $0x30] sm:$0xf]
      %v277 = vld [vmem:[%s253 + $0x34] sm:$0xf]
      %v278 = vld [vmem:[%s253 + $0x38] sm:$0xf]
      %v279 = vld [vmem:[%s253 + $0x3c] sm:$0xf]
      %v280 = vld [vmem:[%s253 + $0x40] sm:$0xf]
      %v281 = vld [vmem:[%s253 + $0x44] sm:$0xf]
      %v282 = vld [vmem:[%s253 + $0x48] sm:$0xf]
      %v283 = vld [vmem:[%s253 + $0x4c] sm:$0xf]
      %v284 = vld [vmem:[%s253 + $0x50] sm:$0xf]
      %v285 = vld [vmem:[%s253 + $0x54] sm:$0xf]
      %v286 = vld [vmem:[%s253 + $0x58] sm:$0xf]
      %v287 = vld [vmem:[%s253 + $0x5c] sm:$0xf]
      %v288 = vld [vmem:[%s253 + $0x60] sm:$0xf]
      %v289 = vld [vmem:[%s253 + $0x64] sm:$0xf]
      %v290 = vld [vmem:[%s253 + $0x68] sm:$0xf]
      %v291 = vld [vmem:[%s253 + $0x6c] sm:$0xf]
      %v292 = vld [vmem:[%s253 + $0x70] sm:$0xf]
      %v293 = vld [vmem:[%s253 + $0x74] sm:$0xf]
      %v294 = vld [vmem:[%s253 + $0x78] sm:$0xf]
      %v295 = vld [vmem:[%s253 + $0x7c] sm:$0xf]
      %v296 = vld [vmem:[%s253 + $0x80] sm:$0xf]
      %v297 = vld [vmem:[%s253 + $0x84] sm:$0xf]
      %v298 = vld [vmem:[%s253 + $0x88] sm:$0xf]
      %v299 = vld [vmem:[%s253 + $0x8c] sm:$0xf]
      %v300 = vunpack.c.l.bf16 %v264
      %v301 = vunpack.c.l.bf16 %v265
      %v302 = vunpack.c.l.bf16 %v266
      %v303 = vunpack.c.l.bf16 %v267
      %v304 = vunpack.c.l.bf16 %v268
      %v305 = vunpack.c.l.bf16 %v269
      %v306 = vunpack.c.l.bf16 %v270
      %v307 = vunpack.c.l.bf16 %v271
      %v308 = vunpack.c.l.bf16 %v272
      %v309 = vunpack.c.l.bf16 %v273
      %v310 = vunpack.c.l.bf16 %v274
      %v311 = vunpack.c.l.bf16 %v275
      %v312 = vunpack.c.l.bf16 %v276
      %v313 = vunpack.c.l.bf16 %v277
      %v314 = vunpack.c.l.bf16 %v278
      %v315 = vunpack.c.l.bf16 %v279
      %v316 = vunpack.c.l.bf16 %v280
      %v317 = vunpack.c.l.bf16 %v281
      %v318 = vunpack.c.l.bf16 %v282
      %v319 = vunpack.c.l.bf16 %v283
      %v320 = vunpack.c.l.bf16 %v284
      %v321 = vunpack.c.l.bf16 %v285
      %v322 = vunpack.c.l.bf16 %v286
      %v323 = vunpack.c.l.bf16 %v287
      %v324 = vunpack.c.l.bf16 %v288
      %v325 = vunpack.c.l.bf16 %v289
      %v326 = vunpack.c.l.bf16 %v290
      %v327 = vunpack.c.l.bf16 %v291
      %v328 = vunpack.c.l.bf16 %v292
      %v329 = vunpack.c.l.bf16 %v293
      %v330 = vunpack.c.l.bf16 %v294
      %v331 = vunpack.c.l.bf16 %v295
      %v332 = vunpack.c.l.bf16 %v296
      %v333 = vunpack.c.l.bf16 %v297
      %v334 = vunpack.c.l.bf16 %v298
      %v335 = vunpack.c.l.bf16 %v299
      %v336 = vld [vmem:[%s2] sm:$0x1]
      %v338 = vperm.slane %v336, 0
      %v340 = vmul.f32 %v300, %v338
      %v341 = vmul.f32 %v301, %v338
      %v342 = vmul.f32 %v302, %v338
      %v343 = vmul.f32 %v303, %v338
      %v344 = vmul.f32 %v304, %v338
      %v345 = vmul.f32 %v305, %v338
      %v346 = vmul.f32 %v306, %v338
      %v347 = vmul.f32 %v307, %v338
      %v348 = vmul.f32 %v308, %v338
      %v349 = vmul.f32 %v309, %v338
      %v350 = vmul.f32 %v310, %v338
      %v351 = vmul.f32 %v311, %v338
      %v352 = vmul.f32 %v312, %v338
      %v353 = vmul.f32 %v313, %v338
      %v354 = vmul.f32 %v314, %v338
      %v355 = vmul.f32 %v315, %v338
      %v356 = vmul.f32 %v316, %v338
      %v357 = vmul.f32 %v317, %v338
      %v358 = vmul.f32 %v318, %v338
      %v359 = vmul.f32 %v319, %v338
      %v360 = vmul.f32 %v320, %v338
      %v361 = vmul.f32 %v321, %v338
      %v362 = vmul.f32 %v322, %v338
      %v363 = vmul.f32 %v323, %v338
      %v364 = vmul.f32 %v324, %v338
      %v365 = vmul.f32 %v325, %v338
      %v366 = vmul.f32 %v326, %v338
      %v367 = vmul.f32 %v327, %v338
      %v368 = vmul.f32 %v328, %v338
      %v369 = vmul.f32 %v329, %v338
      %v370 = vmul.f32 %v330, %v338
      %v371 = vmul.f32 %v331, %v338
      %v372 = vmul.f32 %v332, %v338
      %v373 = vmul.f32 %v333, %v338
      %v374 = vmul.f32 %v334, %v338
      %v375 = vmul.f32 %v335, %v338
      %v376 = vld [vmem:[%s3] sm:$0x1]
      %v378 = vperm.slane %v376, 0
      %v380 = vadd.f32 %v340, %v378
      %v381 = vadd.f32 %v341, %v378
      %v382 = vadd.f32 %v342, %v378
      %v383 = vadd.f32 %v343, %v378
      %v384 = vadd.f32 %v344, %v378
      %v385 = vadd.f32 %v345, %v378
      %v386 = vadd.f32 %v346, %v378
      %v387 = vadd.f32 %v347, %v378
      %v388 = vadd.f32 %v348, %v378
      %v389 = vadd.f32 %v349, %v378
      %v390 = vadd.f32 %v350, %v378
      %v391 = vadd.f32 %v351, %v378
      %v392 = vadd.f32 %v352, %v378
      %v393 = vadd.f32 %v353, %v378
      %v394 = vadd.f32 %v354, %v378
      %v395 = vadd.f32 %v355, %v378
      %v396 = vadd.f32 %v356, %v378
      %v397 = vadd.f32 %v357, %v378
      %v398 = vadd.f32 %v358, %v378
      %v399 = vadd.f32 %v359, %v378
      %v400 = vadd.f32 %v360, %v378
      %v401 = vadd.f32 %v361, %v378
      %v402 = vadd.f32 %v362, %v378
      %v403 = vadd.f32 %v363, %v378
      %v404 = vadd.f32 %v364, %v378
      %v405 = vadd.f32 %v365, %v378
      %v406 = vadd.f32 %v366, %v378
      %v407 = vadd.f32 %v367, %v378
      %v408 = vadd.f32 %v368, %v378
      %v409 = vadd.f32 %v369, %v378
      %v410 = vadd.f32 %v370, %v378
      %v411 = vadd.f32 %v371, %v378
      %v412 = vadd.f32 %v372, %v378
      %v413 = vadd.f32 %v373, %v378
      %v414 = vadd.f32 %v374, %v378
      %v415 = vadd.f32 %v375, %v378
      %v416 = vmax.f32 %v380, 0.0
      %v417 = vmax.f32 %v381, 0.0
      %v418 = vmax.f32 %v382, 0.0
      %v419 = vmax.f32 %v383, 0.0
      %v420 = vmax.f32 %v384, 0.0
      %v421 = vmax.f32 %v385, 0.0
      %v422 = vmax.f32 %v386, 0.0
      %v423 = vmax.f32 %v387, 0.0
      %v424 = vmax.f32 %v388, 0.0
      %v425 = vmax.f32 %v389, 0.0
      %v426 = vmax.f32 %v390, 0.0
      %v427 = vmax.f32 %v391, 0.0
      %v428 = vmax.f32 %v392, 0.0
      %v429 = vmax.f32 %v393, 0.0
      %v430 = vmax.f32 %v394, 0.0
      %v431 = vmax.f32 %v395, 0.0
      %v432 = vmax.f32 %v396, 0.0
      %v433 = vmax.f32 %v397, 0.0
      %v434 = vmax.f32 %v398, 0.0
      %v435 = vmax.f32 %v399, 0.0
      %v436 = vmax.f32 %v400, 0.0
      %v437 = vmax.f32 %v401, 0.0
      %v438 = vmax.f32 %v402, 0.0
      %v439 = vmax.f32 %v403, 0.0
      %v440 = vmax.f32 %v404, 0.0
      %v441 = vmax.f32 %v405, 0.0
      %v442 = vmax.f32 %v406, 0.0
      %v443 = vmax.f32 %v407, 0.0
      %v444 = vmax.f32 %v408, 0.0
      %v445 = vmax.f32 %v409, 0.0
      %v446 = vmax.f32 %v410, 0.0
      %v447 = vmax.f32 %v411, 0.0
      %v448 = vmax.f32 %v412, 0.0
      %v449 = vmax.f32 %v413, 0.0
      %v450 = vmax.f32 %v414, 0.0
      %v451 = vmax.f32 %v415, 0.0
      %v452 = vld [vmem:[%s1] sm:$0xff]
      %v453 = vld [vmem:[%s1 + $0x8] sm:$0xff]
      %v454 = vld [vmem:[%s1 + $0x10] sm:$0xff]
      %v455 = vld [vmem:[%s1 + $0x18] sm:$0xff]
      %v456 = vld [vmem:[%s1 + $0x20] sm:$0xff]
      %v457 = vld [vmem:[%s1 + $0x28] sm:$0xff]
      %v458 = vld [vmem:[%s1 + $0x30] sm:$0xff]
      %v459 = vld [vmem:[%s1 + $0x38] sm:$0xff]
      %v460 = vld [vmem:[%s1 + $0x40] sm:$0xff]
      %v461 = vld [vmem:[%s1 + $0x48] sm:$0xff]
      %v462 = vld [vmem:[%s1 + $0x50] sm:$0xff]
      %v463 = vld [vmem:[%s1 + $0x58] sm:$0xff]
      %v464 = vld [vmem:[%s1 + $0x60] sm:$0xff]
      %v465 = vld [vmem:[%s1 + $0x68] sm:$0xff]
      %v466 = vld [vmem:[%s1 + $0x70] sm:$0xff]
      %v467 = vld [vmem:[%s1 + $0x78] sm:$0xff]
      %v468 = vld [vmem:[%s1 + $0x80] sm:$0xff]
      %v469 = vld [vmem:[%s1 + $0x88] sm:$0xff]
      %v470 = vld [vmem:[%s1 + $0x90] sm:$0xff]
      %v471 = vld [vmem:[%s1 + $0x98] sm:$0xff]
      %v472 = vld [vmem:[%s1 + $0xa0] sm:$0xff]
      %v473 = vld [vmem:[%s1 + $0xa8] sm:$0xff]
      %v474 = vld [vmem:[%s1 + $0xb0] sm:$0xff]
      %v475 = vld [vmem:[%s1 + $0xb8] sm:$0xff]
      %v476 = vld [vmem:[%s1 + $0xc0] sm:$0xff]
      %v477 = vld [vmem:[%s1 + $0xc8] sm:$0xff]
      %v478 = vld [vmem:[%s1 + $0xd0] sm:$0xff]
      %v479 = vld [vmem:[%s1 + $0xd8] sm:$0xff]
      %v480 = vld [vmem:[%s1 + $0xe0] sm:$0xff]
      %v481 = vld [vmem:[%s1 + $0xe8] sm:$0xff]
      %v482 = vld [vmem:[%s1 + $0xf0] sm:$0xff]
      %v483 = vld [vmem:[%s1 + $0xf8] sm:$0xff]
      %v484 = vld [vmem:[%s1 + $0x100] sm:$0xff]
      %v485 = vld [vmem:[%s1 + $0x108] sm:$0xff]
      %v486 = vld [vmem:[%s1 + $0x110] sm:$0xff]
      %v487 = vld [vmem:[%s1 + $0x118] sm:$0xff]
      %489 = vset.pattern.permute.xlu0 0
      %490 = vperm.xlu0 %489, %v452
      %v491 = vpop.permute.xlu0 %490
      %494 = vset.pattern.permute.xlu0 0
      %495 = vperm.xlu0 %494, %v453
      %v496 = vpop.permute.xlu0 %495
      %499 = vset.pattern.permute.xlu0 0
      %500 = vperm.xlu0 %499, %v454
      %v501 = vpop.permute.xlu0 %500
      %504 = vset.pattern.permute.xlu0 0
      %505 = vperm.xlu0 %504, %v455
      %v506 = vpop.permute.xlu0 %505
      %509 = vset.pattern.permute.xlu0 0
      %510 = vperm.xlu0 %509, %v456
      %v511 = vpop.permute.xlu0 %510
      %514 = vset.pattern.permute.xlu0 0
      %515 = vperm.xlu0 %514, %v457
      %v516 = vpop.permute.xlu0 %515
      %519 = vset.pattern.permute.xlu0 0
      %520 = vperm.xlu0 %519, %v458
      %v521 = vpop.permute.xlu0 %520
      %524 = vset.pattern.permute.xlu0 0
      %525 = vperm.xlu0 %524, %v459
      %v526 = vpop.permute.xlu0 %525
      %529 = vset.pattern.permute.xlu0 0
      %530 = vperm.xlu0 %529, %v460
      %v531 = vpop.permute.xlu0 %530
      %534 = vset.pattern.permute.xlu0 0
      %535 = vperm.xlu0 %534, %v461
      %v536 = vpop.permute.xlu0 %535
      %539 = vset.pattern.permute.xlu0 0
      %540 = vperm.xlu0 %539, %v462
      %v541 = vpop.permute.xlu0 %540
      %544 = vset.pattern.permute.xlu0 0
      %545 = vperm.xlu0 %544, %v463
      %v546 = vpop.permute.xlu0 %545
      %549 = vset.pattern.permute.xlu0 0
      %550 = vperm.xlu0 %549, %v464
      %v551 = vpop.permute.xlu0 %550
      %554 = vset.pattern.permute.xlu0 0
      %555 = vperm.xlu0 %554, %v465
      %v556 = vpop.permute.xlu0 %555
      %559 = vset.pattern.permute.xlu0 0
      %560 = vperm.xlu0 %559, %v466
      %v561 = vpop.permute.xlu0 %560
      %564 = vset.pattern.permute.xlu0 0
      %565 = vperm.xlu0 %564, %v467
      %v566 = vpop.permute.xlu0 %565
      %569 = vset.pattern.permute.xlu0 0
      %570 = vperm.xlu0 %569, %v468
      %v571 = vpop.permute.xlu0 %570
      %574 = vset.pattern.permute.xlu0 0
      %575 = vperm.xlu0 %574, %v469
      %v576 = vpop.permute.xlu0 %575
      %579 = vset.pattern.permute.xlu0 0
      %580 = vperm.xlu0 %579, %v470
      %v581 = vpop.permute.xlu0 %580
      %584 = vset.pattern.permute.xlu0 0
      %585 = vperm.xlu0 %584, %v471
      %v586 = vpop.permute.xlu0 %585
      %589 = vset.pattern.permute.xlu0 0
      %590 = vperm.xlu0 %589, %v472
      %v591 = vpop.permute.xlu0 %590
      %594 = vset.pattern.permute.xlu0 0
      %595 = vperm.xlu0 %594, %v473
      %v596 = vpop.permute.xlu0 %595
      %599 = vset.pattern.permute.xlu0 0
      %600 = vperm.xlu0 %599, %v474
      %v601 = vpop.permute.xlu0 %600
      %604 = vset.pattern.permute.xlu0 0
      %605 = vperm.xlu0 %604, %v475
      %v606 = vpop.permute.xlu0 %605
      %609 = vset.pattern.permute.xlu0 0
      %610 = vperm.xlu0 %609, %v476
      %v611 = vpop.permute.xlu0 %610
      %614 = vset.pattern.permute.xlu0 0
      %615 = vperm.xlu0 %614, %v477
      %v616 = vpop.permute.xlu0 %615
      %619 = vset.pattern.permute.xlu0 0
      %620 = vperm.xlu0 %619, %v478
      %v621 = vpop.permute.xlu0 %620
      %624 = vset.pattern.permute.xlu0 0
      %625 = vperm.xlu0 %624, %v479
      %v626 = vpop.permute.xlu0 %625
      %629 = vset.pattern.permute.xlu0 0
      %630 = vperm.xlu0 %629, %v480
      %v631 = vpop.permute.xlu0 %630
      %634 = vset.pattern.permute.xlu0 0
      %635 = vperm.xlu0 %634, %v481
      %v636 = vpop.permute.xlu0 %635
      %639 = vset.pattern.permute.xlu0 0
      %640 = vperm.xlu0 %639, %v482
      %v641 = vpop.permute.xlu0 %640
      %644 = vset.pattern.permute.xlu0 0
      %645 = vperm.xlu0 %644, %v483
      %v646 = vpop.permute.xlu0 %645
      %649 = vset.pattern.permute.xlu0 0
      %650 = vperm.xlu0 %649, %v484
      %v651 = vpop.permute.xlu0 %650
      %654 = vset.pattern.permute.xlu0 0
      %655 = vperm.xlu0 %654, %v485
      %v656 = vpop.permute.xlu0 %655
      %659 = vset.pattern.permute.xlu0 0
      %660 = vperm.xlu0 %659, %v486
      %v661 = vpop.permute.xlu0 %660
      %664 = vset.pattern.permute.xlu0 0
      %665 = vperm.xlu0 %664, %v487
      %v666 = vpop.permute.xlu0 %665
      %v668 = vmul.f32 %v416, %v491
      %v669 = vmul.f32 %v417, %v496
      %v670 = vmul.f32 %v418, %v501
      %v671 = vmul.f32 %v419, %v506
      %v672 = vmul.f32 %v420, %v511
      %v673 = vmul.f32 %v421, %v516
      %v674 = vmul.f32 %v422, %v521
      %v675 = vmul.f32 %v423, %v526
      %v676 = vmul.f32 %v424, %v531
      %v677 = vmul.f32 %v425, %v536
      %v678 = vmul.f32 %v426, %v541
      %v679 = vmul.f32 %v427, %v546
      %v680 = vmul.f32 %v428, %v551
      %v681 = vmul.f32 %v429, %v556
      %v682 = vmul.f32 %v430, %v561
      %v683 = vmul.f32 %v431, %v566
      %v684 = vmul.f32 %v432, %v571
      %v685 = vmul.f32 %v433, %v576
      %v686 = vmul.f32 %v434, %v581
      %v687 = vmul.f32 %v435, %v586
      %v688 = vmul.f32 %v436, %v591
      %v689 = vmul.f32 %v437, %v596
      %v690 = vmul.f32 %v438, %v601
      %v691 = vmul.f32 %v439, %v606
      %v692 = vmul.f32 %v440, %v611
      %v693 = vmul.f32 %v441, %v616
      %v694 = vmul.f32 %v442, %v621
      %v695 = vmul.f32 %v443, %v626
      %v696 = vmul.f32 %v444, %v631
      %v697 = vmul.f32 %v445, %v636
      %v698 = vmul.f32 %v446, %v641
      %v699 = vmul.f32 %v447, %v646
      %v700 = vmul.f32 %v448, %v651
      %v701 = vmul.f32 %v449, %v656
      %v702 = vmul.f32 %v450, %v661
      %v703 = vmul.f32 %v451, %v666
      %v704 = vpack.c.bf16 %v668, %v668
      %v705 = vpack.c.bf16 %v669, %v669
      %v706 = vpack.c.bf16 %v670, %v670
      %v707 = vpack.c.bf16 %v671, %v671
      %v708 = vpack.c.bf16 %v672, %v672
      %v709 = vpack.c.bf16 %v673, %v673
      %v710 = vpack.c.bf16 %v674, %v674
      %v711 = vpack.c.bf16 %v675, %v675
      %v712 = vpack.c.bf16 %v676, %v676
      %v713 = vpack.c.bf16 %v677, %v677
      %v714 = vpack.c.bf16 %v678, %v678
      %v715 = vpack.c.bf16 %v679, %v679
      %v716 = vpack.c.bf16 %v680, %v680
      %v717 = vpack.c.bf16 %v681, %v681
      %v718 = vpack.c.bf16 %v682, %v682
      %v719 = vpack.c.bf16 %v683, %v683
      %v720 = vpack.c.bf16 %v684, %v684
      %v721 = vpack.c.bf16 %v685, %v685
      %v722 = vpack.c.bf16 %v686, %v686
      %v723 = vpack.c.bf16 %v687, %v687
      %v724 = vpack.c.bf16 %v688, %v688
      %v725 = vpack.c.bf16 %v689, %v689
      %v726 = vpack.c.bf16 %v690, %v690
      %v727 = vpack.c.bf16 %v691, %v691
      %v728 = vpack.c.bf16 %v692, %v692
      %v729 = vpack.c.bf16 %v693, %v693
      %v730 = vpack.c.bf16 %v694, %v694
      %v731 = vpack.c.bf16 %v695, %v695
      %v732 = vpack.c.bf16 %v696, %v696
      %v733 = vpack.c.bf16 %v697, %v697
      %v734 = vpack.c.bf16 %v698, %v698
      %v735 = vpack.c.bf16 %v699, %v699
      %v736 = vpack.c.bf16 %v700, %v700
      %v737 = vpack.c.bf16 %v701, %v701
      %v738 = vpack.c.bf16 %v702, %v702
      %v739 = vpack.c.bf16 %v703, %v703
      %vm740 = vcmask 60416
      %741 = vst.msk [vmem:[#allocation2] sm:$0xf] %vm740, 0
      %742 = vst.msk [vmem:[#allocation2 + $0x4] sm:$0xf] %vm740, 0
      %743 = vst.msk [vmem:[#allocation2 + $0x8] sm:$0xf] %vm740, 0
      %vm744 = vcmask 57344
      %745 = vst.msk [vmem:[#allocation2 + $0xc] sm:$0x1] %vm744, 0
      %vm782 = vcmask 1040384
      %vm783 = vcmask 1044484
      %vm784 = vmor %vm782, %vm783
      %v785 = vrot.slane %v704, 7
      %v786 = vrot.slane %v785, 4
      %v787 = vrot.slane %v705, 7
      %v788 = vsel %vm784, %v786, %v787
      %v789 = vrot.slane %v787, 4
      %v790 = vrot.slane %v706, 7
      %v791 = vsel %vm784, %v789, %v790
      %v792 = vrot.slane %v790, 4
      %v793 = vrot.slane %v707, 7
      %v794 = vsel %vm784, %v792, %v793
      %v795 = vrot.slane %v793, 4
      %v796 = vrot.slane %v708, 7
      %v797 = vsel %vm784, %v795, %v796
      %v798 = vrot.slane %v796, 4
      %v799 = vrot.slane %v709, 7
      %v800 = vsel %vm784, %v798, %v799
      %v801 = vrot.slane %v799, 4
      %v802 = vrot.slane %v710, 7
      %v803 = vsel %vm784, %v801, %v802
      %v804 = vrot.slane %v802, 4
      %v805 = vrot.slane %v711, 7
      %v806 = vsel %vm784, %v804, %v805
      %v807 = vrot.slane %v805, 4
      %v808 = vrot.slane %v712, 7
      %v809 = vsel %vm784, %v807, %v808
      %v810 = vrot.slane %v808, 4
      %v811 = vrot.slane %v713, 7
      %v812 = vsel %vm784, %v810, %v811
      %v813 = vrot.slane %v811, 4
      %v814 = vrot.slane %v714, 7
      %v815 = vsel %vm784, %v813, %v814
      %v816 = vrot.slane %v814, 4
      %v817 = vrot.slane %v715, 7
      %v818 = vsel %vm784, %v816, %v817
      %v819 = vrot.slane %v817, 4
      %v820 = vrot.slane %v716, 7
      %v821 = vsel %vm784, %v819, %v820
      %v822 = vrot.slane %v820, 4
      %v823 = vrot.slane %v717, 7
      %v824 = vsel %vm784, %v822, %v823
      %v825 = vrot.slane %v823, 4
      %v826 = vrot.slane %v718, 7
      %v827 = vsel %vm784, %v825, %v826
      %v828 = vrot.slane %v826, 4
      %v829 = vrot.slane %v719, 7
      %v830 = vsel %vm784, %v828, %v829
      %v831 = vrot.slane %v829, 4
      %v832 = vrot.slane %v720, 7
      %v833 = vsel %vm784, %v831, %v832
      %v834 = vrot.slane %v832, 4
      %v835 = vrot.slane %v721, 7
      %v836 = vsel %vm784, %v834, %v835
      %v837 = vrot.slane %v835, 4
      %v838 = vrot.slane %v722, 7
      %v839 = vsel %vm784, %v837, %v838
      %v840 = vrot.slane %v838, 4
      %v841 = vrot.slane %v723, 7
      %v842 = vsel %vm784, %v840, %v841
      %v843 = vrot.slane %v841, 4
      %v844 = vrot.slane %v724, 7
      %v845 = vsel %vm784, %v843, %v844
      %v846 = vrot.slane %v844, 4
      %v847 = vrot.slane %v725, 7
      %v848 = vsel %vm784, %v846, %v847
      %v849 = vrot.slane %v847, 4
      %v850 = vrot.slane %v726, 7
      %v851 = vsel %vm784, %v849, %v850
      %v852 = vrot.slane %v850, 4
      %v853 = vrot.slane %v727, 7
      %v854 = vsel %vm784, %v852, %v853
      %v855 = vrot.slane %v853, 4
      %v856 = vrot.slane %v728, 7
      %v857 = vsel %vm784, %v855, %v856
      %v858 = vrot.slane %v856, 4
      %v859 = vrot.slane %v729, 7
      %v860 = vsel %vm784, %v858, %v859
      %v861 = vrot.slane %v859, 4
      %v862 = vrot.slane %v730, 7
      %v863 = vsel %vm784, %v861, %v862
      %v864 = vrot.slane %v862, 4
      %v865 = vrot.slane %v731, 7
      %v866 = vsel %vm784, %v864, %v865
      %v867 = vrot.slane %v865, 4
      %v868 = vrot.slane %v732, 7
      %v869 = vsel %vm784, %v867, %v868
      %v870 = vrot.slane %v868, 4
      %v871 = vrot.slane %v733, 7
      %v872 = vsel %vm784, %v870, %v871
      %v873 = vrot.slane %v871, 4
      %v874 = vrot.slane %v734, 7
      %v875 = vsel %vm784, %v873, %v874
      %v876 = vrot.slane %v874, 4
      %v877 = vrot.slane %v735, 7
      %v878 = vsel %vm784, %v876, %v877
      %v879 = vrot.slane %v877, 4
      %v880 = vrot.slane %v736, 7
      %v881 = vsel %vm784, %v879, %v880
      %v882 = vrot.slane %v880, 4
      %v883 = vrot.slane %v737, 7
      %v884 = vsel %vm784, %v882, %v883
      %v885 = vrot.slane %v883, 4
      %v886 = vrot.slane %v738, 7
      %v887 = vsel %vm784, %v885, %v886
      %v888 = vrot.slane %v886, 4
      %v889 = vrot.slane %v739, 7
      %v890 = vsel %vm784, %v888, %v889
      %v891 = vrot.slane %v889, 4
      %vm929 = vcmask 60417
      %930 = vst.msk [vmem:[#allocation2 + $0xc] sm:$0xe] %vm929, %v785
      %931 = vst.msk [vmem:[#allocation2 + $0x10] sm:$0xf] %vm740, %v788
      %932 = vst.msk [vmem:[#allocation2 + $0x14] sm:$0xf] %vm740, %v791
      %933 = vst.msk [vmem:[#allocation2 + $0x18] sm:$0xf] %vm740, %v794
      %934 = vst.msk [vmem:[#allocation2 + $0x1c] sm:$0xf] %vm740, %v797
      %935 = vst.msk [vmem:[#allocation2 + $0x20] sm:$0xf] %vm740, %v800
      %936 = vst.msk [vmem:[#allocation2 + $0x24] sm:$0xf] %vm740, %v803
      %937 = vst.msk [vmem:[#allocation2 + $0x28] sm:$0xf] %vm740, %v806
      %938 = vst.msk [vmem:[#allocation2 + $0x2c] sm:$0xf] %vm740, %v809
      %939 = vst.msk [vmem:[#allocation2 + $0x30] sm:$0xf] %vm740, %v812
      %940 = vst.msk [vmem:[#allocation2 + $0x34] sm:$0xf] %vm740, %v815
      %941 = vst.msk [vmem:[#allocation2 + $0x38] sm:$0xf] %vm740, %v818
      %942 = vst.msk [vmem:[#allocation2 + $0x3c] sm:$0xf] %vm740, %v821
      %943 = vst.msk [vmem:[#allocation2 + $0x40] sm:$0xf] %vm740, %v824
      %944 = vst.msk [vmem:[#allocation2 + $0x44] sm:$0xf] %vm740, %v827
      %945 = vst.msk [vmem:[#allocation2 + $0x48] sm:$0xf] %vm740, %v830
      %946 = vst.msk [vmem:[#allocation2 + $0x4c] sm:$0xf] %vm740, %v833
      %947 = vst.msk [vmem:[#allocation2 + $0x50] sm:$0xf] %vm740, %v836
      %948 = vst.msk [vmem:[#allocation2 + $0x54] sm:$0xf] %vm740, %v839
      %949 = vst.msk [vmem:[#allocation2 + $0x58] sm:$0xf] %vm740, %v842
      %950 = vst.msk [vmem:[#allocation2 + $0x5c] sm:$0xf] %vm740, %v845
      %951 = vst.msk [vmem:[#allocation2 + $0x60] sm:$0xf] %vm740, %v848
      %952 = vst.msk [vmem:[#allocation2 + $0x64] sm:$0xf] %vm740, %v851
      %953 = vst.msk [vmem:[#allocation2 + $0x68] sm:$0xf] %vm740, %v854
      %954 = vst.msk [vmem:[#allocation2 + $0x6c] sm:$0xf] %vm740, %v857
      %955 = vst.msk [vmem:[#allocation2 + $0x70] sm:$0xf] %vm740, %v860
      %956 = vst.msk [vmem:[#allocation2 + $0x74] sm:$0xf] %vm740, %v863
      %957 = vst.msk [vmem:[#allocation2 + $0x78] sm:$0xf] %vm740, %v866
      %958 = vst.msk [vmem:[#allocation2 + $0x7c] sm:$0xf] %vm740, %v869
      %959 = vst.msk [vmem:[#allocation2 + $0x80] sm:$0xf] %vm740, %v872
      %960 = vst.msk [vmem:[#allocation2 + $0x84] sm:$0xf] %vm740, %v875
      %961 = vst.msk [vmem:[#allocation2 + $0x88] sm:$0xf] %vm740, %v878
      %962 = vst.msk [vmem:[#allocation2 + $0x8c] sm:$0xf] %vm740, %v881
      %963 = vst.msk [vmem:[#allocation2 + $0x90] sm:$0xf] %vm740, %v884
      %964 = vst.msk [vmem:[#allocation2 + $0x94] sm:$0xf] %vm740, %v887
      %965 = vst.msk [vmem:[#allocation2 + $0x98] sm:$0xf] %vm740, %v890
      %966 = vst.msk [vmem:[#allocation2 + $0x9c] sm:$0x1] %vm744, %v891
      %967 = vst.msk [vmem:[#allocation2 + $0x9c] sm:$0xe] %vm929, 0
      %968 = vst.msk [vmem:[#allocation2 + $0xa0] sm:$0xf] %vm740, 0
      %969 = vst.msk [vmem:[#allocation2 + $0xa4] sm:$0xf] %vm740, 0
      %970 = vst.msk [vmem:[#allocation2 + $0xa8] sm:$0xf] %vm740, 0
      %v971 = vld [vmem:[#allocation2] sm:$0x8]
      %v972 = vld [vmem:[#allocation2 + $0x4] sm:$0xf]
      %v973 = vld [vmem:[#allocation2 + $0x8] sm:$0xf]
      %v974 = vld [vmem:[#allocation2 + $0xc] sm:$0xf]
      %v975 = vld [vmem:[#allocation2 + $0x10] sm:$0xf]
      %v976 = vld [vmem:[#allocation2 + $0x14] sm:$0xf]
      %v977 = vld [vmem:[#allocation2 + $0x18] sm:$0xf]
      %v978 = vld [vmem:[#allocation2 + $0x1c] sm:$0xf]
      %v979 = vld [vmem:[#allocation2 + $0x20] sm:$0xf]
      %v980 = vld [vmem:[#allocation2 + $0x24] sm:$0xf]
      %v981 = vld [vmem:[#allocation2 + $0x28] sm:$0xf]
      %v982 = vld [vmem:[#allocation2 + $0x2c] sm:$0xf]
      %v983 = vld [vmem:[#allocation2 + $0x30] sm:$0xf]
      %v984 = vld [vmem:[#allocation2 + $0x34] sm:$0xf]
      %v985 = vld [vmem:[#allocation2 + $0x38] sm:$0xf]
      %v986 = vld [vmem:[#allocation2 + $0x3c] sm:$0xf]
      %v987 = vld [vmem:[#allocation2 + $0x40] sm:$0xf]
      %v988 = vld [vmem:[#allocation2 + $0x44] sm:$0xf]
      %v989 = vld [vmem:[#allocation2 + $0x48] sm:$0xf]
      %v990 = vld [vmem:[#allocation2 + $0x4c] sm:$0xf]
      %v991 = vld [vmem:[#allocation2 + $0x50] sm:$0xf]
      %v992 = vld [vmem:[#allocation2 + $0x54] sm:$0xf]
      %v993 = vld [vmem:[#allocation2 + $0x58] sm:$0xf]
      %v994 = vld [vmem:[#allocation2 + $0x5c] sm:$0xf]
      %v995 = vld [vmem:[#allocation2 + $0x60] sm:$0xf]
      %v996 = vld [vmem:[#allocation2 + $0x64] sm:$0xf]
      %v997 = vld [vmem:[#allocation2 + $0x68] sm:$0xf]
      %v998 = vld [vmem:[#allocation2 + $0x6c] sm:$0xf]
      %v999 = vld [vmem:[#allocation2 + $0x70] sm:$0xf]
      %v1000 = vld [vmem:[#allocation2 + $0x74] sm:$0xf]
      %v1001 = vld [vmem:[#allocation2 + $0x78] sm:$0xf]
      %v1002 = vld [vmem:[#allocation2 + $0x7c] sm:$0xf]
      %v1003 = vld [vmem:[#allocation2 + $0x80] sm:$0xf]
      %v1004 = vld [vmem:[#allocation2 + $0x84] sm:$0xf]
      %v1005 = vld [vmem:[#allocation2 + $0x88] sm:$0xf]
      %v1006 = vld [vmem:[#allocation2 + $0x8c] sm:$0xf]
      %v1007 = vld [vmem:[#allocation2 + $0x90] sm:$0xf]
      %v1008 = vld [vmem:[%s4] sm:$0xf]
      %v1046 = vunpack.c.l.b16 %v971
      %v1047 = vunpack.c.l.b16 %v972
      %v1048 = vunpack.c.l.b16 %v973
      %v1049 = vunpack.c.l.b16 %v974
      %v1050 = vunpack.c.l.b16 %v975
      %v1051 = vunpack.c.l.b16 %v976
      %v1052 = vunpack.c.l.b16 %v977
      %v1053 = vunpack.c.l.b16 %v978
      %v1054 = vunpack.c.l.b16 %v979
      %v1055 = vunpack.c.l.b16 %v980
      %v1056 = vunpack.c.l.b16 %v981
      %v1057 = vunpack.c.l.b16 %v982
      %v1058 = vunpack.c.l.b16 %v983
      %v1059 = vunpack.c.l.b16 %v984
      %v1060 = vunpack.c.l.b16 %v985
      %v1061 = vunpack.c.l.b16 %v986
      %v1062 = vunpack.c.l.b16 %v987
      %v1063 = vunpack.c.l.b16 %v988
      %v1064 = vunpack.c.l.b16 %v989
      %v1065 = vunpack.c.l.b16 %v990
      %v1066 = vunpack.c.l.b16 %v991
      %v1067 = vunpack.c.l.b16 %v992
      %v1068 = vunpack.c.l.b16 %v993
      %v1069 = vunpack.c.l.b16 %v994
      %v1070 = vunpack.c.l.b16 %v995
      %v1071 = vunpack.c.l.b16 %v996
      %v1072 = vunpack.c.l.b16 %v997
      %v1073 = vunpack.c.l.b16 %v998
      %v1074 = vunpack.c.l.b16 %v999
      %v1075 = vunpack.c.l.b16 %v1000
      %v1076 = vunpack.c.l.b16 %v1001
      %v1077 = vunpack.c.l.b16 %v1002
      %v1078 = vunpack.c.l.b16 %v1003
      %v1079 = vunpack.c.l.b16 %v1004
      %v1080 = vunpack.c.l.b16 %v1005
      %v1081 = vunpack.c.l.b16 %v1006
      %v1082 = vunpack.c.l.b16 %v1007
      %v1083 = vpack.c.b16 %v1047, %v1046
      %v1084 = vpack.c.b16 %v1049, %v1048
      %v1085 = vpack.c.b16 %v1051, %v1050
      %v1086 = vpack.c.b16 %v1053, %v1052
      %v1087 = vpack.c.b16 %v1055, %v1054
      %v1088 = vpack.c.b16 %v1057, %v1056
      %v1089 = vpack.c.b16 %v1059, %v1058
      %v1090 = vpack.c.b16 %v1061, %v1060
      %v1091 = vpack.c.b16 %v1063, %v1062
      %v1092 = vpack.c.b16 %v1065, %v1064
      %v1093 = vpack.c.b16 %v1067, %v1066
      %v1094 = vpack.c.b16 %v1069, %v1068
      %v1095 = vpack.c.b16 %v1071, %v1070
      %v1096 = vpack.c.b16 %v1073, %v1072
      %v1097 = vpack.c.b16 %v1075, %v1074
      %v1098 = vpack.c.b16 %v1077, %v1076
      %v1099 = vpack.c.b16 %v1079, %v1078
      %v1100 = vpack.c.b16 %v1081, %v1080
      %v1101 = vpack.c.b16 %v1082, %v1082
      %vm1102 = vsmask.f32 4352
      %v1104 = vshrl.u32 %v1083, 16
      %v1106 = vrot.slane %v1104, 3
      %v1107 = vshll.u32 %v1083, 16
      %v1109 = vrot.slane %v1107, 4
      %v1110 = vor.u32 %v1106, %v1109
      %v1112 = vshrl.u32 %v1084, 16
      %v1114 = vrot.slane %v1112, 3
      %v1115 = vshll.u32 %v1084, 16
      %v1117 = vrot.slane %v1115, 4
      %v1118 = vor.u32 %v1114, %v1117
      %v1119 = vsel %vm1102, %v1110, %v1118
      %v1121 = vshrl.u32 %v1085, 16
      %v1123 = vrot.slane %v1121, 3
      %v1124 = vshll.u32 %v1085, 16
      %v1126 = vrot.slane %v1124, 4
      %v1127 = vor.u32 %v1123, %v1126
      %v1128 = vsel %vm1102, %v1118, %v1127
      %v1130 = vshrl.u32 %v1086, 16
      %v1132 = vrot.slane %v1130, 3
      %v1133 = vshll.u32 %v1086, 16
      %v1135 = vrot.slane %v1133, 4
      %v1136 = vor.u32 %v1132, %v1135
      %v1137 = vsel %vm1102, %v1127, %v1136
      %v1139 = vshrl.u32 %v1087, 16
      %v1141 = vrot.slane %v1139, 3
      %v1142 = vshll.u32 %v1087, 16
      %v1144 = vrot.slane %v1142, 4
      %v1145 = vor.u32 %v1141, %v1144
      %v1146 = vsel %vm1102, %v1136, %v1145
      %v1148 = vshrl.u32 %v1088, 16
      %v1150 = vrot.slane %v1148, 3
      %v1151 = vshll.u32 %v1088, 16
      %v1153 = vrot.slane %v1151, 4
      %v1154 = vor.u32 %v1150, %v1153
      %v1155 = vsel %vm1102, %v1145, %v1154
      %v1157 = vshrl.u32 %v1089, 16
      %v1159 = vrot.slane %v1157, 3
      %v1160 = vshll.u32 %v1089, 16
      %v1162 = vrot.slane %v1160, 4
      %v1163 = vor.u32 %v1159, %v1162
      %v1164 = vsel %vm1102, %v1154, %v1163
      %v1166 = vshrl.u32 %v1090, 16
      %v1168 = vrot.slane %v1166, 3
      %v1169 = vshll.u32 %v1090, 16
      %v1171 = vrot.slane %v1169, 4
      %v1172 = vor.u32 %v1168, %v1171
      %v1173 = vsel %vm1102, %v1163, %v1172
      %v1175 = vshrl.u32 %v1091, 16
      %v1177 = vrot.slane %v1175, 3
      %v1178 = vshll.u32 %v1091, 16
      %v1180 = vrot.slane %v1178, 4
      %v1181 = vor.u32 %v1177, %v1180
      %v1182 = vsel %vm1102, %v1172, %v1181
      %v1184 = vshrl.u32 %v1092, 16
      %v1186 = vrot.slane %v1184, 3
      %v1187 = vshll.u32 %v1092, 16
      %v1189 = vrot.slane %v1187, 4
      %v1190 = vor.u32 %v1186, %v1189
      %v1191 = vsel %vm1102, %v1181, %v1190
      %v1193 = vshrl.u32 %v1093, 16
      %v1195 = vrot.slane %v1193, 3
      %v1196 = vshll.u32 %v1093, 16
      %v1198 = vrot.slane %v1196, 4
      %v1199 = vor.u32 %v1195, %v1198
      %v1200 = vsel %vm1102, %v1190, %v1199
      %v1202 = vshrl.u32 %v1094, 16
      %v1204 = vrot.slane %v1202, 3
      %v1205 = vshll.u32 %v1094, 16
      %v1207 = vrot.slane %v1205, 4
      %v1208 = vor.u32 %v1204, %v1207
      %v1209 = vsel %vm1102, %v1199, %v1208
      %v1211 = vshrl.u32 %v1095, 16
      %v1213 = vrot.slane %v1211, 3
      %v1214 = vshll.u32 %v1095, 16
      %v1216 = vrot.slane %v1214, 4
      %v1217 = vor.u32 %v1213, %v1216
      %v1218 = vsel %vm1102, %v1208, %v1217
      %v1220 = vshrl.u32 %v1096, 16
      %v1222 = vrot.slane %v1220, 3
      %v1223 = vshll.u32 %v1096, 16
      %v1225 = vrot.slane %v1223, 4
      %v1226 = vor.u32 %v1222, %v1225
      %v1227 = vsel %vm1102, %v1217, %v1226
      %v1229 = vshrl.u32 %v1097, 16
      %v1231 = vrot.slane %v1229, 3
      %v1232 = vshll.u32 %v1097, 16
      %v1234 = vrot.slane %v1232, 4
      %v1235 = vor.u32 %v1231, %v1234
      %v1236 = vsel %vm1102, %v1226, %v1235
      %v1238 = vshrl.u32 %v1098, 16
      %v1240 = vrot.slane %v1238, 3
      %v1241 = vshll.u32 %v1098, 16
      %v1243 = vrot.slane %v1241, 4
      %v1244 = vor.u32 %v1240, %v1243
      %v1245 = vsel %vm1102, %v1235, %v1244
      %v1247 = vshrl.u32 %v1099, 16
      %v1249 = vrot.slane %v1247, 3
      %v1250 = vshll.u32 %v1099, 16
      %v1252 = vrot.slane %v1250, 4
      %v1253 = vor.u32 %v1249, %v1252
      %v1254 = vsel %vm1102, %v1244, %v1253
      %v1256 = vshrl.u32 %v1100, 16
      %v1258 = vrot.slane %v1256, 3
      %v1259 = vshll.u32 %v1100, 16
      %v1261 = vrot.slane %v1259, 4
      %v1262 = vor.u32 %v1258, %v1261
      %v1263 = vsel %vm1102, %v1253, %v1262
      %v1265 = vshrl.u32 %v1101, 16
      %v1267 = vrot.slane %v1265, 3
      %v1268 = vshll.u32 %v1101, 16
      %v1270 = vrot.slane %v1268, 4
      %v1271 = vor.u32 %v1267, %v1270
      %v1272 = vsel %vm1102, %v1262, %v1271
      %vm1273 = vcmask 64512
      %v1275 = vsel %vm1273, %v1119, 0
      %v1278 = vsel %vm1273, %v1128, 0
      %v1281 = vsel %vm1273, %v1137, 0
      %v1284 = vsel %vm1273, %v1146, 0
      %v1287 = vsel %vm1273, %v1155, 0
      %v1290 = vsel %vm1273, %v1164, 0
      %v1293 = vsel %vm1273, %v1173, 0
      %v1296 = vsel %vm1273, %v1182, 0
      %v1299 = vsel %vm1273, %v1191, 0
      %v1302 = vsel %vm1273, %v1200, 0
      %v1305 = vsel %vm1273, %v1209, 0
      %v1308 = vsel %vm1273, %v1218, 0
      %v1311 = vsel %vm1273, %v1227, 0
      %v1314 = vsel %vm1273, %v1236, 0
      %v1317 = vsel %vm1273, %v1245, 0
      %v1320 = vsel %vm1273, %v1254, 0
      %v1323 = vsel %vm1273, %v1263, 0
      %v1326 = vsel %vm1273, %v1272, 0
      %vm1328 = vcmask 1043456
      %v1330 = vsel %vm1328, %v1008, 0
      %1332 = vmatpush.bf16.msra.mxu0 0
      %1333 = vmatpush.bf16.msra.mxu0 0
      %1334 = vmatpush.bf16.msra.mxu0 0
      %1335 = vmatpush.bf16.msra.mxu0 0
      %1336 = vmatpush.bf16.msra.mxu0 0
      %1337 = vmatpush.bf16.msra.mxu0 0
      %1338 = vmatpush.bf16.msra.mxu0 0
      %1339 = vmatpush.bf16.msra.mxu0 %v1330
      %1340 = vmatmul.bf16.gmra.mxu0 %v1275
      %v1341 = vpop.f32.mrf.mxu0
      %v1342 = vadd.f32 0.0, %v1341
      %v1343 = vpop.f32.mrf.mxu0
      %v1344 = vadd.f32 0.0, %v1343
      %1345 = vmatmul.bf16.gmra.mxu0 %v1278
      %v1346 = vpop.f32.mrf.mxu0
      %v1347 = vadd.f32 0.0, %v1346
      %v1348 = vpop.f32.mrf.mxu0
      %v1349 = vadd.f32 0.0, %v1348
      %1350 = vmatmul.bf16.gmra.mxu0 %v1281
      %v1351 = vpop.f32.mrf.mxu0
      %v1352 = vadd.f32 0.0, %v1351
      %v1353 = vpop.f32.mrf.mxu0
      %v1354 = vadd.f32 0.0, %v1353
      %1355 = vmatmul.bf16.gmra.mxu0 %v1284
      %v1356 = vpop.f32.mrf.mxu0
      %v1357 = vadd.f32 0.0, %v1356
      %v1358 = vpop.f32.mrf.mxu0
      %v1359 = vadd.f32 0.0, %v1358
      %1360 = vmatmul.bf16.gmra.mxu0 %v1287
      %v1361 = vpop.f32.mrf.mxu0
      %v1362 = vadd.f32 0.0, %v1361
      %v1363 = vpop.f32.mrf.mxu0
      %v1364 = vadd.f32 0.0, %v1363
      %1365 = vmatmul.bf16.gmra.mxu0 %v1290
      %v1366 = vpop.f32.mrf.mxu0
      %v1367 = vadd.f32 0.0, %v1366
      %v1368 = vpop.f32.mrf.mxu0
      %v1369 = vadd.f32 0.0, %v1368
      %1370 = vmatmul.bf16.gmra.mxu0 %v1293
      %v1371 = vpop.f32.mrf.mxu0
      %v1372 = vadd.f32 0.0, %v1371
      %v1373 = vpop.f32.mrf.mxu0
      %v1374 = vadd.f32 0.0, %v1373
      %1375 = vmatmul.bf16.gmra.mxu0 %v1296
      %v1376 = vpop.f32.mrf.mxu0
      %v1377 = vadd.f32 0.0, %v1376
      %v1378 = vpop.f32.mrf.mxu0
      %v1379 = vadd.f32 0.0, %v1378
      %1380 = vmatmul.bf16.gmra.mxu0 %v1299
      %v1381 = vpop.f32.mrf.mxu0
      %v1382 = vadd.f32 0.0, %v1381
      %v1383 = vpop.f32.mrf.mxu0
      %v1384 = vadd.f32 0.0, %v1383
      %1385 = vmatmul.bf16.gmra.mxu0 %v1302
      %v1386 = vpop.f32.mrf.mxu0
      %v1387 = vadd.f32 0.0, %v1386
      %v1388 = vpop.f32.mrf.mxu0
      %v1389 = vadd.f32 0.0, %v1388
      %1390 = vmatmul.bf16.gmra.mxu0 %v1305
      %v1391 = vpop.f32.mrf.mxu0
      %v1392 = vadd.f32 0.0, %v1391
      %v1393 = vpop.f32.mrf.mxu0
      %v1394 = vadd.f32 0.0, %v1393
      %1395 = vmatmul.bf16.gmra.mxu0 %v1308
      %v1396 = vpop.f32.mrf.mxu0
      %v1397 = vadd.f32 0.0, %v1396
      %v1398 = vpop.f32.mrf.mxu0
      %v1399 = vadd.f32 0.0, %v1398
      %1400 = vmatmul.bf16.gmra.mxu0 %v1311
      %v1401 = vpop.f32.mrf.mxu0
      %v1402 = vadd.f32 0.0, %v1401
      %v1403 = vpop.f32.mrf.mxu0
      %v1404 = vadd.f32 0.0, %v1403
      %1405 = vmatmul.bf16.gmra.mxu0 %v1314
      %v1406 = vpop.f32.mrf.mxu0
      %v1407 = vadd.f32 0.0, %v1406
      %v1408 = vpop.f32.mrf.mxu0
      %v1409 = vadd.f32 0.0, %v1408
      %1410 = vmatmul.bf16.gmra.mxu0 %v1317
      %v1411 = vpop.f32.mrf.mxu0
      %v1412 = vadd.f32 0.0, %v1411
      %v1413 = vpop.f32.mrf.mxu0
      %v1414 = vadd.f32 0.0, %v1413
      %1415 = vmatmul.bf16.gmra.mxu0 %v1320
      %v1416 = vpop.f32.mrf.mxu0
      %v1417 = vadd.f32 0.0, %v1416
      %v1418 = vpop.f32.mrf.mxu0
      %v1419 = vadd.f32 0.0, %v1418
      %1420 = vmatmul.bf16.gmra.mxu0 %v1323
      %v1421 = vpop.f32.mrf.mxu0
      %v1422 = vadd.f32 0.0, %v1421
      %v1423 = vpop.f32.mrf.mxu0
      %v1424 = vadd.f32 0.0, %v1423
      %1425 = vmatmul.bf16.gmra.mxu0 %v1326
      %v1426 = vpop.f32.mrf.mxu0
      %v1427 = vadd.f32 0.0, %v1426
      %v1428 = vpop.f32.mrf.mxu0
      %v1429 = vadd.f32 0.0, %v1428
      %1430 = vdwg.mxu0
      %1431 = vst [vmem:[#allocation3] sm:$0xff] %v1342
      %1432 = vst [vmem:[#allocation3 + $0x8] sm:$0xff] %v1344
      %1433 = vst [vmem:[#allocation3 + $0x10] sm:$0xff] %v1347
      %1434 = vst [vmem:[#allocation3 + $0x18] sm:$0xff] %v1349
      %1435 = vst [vmem:[#allocation3 + $0x20] sm:$0xff] %v1352
      %1436 = vst [vmem:[#allocation3 + $0x28] sm:$0xff] %v1354
      %1437 = vst [vmem:[#allocation3 + $0x30] sm:$0xff] %v1357
      %1438 = vst [vmem:[#allocation3 + $0x38] sm:$0xff] %v1359
      %1439 = vst [vmem:[#allocation3 + $0x40] sm:$0xff] %v1362
      %1440 = vst [vmem:[#allocation3 + $0x48] sm:$0xff] %v1364
      %1441 = vst [vmem:[#allocation3 + $0x50] sm:$0xff] %v1367
      %1442 = vst [vmem:[#allocation3 + $0x58] sm:$0xff] %v1369
      %1443 = vst [vmem:[#allocation3 + $0x60] sm:$0xff] %v1372
      %1444 = vst [vmem:[#allocation3 + $0x68] sm:$0xff] %v1374
      %1445 = vst [vmem:[#allocation3 + $0x70] sm:$0xff] %v1377
      %1446 = vst [vmem:[#allocation3 + $0x78] sm:$0xff] %v1379
      %1447 = vst [vmem:[#allocation3 + $0x80] sm:$0xff] %v1382
      %1448 = vst [vmem:[#allocation3 + $0x88] sm:$0xff] %v1384
      %1449 = vst [vmem:[#allocation3 + $0x90] sm:$0xff] %v1387
      %1450 = vst [vmem:[#allocation3 + $0x98] sm:$0xff] %v1389
      %1451 = vst [vmem:[#allocation3 + $0xa0] sm:$0xff] %v1392
      %1452 = vst [vmem:[#allocation3 + $0xa8] sm:$0xff] %v1394
      %1453 = vst [vmem:[#allocation3 + $0xb0] sm:$0xff] %v1397
      %1454 = vst [vmem:[#allocation3 + $0xb8] sm:$0xff] %v1399
      %1455 = vst [vmem:[#allocation3 + $0xc0] sm:$0xff] %v1402
      %1456 = vst [vmem:[#allocation3 + $0xc8] sm:$0xff] %v1404
      %1457 = vst [vmem:[#allocation3 + $0xd0] sm:$0xff] %v1407
      %1458 = vst [vmem:[#allocation3 + $0xd8] sm:$0xff] %v1409
      %1459 = vst [vmem:[#allocation3 + $0xe0] sm:$0xff] %v1412
      %1460 = vst [vmem:[#allocation3 + $0xe8] sm:$0xff] %v1414
      %1461 = vst [vmem:[#allocation3 + $0xf0] sm:$0xff] %v1417
      %1462 = vst [vmem:[#allocation3 + $0xf8] sm:$0xff] %v1419
      %1463 = vst [vmem:[#allocation3 + $0x100] sm:$0xff] %v1422
      %1464 = vst [vmem:[#allocation3 + $0x108] sm:$0xff] %v1424
      %1465 = vst [vmem:[#allocation3 + $0x110] sm:$0xff] %v1427
      %1466 = vst [vmem:[#allocation3 + $0x118] sm:$0xff] %v1429
      %v1467 = vld [vmem:[#allocation2 + $0x4] sm:$0xf]
      %v1468 = vld [vmem:[#allocation2 + $0x8] sm:$0xf]
      %v1469 = vld [vmem:[#allocation2 + $0xc] sm:$0xf]
      %v1470 = vld [vmem:[#allocation2 + $0x10] sm:$0xf]
      %v1471 = vld [vmem:[#allocation2 + $0x14] sm:$0xf]
      %v1472 = vld [vmem:[#allocation2 + $0x18] sm:$0xf]
      %v1473 = vld [vmem:[#allocation2 + $0x1c] sm:$0xf]
      %v1474 = vld [vmem:[#allocation2 + $0x20] sm:$0xf]
      %v1475 = vld [vmem:[#allocation2 + $0x24] sm:$0xf]
      %v1476 = vld [vmem:[#allocation2 + $0x28] sm:$0xf]
      %v1477 = vld [vmem:[#allocation2 + $0x2c] sm:$0xf]
      %v1478 = vld [vmem:[#allocation2 + $0x30] sm:$0xf]
      %v1479 = vld [vmem:[#allocation2 + $0x34] sm:$0xf]
      %v1480 = vld [vmem:[#allocation2 + $0x38] sm:$0xf]
      %v1481 = vld [vmem:[#allocation2 + $0x3c] sm:$0xf]
      %v1482 = vld [vmem:[#allocation2 + $0x40] sm:$0xf]
      %v1483 = vld [vmem:[#allocation2 + $0x44] sm:$0xf]
      %v1484 = vld [vmem:[#allocation2 + $0x48] sm:$0xf]
      %v1485 = vld [vmem:[#allocation2 + $0x4c] sm:$0xf]
      %v1486 = vld [vmem:[#allocation2 + $0x50] sm:$0xf]
      %v1487 = vld [vmem:[#allocation2 + $0x54] sm:$0xf]
      %v1488 = vld [vmem:[#allocation2 + $0x58] sm:$0xf]
      %v1489 = vld [vmem:[#allocation2 + $0x5c] sm:$0xf]
      %v1490 = vld [vmem:[#allocation2 + $0x60] sm:$0xf]
      %v1491 = vld [vmem:[#allocation2 + $0x64] sm:$0xf]
      %v1492 = vld [vmem:[#allocation2 + $0x68] sm:$0xf]
      %v1493 = vld [vmem:[#allocation2 + $0x6c] sm:$0xf]
      %v1494 = vld [vmem:[#allocation2 + $0x70] sm:$0xf]
      %v1495 = vld [vmem:[#allocation2 + $0x74] sm:$0xf]
      %v1496 = vld [vmem:[#allocation2 + $0x78] sm:$0xf]
      %v1497 = vld [vmem:[#allocation2 + $0x7c] sm:$0xf]
      %v1498 = vld [vmem:[#allocation2 + $0x80] sm:$0xf]
      %v1499 = vld [vmem:[#allocation2 + $0x84] sm:$0xf]
      %v1500 = vld [vmem:[#allocation2 + $0x88] sm:$0xf]
      %v1501 = vld [vmem:[#allocation2 + $0x8c] sm:$0xf]
      %v1502 = vld [vmem:[#allocation2 + $0x90] sm:$0xf]
      %s1503 = scalar_lea.vmem %s4, 4
      %v1504 = vld [vmem:[%s1503] sm:$0xf]
      %v1541 = vunpack.c.l.b16 %v1467
      %v1542 = vunpack.c.l.b16 %v1468
      %v1543 = vunpack.c.l.b16 %v1469
      %v1544 = vunpack.c.l.b16 %v1470
      %v1545 = vunpack.c.l.b16 %v1471
      %v1546 = vunpack.c.l.b16 %v1472
      %v1547 = vunpack.c.l.b16 %v1473
      %v1548 = vunpack.c.l.b16 %v1474
      %v1549 = vunpack.c.l.b16 %v1475
      %v1550 = vunpack.c.l.b16 %v1476
      %v1551 = vunpack.c.l.b16 %v1477
      %v1552 = vunpack.c.l.b16 %v1478
      %v1553 = vunpack.c.l.b16 %v1479
      %v1554 = vunpack.c.l.b16 %v1480
      %v1555 = vunpack.c.l.b16 %v1481
      %v1556 = vunpack.c.l.b16 %v1482
      %v1557 = vunpack.c.l.b16 %v1483
      %v1558 = vunpack.c.l.b16 %v1484
      %v1559 = vunpack.c.l.b16 %v1485
      %v1560 = vunpack.c.l.b16 %v1486
      %v1561 = vunpack.c.l.b16 %v1487
      %v1562 = vunpack.c.l.b16 %v1488
      %v1563 = vunpack.c.l.b16 %v1489
      %v1564 = vunpack.c.l.b16 %v1490
      %v1565 = vunpack.c.l.b16 %v1491
      %v1566 = vunpack.c.l.b16 %v1492
      %v1567 = vunpack.c.l.b16 %v1493
      %v1568 = vunpack.c.l.b16 %v1494
      %v1569 = vunpack.c.l.b16 %v1495
      %v1570 = vunpack.c.l.b16 %v1496
      %v1571 = vunpack.c.l.b16 %v1497
      %v1572 = vunpack.c.l.b16 %v1498
      %v1573 = vunpack.c.l.b16 %v1499
      %v1574 = vunpack.c.l.b16 %v1500
      %v1575 = vunpack.c.l.b16 %v1501
      %v1576 = vunpack.c.l.b16 %v1502
      %v1577 = vpack.c.b16 %v1542, %v1541
      %v1578 = vpack.c.b16 %v1544, %v1543
      %v1579 = vpack.c.b16 %v1546, %v1545
      %v1580 = vpack.c.b16 %v1548, %v1547
      %v1581 = vpack.c.b16 %v1550, %v1549
      %v1582 = vpack.c.b16 %v1552, %v1551
      %v1583 = vpack.c.b16 %v1554, %v1553
      %v1584 = vpack.c.b16 %v1556, %v1555
      %v1585 = vpack.c.b16 %v1558, %v1557
      %v1586 = vpack.c.b16 %v1560, %v1559
      %v1587 = vpack.c.b16 %v1562, %v1561
      %v1588 = vpack.c.b16 %v1564, %v1563
      %v1589 = vpack.c.b16 %v1566, %v1565
      %v1590 = vpack.c.b16 %v1568, %v1567
      %v1591 = vpack.c.b16 %v1570, %v1569
      %v1592 = vpack.c.b16 %v1572, %v1571
      %v1593 = vpack.c.b16 %v1574, %v1573
      %v1594 = vpack.c.b16 %v1576, %v1575
      %v1596 = vsel %vm1273, %v1577, 0
      %v1599 = vsel %vm1273, %v1578, 0
      %v1602 = vsel %vm1273, %v1579, 0
      %v1605 = vsel %vm1273, %v1580, 0
      %v1608 = vsel %vm1273, %v1581, 0
      %v1611 = vsel %vm1273, %v1582, 0
      %v1614 = vsel %vm1273, %v1583, 0
      %v1617 = vsel %vm1273, %v1584, 0
      %v1620 = vsel %vm1273, %v1585, 0
      %v1623 = vsel %vm1273, %v1586, 0
      %v1626 = vsel %vm1273, %v1587, 0
      %v1629 = vsel %vm1273, %v1588, 0
      %v1632 = vsel %vm1273, %v1589, 0
      %v1635 = vsel %vm1273, %v1590, 0
      %v1638 = vsel %vm1273, %v1591, 0
      %v1641 = vsel %vm1273, %v1592, 0
      %v1644 = vsel %vm1273, %v1593, 0
      %v1647 = vsel %vm1273, %v1594, 0
      %v1650 = vsel %vm1328, %v1504, 0
      %1652 = vmatpush.bf16.msra.mxu0 0
      %1653 = vmatpush.bf16.msra.mxu0 0
      %1654 = vmatpush.bf16.msra.mxu0 0
      %1655 = vmatpush.bf16.msra.mxu0 0
      %1656 = vmatpush.bf16.msra.mxu0 0
      %1657 = vmatpush.bf16.msra.mxu0 0
      %1658 = vmatpush.bf16.msra.mxu0 0
      %1659 = vmatpush.bf16.msra.mxu0 %v1650
      %1660 = vmatmul.bf16.gmra.mxu0 %v1596
      %v1661 = vpop.f32.mrf.mxu0
      %v1662 = vadd.f32 0.0, %v1661
      %v1663 = vpop.f32.mrf.mxu0
      %v1664 = vadd.f32 0.0, %v1663
      %1665 = vmatmul.bf16.gmra.mxu0 %v1599
      %v1666 = vpop.f32.mrf.mxu0
      %v1667 = vadd.f32 0.0, %v1666
      %v1668 = vpop.f32.mrf.mxu0
      %v1669 = vadd.f32 0.0, %v1668
      %1670 = vmatmul.bf16.gmra.mxu0 %v1602
      %v1671 = vpop.f32.mrf.mxu0
      %v1672 = vadd.f32 0.0, %v1671
      %v1673 = vpop.f32.mrf.mxu0
      %v1674 = vadd.f32 0.0, %v1673
      %1675 = vmatmul.bf16.gmra.mxu0 %v1605
      %v1676 = vpop.f32.mrf.mxu0
      %v1677 = vadd.f32 0.0, %v1676
      %v1678 = vpop.f32.mrf.mxu0
      %v1679 = vadd.f32 0.0, %v1678
      %1680 = vmatmul.bf16.gmra.mxu0 %v1608
      %v1681 = vpop.f32.mrf.mxu0
      %v1682 = vadd.f32 0.0, %v1681
      %v1683 = vpop.f32.mrf.mxu0
      %v1684 = vadd.f32 0.0, %v1683
      %1685 = vmatmul.bf16.gmra.mxu0 %v1611
      %v1686 = vpop.f32.mrf.mxu0
      %v1687 = vadd.f32 0.0, %v1686
      %v1688 = vpop.f32.mrf.mxu0
      %v1689 = vadd.f32 0.0, %v1688
      %1690 = vmatmul.bf16.gmra.mxu0 %v1614
      %v1691 = vpop.f32.mrf.mxu0
      %v1692 = vadd.f32 0.0, %v1691
      %v1693 = vpop.f32.mrf.mxu0
      %v1694 = vadd.f32 0.0, %v1693
      %1695 = vmatmul.bf16.gmra.mxu0 %v1617
      %v1696 = vpop.f32.mrf.mxu0
      %v1697 = vadd.f32 0.0, %v1696
      %v1698 = vpop.f32.mrf.mxu0
      %v1699 = vadd.f32 0.0, %v1698
      %1700 = vmatmul.bf16.gmra.mxu0 %v1620
      %v1701 = vpop.f32.mrf.mxu0
      %v1702 = vadd.f32 0.0, %v1701
      %v1703 = vpop.f32.mrf.mxu0
      %v1704 = vadd.f32 0.0, %v1703
      %1705 = vmatmul.bf16.gmra.mxu0 %v1623
      %v1706 = vpop.f32.mrf.mxu0
      %v1707 = vadd.f32 0.0, %v1706
      %v1708 = vpop.f32.mrf.mxu0
      %v1709 = vadd.f32 0.0, %v1708
      %1710 = vmatmul.bf16.gmra.mxu0 %v1626
      %v1711 = vpop.f32.mrf.mxu0
      %v1712 = vadd.f32 0.0, %v1711
      %v1713 = vpop.f32.mrf.mxu0
      %v1714 = vadd.f32 0.0, %v1713
      %1715 = vmatmul.bf16.gmra.mxu0 %v1629
      %v1716 = vpop.f32.mrf.mxu0
      %v1717 = vadd.f32 0.0, %v1716
      %v1718 = vpop.f32.mrf.mxu0
      %v1719 = vadd.f32 0.0, %v1718
      %1720 = vmatmul.bf16.gmra.mxu0 %v1632
      %v1721 = vpop.f32.mrf.mxu0
      %v1722 = vadd.f32 0.0, %v1721
      %v1723 = vpop.f32.mrf.mxu0
      %v1724 = vadd.f32 0.0, %v1723
      %1725 = vmatmul.bf16.gmra.mxu0 %v1635
      %v1726 = vpop.f32.mrf.mxu0
      %v1727 = vadd.f32 0.0, %v1726
      %v1728 = vpop.f32.mrf.mxu0
      %v1729 = vadd.f32 0.0, %v1728
      %1730 = vmatmul.bf16.gmra.mxu0 %v1638
      %v1731 = vpop.f32.mrf.mxu0
      %v1732 = vadd.f32 0.0, %v1731
      %v1733 = vpop.f32.mrf.mxu0
      %v1734 = vadd.f32 0.0, %v1733
      %1735 = vmatmul.bf16.gmra.mxu0 %v1641
      %v1736 = vpop.f32.mrf.mxu0
      %v1737 = vadd.f32 0.0, %v1736
      %v1738 = vpop.f32.mrf.mxu0
      %v1739 = vadd.f32 0.0, %v1738
      %1740 = vmatmul.bf16.gmra.mxu0 %v1644
      %v1741 = vpop.f32.mrf.mxu0
      %v1742 = vadd.f32 0.0, %v1741
      %v1743 = vpop.f32.mrf.mxu0
      %v1744 = vadd.f32 0.0, %v1743
      %1745 = vmatmul.bf16.gmra.mxu0 %v1647
      %v1746 = vpop.f32.mrf.mxu0
      %v1747 = vadd.f32 0.0, %v1746
      %v1748 = vpop.f32.mrf.mxu0
      %v1749 = vadd.f32 0.0, %v1748
      %1750 = vdwg.mxu0
      %v1751 = vld [vmem:[#allocation3] sm:$0xff]
      %v1752 = vld [vmem:[#allocation3 + $0x8] sm:$0xff]
      %v1753 = vld [vmem:[#allocation3 + $0x10] sm:$0xff]
      %v1754 = vld [vmem:[#allocation3 + $0x18] sm:$0xff]
      %v1755 = vld [vmem:[#allocation3 + $0x20] sm:$0xff]
      %v1756 = vld [vmem:[#allocation3 + $0x28] sm:$0xff]
      %v1757 = vld [vmem:[#allocation3 + $0x30] sm:$0xff]
      %v1758 = vld [vmem:[#allocation3 + $0x38] sm:$0xff]
      %v1759 = vld [vmem:[#allocation3 + $0x40] sm:$0xff]
      %v1760 = vld [vmem:[#allocation3 + $0x48] sm:$0xff]
      %v1761 = vld [vmem:[#allocation3 + $0x50] sm:$0xff]
      %v1762 = vld [vmem:[#allocation3 + $0x58] sm:$0xff]
      %v1763 = vld [vmem:[#allocation3 + $0x60] sm:$0xff]
      %v1764 = vld [vmem:[#allocation3 + $0x68] sm:$0xff]
      %v1765 = vld [vmem:[#allocation3 + $0x70] sm:$0xff]
      %v1766 = vld [vmem:[#allocation3 + $0x78] sm:$0xff]
      %v1767 = vld [vmem:[#allocation3 + $0x80] sm:$0xff]
      %v1768 = vld [vmem:[#allocation3 + $0x88] sm:$0xff]
      %v1769 = vld [vmem:[#allocation3 + $0x90] sm:$0xff]
      %v1770 = vld [vmem:[#allocation3 + $0x98] sm:$0xff]
      %v1771 = vld [vmem:[#allocation3 + $0xa0] sm:$0xff]
      %v1772 = vld [vmem:[#allocation3 + $0xa8] sm:$0xff]
      %v1773 = vld [vmem:[#allocation3 + $0xb0] sm:$0xff]
      %v1774 = vld [vmem:[#allocation3 + $0xb8] sm:$0xff]
      %v1775 = vld [vmem:[#allocation3 + $0xc0] sm:$0xff]
      %v1776 = vld [vmem:[#allocation3 + $0xc8] sm:$0xff]
      %v1777 = vld [vmem:[#allocation3 + $0xd0] sm:$0xff]
      %v1778 = vld [vmem:[#allocation3 + $0xd8] sm:$0xff]
      %v1779 = vld [vmem:[#allocation3 + $0xe0] sm:$0xff]
      %v1780 = vld [vmem:[#allocation3 + $0xe8] sm:$0xff]
      %v1781 = vld [vmem:[#allocation3 + $0xf0] sm:$0xff]
      %v1782 = vld [vmem:[#allocation3 + $0xf8] sm:$0xff]
      %v1783 = vld [vmem:[#allocation3 + $0x100] sm:$0xff]
      %v1784 = vld [vmem:[#allocation3 + $0x108] sm:$0xff]
      %v1785 = vld [vmem:[#allocation3 + $0x110] sm:$0xff]
      %v1786 = vld [vmem:[#allocation3 + $0x118] sm:$0xff]
      %v1787 = vadd.f32 %v1751, %v1662
      %v1788 = vadd.f32 %v1752, %v1664
      %v1789 = vadd.f32 %v1753, %v1667
      %v1790 = vadd.f32 %v1754, %v1669
      %v1791 = vadd.f32 %v1755, %v1672
      %v1792 = vadd.f32 %v1756, %v1674
      %v1793 = vadd.f32 %v1757, %v1677
      %v1794 = vadd.f32 %v1758, %v1679
      %v1795 = vadd.f32 %v1759, %v1682
      %v1796 = vadd.f32 %v1760, %v1684
      %v1797 = vadd.f32 %v1761, %v1687
      %v1798 = vadd.f32 %v1762, %v1689
      %v1799 = vadd.f32 %v1763, %v1692
      %v1800 = vadd.f32 %v1764, %v1694
      %v1801 = vadd.f32 %v1765, %v1697
      %v1802 = vadd.f32 %v1766, %v1699
      %v1803 = vadd.f32 %v1767, %v1702
      %v1804 = vadd.f32 %v1768, %v1704
      %v1805 = vadd.f32 %v1769, %v1707
      %v1806 = vadd.f32 %v1770, %v1709
      %v1807 = vadd.f32 %v1771, %v1712
      %v1808 = vadd.f32 %v1772, %v1714
      %v1809 = vadd.f32 %v1773, %v1717
      %v1810 = vadd.f32 %v1774, %v1719
      %v1811 = vadd.f32 %v1775, %v1722
      %v1812 = vadd.f32 %v1776, %v1724
      %v1813 = vadd.f32 %v1777, %v1727
      %v1814 = vadd.f32 %v1778, %v1729
      %v1815 = vadd.f32 %v1779, %v1732
      %v1816 = vadd.f32 %v1780, %v1734
      %v1817 = vadd.f32 %v1781, %v1737
      %v1818 = vadd.f32 %v1782, %v1739
      %v1819 = vadd.f32 %v1783, %v1742
      %v1820 = vadd.f32 %v1784, %v1744
      %v1821 = vadd.f32 %v1785, %v1747
      %v1822 = vadd.f32 %v1786, %v1749
      %1823 = vst [vmem:[#allocation3] sm:$0xff] %v1787
      %1824 = vst [vmem:[#allocation3 + $0x8] sm:$0xff] %v1788
      %1825 = vst [vmem:[#allocation3 + $0x10] sm:$0xff] %v1789
      %1826 = vst [vmem:[#allocation3 + $0x18] sm:$0xff] %v1790
      %1827 = vst [vmem:[#allocation3 + $0x20] sm:$0xff] %v1791
      %1828 = vst [vmem:[#allocation3 + $0x28] sm:$0xff] %v1792
      %1829 = vst [vmem:[#allocation3 + $0x30] sm:$0xff] %v1793
      %1830 = vst [vmem:[#allocation3 + $0x38] sm:$0xff] %v1794
      %1831 = vst [vmem:[#allocation3 + $0x40] sm:$0xff] %v1795
      %1832 = vst [vmem:[#allocation3 + $0x48] sm:$0xff] %v1796
      %1833 = vst [vmem:[#allocation3 + $0x50] sm:$0xff] %v1797
      %1834 = vst [vmem:[#allocation3 + $0x58] sm:$0xff] %v1798
      %1835 = vst [vmem:[#allocation3 + $0x60] sm:$0xff] %v1799
      %1836 = vst [vmem:[#allocation3 + $0x68] sm:$0xff] %v1800
      %1837 = vst [vmem:[#allocation3 + $0x70] sm:$0xff] %v1801
      %1838 = vst [vmem:[#allocation3 + $0x78] sm:$0xff] %v1802
      %1839 = vst [vmem:[#allocation3 + $0x80] sm:$0xff] %v1803
      %1840 = vst [vmem:[#allocation3 + $0x88] sm:$0xff] %v1804
      %1841 = vst [vmem:[#allocation3 + $0x90] sm:$0xff] %v1805
      %1842 = vst [vmem:[#allocation3 + $0x98] sm:$0xff] %v1806
      %1843 = vst [vmem:[#allocation3 + $0xa0] sm:$0xff] %v1807
      %1844 = vst [vmem:[#allocation3 + $0xa8] sm:$0xff] %v1808
      %1845 = vst [vmem:[#allocation3 + $0xb0] sm:$0xff] %v1809
      %1846 = vst [vmem:[#allocation3 + $0xb8] sm:$0xff] %v1810
      %1847 = vst [vmem:[#allocation3 + $0xc0] sm:$0xff] %v1811
      %1848 = vst [vmem:[#allocation3 + $0xc8] sm:$0xff] %v1812
      %1849 = vst [vmem:[#allocation3 + $0xd0] sm:$0xff] %v1813
      %1850 = vst [vmem:[#allocation3 + $0xd8] sm:$0xff] %v1814
      %1851 = vst [vmem:[#allocation3 + $0xe0] sm:$0xff] %v1815
      %1852 = vst [vmem:[#allocation3 + $0xe8] sm:$0xff] %v1816
      %1853 = vst [vmem:[#allocation3 + $0xf0] sm:$0xff] %v1817
      %1854 = vst [vmem:[#allocation3 + $0xf8] sm:$0xff] %v1818
      %1855 = vst [vmem:[#allocation3 + $0x100] sm:$0xff] %v1819
      %1856 = vst [vmem:[#allocation3 + $0x108] sm:$0xff] %v1820
      %1857 = vst [vmem:[#allocation3 + $0x110] sm:$0xff] %v1821
      %1858 = vst [vmem:[#allocation3 + $0x118] sm:$0xff] %v1822
      %v1859 = vld [vmem:[#allocation2 + $0x4] sm:$0xf]
      %v1860 = vld [vmem:[#allocation2 + $0x8] sm:$0xf]
      %v1861 = vld [vmem:[#allocation2 + $0xc] sm:$0xf]
      %v1862 = vld [vmem:[#allocation2 + $0x10] sm:$0xf]
      %v1863 = vld [vmem:[#allocation2 + $0x14] sm:$0xf]
      %v1864 = vld [vmem:[#allocation2 + $0x18] sm:$0xf]
      %v1865 = vld [vmem:[#allocation2 + $0x1c] sm:$0xf]
      %v1866 = vld [vmem:[#allocation2 + $0x20] sm:$0xf]
      %v1867 = vld [vmem:[#allocation2 + $0x24] sm:$0xf]
      %v1868 = vld [vmem:[#allocation2 + $0x28] sm:$0xf]
      %v1869 = vld [vmem:[#allocation2 + $0x2c] sm:$0xf]
      %v1870 = vld [vmem:[#allocation2 + $0x30] sm:$0xf]
      %v1871 = vld [vmem:[#allocation2 + $0x34] sm:$0xf]
      %v1872 = vld [vmem:[#allocation2 + $0x38] sm:$0xf]
      %v1873 = vld [vmem:[#allocation2 + $0x3c] sm:$0xf]
      %v1874 = vld [vmem:[#allocation2 + $0x40] sm:$0xf]
      %v1875 = vld [vmem:[#allocation2 + $0x44] sm:$0xf]
      %v1876 = vld [vmem:[#allocation2 + $0x48] sm:$0xf]
      %v1877 = vld [vmem:[#allocation2 + $0x4c] sm:$0xf]
      %v1878 = vld [vmem:[#allocation2 + $0x50] sm:$0xf]
      %v1879 = vld [vmem:[#allocation2 + $0x54] sm:$0xf]
      %v1880 = vld [vmem:[#allocation2 + $0x58] sm:$0xf]
      %v1881 = vld [vmem:[#allocation2 + $0x5c] sm:$0xf]
      %v1882 = vld [vmem:[#allocation2 + $0x60] sm:$0xf]
      %v1883 = vld [vmem:[#allocation2 + $0x64] sm:$0xf]
      %v1884 = vld [vmem:[#allocation2 + $0x68] sm:$0xf]
      %v1885 = vld [vmem:[#allocation2 + $0x6c] sm:$0xf]
      %v1886 = vld [vmem:[#allocation2 + $0x70] sm:$0xf]
      %v1887 = vld [vmem:[#allocation2 + $0x74] sm:$0xf]
      %v1888 = vld [vmem:[#allocation2 + $0x78] sm:$0xf]
      %v1889 = vld [vmem:[#allocation2 + $0x7c] sm:$0xf]
      %v1890 = vld [vmem:[#allocation2 + $0x80] sm:$0xf]
      %v1891 = vld [vmem:[#allocation2 + $0x84] sm:$0xf]
      %v1892 = vld [vmem:[#allocation2 + $0x88] sm:$0xf]
      %v1893 = vld [vmem:[#allocation2 + $0x8c] sm:$0xf]
      %v1894 = vld [vmem:[#allocation2 + $0x90] sm:$0xf]
      %v1895 = vld [vmem:[#allocation2 + $0x94] sm:$0x1]
      %s1896 = scalar_lea.vmem %s4, 8
      %v1897 = vld [vmem:[%s1896] sm:$0xf]
      %v1935 = vunpack.c.l.b16 %v1859
      %v1936 = vunpack.c.l.b16 %v1860
      %v1937 = vunpack.c.l.b16 %v1861
      %v1938 = vunpack.c.l.b16 %v1862
      %v1939 = vunpack.c.l.b16 %v1863
      %v1940 = vunpack.c.l.b16 %v1864
      %v1941 = vunpack.c.l.b16 %v1865
      %v1942 = vunpack.c.l.b16 %v1866
      %v1943 = vunpack.c.l.b16 %v1867
      %v1944 = vunpack.c.l.b16 %v1868
      %v1945 = vunpack.c.l.b16 %v1869
      %v1946 = vunpack.c.l.b16 %v1870
      %v1947 = vunpack.c.l.b16 %v1871
      %v1948 = vunpack.c.l.b16 %v1872
      %v1949 = vunpack.c.l.b16 %v1873
      %v1950 = vunpack.c.l.b16 %v1874
      %v1951 = vunpack.c.l.b16 %v1875
      %v1952 = vunpack.c.l.b16 %v1876
      %v1953 = vunpack.c.l.b16 %v1877
      %v1954 = vunpack.c.l.b16 %v1878
      %v1955 = vunpack.c.l.b16 %v1879
      %v1956 = vunpack.c.l.b16 %v1880
      %v1957 = vunpack.c.l.b16 %v1881
      %v1958 = vunpack.c.l.b16 %v1882
      %v1959 = vunpack.c.l.b16 %v1883
      %v1960 = vunpack.c.l.b16 %v1884
      %v1961 = vunpack.c.l.b16 %v1885
      %v1962 = vunpack.c.l.b16 %v1886
      %v1963 = vunpack.c.l.b16 %v1887
      %v1964 = vunpack.c.l.b16 %v1888
      %v1965 = vunpack.c.l.b16 %v1889
      %v1966 = vunpack.c.l.b16 %v1890
      %v1967 = vunpack.c.l.b16 %v1891
      %v1968 = vunpack.c.l.b16 %v1892
      %v1969 = vunpack.c.l.b16 %v1893
      %v1970 = vunpack.c.l.b16 %v1894
      %v1971 = vunpack.c.l.b16 %v1895
      %v1972 = vpack.c.b16 %v1936, %v1935
      %v1973 = vpack.c.b16 %v1938, %v1937
      %v1974 = vpack.c.b16 %v1940, %v1939
      %v1975 = vpack.c.b16 %v1942, %v1941
      %v1976 = vpack.c.b16 %v1944, %v1943
      %v1977 = vpack.c.b16 %v1946, %v1945
      %v1978 = vpack.c.b16 %v1948, %v1947
      %v1979 = vpack.c.b16 %v1950, %v1949
      %v1980 = vpack.c.b16 %v1952, %v1951
      %v1981 = vpack.c.b16 %v1954, %v1953
      %v1982 = vpack.c.b16 %v1956, %v1955
      %v1983 = vpack.c.b16 %v1958, %v1957
      %v1984 = vpack.c.b16 %v1960, %v1959
      %v1985 = vpack.c.b16 %v1962, %v1961
      %v1986 = vpack.c.b16 %v1964, %v1963
      %v1987 = vpack.c.b16 %v1966, %v1965
      %v1988 = vpack.c.b16 %v1968, %v1967
      %v1989 = vpack.c.b16 %v1970, %v1969
      %v1990 = vpack.c.b16 %v1971, %v1971
      %vm1991 = vsmask.f32 7424
      %v1993 = vshrl.u32 %v1972, 16
      %v1995 = vshll.u32 %v1972, 16
      %v1997 = vrot.slane %v1995, 1
      %v1998 = vor.u32 %v1993, %v1997
      %v2000 = vshll.u32 %v1973, 16
      %v2002 = vrot.slane %v2000, 1
      %v2003 = vsel %vm1991, %v1998, %v2002
      %v2004 = vshrl.u32 %v1973, 16
      %v2006 = vor.u32 %v2004, %v2002
      %v2008 = vshll.u32 %v1974, 16
      %v2010 = vrot.slane %v2008, 1
      %v2011 = vsel %vm1991, %v2006, %v2010
      %v2012 = vshrl.u32 %v1974, 16
      %v2014 = vor.u32 %v2012, %v2010
      %v2016 = vshll.u32 %v1975, 16
      %v2018 = vrot.slane %v2016, 1
      %v2019 = vsel %vm1991, %v2014, %v2018
      %v2020 = vshrl.u32 %v1975, 16
      %v2022 = vor.u32 %v2020, %v2018
      %v2024 = vshll.u32 %v1976, 16
      %v2026 = vrot.slane %v2024, 1
      %v2027 = vsel %vm1991, %v2022, %v2026
      %v2028 = vshrl.u32 %v1976, 16
      %v2030 = vor.u32 %v2028, %v2026
      %v2032 = vshll.u32 %v1977, 16
      %v2034 = vrot.slane %v2032, 1
      %v2035 = vsel %vm1991, %v2030, %v2034
      %v2036 = vshrl.u32 %v1977, 16
      %v2038 = vor.u32 %v2036, %v2034
      %v2040 = vshll.u32 %v1978, 16
      %v2042 = vrot.slane %v2040, 1
      %v2043 = vsel %vm1991, %v2038, %v2042
      %v2044 = vshrl.u32 %v1978, 16
      %v2046 = vor.u32 %v2044, %v2042
      %v2048 = vshll.u32 %v1979, 16
      %v2050 = vrot.slane %v2048, 1
      %v2051 = vsel %vm1991, %v2046, %v2050
      %v2052 = vshrl.u32 %v1979, 16
      %v2054 = vor.u32 %v2052, %v2050
      %v2056 = vshll.u32 %v1980, 16
      %v2058 = vrot.slane %v2056, 1
      %v2059 = vsel %vm1991, %v2054, %v2058
      %v2060 = vshrl.u32 %v1980, 16
      %v2062 = vor.u32 %v2060, %v2058
      %v2064 = vshll.u32 %v1981, 16
      %v2066 = vrot.slane %v2064, 1
      %v2067 = vsel %vm1991, %v2062, %v2066
      %v2068 = vshrl.u32 %v1981, 16
      %v2070 = vor.u32 %v2068, %v2066
      %v2072 = vshll.u32 %v1982, 16
      %v2074 = vrot.slane %v2072, 1
      %v2075 = vsel %vm1991, %v2070, %v2074
      %v2076 = vshrl.u32 %v1982, 16
      %v2078 = vor.u32 %v2076, %v2074
      %v2080 = vshll.u32 %v1983, 16
      %v2082 = vrot.slane %v2080, 1
      %v2083 = vsel %vm1991, %v2078, %v2082
      %v2084 = vshrl.u32 %v1983, 16
      %v2086 = vor.u32 %v2084, %v2082
      %v2088 = vshll.u32 %v1984, 16
      %v2090 = vrot.slane %v2088, 1
      %v2091 = vsel %vm1991, %v2086, %v2090
      %v2092 = vshrl.u32 %v1984, 16
      %v2094 = vor.u32 %v2092, %v2090
      %v2096 = vshll.u32 %v1985, 16
      %v2098 = vrot.slane %v2096, 1
      %v2099 = vsel %vm1991, %v2094, %v2098
      %v2100 = vshrl.u32 %v1985, 16
      %v2102 = vor.u32 %v2100, %v2098
      %v2104 = vshll.u32 %v1986, 16
      %v2106 = vrot.slane %v2104, 1
      %v2107 = vsel %vm1991, %v2102, %v2106
      %v2108 = vshrl.u32 %v1986, 16
      %v2110 = vor.u32 %v2108, %v2106
      %v2112 = vshll.u32 %v1987, 16
      %v2114 = vrot.slane %v2112, 1
      %v2115 = vsel %vm1991, %v2110, %v2114
      %v2116 = vshrl.u32 %v1987, 16
      %v2118 = vor.u32 %v2116, %v2114
      %v2120 = vshll.u32 %v1988, 16
      %v2122 = vrot.slane %v2120, 1
      %v2123 = vsel %vm1991, %v2118, %v2122
      %v2124 = vshrl.u32 %v1988, 16
      %v2126 = vor.u32 %v2124, %v2122
      %v2128 = vshll.u32 %v1989, 16
      %v2130 = vrot.slane %v2128, 1
      %v2131 = vsel %vm1991, %v2126, %v2130
      %v2132 = vshrl.u32 %v1989, 16
      %v2134 = vor.u32 %v2132, %v2130
      %v2136 = vshll.u32 %v1990, 16
      %v2138 = vrot.slane %v2136, 1
      %v2139 = vsel %vm1991, %v2134, %v2138
      %v2141 = vsel %vm1273, %v2003, 0
      %v2144 = vsel %vm1273, %v2011, 0
      %v2147 = vsel %vm1273, %v2019, 0
      %v2150 = vsel %vm1273, %v2027, 0
      %v2153 = vsel %vm1273, %v2035, 0
      %v2156 = vsel %vm1273, %v2043, 0
      %v2159 = vsel %vm1273, %v2051, 0
      %v2162 = vsel %vm1273, %v2059, 0
      %v2165 = vsel %vm1273, %v2067, 0
      %v2168 = vsel %vm1273, %v2075, 0
      %v2171 = vsel %vm1273, %v2083, 0
      %v2174 = vsel %vm1273, %v2091, 0
      %v2177 = vsel %vm1273, %v2099, 0
      %v2180 = vsel %vm1273, %v2107, 0
      %v2183 = vsel %vm1273, %v2115, 0
      %v2186 = vsel %vm1273, %v2123, 0
      %v2189 = vsel %vm1273, %v2131, 0
      %v2192 = vsel %vm1273, %v2139, 0
      %v2195 = vsel %vm1328, %v1897, 0
      %2197 = vmatpush.bf16.msra.mxu0 0
      %2198 = vmatpush.bf16.msra.mxu0 0
      %2199 = vmatpush.bf16.msra.mxu0 0
      %2200 = vmatpush.bf16.msra.mxu0 0
      %2201 = vmatpush.bf16.msra.mxu0 0
      %2202 = vmatpush.bf16.msra.mxu0 0
      %2203 = vmatpush.bf16.msra.mxu0 0
      %2204 = vmatpush.bf16.msra.mxu0 %v2195
      %2205 = vmatmul.bf16.gmra.mxu0 %v2141
      %v2206 = vpop.f32.mrf.mxu0
      %v2207 = vadd.f32 0.0, %v2206
      %v2208 = vpop.f32.mrf.mxu0
      %v2209 = vadd.f32 0.0, %v2208
      %2210 = vmatmul.bf16.gmra.mxu0 %v2144
      %v2211 = vpop.f32.mrf.mxu0
      %v2212 = vadd.f32 0.0, %v2211
      %v2213 = vpop.f32.mrf.mxu0
      %v2214 = vadd.f32 0.0, %v2213
      %2215 = vmatmul.bf16.gmra.mxu0 %v2147
      %v2216 = vpop.f32.mrf.mxu0
      %v2217 = vadd.f32 0.0, %v2216
      %v2218 = vpop.f32.mrf.mxu0
      %v2219 = vadd.f32 0.0, %v2218
      %2220 = vmatmul.bf16.gmra.mxu0 %v2150
      %v2221 = vpop.f32.mrf.mxu0
      %v2222 = vadd.f32 0.0, %v2221
      %v2223 = vpop.f32.mrf.mxu0
      %v2224 = vadd.f32 0.0, %v2223
      %2225 = vmatmul.bf16.gmra.mxu0 %v2153
      %v2226 = vpop.f32.mrf.mxu0
      %v2227 = vadd.f32 0.0, %v2226
      %v2228 = vpop.f32.mrf.mxu0
      %v2229 = vadd.f32 0.0, %v2228
      %2230 = vmatmul.bf16.gmra.mxu0 %v2156
      %v2231 = vpop.f32.mrf.mxu0
      %v2232 = vadd.f32 0.0, %v2231
      %v2233 = vpop.f32.mrf.mxu0
      %v2234 = vadd.f32 0.0, %v2233
      %2235 = vmatmul.bf16.gmra.mxu0 %v2159
      %v2236 = vpop.f32.mrf.mxu0
      %v2237 = vadd.f32 0.0, %v2236
      %v2238 = vpop.f32.mrf.mxu0
      %v2239 = vadd.f32 0.0, %v2238
      %2240 = vmatmul.bf16.gmra.mxu0 %v2162
      %v2241 = vpop.f32.mrf.mxu0
      %v2242 = vadd.f32 0.0, %v2241
      %v2243 = vpop.f32.mrf.mxu0
      %v2244 = vadd.f32 0.0, %v2243
      %2245 = vmatmul.bf16.gmra.mxu0 %v2165
      %v2246 = vpop.f32.mrf.mxu0
      %v2247 = vadd.f32 0.0, %v2246
      %v2248 = vpop.f32.mrf.mxu0
      %v2249 = vadd.f32 0.0, %v2248
      %2250 = vmatmul.bf16.gmra.mxu0 %v2168
      %v2251 = vpop.f32.mrf.mxu0
      %v2252 = vadd.f32 0.0, %v2251
      %v2253 = vpop.f32.mrf.mxu0
      %v2254 = vadd.f32 0.0, %v2253
      %2255 = vmatmul.bf16.gmra.mxu0 %v2171
      %v2256 = vpop.f32.mrf.mxu0
      %v2257 = vadd.f32 0.0, %v2256
      %v2258 = vpop.f32.mrf.mxu0
      %v2259 = vadd.f32 0.0, %v2258
      %2260 = vmatmul.bf16.gmra.mxu0 %v2174
      %v2261 = vpop.f32.mrf.mxu0
      %v2262 = vadd.f32 0.0, %v2261
      %v2263 = vpop.f32.mrf.mxu0
      %v2264 = vadd.f32 0.0, %v2263
      %2265 = vmatmul.bf16.gmra.mxu0 %v2177
      %v2266 = vpop.f32.mrf.mxu0
      %v2267 = vadd.f32 0.0, %v2266
      %v2268 = vpop.f32.mrf.mxu0
      %v2269 = vadd.f32 0.0, %v2268
      %2270 = vmatmul.bf16.gmra.mxu0 %v2180
      %v2271 = vpop.f32.mrf.mxu0
      %v2272 = vadd.f32 0.0, %v2271
      %v2273 = vpop.f32.mrf.mxu0
      %v2274 = vadd.f32 0.0, %v2273
      %2275 = vmatmul.bf16.gmra.mxu0 %v2183
      %v2276 = vpop.f32.mrf.mxu0
      %v2277 = vadd.f32 0.0, %v2276
      %v2278 = vpop.f32.mrf.mxu0
      %v2279 = vadd.f32 0.0, %v2278
      %2280 = vmatmul.bf16.gmra.mxu0 %v2186
      %v2281 = vpop.f32.mrf.mxu0
      %v2282 = vadd.f32 0.0, %v2281
      %v2283 = vpop.f32.mrf.mxu0
      %v2284 = vadd.f32 0.0, %v2283
      %2285 = vmatmul.bf16.gmra.mxu0 %v2189
      %v2286 = vpop.f32.mrf.mxu0
      %v2287 = vadd.f32 0.0, %v2286
      %v2288 = vpop.f32.mrf.mxu0
      %v2289 = vadd.f32 0.0, %v2288
      %2290 = vmatmul.bf16.gmra.mxu0 %v2192
      %v2291 = vpop.f32.mrf.mxu0
      %v2292 = vadd.f32 0.0, %v2291
      %v2293 = vpop.f32.mrf.mxu0
      %v2294 = vadd.f32 0.0, %v2293
      %2295 = vdwg.mxu0
      %v2296 = vld [vmem:[#allocation3] sm:$0xff]
      %v2297 = vld [vmem:[#allocation3 + $0x8] sm:$0xff]
      %v2298 = vld [vmem:[#allocation3 + $0x10] sm:$0xff]
      %v2299 = vld [vmem:[#allocation3 + $0x18] sm:$0xff]
      %v2300 = vld [vmem:[#allocation3 + $0x20] sm:$0xff]
      %v2301 = vld [vmem:[#allocation3 + $0x28] sm:$0xff]
      %v2302 = vld [vmem:[#allocation3 + $0x30] sm:$0xff]
      %v2303 = vld [vmem:[#allocation3 + $0x38] sm:$0xff]
      %v2304 = vld [vmem:[#allocation3 + $0x40] sm:$0xff]
      %v2305 = vld [vmem:[#allocation3 + $0x48] sm:$0xff]
      %v2306 = vld [vmem:[#allocation3 + $0x50] sm:$0xff]
      %v2307 = vld [vmem:[#allocation3 + $0x58] sm:$0xff]
      %v2308 = vld [vmem:[#allocation3 + $0x60] sm:$0xff]
      %v2309 = vld [vmem:[#allocation3 + $0x68] sm:$0xff]
      %v2310 = vld [vmem:[#allocation3 + $0x70] sm:$0xff]
      %v2311 = vld [vmem:[#allocation3 + $0x78] sm:$0xff]
      %v2312 = vld [vmem:[#allocation3 + $0x80] sm:$0xff]
      %v2313 = vld [vmem:[#allocation3 + $0x88] sm:$0xff]
      %v2314 = vld [vmem:[#allocation3 + $0x90] sm:$0xff]
      %v2315 = vld [vmem:[#allocation3 + $0x98] sm:$0xff]
      %v2316 = vld [vmem:[#allocation3 + $0xa0] sm:$0xff]
      %v2317 = vld [vmem:[#allocation3 + $0xa8] sm:$0xff]
      %v2318 = vld [vmem:[#allocation3 + $0xb0] sm:$0xff]
      %v2319 = vld [vmem:[#allocation3 + $0xb8] sm:$0xff]
      %v2320 = vld [vmem:[#allocation3 + $0xc0] sm:$0xff]
      %v2321 = vld [vmem:[#allocation3 + $0xc8] sm:$0xff]
      %v2322 = vld [vmem:[#allocation3 + $0xd0] sm:$0xff]
      %v2323 = vld [vmem:[#allocation3 + $0xd8] sm:$0xff]
      %v2324 = vld [vmem:[#allocation3 + $0xe0] sm:$0xff]
      %v2325 = vld [vmem:[#allocation3 + $0xe8] sm:$0xff]
      %v2326 = vld [vmem:[#allocation3 + $0xf0] sm:$0xff]
      %v2327 = vld [vmem:[#allocation3 + $0xf8] sm:$0xff]
      %v2328 = vld [vmem:[#allocation3 + $0x100] sm:$0xff]
      %v2329 = vld [vmem:[#allocation3 + $0x108] sm:$0xff]
      %v2330 = vld [vmem:[#allocation3 + $0x110] sm:$0xff]
      %v2331 = vld [vmem:[#allocation3 + $0x118] sm:$0xff]
      %v2332 = vadd.f32 %v2296, %v2207
      %v2333 = vadd.f32 %v2297, %v2209
      %v2334 = vadd.f32 %v2298, %v2212
      %v2335 = vadd.f32 %v2299, %v2214
      %v2336 = vadd.f32 %v2300, %v2217
      %v2337 = vadd.f32 %v2301, %v2219
      %v2338 = vadd.f32 %v2302, %v2222
      %v2339 = vadd.f32 %v2303, %v2224
      %v2340 = vadd.f32 %v2304, %v2227
      %v2341 = vadd.f32 %v2305, %v2229
      %v2342 = vadd.f32 %v2306, %v2232
      %v2343 = vadd.f32 %v2307, %v2234
      %v2344 = vadd.f32 %v2308, %v2237
      %v2345 = vadd.f32 %v2309, %v2239
      %v2346 = vadd.f32 %v2310, %v2242
      %v2347 = vadd.f32 %v2311, %v2244
      %v2348 = vadd.f32 %v2312, %v2247
      %v2349 = vadd.f32 %v2313, %v2249
      %v2350 = vadd.f32 %v2314, %v2252
      %v2351 = vadd.f32 %v2315, %v2254
      %v2352 = vadd.f32 %v2316, %v2257
      %v2353 = vadd.f32 %v2317, %v2259
      %v2354 = vadd.f32 %v2318, %v2262
      %v2355 = vadd.f32 %v2319, %v2264
      %v2356 = vadd.f32 %v2320, %v2267
      %v2357 = vadd.f32 %v2321, %v2269
      %v2358 = vadd.f32 %v2322, %v2272
      %v2359 = vadd.f32 %v2323, %v2274
      %v2360 = vadd.f32 %v2324, %v2277
      %v2361 = vadd.f32 %v2325, %v2279
      %v2362 = vadd.f32 %v2326, %v2282
      %v2363 = vadd.f32 %v2327, %v2284
      %v2364 = vadd.f32 %v2328, %v2287
      %v2365 = vadd.f32 %v2329, %v2289
      %v2366 = vadd.f32 %v2330, %v2292
      %v2367 = vadd.f32 %v2331, %v2294
      %2368 = vst [vmem:[#allocation3] sm:$0xff] %v2332
      %2369 = vst [vmem:[#allocation3 + $0x8] sm:$0xff] %v2333
      %2370 = vst [vmem:[#allocation3 + $0x10] sm:$0xff] %v2334
      %2371 = vst [vmem:[#allocation3 + $0x18] sm:$0xff] %v2335
      %2372 = vst [vmem:[#allocation3 + $0x20] sm:$0xff] %v2336
      %2373 = vst [vmem:[#allocation3 + $0x28] sm:$0xff] %v2337
      %2374 = vst [vmem:[#allocation3 + $0x30] sm:$0xff] %v2338
      %2375 = vst [vmem:[#allocation3 + $0x38] sm:$0xff] %v2339
      %2376 = vst [vmem:[#allocation3 + $0x40] sm:$0xff] %v2340
      %2377 = vst [vmem:[#allocation3 + $0x48] sm:$0xff] %v2341
      %2378 = vst [vmem:[#allocation3 + $0x50] sm:$0xff] %v2342
      %2379 = vst [vmem:[#allocation3 + $0x58] sm:$0xff] %v2343
      %2380 = vst [vmem:[#allocation3 + $0x60] sm:$0xff] %v2344
      %2381 = vst [vmem:[#allocation3 + $0x68] sm:$0xff] %v2345
      %2382 = vst [vmem:[#allocation3 + $0x70] sm:$0xff] %v2346
      %2383 = vst [vmem:[#allocation3 + $0x78] sm:$0xff] %v2347
      %2384 = vst [vmem:[#allocation3 + $0x80] sm:$0xff] %v2348
      %2385 = vst [vmem:[#allocation3 + $0x88] sm:$0xff] %v2349
      %2386 = vst [vmem:[#allocation3 + $0x90] sm:$0xff] %v2350
      %2387 = vst [vmem:[#allocation3 + $0x98] sm:$0xff] %v2351
      %2388 = vst [vmem:[#allocation3 + $0xa0] sm:$0xff] %v2352
      %2389 = vst [vmem:[#allocation3 + $0xa8] sm:$0xff] %v2353
      %2390 = vst [vmem:[#allocation3 + $0xb0] sm:$0xff] %v2354
      %2391 = vst [vmem:[#allocation3 + $0xb8] sm:$0xff] %v2355
      %2392 = vst [vmem:[#allocation3 + $0xc0] sm:$0xff] %v2356
      %2393 = vst [vmem:[#allocation3 + $0xc8] sm:$0xff] %v2357
      %2394 = vst [vmem:[#allocation3 + $0xd0] sm:$0xff] %v2358
      %2395 = vst [vmem:[#allocation3 + $0xd8] sm:$0xff] %v2359
      %2396 = vst [vmem:[#allocation3 + $0xe0] sm:$0xff] %v2360
      %2397 = vst [vmem:[#allocation3 + $0xe8] sm:$0xff] %v2361
      %2398 = vst [vmem:[#allocation3 + $0xf0] sm:$0xff] %v2362
      %2399 = vst [vmem:[#allocation3 + $0xf8] sm:$0xff] %v2363
      %2400 = vst [vmem:[#allocation3 + $0x100] sm:$0xff] %v2364
      %2401 = vst [vmem:[#allocation3 + $0x108] sm:$0xff] %v2365
      %2402 = vst [vmem:[#allocation3 + $0x110] sm:$0xff] %v2366
      %2403 = vst [vmem:[#allocation3 + $0x118] sm:$0xff] %v2367
      %v2404 = vld [vmem:[#allocation2 + $0xc] sm:$0xf]
      %v2405 = vld [vmem:[#allocation2 + $0x10] sm:$0xf]
      %v2406 = vld [vmem:[#allocation2 + $0x14] sm:$0xf]
      %v2407 = vld [vmem:[#allocation2 + $0x18] sm:$0xf]
      %v2408 = vld [vmem:[#allocation2 + $0x1c] sm:$0xf]
      %v2409 = vld [vmem:[#allocation2 + $0x20] sm:$0xf]
      %v2410 = vld [vmem:[#allocation2 + $0x24] sm:$0xf]
      %v2411 = vld [vmem:[#allocation2 + $0x28] sm:$0xf]
      %v2412 = vld [vmem:[#allocation2 + $0x2c] sm:$0xf]
      %v2413 = vld [vmem:[#allocation2 + $0x30] sm:$0xf]
      %v2414 = vld [vmem:[#allocation2 + $0x34] sm:$0xf]
      %v2415 = vld [vmem:[#allocation2 + $0x38] sm:$0xf]
      %v2416 = vld [vmem:[#allocation2 + $0x3c] sm:$0xf]
      %v2417 = vld [vmem:[#allocation2 + $0x40] sm:$0xf]
      %v2418 = vld [vmem:[#allocation2 + $0x44] sm:$0xf]
      %v2419 = vld [vmem:[#allocation2 + $0x48] sm:$0xf]
      %v2420 = vld [vmem:[#allocation2 + $0x4c] sm:$0xf]
      %v2421 = vld [vmem:[#allocation2 + $0x50] sm:$0xf]
      %v2422 = vld [vmem:[#allocation2 + $0x54] sm:$0xf]
      %v2423 = vld [vmem:[#allocation2 + $0x58] sm:$0xf]
      %v2424 = vld [vmem:[#allocation2 + $0x5c] sm:$0xf]
      %v2425 = vld [vmem:[#allocation2 + $0x60] sm:$0xf]
      %v2426 = vld [vmem:[#allocation2 + $0x64] sm:$0xf]
      %v2427 = vld [vmem:[#allocation2 + $0x68] sm:$0xf]
      %v2428 = vld [vmem:[#allocation2 + $0x6c] sm:$0xf]
      %v2429 = vld [vmem:[#allocation2 + $0x70] sm:$0xf]
      %v2430 = vld [vmem:[#allocation2 + $0x74] sm:$0xf]
      %v2431 = vld [vmem:[#allocation2 + $0x78] sm:$0xf]
      %v2432 = vld [vmem:[#allocation2 + $0x7c] sm:$0xf]
      %v2433 = vld [vmem:[#allocation2 + $0x80] sm:$0xf]
      %v2434 = vld [vmem:[#allocation2 + $0x84] sm:$0xf]
      %v2435 = vld [vmem:[#allocation2 + $0x88] sm:$0xf]
      %v2436 = vld [vmem:[#allocation2 + $0x8c] sm:$0xf]
      %v2437 = vld [vmem:[#allocation2 + $0x90] sm:$0xf]
      %v2438 = vld [vmem:[#allocation2 + $0x94] sm:$0xf]
      %v2439 = vld [vmem:[#allocation2 + $0x98] sm:$0xf]
      %v2440 = vld [vmem:[#allocation2 + $0x9c] sm:$0x1]
      %s2441 = scalar_lea.vmem %s4, 12
      %v2442 = vld [vmem:[%s2441] sm:$0xf]
      %v2480 = vunpack.c.l.b16 %v2404
      %v2481 = vunpack.c.l.b16 %v2405
      %v2482 = vunpack.c.l.b16 %v2406
      %v2483 = vunpack.c.l.b16 %v2407
      %v2484 = vunpack.c.l.b16 %v2408
      %v2485 = vunpack.c.l.b16 %v2409
      %v2486 = vunpack.c.l.b16 %v2410
      %v2487 = vunpack.c.l.b16 %v2411
      %v2488 = vunpack.c.l.b16 %v2412
      %v2489 = vunpack.c.l.b16 %v2413
      %v2490 = vunpack.c.l.b16 %v2414
      %v2491 = vunpack.c.l.b16 %v2415
      %v2492 = vunpack.c.l.b16 %v2416
      %v2493 = vunpack.c.l.b16 %v2417
      %v2494 = vunpack.c.l.b16 %v2418
      %v2495 = vunpack.c.l.b16 %v2419
      %v2496 = vunpack.c.l.b16 %v2420
      %v2497 = vunpack.c.l.b16 %v2421
      %v2498 = vunpack.c.l.b16 %v2422
      %v2499 = vunpack.c.l.b16 %v2423
      %v2500 = vunpack.c.l.b16 %v2424
      %v2501 = vunpack.c.l.b16 %v2425
      %v2502 = vunpack.c.l.b16 %v2426
      %v2503 = vunpack.c.l.b16 %v2427
      %v2504 = vunpack.c.l.b16 %v2428
      %v2505 = vunpack.c.l.b16 %v2429
      %v2506 = vunpack.c.l.b16 %v2430
      %v2507 = vunpack.c.l.b16 %v2431
      %v2508 = vunpack.c.l.b16 %v2432
      %v2509 = vunpack.c.l.b16 %v2433
      %v2510 = vunpack.c.l.b16 %v2434
      %v2511 = vunpack.c.l.b16 %v2435
      %v2512 = vunpack.c.l.b16 %v2436
      %v2513 = vunpack.c.l.b16 %v2437
      %v2514 = vunpack.c.l.b16 %v2438
      %v2515 = vunpack.c.l.b16 %v2439
      %v2516 = vunpack.c.l.b16 %v2440
      %v2517 = vpack.c.b16 %v2481, %v2480
      %v2518 = vpack.c.b16 %v2483, %v2482
      %v2519 = vpack.c.b16 %v2485, %v2484
      %v2520 = vpack.c.b16 %v2487, %v2486
      %v2521 = vpack.c.b16 %v2489, %v2488
      %v2522 = vpack.c.b16 %v2491, %v2490
      %v2523 = vpack.c.b16 %v2493, %v2492
      %v2524 = vpack.c.b16 %v2495, %v2494
      %v2525 = vpack.c.b16 %v2497, %v2496
      %v2526 = vpack.c.b16 %v2499, %v2498
      %v2527 = vpack.c.b16 %v2501, %v2500
      %v2528 = vpack.c.b16 %v2503, %v2502
      %v2529 = vpack.c.b16 %v2505, %v2504
      %v2530 = vpack.c.b16 %v2507, %v2506
      %v2531 = vpack.c.b16 %v2509, %v2508
      %v2532 = vpack.c.b16 %v2511, %v2510
      %v2533 = vpack.c.b16 %v2513, %v2512
      %v2534 = vpack.c.b16 %v2515, %v2514
      %v2535 = vpack.c.b16 %v2516, %v2516
      %v2537 = vshrl.u32 %v2517, 16
      %v2539 = vshll.u32 %v2517, 16
      %v2541 = vrot.slane %v2539, 1
      %v2542 = vor.u32 %v2537, %v2541
      %v2544 = vshll.u32 %v2518, 16
      %v2546 = vrot.slane %v2544, 1
      %v2547 = vsel %vm1991, %v2542, %v2546
      %v2548 = vshrl.u32 %v2518, 16
      %v2550 = vor.u32 %v2548, %v2546
      %v2552 = vshll.u32 %v2519, 16
      %v2554 = vrot.slane %v2552, 1
      %v2555 = vsel %vm1991, %v2550, %v2554
      %v2556 = vshrl.u32 %v2519, 16
      %v2558 = vor.u32 %v2556, %v2554
      %v2560 = vshll.u32 %v2520, 16
      %v2562 = vrot.slane %v2560, 1
      %v2563 = vsel %vm1991, %v2558, %v2562
      %v2564 = vshrl.u32 %v2520, 16
      %v2566 = vor.u32 %v2564, %v2562
      %v2568 = vshll.u32 %v2521, 16
      %v2570 = vrot.slane %v2568, 1
      %v2571 = vsel %vm1991, %v2566, %v2570
      %v2572 = vshrl.u32 %v2521, 16
      %v2574 = vor.u32 %v2572, %v2570
      %v2576 = vshll.u32 %v2522, 16
      %v2578 = vrot.slane %v2576, 1
      %v2579 = vsel %vm1991, %v2574, %v2578
      %v2580 = vshrl.u32 %v2522, 16
      %v2582 = vor.u32 %v2580, %v2578
      %v2584 = vshll.u32 %v2523, 16
      %v2586 = vrot.slane %v2584, 1
      %v2587 = vsel %vm1991, %v2582, %v2586
      %v2588 = vshrl.u32 %v2523, 16
      %v2590 = vor.u32 %v2588, %v2586
      %v2592 = vshll.u32 %v2524, 16
      %v2594 = vrot.slane %v2592, 1
      %v2595 = vsel %vm1991, %v2590, %v2594
      %v2596 = vshrl.u32 %v2524, 16
      %v2598 = vor.u32 %v2596, %v2594
      %v2600 = vshll.u32 %v2525, 16
      %v2602 = vrot.slane %v2600, 1
      %v2603 = vsel %vm1991, %v2598, %v2602
      %v2604 = vshrl.u32 %v2525, 16
      %v2606 = vor.u32 %v2604, %v2602
      %v2608 = vshll.u32 %v2526, 16
      %v2610 = vrot.slane %v2608, 1
      %v2611 = vsel %vm1991, %v2606, %v2610
      %v2612 = vshrl.u32 %v2526, 16
      %v2614 = vor.u32 %v2612, %v2610
      %v2616 = vshll.u32 %v2527, 16
      %v2618 = vrot.slane %v2616, 1
      %v2619 = vsel %vm1991, %v2614, %v2618
      %v2620 = vshrl.u32 %v2527, 16
      %v2622 = vor.u32 %v2620, %v2618
      %v2624 = vshll.u32 %v2528, 16
      %v2626 = vrot.slane %v2624, 1
      %v2627 = vsel %vm1991, %v2622, %v2626
      %v2628 = vshrl.u32 %v2528, 16
      %v2630 = vor.u32 %v2628, %v2626
      %v2632 = vshll.u32 %v2529, 16
      %v2634 = vrot.slane %v2632, 1
      %v2635 = vsel %vm1991, %v2630, %v2634
      %v2636 = vshrl.u32 %v2529, 16
      %v2638 = vor.u32 %v2636, %v2634
      %v2640 = vshll.u32 %v2530, 16
      %v2642 = vrot.slane %v2640, 1
      %v2643 = vsel %vm1991, %v2638, %v2642
      %v2644 = vshrl.u32 %v2530, 16
      %v2646 = vor.u32 %v2644, %v2642
      %v2648 = vshll.u32 %v2531, 16
      %v2650 = vrot.slane %v2648, 1
      %v2651 = vsel %vm1991, %v2646, %v2650
      %v2652 = vshrl.u32 %v2531, 16
      %v2654 = vor.u32 %v2652, %v2650
      %v2656 = vshll.u32 %v2532, 16
      %v2658 = vrot.slane %v2656, 1
      %v2659 = vsel %vm1991, %v2654, %v2658
      %v2660 = vshrl.u32 %v2532, 16
      %v2662 = vor.u32 %v2660, %v2658
      %v2664 = vshll.u32 %v2533, 16
      %v2666 = vrot.slane %v2664, 1
      %v2667 = vsel %vm1991, %v2662, %v2666
      %v2668 = vshrl.u32 %v2533, 16
      %v2670 = vor.u32 %v2668, %v2666
      %v2672 = vshll.u32 %v2534, 16
      %v2674 = vrot.slane %v2672, 1
      %v2675 = vsel %vm1991, %v2670, %v2674
      %v2676 = vshrl.u32 %v2534, 16
      %v2678 = vor.u32 %v2676, %v2674
      %v2680 = vshll.u32 %v2535, 16
      %v2682 = vrot.slane %v2680, 1
      %v2683 = vsel %vm1991, %v2678, %v2682
      %v2685 = vsel %vm1273, %v2547, 0
      %v2688 = vsel %vm1273, %v2555, 0
      %v2691 = vsel %vm1273, %v2563, 0
      %v2694 = vsel %vm1273, %v2571, 0
      %v2697 = vsel %vm1273, %v2579, 0
      %v2700 = vsel %vm1273, %v2587, 0
      %v2703 = vsel %vm1273, %v2595, 0
      %v2706 = vsel %vm1273, %v2603, 0
      %v2709 = vsel %vm1273, %v2611, 0
      %v2712 = vsel %vm1273, %v2619, 0
      %v2715 = vsel %vm1273, %v2627, 0
      %v2718 = vsel %vm1273, %v2635, 0
      %v2721 = vsel %vm1273, %v2643, 0
      %v2724 = vsel %vm1273, %v2651, 0
      %v2727 = vsel %vm1273, %v2659, 0
      %v2730 = vsel %vm1273, %v2667, 0
      %v2733 = vsel %vm1273, %v2675, 0
      %v2736 = vsel %vm1273, %v2683, 0
      %v2739 = vsel %vm1328, %v2442, 0
      %2741 = vmatpush.bf16.msra.mxu0 0
      %2742 = vmatpush.bf16.msra.mxu0 0
      %2743 = vmatpush.bf16.msra.mxu0 0
      %2744 = vmatpush.bf16.msra.mxu0 0
      %2745 = vmatpush.bf16.msra.mxu0 0
      %2746 = vmatpush.bf16.msra.mxu0 0
      %2747 = vmatpush.bf16.msra.mxu0 0
      %2748 = vmatpush.bf16.msra.mxu0 %v2739
      %2749 = vmatmul.bf16.gmra.mxu0 %v2685
      %v2750 = vpop.f32.mrf.mxu0
      %v2751 = vadd.f32 0.0, %v2750
      %v2752 = vpop.f32.mrf.mxu0
      %v2753 = vadd.f32 0.0, %v2752
      %2754 = vmatmul.bf16.gmra.mxu0 %v2688
      %v2755 = vpop.f32.mrf.mxu0
      %v2756 = vadd.f32 0.0, %v2755
      %v2757 = vpop.f32.mrf.mxu0
      %v2758 = vadd.f32 0.0, %v2757
      %2759 = vmatmul.bf16.gmra.mxu0 %v2691
      %v2760 = vpop.f32.mrf.mxu0
      %v2761 = vadd.f32 0.0, %v2760
      %v2762 = vpop.f32.mrf.mxu0
      %v2763 = vadd.f32 0.0, %v2762
      %2764 = vmatmul.bf16.gmra.mxu0 %v2694
      %v2765 = vpop.f32.mrf.mxu0
      %v2766 = vadd.f32 0.0, %v2765
      %v2767 = vpop.f32.mrf.mxu0
      %v2768 = vadd.f32 0.0, %v2767
      %2769 = vmatmul.bf16.gmra.mxu0 %v2697
      %v2770 = vpop.f32.mrf.mxu0
      %v2771 = vadd.f32 0.0, %v2770
      %v2772 = vpop.f32.mrf.mxu0
      %v2773 = vadd.f32 0.0, %v2772
      %2774 = vmatmul.bf16.gmra.mxu0 %v2700
      %v2775 = vpop.f32.mrf.mxu0
      %v2776 = vadd.f32 0.0, %v2775
      %v2777 = vpop.f32.mrf.mxu0
      %v2778 = vadd.f32 0.0, %v2777
      %2779 = vmatmul.bf16.gmra.mxu0 %v2703
      %v2780 = vpop.f32.mrf.mxu0
      %v2781 = vadd.f32 0.0, %v2780
      %v2782 = vpop.f32.mrf.mxu0
      %v2783 = vadd.f32 0.0, %v2782
      %2784 = vmatmul.bf16.gmra.mxu0 %v2706
      %v2785 = vpop.f32.mrf.mxu0
      %v2786 = vadd.f32 0.0, %v2785
      %v2787 = vpop.f32.mrf.mxu0
      %v2788 = vadd.f32 0.0, %v2787
      %2789 = vmatmul.bf16.gmra.mxu0 %v2709
      %v2790 = vpop.f32.mrf.mxu0
      %v2791 = vadd.f32 0.0, %v2790
      %v2792 = vpop.f32.mrf.mxu0
      %v2793 = vadd.f32 0.0, %v2792
      %2794 = vmatmul.bf16.gmra.mxu0 %v2712
      %v2795 = vpop.f32.mrf.mxu0
      %v2796 = vadd.f32 0.0, %v2795
      %v2797 = vpop.f32.mrf.mxu0
      %v2798 = vadd.f32 0.0, %v2797
      %2799 = vmatmul.bf16.gmra.mxu0 %v2715
      %v2800 = vpop.f32.mrf.mxu0
      %v2801 = vadd.f32 0.0, %v2800
      %v2802 = vpop.f32.mrf.mxu0
      %v2803 = vadd.f32 0.0, %v2802
      %2804 = vmatmul.bf16.gmra.mxu0 %v2718
      %v2805 = vpop.f32.mrf.mxu0
      %v2806 = vadd.f32 0.0, %v2805
      %v2807 = vpop.f32.mrf.mxu0
      %v2808 = vadd.f32 0.0, %v2807
      %2809 = vmatmul.bf16.gmra.mxu0 %v2721
      %v2810 = vpop.f32.mrf.mxu0
      %v2811 = vadd.f32 0.0, %v2810
      %v2812 = vpop.f32.mrf.mxu0
      %v2813 = vadd.f32 0.0, %v2812
      %2814 = vmatmul.bf16.gmra.mxu0 %v2724
      %v2815 = vpop.f32.mrf.mxu0
      %v2816 = vadd.f32 0.0, %v2815
      %v2817 = vpop.f32.mrf.mxu0
      %v2818 = vadd.f32 0.0, %v2817
      %2819 = vmatmul.bf16.gmra.mxu0 %v2727
      %v2820 = vpop.f32.mrf.mxu0
      %v2821 = vadd.f32 0.0, %v2820
      %v2822 = vpop.f32.mrf.mxu0
      %v2823 = vadd.f32 0.0, %v2822
      %2824 = vmatmul.bf16.gmra.mxu0 %v2730
      %v2825 = vpop.f32.mrf.mxu0
      %v2826 = vadd.f32 0.0, %v2825
      %v2827 = vpop.f32.mrf.mxu0
      %v2828 = vadd.f32 0.0, %v2827
      %2829 = vmatmul.bf16.gmra.mxu0 %v2733
      %v2830 = vpop.f32.mrf.mxu0
      %v2831 = vadd.f32 0.0, %v2830
      %v2832 = vpop.f32.mrf.mxu0
      %v2833 = vadd.f32 0.0, %v2832
      %2834 = vmatmul.bf16.gmra.mxu0 %v2736
      %v2835 = vpop.f32.mrf.mxu0
      %v2836 = vadd.f32 0.0, %v2835
      %v2837 = vpop.f32.mrf.mxu0
      %v2838 = vadd.f32 0.0, %v2837
      %2839 = vdwg.mxu0
      %v2840 = vld [vmem:[#allocation3] sm:$0xff]
      %v2841 = vld [vmem:[#allocation3 + $0x8] sm:$0xff]
      %v2842 = vld [vmem:[#allocation3 + $0x10] sm:$0xff]
      %v2843 = vld [vmem:[#allocation3 + $0x18] sm:$0xff]
      %v2844 = vld [vmem:[#allocation3 + $0x20] sm:$0xff]
      %v2845 = vld [vmem:[#allocation3 + $0x28] sm:$0xff]
      %v2846 = vld [vmem:[#allocation3 + $0x30] sm:$0xff]
      %v2847 = vld [vmem:[#allocation3 + $0x38] sm:$0xff]
      %v2848 = vld [vmem:[#allocation3 + $0x40] sm:$0xff]
      %v2849 = vld [vmem:[#allocation3 + $0x48] sm:$0xff]
      %v2850 = vld [vmem:[#allocation3 + $0x50] sm:$0xff]
      %v2851 = vld [vmem:[#allocation3 + $0x58] sm:$0xff]
      %v2852 = vld [vmem:[#allocation3 + $0x60] sm:$0xff]
      %v2853 = vld [vmem:[#allocation3 + $0x68] sm:$0xff]
      %v2854 = vld [vmem:[#allocation3 + $0x70] sm:$0xff]
      %v2855 = vld [vmem:[#allocation3 + $0x78] sm:$0xff]
      %v2856 = vld [vmem:[#allocation3 + $0x80] sm:$0xff]
      %v2857 = vld [vmem:[#allocation3 + $0x88] sm:$0xff]
      %v2858 = vld [vmem:[#allocation3 + $0x90] sm:$0xff]
      %v2859 = vld [vmem:[#allocation3 + $0x98] sm:$0xff]
      %v2860 = vld [vmem:[#allocation3 + $0xa0] sm:$0xff]
      %v2861 = vld [vmem:[#allocation3 + $0xa8] sm:$0xff]
      %v2862 = vld [vmem:[#allocation3 + $0xb0] sm:$0xff]
      %v2863 = vld [vmem:[#allocation3 + $0xb8] sm:$0xff]
      %v2864 = vld [vmem:[#allocation3 + $0xc0] sm:$0xff]
      %v2865 = vld [vmem:[#allocation3 + $0xc8] sm:$0xff]
      %v2866 = vld [vmem:[#allocation3 + $0xd0] sm:$0xff]
      %v2867 = vld [vmem:[#allocation3 + $0xd8] sm:$0xff]
      %v2868 = vld [vmem:[#allocation3 + $0xe0] sm:$0xff]
      %v2869 = vld [vmem:[#allocation3 + $0xe8] sm:$0xff]
      %v2870 = vld [vmem:[#allocation3 + $0xf0] sm:$0xff]
      %v2871 = vld [vmem:[#allocation3 + $0xf8] sm:$0xff]
      %v2872 = vld [vmem:[#allocation3 + $0x100] sm:$0xff]
      %v2873 = vld [vmem:[#allocation3 + $0x108] sm:$0xff]
      %v2874 = vld [vmem:[#allocation3 + $0x110] sm:$0xff]
      %v2875 = vld [vmem:[#allocation3 + $0x118] sm:$0xff]
      %v2876 = vadd.f32 %v2840, %v2751
      %v2877 = vadd.f32 %v2841, %v2753
      %v2878 = vadd.f32 %v2842, %v2756
      %v2879 = vadd.f32 %v2843, %v2758
      %v2880 = vadd.f32 %v2844, %v2761
      %v2881 = vadd.f32 %v2845, %v2763
      %v2882 = vadd.f32 %v2846, %v2766
      %v2883 = vadd.f32 %v2847, %v2768
      %v2884 = vadd.f32 %v2848, %v2771
      %v2885 = vadd.f32 %v2849, %v2773
      %v2886 = vadd.f32 %v2850, %v2776
      %v2887 = vadd.f32 %v2851, %v2778
      %v2888 = vadd.f32 %v2852, %v2781
      %v2889 = vadd.f32 %v2853, %v2783
      %v2890 = vadd.f32 %v2854, %v2786
      %v2891 = vadd.f32 %v2855, %v2788
      %v2892 = vadd.f32 %v2856, %v2791
      %v2893 = vadd.f32 %v2857, %v2793
      %v2894 = vadd.f32 %v2858, %v2796
      %v2895 = vadd.f32 %v2859, %v2798
      %v2896 = vadd.f32 %v2860, %v2801
      %v2897 = vadd.f32 %v2861, %v2803
      %v2898 = vadd.f32 %v2862, %v2806
      %v2899 = vadd.f32 %v2863, %v2808
      %v2900 = vadd.f32 %v2864, %v2811
      %v2901 = vadd.f32 %v2865, %v2813
      %v2902 = vadd.f32 %v2866, %v2816
      %v2903 = vadd.f32 %v2867, %v2818
      %v2904 = vadd.f32 %v2868, %v2821
      %v2905 = vadd.f32 %v2869, %v2823
      %v2906 = vadd.f32 %v2870, %v2826
      %v2907 = vadd.f32 %v2871, %v2828
      %v2908 = vadd.f32 %v2872, %v2831
      %v2909 = vadd.f32 %v2873, %v2833
      %v2910 = vadd.f32 %v2874, %v2836
      %v2911 = vadd.f32 %v2875, %v2838
      %2912 = vst [vmem:[#allocation3] sm:$0xff] %v2876
      %2913 = vst [vmem:[#allocation3 + $0x8] sm:$0xff] %v2877
      %2914 = vst [vmem:[#allocation3 + $0x10] sm:$0xff] %v2878
      %2915 = vst [vmem:[#allocation3 + $0x18] sm:$0xff] %v2879
      %2916 = vst [vmem:[#allocation3 + $0x20] sm:$0xff] %v2880
      %2917 = vst [vmem:[#allocation3 + $0x28] sm:$0xff] %v2881
      %2918 = vst [vmem:[#allocation3 + $0x30] sm:$0xff] %v2882
      %2919 = vst [vmem:[#allocation3 + $0x38] sm:$0xff] %v2883
      %2920 = vst [vmem:[#allocation3 + $0x40] sm:$0xff] %v2884
      %2921 = vst [vmem:[#allocation3 + $0x48] sm:$0xff] %v2885
      %2922 = vst [vmem:[#allocation3 + $0x50] sm:$0xff] %v2886
      %2923 = vst [vmem:[#allocation3 + $0x58] sm:$0xff] %v2887
      %2924 = vst [vmem:[#allocation3 + $0x60] sm:$0xff] %v2888
      %2925 = vst [vmem:[#allocation3 + $0x68] sm:$0xff] %v2889
      %2926 = vst [vmem:[#allocation3 + $0x70] sm:$0xff] %v2890
      %2927 = vst [vmem:[#allocation3 + $0x78] sm:$0xff] %v2891
      %2928 = vst [vmem:[#allocation3 + $0x80] sm:$0xff] %v2892
      %2929 = vst [vmem:[#allocation3 + $0x88] sm:$0xff] %v2893
      %2930 = vst [vmem:[#allocation3 + $0x90] sm:$0xff] %v2894
      %2931 = vst [vmem:[#allocation3 + $0x98] sm:$0xff] %v2895
      %2932 = vst [vmem:[#allocation3 + $0xa0] sm:$0xff] %v2896
      %2933 = vst [vmem:[#allocation3 + $0xa8] sm:$0xff] %v2897
      %2934 = vst [vmem:[#allocation3 + $0xb0] sm:$0xff] %v2898
      %2935 = vst [vmem:[#allocation3 + $0xb8] sm:$0xff] %v2899
      %2936 = vst [vmem:[#allocation3 + $0xc0] sm:$0xff] %v2900
      %2937 = vst [vmem:[#allocation3 + $0xc8] sm:$0xff] %v2901
      %2938 = vst [vmem:[#allocation3 + $0xd0] sm:$0xff] %v2902
      %2939 = vst [vmem:[#allocation3 + $0xd8] sm:$0xff] %v2903
      %2940 = vst [vmem:[#allocation3 + $0xe0] sm:$0xff] %v2904
      %2941 = vst [vmem:[#allocation3 + $0xe8] sm:$0xff] %v2905
      %2942 = vst [vmem:[#allocation3 + $0xf0] sm:$0xff] %v2906
      %2943 = vst [vmem:[#allocation3 + $0xf8] sm:$0xff] %v2907
      %2944 = vst [vmem:[#allocation3 + $0x100] sm:$0xff] %v2908
      %2945 = vst [vmem:[#allocation3 + $0x108] sm:$0xff] %v2909
      %2946 = vst [vmem:[#allocation3 + $0x110] sm:$0xff] %v2910
      %2947 = vst [vmem:[#allocation3 + $0x118] sm:$0xff] %v2911
      %v2948 = vld [vmem:[#allocation2 + $0xc] sm:$0xe]
      %v2949 = vld [vmem:[#allocation2 + $0x10] sm:$0xf]
      %v2950 = vld [vmem:[#allocation2 + $0x14] sm:$0xf]
      %v2951 = vld [vmem:[#allocation2 + $0x18] sm:$0xf]
      %v2952 = vld [vmem:[#allocation2 + $0x1c] sm:$0xf]
      %v2953 = vld [vmem:[#allocation2 + $0x20] sm:$0xf]
      %v2954 = vld [vmem:[#allocation2 + $0x24] sm:$0xf]
      %v2955 = vld [vmem:[#allocation2 + $0x28] sm:$0xf]
      %v2956 = vld [vmem:[#allocation2 + $0x2c] sm:$0xf]
      %v2957 = vld [vmem:[#allocation2 + $0x30] sm:$0xf]
      %v2958 = vld [vmem:[#allocation2 + $0x34] sm:$0xf]
      %v2959 = vld [vmem:[#allocation2 + $0x38] sm:$0xf]
      %v2960 = vld [vmem:[#allocation2 + $0x3c] sm:$0xf]
      %v2961 = vld [vmem:[#allocation2 + $0x40] sm:$0xf]
      %v2962 = vld [vmem:[#allocation2 + $0x44] sm:$0xf]
      %v2963 = vld [vmem:[#allocation2 + $0x48] sm:$0xf]
      %v2964 = vld [vmem:[#allocation2 + $0x4c] sm:$0xf]
      %v2965 = vld [vmem:[#allocation2 + $0x50] sm:$0xf]
      %v2966 = vld [vmem:[#allocation2 + $0x54] sm:$0xf]
      %v2967 = vld [vmem:[#allocation2 + $0x58] sm:$0xf]
      %v2968 = vld [vmem:[#allocation2 + $0x5c] sm:$0xf]
      %v2969 = vld [vmem:[#allocation2 + $0x60] sm:$0xf]
      %v2970 = vld [vmem:[#allocation2 + $0x64] sm:$0xf]
      %v2971 = vld [vmem:[#allocation2 + $0x68] sm:$0xf]
      %v2972 = vld [vmem:[#allocation2 + $0x6c] sm:$0xf]
      %v2973 = vld [vmem:[#allocation2 + $0x70] sm:$0xf]
      %v2974 = vld [vmem:[#allocation2 + $0x74] sm:$0xf]
      %v2975 = vld [vmem:[#allocation2 + $0x78] sm:$0xf]
      %v2976 = vld [vmem:[#allocation2 + $0x7c] sm:$0xf]
      %v2977 = vld [vmem:[#allocation2 + $0x80] sm:$0xf]
      %v2978 = vld [vmem:[#allocation2 + $0x84] sm:$0xf]
      %v2979 = vld [vmem:[#allocation2 + $0x88] sm:$0xf]
      %v2980 = vld [vmem:[#allocation2 + $0x8c] sm:$0xf]
      %v2981 = vld [vmem:[#allocation2 + $0x90] sm:$0xf]
      %v2982 = vld [vmem:[#allocation2 + $0x94] sm:$0xf]
      %v2983 = vld [vmem:[#allocation2 + $0x98] sm:$0xf]
      %v2984 = vld [vmem:[#allocation2 + $0x9c] sm:$0x1]
      %s2985 = scalar_lea.vmem %s4, 16
      %v2986 = vld [vmem:[%s2985] sm:$0xf]
      %v3024 = vunpack.c.l.b16 %v2948
      %v3025 = vunpack.c.l.b16 %v2949
      %v3026 = vunpack.c.l.b16 %v2950
      %v3027 = vunpack.c.l.b16 %v2951
      %v3028 = vunpack.c.l.b16 %v2952
      %v3029 = vunpack.c.l.b16 %v2953
      %v3030 = vunpack.c.l.b16 %v2954
      %v3031 = vunpack.c.l.b16 %v2955
      %v3032 = vunpack.c.l.b16 %v2956
      %v3033 = vunpack.c.l.b16 %v2957
      %v3034 = vunpack.c.l.b16 %v2958
      %v3035 = vunpack.c.l.b16 %v2959
      %v3036 = vunpack.c.l.b16 %v2960
      %v3037 = vunpack.c.l.b16 %v2961
      %v3038 = vunpack.c.l.b16 %v2962
      %v3039 = vunpack.c.l.b16 %v2963
      %v3040 = vunpack.c.l.b16 %v2964
      %v3041 = vunpack.c.l.b16 %v2965
      %v3042 = vunpack.c.l.b16 %v2966
      %v3043 = vunpack.c.l.b16 %v2967
      %v3044 = vunpack.c.l.b16 %v2968
      %v3045 = vunpack.c.l.b16 %v2969
      %v3046 = vunpack.c.l.b16 %v2970
      %v3047 = vunpack.c.l.b16 %v2971
      %v3048 = vunpack.c.l.b16 %v2972
      %v3049 = vunpack.c.l.b16 %v2973
      %v3050 = vunpack.c.l.b16 %v2974
      %v3051 = vunpack.c.l.b16 %v2975
      %v3052 = vunpack.c.l.b16 %v2976
      %v3053 = vunpack.c.l.b16 %v2977
      %v3054 = vunpack.c.l.b16 %v2978
      %v3055 = vunpack.c.l.b16 %v2979
      %v3056 = vunpack.c.l.b16 %v2980
      %v3057 = vunpack.c.l.b16 %v2981
      %v3058 = vunpack.c.l.b16 %v2982
      %v3059 = vunpack.c.l.b16 %v2983
      %v3060 = vunpack.c.l.b16 %v2984
      %v3061 = vpack.c.b16 %v3025, %v3024
      %v3062 = vpack.c.b16 %v3027, %v3026
      %v3063 = vpack.c.b16 %v3029, %v3028
      %v3064 = vpack.c.b16 %v3031, %v3030
      %v3065 = vpack.c.b16 %v3033, %v3032
      %v3066 = vpack.c.b16 %v3035, %v3034
      %v3067 = vpack.c.b16 %v3037, %v3036
      %v3068 = vpack.c.b16 %v3039, %v3038
      %v3069 = vpack.c.b16 %v3041, %v3040
      %v3070 = vpack.c.b16 %v3043, %v3042
      %v3071 = vpack.c.b16 %v3045, %v3044
      %v3072 = vpack.c.b16 %v3047, %v3046
      %v3073 = vpack.c.b16 %v3049, %v3048
      %v3074 = vpack.c.b16 %v3051, %v3050
      %v3075 = vpack.c.b16 %v3053, %v3052
      %v3076 = vpack.c.b16 %v3055, %v3054
      %v3077 = vpack.c.b16 %v3057, %v3056
      %v3078 = vpack.c.b16 %v3059, %v3058
      %v3079 = vpack.c.b16 %v3060, %v3060
      %vm3080 = vcmask 1046528
      %v3081 = vrot.slane %v3061, 1
      %v3082 = vrot.slane %v3062, 1
      %v3083 = vsel %vm3080, %v3081, %v3082
      %v3084 = vrot.slane %v3063, 1
      %v3085 = vsel %vm3080, %v3082, %v3084
      %v3086 = vrot.slane %v3064, 1
      %v3087 = vsel %vm3080, %v3084, %v3086
      %v3088 = vrot.slane %v3065, 1
      %v3089 = vsel %vm3080, %v3086, %v3088
      %v3090 = vrot.slane %v3066, 1
      %v3091 = vsel %vm3080, %v3088, %v3090
      %v3092 = vrot.slane %v3067, 1
      %v3093 = vsel %vm3080, %v3090, %v3092
      %v3094 = vrot.slane %v3068, 1
      %v3095 = vsel %vm3080, %v3092, %v3094
      %v3096 = vrot.slane %v3069, 1
      %v3097 = vsel %vm3080, %v3094, %v3096
      %v3098 = vrot.slane %v3070, 1
      %v3099 = vsel %vm3080, %v3096, %v3098
      %v3100 = vrot.slane %v3071, 1
      %v3101 = vsel %vm3080, %v3098, %v3100
      %v3102 = vrot.slane %v3072, 1
      %v3103 = vsel %vm3080, %v3100, %v3102
      %v3104 = vrot.slane %v3073, 1
      %v3105 = vsel %vm3080, %v3102, %v3104
      %v3106 = vrot.slane %v3074, 1
      %v3107 = vsel %vm3080, %v3104, %v3106
      %v3108 = vrot.slane %v3075, 1
      %v3109 = vsel %vm3080, %v3106, %v3108
      %v3110 = vrot.slane %v3076, 1
      %v3111 = vsel %vm3080, %v3108, %v3110
      %v3112 = vrot.slane %v3077, 1
      %v3113 = vsel %vm3080, %v3110, %v3112
      %v3114 = vrot.slane %v3078, 1
      %v3115 = vsel %vm3080, %v3112, %v3114
      %v3116 = vrot.slane %v3079, 1
      %v3117 = vsel %vm3080, %v3114, %v3116
      %v3119 = vsel %vm1273, %v3083, 0
      %v3122 = vsel %vm1273, %v3085, 0
      %v3125 = vsel %vm1273, %v3087, 0
      %v3128 = vsel %vm1273, %v3089, 0
      %v3131 = vsel %vm1273, %v3091, 0
      %v3134 = vsel %vm1273, %v3093, 0
      %v3137 = vsel %vm1273, %v3095, 0
      %v3140 = vsel %vm1273, %v3097, 0
      %v3143 = vsel %vm1273, %v3099, 0
      %v3146 = vsel %vm1273, %v3101, 0
      %v3149 = vsel %vm1273, %v3103, 0
      %v3152 = vsel %vm1273, %v3105, 0
      %v3155 = vsel %vm1273, %v3107, 0
      %v3158 = vsel %vm1273, %v3109, 0
      %v3161 = vsel %vm1273, %v3111, 0
      %v3164 = vsel %vm1273, %v3113, 0
      %v3167 = vsel %vm1273, %v3115, 0
      %v3170 = vsel %vm1273, %v3117, 0
      %v3173 = vsel %vm1328, %v2986, 0
      %3175 = vmatpush.bf16.msra.mxu0 0
      %3176 = vmatpush.bf16.msra.mxu0 0
      %3177 = vmatpush.bf16.msra.mxu0 0
      %3178 = vmatpush.bf16.msra.mxu0 0
      %3179 = vmatpush.bf16.msra.mxu0 0
      %3180 = vmatpush.bf16.msra.mxu0 0
      %3181 = vmatpush.bf16.msra.mxu0 0
      %3182 = vmatpush.bf16.msra.mxu0 %v3173
      %3183 = vmatmul.bf16.gmra.mxu0 %v3119
      %v3184 = vpop.f32.mrf.mxu0
      %v3185 = vadd.f32 0.0, %v3184
      %v3186 = vpop.f32.mrf.mxu0
      %v3187 = vadd.f32 0.0, %v3186
      %3188 = vmatmul.bf16.gmra.mxu0 %v3122
      %v3189 = vpop.f32.mrf.mxu0
      %v3190 = vadd.f32 0.0, %v3189
      %v3191 = vpop.f32.mrf.mxu0
      %v3192 = vadd.f32 0.0, %v3191
      %3193 = vmatmul.bf16.gmra.mxu0 %v3125
      %v3194 = vpop.f32.mrf.mxu0
      %v3195 = vadd.f32 0.0, %v3194
      %v3196 = vpop.f32.mrf.mxu0
      %v3197 = vadd.f32 0.0, %v3196
      %3198 = vmatmul.bf16.gmra.mxu0 %v3128
      %v3199 = vpop.f32.mrf.mxu0
      %v3200 = vadd.f32 0.0, %v3199
      %v3201 = vpop.f32.mrf.mxu0
      %v3202 = vadd.f32 0.0, %v3201
      %3203 = vmatmul.bf16.gmra.mxu0 %v3131
      %v3204 = vpop.f32.mrf.mxu0
      %v3205 = vadd.f32 0.0, %v3204
      %v3206 = vpop.f32.mrf.mxu0
      %v3207 = vadd.f32 0.0, %v3206
      %3208 = vmatmul.bf16.gmra.mxu0 %v3134
      %v3209 = vpop.f32.mrf.mxu0
      %v3210 = vadd.f32 0.0, %v3209
      %v3211 = vpop.f32.mrf.mxu0
      %v3212 = vadd.f32 0.0, %v3211
      %3213 = vmatmul.bf16.gmra.mxu0 %v3137
      %v3214 = vpop.f32.mrf.mxu0
      %v3215 = vadd.f32 0.0, %v3214
      %v3216 = vpop.f32.mrf.mxu0
      %v3217 = vadd.f32 0.0, %v3216
      %3218 = vmatmul.bf16.gmra.mxu0 %v3140
      %v3219 = vpop.f32.mrf.mxu0
      %v3220 = vadd.f32 0.0, %v3219
      %v3221 = vpop.f32.mrf.mxu0
      %v3222 = vadd.f32 0.0, %v3221
      %3223 = vmatmul.bf16.gmra.mxu0 %v3143
      %v3224 = vpop.f32.mrf.mxu0
      %v3225 = vadd.f32 0.0, %v3224
      %v3226 = vpop.f32.mrf.mxu0
      %v3227 = vadd.f32 0.0, %v3226
      %3228 = vmatmul.bf16.gmra.mxu0 %v3146
      %v3229 = vpop.f32.mrf.mxu0
      %v3230 = vadd.f32 0.0, %v3229
      %v3231 = vpop.f32.mrf.mxu0
      %v3232 = vadd.f32 0.0, %v3231
      %3233 = vmatmul.bf16.gmra.mxu0 %v3149
      %v3234 = vpop.f32.mrf.mxu0
      %v3235 = vadd.f32 0.0, %v3234
      %v3236 = vpop.f32.mrf.mxu0
      %v3237 = vadd.f32 0.0, %v3236
      %3238 = vmatmul.bf16.gmra.mxu0 %v3152
      %v3239 = vpop.f32.mrf.mxu0
      %v3240 = vadd.f32 0.0, %v3239
      %v3241 = vpop.f32.mrf.mxu0
      %v3242 = vadd.f32 0.0, %v3241
      %3243 = vmatmul.bf16.gmra.mxu0 %v3155
      %v3244 = vpop.f32.mrf.mxu0
      %v3245 = vadd.f32 0.0, %v3244
      %v3246 = vpop.f32.mrf.mxu0
      %v3247 = vadd.f32 0.0, %v3246
      %3248 = vmatmul.bf16.gmra.mxu0 %v3158
      %v3249 = vpop.f32.mrf.mxu0
      %v3250 = vadd.f32 0.0, %v3249
      %v3251 = vpop.f32.mrf.mxu0
      %v3252 = vadd.f32 0.0, %v3251
      %3253 = vmatmul.bf16.gmra.mxu0 %v3161
      %v3254 = vpop.f32.mrf.mxu0
      %v3255 = vadd.f32 0.0, %v3254
      %v3256 = vpop.f32.mrf.mxu0
      %v3257 = vadd.f32 0.0, %v3256
      %3258 = vmatmul.bf16.gmra.mxu0 %v3164
      %v3259 = vpop.f32.mrf.mxu0
      %v3260 = vadd.f32 0.0, %v3259
      %v3261 = vpop.f32.mrf.mxu0
      %v3262 = vadd.f32 0.0, %v3261
      %3263 = vmatmul.bf16.gmra.mxu0 %v3167
      %v3264 = vpop.f32.mrf.mxu0
      %v3265 = vadd.f32 0.0, %v3264
      %v3266 = vpop.f32.mrf.mxu0
      %v3267 = vadd.f32 0.0, %v3266
      %3268 = vmatmul.bf16.gmra.mxu0 %v3170
      %v3269 = vpop.f32.mrf.mxu0
      %v3270 = vadd.f32 0.0, %v3269
      %v3271 = vpop.f32.mrf.mxu0
      %v3272 = vadd.f32 0.0, %v3271
      %3273 = vdwg.mxu0
      %v3274 = vld [vmem:[#allocation3] sm:$0xff]
      %v3275 = vld [vmem:[#allocation3 + $0x8] sm:$0xff]
      %v3276 = vld [vmem:[#allocation3 + $0x10] sm:$0xff]
      %v3277 = vld [vmem:[#allocation3 + $0x18] sm:$0xff]
      %v3278 = vld [vmem:[#allocation3 + $0x20] sm:$0xff]
      %v3279 = vld [vmem:[#allocation3 + $0x28] sm:$0xff]
      %v3280 = vld [vmem:[#allocation3 + $0x30] sm:$0xff]
      %v3281 = vld [vmem:[#allocation3 + $0x38] sm:$0xff]
      %v3282 = vld [vmem:[#allocation3 + $0x40] sm:$0xff]
      %v3283 = vld [vmem:[#allocation3 + $0x48] sm:$0xff]
      %v3284 = vld [vmem:[#allocation3 + $0x50] sm:$0xff]
      %v3285 = vld [vmem:[#allocation3 + $0x58] sm:$0xff]
      %v3286 = vld [vmem:[#allocation3 + $0x60] sm:$0xff]
      %v3287 = vld [vmem:[#allocation3 + $0x68] sm:$0xff]
      %v3288 = vld [vmem:[#allocation3 + $0x70] sm:$0xff]
      %v3289 = vld [vmem:[#allocation3 + $0x78] sm:$0xff]
      %v3290 = vld [vmem:[#allocation3 + $0x80] sm:$0xff]
      %v3291 = vld [vmem:[#allocation3 + $0x88] sm:$0xff]
      %v3292 = vld [vmem:[#allocation3 + $0x90] sm:$0xff]
      %v3293 = vld [vmem:[#allocation3 + $0x98] sm:$0xff]
      %v3294 = vld [vmem:[#allocation3 + $0xa0] sm:$0xff]
      %v3295 = vld [vmem:[#allocation3 + $0xa8] sm:$0xff]
      %v3296 = vld [vmem:[#allocation3 + $0xb0] sm:$0xff]
      %v3297 = vld [vmem:[#allocation3 + $0xb8] sm:$0xff]
      %v3298 = vld [vmem:[#allocation3 + $0xc0] sm:$0xff]
      %v3299 = vld [vmem:[#allocation3 + $0xc8] sm:$0xff]
      %v3300 = vld [vmem:[#allocation3 + $0xd0] sm:$0xff]
      %v3301 = vld [vmem:[#allocation3 + $0xd8] sm:$0xff]
      %v3302 = vld [vmem:[#allocation3 + $0xe0] sm:$0xff]
      %v3303 = vld [vmem:[#allocation3 + $0xe8] sm:$0xff]
      %v3304 = vld [vmem:[#allocation3 + $0xf0] sm:$0xff]
      %v3305 = vld [vmem:[#allocation3 + $0xf8] sm:$0xff]
      %v3306 = vld [vmem:[#allocation3 + $0x100] sm:$0xff]
      %v3307 = vld [vmem:[#allocation3 + $0x108] sm:$0xff]
      %v3308 = vld [vmem:[#allocation3 + $0x110] sm:$0xff]
      %v3309 = vld [vmem:[#allocation3 + $0x118] sm:$0xff]
      %v3310 = vadd.f32 %v3274, %v3185
      %v3311 = vadd.f32 %v3275, %v3187
      %v3312 = vadd.f32 %v3276, %v3190
      %v3313 = vadd.f32 %v3277, %v3192
      %v3314 = vadd.f32 %v3278, %v3195
      %v3315 = vadd.f32 %v3279, %v3197
      %v3316 = vadd.f32 %v3280, %v3200
      %v3317 = vadd.f32 %v3281, %v3202
      %v3318 = vadd.f32 %v3282, %v3205
      %v3319 = vadd.f32 %v3283, %v3207
      %v3320 = vadd.f32 %v3284, %v3210
      %v3321 = vadd.f32 %v3285, %v3212
      %v3322 = vadd.f32 %v3286, %v3215
      %v3323 = vadd.f32 %v3287, %v3217
      %v3324 = vadd.f32 %v3288, %v3220
      %v3325 = vadd.f32 %v3289, %v3222
      %v3326 = vadd.f32 %v3290, %v3225
      %v3327 = vadd.f32 %v3291, %v3227
      %v3328 = vadd.f32 %v3292, %v3230
      %v3329 = vadd.f32 %v3293, %v3232
      %v3330 = vadd.f32 %v3294, %v3235
      %v3331 = vadd.f32 %v3295, %v3237
      %v3332 = vadd.f32 %v3296, %v3240
      %v3333 = vadd.f32 %v3297, %v3242
      %v3334 = vadd.f32 %v3298, %v3245
      %v3335 = vadd.f32 %v3299, %v3247
      %v3336 = vadd.f32 %v3300, %v3250
      %v3337 = vadd.f32 %v3301, %v3252
      %v3338 = vadd.f32 %v3302, %v3255
      %v3339 = vadd.f32 %v3303, %v3257
      %v3340 = vadd.f32 %v3304, %v3260
      %v3341 = vadd.f32 %v3305, %v3262
      %v3342 = vadd.f32 %v3306, %v3265
      %v3343 = vadd.f32 %v3307, %v3267
      %v3344 = vadd.f32 %v3308, %v3270
      %v3345 = vadd.f32 %v3309, %v3272
      %3346 = vst [vmem:[#allocation3] sm:$0xff] %v3310
      %3347 = vst [vmem:[#allocation3 + $0x8] sm:$0xff] %v3311
      %3348 = vst [vmem:[#allocation3 + $0x10] sm:$0xff] %v3312
      %3349 = vst [vmem:[#allocation3 + $0x18] sm:$0xff] %v3313
      %3350 = vst [vmem:[#allocation3 + $0x20] sm:$0xff] %v3314
      %3351 = vst [vmem:[#allocation3 + $0x28] sm:$0xff] %v3315
      %3352 = vst [vmem:[#allocation3 + $0x30] sm:$0xff] %v3316
      %3353 = vst [vmem:[#allocation3 + $0x38] sm:$0xff] %v3317
      %3354 = vst [vmem:[#allocation3 + $0x40] sm:$0xff] %v3318
      %3355 = vst [vmem:[#allocation3 + $0x48] sm:$0xff] %v3319
      %3356 = vst [vmem:[#allocation3 + $0x50] sm:$0xff] %v3320
      %3357 = vst [vmem:[#allocation3 + $0x58] sm:$0xff] %v3321
      %3358 = vst [vmem:[#allocation3 + $0x60] sm:$0xff] %v3322
      %3359 = vst [vmem:[#allocation3 + $0x68] sm:$0xff] %v3323
      %3360 = vst [vmem:[#allocation3 + $0x70] sm:$0xff] %v3324
      %3361 = vst [vmem:[#allocation3 + $0x78] sm:$0xff] %v3325
      %3362 = vst [vmem:[#allocation3 + $0x80] sm:$0xff] %v3326
      %3363 = vst [vmem:[#allocation3 + $0x88] sm:$0xff] %v3327
      %3364 = vst [vmem:[#allocation3 + $0x90] sm:$0xff] %v3328
      %3365 = vst [vmem:[#allocation3 + $0x98] sm:$0xff] %v3329
      %3366 = vst [vmem:[#allocation3 + $0xa0] sm:$0xff] %v3330
      %3367 = vst [vmem:[#allocation3 + $0xa8] sm:$0xff] %v3331
      %3368 = vst [vmem:[#allocation3 + $0xb0] sm:$0xff] %v3332
      %3369 = vst [vmem:[#allocation3 + $0xb8] sm:$0xff] %v3333
      %3370 = vst [vmem:[#allocation3 + $0xc0] sm:$0xff] %v3334
      %3371 = vst [vmem:[#allocation3 + $0xc8] sm:$0xff] %v3335
      %3372 = vst [vmem:[#allocation3 + $0xd0] sm:$0xff] %v3336
      %3373 = vst [vmem:[#allocation3 + $0xd8] sm:$0xff] %v3337
      %3374 = vst [vmem:[#allocation3 + $0xe0] sm:$0xff] %v3338
      %3375 = vst [vmem:[#allocation3 + $0xe8] sm:$0xff] %v3339
      %3376 = vst [vmem:[#allocation3 + $0xf0] sm:$0xff] %v3340
      %3377 = vst [vmem:[#allocation3 + $0xf8] sm:$0xff] %v3341
      %3378 = vst [vmem:[#allocation3 + $0x100] sm:$0xff] %v3342
      %3379 = vst [vmem:[#allocation3 + $0x108] sm:$0xff] %v3343
      %3380 = vst [vmem:[#allocation3 + $0x110] sm:$0xff] %v3344
      %3381 = vst [vmem:[#allocation3 + $0x118] sm:$0xff] %v3345
      %v3382 = vld [vmem:[#allocation2 + $0xc] sm:$0xe]
      %v3383 = vld [vmem:[#allocation2 + $0x10] sm:$0xf]
      %v3384 = vld [vmem:[#allocation2 + $0x14] sm:$0xf]
      %v3385 = vld [vmem:[#allocation2 + $0x18] sm:$0xf]
      %v3386 = vld [vmem:[#allocation2 + $0x1c] sm:$0xf]
      %v3387 = vld [vmem:[#allocation2 + $0x20] sm:$0xf]
      %v3388 = vld [vmem:[#allocation2 + $0x24] sm:$0xf]
      %v3389 = vld [vmem:[#allocation2 + $0x28] sm:$0xf]
      %v3390 = vld [vmem:[#allocation2 + $0x2c] sm:$0xf]
      %v3391 = vld [vmem:[#allocation2 + $0x30] sm:$0xf]
      %v3392 = vld [vmem:[#allocation2 + $0x34] sm:$0xf]
      %v3393 = vld [vmem:[#allocation2 + $0x38] sm:$0xf]
      %v3394 = vld [vmem:[#allocation2 + $0x3c] sm:$0xf]
      %v3395 = vld [vmem:[#allocation2 + $0x40] sm:$0xf]
      %v3396 = vld [vmem:[#allocation2 + $0x44] sm:$0xf]
      %v3397 = vld [vmem:[#allocation2 + $0x48] sm:$0xf]
      %v3398 = vld [vmem:[#allocation2 + $0x4c] sm:$0xf]
      %v3399 = vld [vmem:[#allocation2 + $0x50] sm:$0xf]
      %v3400 = vld [vmem:[#allocation2 + $0x54] sm:$0xf]
      %v3401 = vld [vmem:[#allocation2 + $0x58] sm:$0xf]
      %v3402 = vld [vmem:[#allocation2 + $0x5c] sm:$0xf]
      %v3403 = vld [vmem:[#allocation2 + $0x60] sm:$0xf]
      %v3404 = vld [vmem:[#allocation2 + $0x64] sm:$0xf]
      %v3405 = vld [vmem:[#allocation2 + $0x68] sm:$0xf]
      %v3406 = vld [vmem:[#allocation2 + $0x6c] sm:$0xf]
      %v3407 = vld [vmem:[#allocation2 + $0x70] sm:$0xf]
      %v3408 = vld [vmem:[#allocation2 + $0x74] sm:$0xf]
      %v3409 = vld [vmem:[#allocation2 + $0x78] sm:$0xf]
      %v3410 = vld [vmem:[#allocation2 + $0x7c] sm:$0xf]
      %v3411 = vld [vmem:[#allocation2 + $0x80] sm:$0xf]
      %v3412 = vld [vmem:[#allocation2 + $0x84] sm:$0xf]
      %v3413 = vld [vmem:[#allocation2 + $0x88] sm:$0xf]
      %v3414 = vld [vmem:[#allocation2 + $0x8c] sm:$0xf]
      %v3415 = vld [vmem:[#allocation2 + $0x90] sm:$0xf]
      %v3416 = vld [vmem:[#allocation2 + $0x94] sm:$0xf]
      %v3417 = vld [vmem:[#allocation2 + $0x98] sm:$0xf]
      %v3418 = vld [vmem:[#allocation2 + $0x9c] sm:$0x3]
      %s3419 = scalar_lea.vmem %s4, 20
      %v3420 = vld [vmem:[%s3419] sm:$0xf]
      %v3458 = vunpack.c.l.b16 %v3382
      %v3459 = vunpack.c.l.b16 %v3383
      %v3460 = vunpack.c.l.b16 %v3384
      %v3461 = vunpack.c.l.b16 %v3385
      %v3462 = vunpack.c.l.b16 %v3386
      %v3463 = vunpack.c.l.b16 %v3387
      %v3464 = vunpack.c.l.b16 %v3388
      %v3465 = vunpack.c.l.b16 %v3389
      %v3466 = vunpack.c.l.b16 %v3390
      %v3467 = vunpack.c.l.b16 %v3391
      %v3468 = vunpack.c.l.b16 %v3392
      %v3469 = vunpack.c.l.b16 %v3393
      %v3470 = vunpack.c.l.b16 %v3394
      %v3471 = vunpack.c.l.b16 %v3395
      %v3472 = vunpack.c.l.b16 %v3396
      %v3473 = vunpack.c.l.b16 %v3397
      %v3474 = vunpack.c.l.b16 %v3398
      %v3475 = vunpack.c.l.b16 %v3399
      %v3476 = vunpack.c.l.b16 %v3400
      %v3477 = vunpack.c.l.b16 %v3401
      %v3478 = vunpack.c.l.b16 %v3402
      %v3479 = vunpack.c.l.b16 %v3403
      %v3480 = vunpack.c.l.b16 %v3404
      %v3481 = vunpack.c.l.b16 %v3405
      %v3482 = vunpack.c.l.b16 %v3406
      %v3483 = vunpack.c.l.b16 %v3407
      %v3484 = vunpack.c.l.b16 %v3408
      %v3485 = vunpack.c.l.b16 %v3409
      %v3486 = vunpack.c.l.b16 %v3410
      %v3487 = vunpack.c.l.b16 %v3411
      %v3488 = vunpack.c.l.b16 %v3412
      %v3489 = vunpack.c.l.b16 %v3413
      %v3490 = vunpack.c.l.b16 %v3414
      %v3491 = vunpack.c.l.b16 %v3415
      %v3492 = vunpack.c.l.b16 %v3416
      %v3493 = vunpack.c.l.b16 %v3417
      %v3494 = vunpack.c.l.b16 %v3418
      %v3495 = vpack.c.b16 %v3459, %v3458
      %v3496 = vpack.c.b16 %v3461, %v3460
      %v3497 = vpack.c.b16 %v3463, %v3462
      %v3498 = vpack.c.b16 %v3465, %v3464
      %v3499 = vpack.c.b16 %v3467, %v3466
      %v3500 = vpack.c.b16 %v3469, %v3468
      %v3501 = vpack.c.b16 %v3471, %v3470
      %v3502 = vpack.c.b16 %v3473, %v3472
      %v3503 = vpack.c.b16 %v3475, %v3474
      %v3504 = vpack.c.b16 %v3477, %v3476
      %v3505 = vpack.c.b16 %v3479, %v3478
      %v3506 = vpack.c.b16 %v3481, %v3480
      %v3507 = vpack.c.b16 %v3483, %v3482
      %v3508 = vpack.c.b16 %v3485, %v3484
      %v3509 = vpack.c.b16 %v3487, %v3486
      %v3510 = vpack.c.b16 %v3489, %v3488
      %v3511 = vpack.c.b16 %v3491, %v3490
      %v3512 = vpack.c.b16 %v3493, %v3492
      %v3513 = vpack.c.b16 %v3494, %v3494
      %vm3514 = vsmask.f32 6400
      %v3516 = vshrl.u32 %v3495, 16
      %v3518 = vrot.slane %v3516, 1
      %v3519 = vshll.u32 %v3495, 16
      %v3521 = vrot.slane %v3519, 2
      %v3522 = vor.u32 %v3518, %v3521
      %v3524 = vshrl.u32 %v3496, 16
      %v3526 = vrot.slane %v3524, 1
      %v3527 = vshll.u32 %v3496, 16
      %v3529 = vrot.slane %v3527, 2
      %v3530 = vor.u32 %v3526, %v3529
      %v3531 = vsel %vm3514, %v3522, %v3530
      %v3533 = vshrl.u32 %v3497, 16
      %v3535 = vrot.slane %v3533, 1
      %v3536 = vshll.u32 %v3497, 16
      %v3538 = vrot.slane %v3536, 2
      %v3539 = vor.u32 %v3535, %v3538
      %v3540 = vsel %vm3514, %v3530, %v3539
      %v3542 = vshrl.u32 %v3498, 16
      %v3544 = vrot.slane %v3542, 1
      %v3545 = vshll.u32 %v3498, 16
      %v3547 = vrot.slane %v3545, 2
      %v3548 = vor.u32 %v3544, %v3547
      %v3549 = vsel %vm3514, %v3539, %v3548
      %v3551 = vshrl.u32 %v3499, 16
      %v3553 = vrot.slane %v3551, 1
      %v3554 = vshll.u32 %v3499, 16
      %v3556 = vrot.slane %v3554, 2
      %v3557 = vor.u32 %v3553, %v3556
      %v3558 = vsel %vm3514, %v3548, %v3557
      %v3560 = vshrl.u32 %v3500, 16
      %v3562 = vrot.slane %v3560, 1
      %v3563 = vshll.u32 %v3500, 16
      %v3565 = vrot.slane %v3563, 2
      %v3566 = vor.u32 %v3562, %v3565
      %v3567 = vsel %vm3514, %v3557, %v3566
      %v3569 = vshrl.u32 %v3501, 16
      %v3571 = vrot.slane %v3569, 1
      %v3572 = vshll.u32 %v3501, 16
      %v3574 = vrot.slane %v3572, 2
      %v3575 = vor.u32 %v3571, %v3574
      %v3576 = vsel %vm3514, %v3566, %v3575
      %v3578 = vshrl.u32 %v3502, 16
      %v3580 = vrot.slane %v3578, 1
      %v3581 = vshll.u32 %v3502, 16
      %v3583 = vrot.slane %v3581, 2
      %v3584 = vor.u32 %v3580, %v3583
      %v3585 = vsel %vm3514, %v3575, %v3584
      %v3587 = vshrl.u32 %v3503, 16
      %v3589 = vrot.slane %v3587, 1
      %v3590 = vshll.u32 %v3503, 16
      %v3592 = vrot.slane %v3590, 2
      %v3593 = vor.u32 %v3589, %v3592
      %v3594 = vsel %vm3514, %v3584, %v3593
      %v3596 = vshrl.u32 %v3504, 16
      %v3598 = vrot.slane %v3596, 1
      %v3599 = vshll.u32 %v3504, 16
      %v3601 = vrot.slane %v3599, 2
      %v3602 = vor.u32 %v3598, %v3601
      %v3603 = vsel %vm3514, %v3593, %v3602
      %v3605 = vshrl.u32 %v3505, 16
      %v3607 = vrot.slane %v3605, 1
      %v3608 = vshll.u32 %v3505, 16
      %v3610 = vrot.slane %v3608, 2
      %v3611 = vor.u32 %v3607, %v3610
      %v3612 = vsel %vm3514, %v3602, %v3611
      %v3614 = vshrl.u32 %v3506, 16
      %v3616 = vrot.slane %v3614, 1
      %v3617 = vshll.u32 %v3506, 16
      %v3619 = vrot.slane %v3617, 2
      %v3620 = vor.u32 %v3616, %v3619
      %v3621 = vsel %vm3514, %v3611, %v3620
      %v3623 = vshrl.u32 %v3507, 16
      %v3625 = vrot.slane %v3623, 1
      %v3626 = vshll.u32 %v3507, 16
      %v3628 = vrot.slane %v3626, 2
      %v3629 = vor.u32 %v3625, %v3628
      %v3630 = vsel %vm3514, %v3620, %v3629
      %v3632 = vshrl.u32 %v3508, 16
      %v3634 = vrot.slane %v3632, 1
      %v3635 = vshll.u32 %v3508, 16
      %v3637 = vrot.slane %v3635, 2
      %v3638 = vor.u32 %v3634, %v3637
      %v3639 = vsel %vm3514, %v3629, %v3638
      %v3641 = vshrl.u32 %v3509, 16
      %v3643 = vrot.slane %v3641, 1
      %v3644 = vshll.u32 %v3509, 16
      %v3646 = vrot.slane %v3644, 2
      %v3647 = vor.u32 %v3643, %v3646
      %v3648 = vsel %vm3514, %v3638, %v3647
      %v3650 = vshrl.u32 %v3510, 16
      %v3652 = vrot.slane %v3650, 1
      %v3653 = vshll.u32 %v3510, 16
      %v3655 = vrot.slane %v3653, 2
      %v3656 = vor.u32 %v3652, %v3655
      %v3657 = vsel %vm3514, %v3647, %v3656
      %v3659 = vshrl.u32 %v3511, 16
      %v3661 = vrot.slane %v3659, 1
      %v3662 = vshll.u32 %v3511, 16
      %v3664 = vrot.slane %v3662, 2
      %v3665 = vor.u32 %v3661, %v3664
      %v3666 = vsel %vm3514, %v3656, %v3665
      %v3668 = vshrl.u32 %v3512, 16
      %v3670 = vrot.slane %v3668, 1
      %v3671 = vshll.u32 %v3512, 16
      %v3673 = vrot.slane %v3671, 2
      %v3674 = vor.u32 %v3670, %v3673
      %v3675 = vsel %vm3514, %v3665, %v3674
      %v3677 = vshrl.u32 %v3513, 16
      %v3679 = vrot.slane %v3677, 1
      %v3680 = vshll.u32 %v3513, 16
      %v3682 = vrot.slane %v3680, 2
      %v3683 = vor.u32 %v3679, %v3682
      %v3684 = vsel %vm3514, %v3674, %v3683
      %v3686 = vsel %vm1273, %v3531, 0
      %v3689 = vsel %vm1273, %v3540, 0
      %v3692 = vsel %vm1273, %v3549, 0
      %v3695 = vsel %vm1273, %v3558, 0
      %v3698 = vsel %vm1273, %v3567, 0
      %v3701 = vsel %vm1273, %v3576, 0
      %v3704 = vsel %vm1273, %v3585, 0
      %v3707 = vsel %vm1273, %v3594, 0
      %v3710 = vsel %vm1273, %v3603, 0
      %v3713 = vsel %vm1273, %v3612, 0
      %v3716 = vsel %vm1273, %v3621, 0
      %v3719 = vsel %vm1273, %v3630, 0
      %v3722 = vsel %vm1273, %v3639, 0
      %v3725 = vsel %vm1273, %v3648, 0
      %v3728 = vsel %vm1273, %v3657, 0
      %v3731 = vsel %vm1273, %v3666, 0
      %v3734 = vsel %vm1273, %v3675, 0
      %v3737 = vsel %vm1273, %v3684, 0
      %v3740 = vsel %vm1328, %v3420, 0
      %3742 = vmatpush.bf16.msra.mxu0 0
      %3743 = vmatpush.bf16.msra.mxu0 0
      %3744 = vmatpush.bf16.msra.mxu0 0
      %3745 = vmatpush.bf16.msra.mxu0 0
      %3746 = vmatpush.bf16.msra.mxu0 0
      %3747 = vmatpush.bf16.msra.mxu0 0
      %3748 = vmatpush.bf16.msra.mxu0 0
      %3749 = vmatpush.bf16.msra.mxu0 %v3740
      %3750 = vmatmul.bf16.gmra.mxu0 %v3686
      %v3751 = vpop.f32.mrf.mxu0
      %v3752 = vadd.f32 0.0, %v3751
      %v3753 = vpop.f32.mrf.mxu0
      %v3754 = vadd.f32 0.0, %v3753
      %3755 = vmatmul.bf16.gmra.mxu0 %v3689
      %v3756 = vpop.f32.mrf.mxu0
      %v3757 = vadd.f32 0.0, %v3756
      %v3758 = vpop.f32.mrf.mxu0
      %v3759 = vadd.f32 0.0, %v3758
      %3760 = vmatmul.bf16.gmra.mxu0 %v3692
      %v3761 = vpop.f32.mrf.mxu0
      %v3762 = vadd.f32 0.0, %v3761
      %v3763 = vpop.f32.mrf.mxu0
      %v3764 = vadd.f32 0.0, %v3763
      %3765 = vmatmul.bf16.gmra.mxu0 %v3695
      %v3766 = vpop.f32.mrf.mxu0
      %v3767 = vadd.f32 0.0, %v3766
      %v3768 = vpop.f32.mrf.mxu0
      %v3769 = vadd.f32 0.0, %v3768
      %3770 = vmatmul.bf16.gmra.mxu0 %v3698
      %v3771 = vpop.f32.mrf.mxu0
      %v3772 = vadd.f32 0.0, %v3771
      %v3773 = vpop.f32.mrf.mxu0
      %v3774 = vadd.f32 0.0, %v3773
      %3775 = vmatmul.bf16.gmra.mxu0 %v3701
      %v3776 = vpop.f32.mrf.mxu0
      %v3777 = vadd.f32 0.0, %v3776
      %v3778 = vpop.f32.mrf.mxu0
      %v3779 = vadd.f32 0.0, %v3778
      %3780 = vmatmul.bf16.gmra.mxu0 %v3704
      %v3781 = vpop.f32.mrf.mxu0
      %v3782 = vadd.f32 0.0, %v3781
      %v3783 = vpop.f32.mrf.mxu0
      %v3784 = vadd.f32 0.0, %v3783
      %3785 = vmatmul.bf16.gmra.mxu0 %v3707
      %v3786 = vpop.f32.mrf.mxu0
      %v3787 = vadd.f32 0.0, %v3786
      %v3788 = vpop.f32.mrf.mxu0
      %v3789 = vadd.f32 0.0, %v3788
      %3790 = vmatmul.bf16.gmra.mxu0 %v3710
      %v3791 = vpop.f32.mrf.mxu0
      %v3792 = vadd.f32 0.0, %v3791
      %v3793 = vpop.f32.mrf.mxu0
      %v3794 = vadd.f32 0.0, %v3793
      %3795 = vmatmul.bf16.gmra.mxu0 %v3713
      %v3796 = vpop.f32.mrf.mxu0
      %v3797 = vadd.f32 0.0, %v3796
      %v3798 = vpop.f32.mrf.mxu0
      %v3799 = vadd.f32 0.0, %v3798
      %3800 = vmatmul.bf16.gmra.mxu0 %v3716
      %v3801 = vpop.f32.mrf.mxu0
      %v3802 = vadd.f32 0.0, %v3801
      %v3803 = vpop.f32.mrf.mxu0
      %v3804 = vadd.f32 0.0, %v3803
      %3805 = vmatmul.bf16.gmra.mxu0 %v3719
      %v3806 = vpop.f32.mrf.mxu0
      %v3807 = vadd.f32 0.0, %v3806
      %v3808 = vpop.f32.mrf.mxu0
      %v3809 = vadd.f32 0.0, %v3808
      %3810 = vmatmul.bf16.gmra.mxu0 %v3722
      %v3811 = vpop.f32.mrf.mxu0
      %v3812 = vadd.f32 0.0, %v3811
      %v3813 = vpop.f32.mrf.mxu0
      %v3814 = vadd.f32 0.0, %v3813
      %3815 = vmatmul.bf16.gmra.mxu0 %v3725
      %v3816 = vpop.f32.mrf.mxu0
      %v3817 = vadd.f32 0.0, %v3816
      %v3818 = vpop.f32.mrf.mxu0
      %v3819 = vadd.f32 0.0, %v3818
      %3820 = vmatmul.bf16.gmra.mxu0 %v3728
      %v3821 = vpop.f32.mrf.mxu0
      %v3822 = vadd.f32 0.0, %v3821
      %v3823 = vpop.f32.mrf.mxu0
      %v3824 = vadd.f32 0.0, %v3823
      %3825 = vmatmul.bf16.gmra.mxu0 %v3731
      %v3826 = vpop.f32.mrf.mxu0
      %v3827 = vadd.f32 0.0, %v3826
      %v3828 = vpop.f32.mrf.mxu0
      %v3829 = vadd.f32 0.0, %v3828
      %3830 = vmatmul.bf16.gmra.mxu0 %v3734
      %v3831 = vpop.f32.mrf.mxu0
      %v3832 = vadd.f32 0.0, %v3831
      %v3833 = vpop.f32.mrf.mxu0
      %v3834 = vadd.f32 0.0, %v3833
      %3835 = vmatmul.bf16.gmra.mxu0 %v3737
      %v3836 = vpop.f32.mrf.mxu0
      %v3837 = vadd.f32 0.0, %v3836
      %v3838 = vpop.f32.mrf.mxu0
      %v3839 = vadd.f32 0.0, %v3838
      %3840 = vdwg.mxu0
      %v3841 = vld [vmem:[#allocation3] sm:$0xff]
      %v3842 = vld [vmem:[#allocation3 + $0x8] sm:$0xff]
      %v3843 = vld [vmem:[#allocation3 + $0x10] sm:$0xff]
      %v3844 = vld [vmem:[#allocation3 + $0x18] sm:$0xff]
      %v3845 = vld [vmem:[#allocation3 + $0x20] sm:$0xff]
      %v3846 = vld [vmem:[#allocation3 + $0x28] sm:$0xff]
      %v3847 = vld [vmem:[#allocation3 + $0x30] sm:$0xff]
      %v3848 = vld [vmem:[#allocation3 + $0x38] sm:$0xff]
      %v3849 = vld [vmem:[#allocation3 + $0x40] sm:$0xff]
      %v3850 = vld [vmem:[#allocation3 + $0x48] sm:$0xff]
      %v3851 = vld [vmem:[#allocation3 + $0x50] sm:$0xff]
      %v3852 = vld [vmem:[#allocation3 + $0x58] sm:$0xff]
      %v3853 = vld [vmem:[#allocation3 + $0x60] sm:$0xff]
      %v3854 = vld [vmem:[#allocation3 + $0x68] sm:$0xff]
      %v3855 = vld [vmem:[#allocation3 + $0x70] sm:$0xff]
      %v3856 = vld [vmem:[#allocation3 + $0x78] sm:$0xff]
      %v3857 = vld [vmem:[#allocation3 + $0x80] sm:$0xff]
      %v3858 = vld [vmem:[#allocation3 + $0x88] sm:$0xff]
      %v3859 = vld [vmem:[#allocation3 + $0x90] sm:$0xff]
      %v3860 = vld [vmem:[#allocation3 + $0x98] sm:$0xff]
      %v3861 = vld [vmem:[#allocation3 + $0xa0] sm:$0xff]
      %v3862 = vld [vmem:[#allocation3 + $0xa8] sm:$0xff]
      %v3863 = vld [vmem:[#allocation3 + $0xb0] sm:$0xff]
      %v3864 = vld [vmem:[#allocation3 + $0xb8] sm:$0xff]
      %v3865 = vld [vmem:[#allocation3 + $0xc0] sm:$0xff]
      %v3866 = vld [vmem:[#allocation3 + $0xc8] sm:$0xff]
      %v3867 = vld [vmem:[#allocation3 + $0xd0] sm:$0xff]
      %v3868 = vld [vmem:[#allocation3 + $0xd8] sm:$0xff]
      %v3869 = vld [vmem:[#allocation3 + $0xe0] sm:$0xff]
      %v3870 = vld [vmem:[#allocation3 + $0xe8] sm:$0xff]
      %v3871 = vld [vmem:[#allocation3 + $0xf0] sm:$0xff]
      %v3872 = vld [vmem:[#allocation3 + $0xf8] sm:$0xff]
      %v3873 = vld [vmem:[#allocation3 + $0x100] sm:$0xff]
      %v3874 = vld [vmem:[#allocation3 + $0x108] sm:$0xff]
      %v3875 = vld [vmem:[#allocation3 + $0x110] sm:$0xff]
      %v3876 = vld [vmem:[#allocation3 + $0x118] sm:$0xff]
      %v3877 = vadd.f32 %v3841, %v3752
      %v3878 = vadd.f32 %v3842, %v3754
      %v3879 = vadd.f32 %v3843, %v3757
      %v3880 = vadd.f32 %v3844, %v3759
      %v3881 = vadd.f32 %v3845, %v3762
      %v3882 = vadd.f32 %v3846, %v3764
      %v3883 = vadd.f32 %v3847, %v3767
      %v3884 = vadd.f32 %v3848, %v3769
      %v3885 = vadd.f32 %v3849, %v3772
      %v3886 = vadd.f32 %v3850, %v3774
      %v3887 = vadd.f32 %v3851, %v3777
      %v3888 = vadd.f32 %v3852, %v3779
      %v3889 = vadd.f32 %v3853, %v3782
      %v3890 = vadd.f32 %v3854, %v3784
      %v3891 = vadd.f32 %v3855, %v3787
      %v3892 = vadd.f32 %v3856, %v3789
      %v3893 = vadd.f32 %v3857, %v3792
      %v3894 = vadd.f32 %v3858, %v3794
      %v3895 = vadd.f32 %v3859, %v3797
      %v3896 = vadd.f32 %v3860, %v3799
      %v3897 = vadd.f32 %v3861, %v3802
      %v3898 = vadd.f32 %v3862, %v3804
      %v3899 = vadd.f32 %v3863, %v3807
      %v3900 = vadd.f32 %v3864, %v3809
      %v3901 = vadd.f32 %v3865, %v3812
      %v3902 = vadd.f32 %v3866, %v3814
      %v3903 = vadd.f32 %v3867, %v3817
      %v3904 = vadd.f32 %v3868, %v3819
      %v3905 = vadd.f32 %v3869, %v3822
      %v3906 = vadd.f32 %v3870, %v3824
      %v3907 = vadd.f32 %v3871, %v3827
      %v3908 = vadd.f32 %v3872, %v3829
      %v3909 = vadd.f32 %v3873, %v3832
      %v3910 = vadd.f32 %v3874, %v3834
      %v3911 = vadd.f32 %v3875, %v3837
      %v3912 = vadd.f32 %v3876, %v3839
      %3913 = vst [vmem:[#allocation3] sm:$0xff] %v3877
      %3914 = vst [vmem:[#allocation3 + $0x8] sm:$0xff] %v3878
      %3915 = vst [vmem:[#allocation3 + $0x10] sm:$0xff] %v3879
      %3916 = vst [vmem:[#allocation3 + $0x18] sm:$0xff] %v3880
      %3917 = vst [vmem:[#allocation3 + $0x20] sm:$0xff] %v3881
      %3918 = vst [vmem:[#allocation3 + $0x28] sm:$0xff] %v3882
      %3919 = vst [vmem:[#allocation3 + $0x30] sm:$0xff] %v3883
      %3920 = vst [vmem:[#allocation3 + $0x38] sm:$0xff] %v3884
      %3921 = vst [vmem:[#allocation3 + $0x40] sm:$0xff] %v3885
      %3922 = vst [vmem:[#allocation3 + $0x48] sm:$0xff] %v3886
      %3923 = vst [vmem:[#allocation3 + $0x50] sm:$0xff] %v3887
      %3924 = vst [vmem:[#allocation3 + $0x58] sm:$0xff] %v3888
      %3925 = vst [vmem:[#allocation3 + $0x60] sm:$0xff] %v3889
      %3926 = vst [vmem:[#allocation3 + $0x68] sm:$0xff] %v3890
      %3927 = vst [vmem:[#allocation3 + $0x70] sm:$0xff] %v3891
      %3928 = vst [vmem:[#allocation3 + $0x78] sm:$0xff] %v3892
      %3929 = vst [vmem:[#allocation3 + $0x80] sm:$0xff] %v3893
      %3930 = vst [vmem:[#allocation3 + $0x88] sm:$0xff] %v3894
      %3931 = vst [vmem:[#allocation3 + $0x90] sm:$0xff] %v3895
      %3932 = vst [vmem:[#allocation3 + $0x98] sm:$0xff] %v3896
      %3933 = vst [vmem:[#allocation3 + $0xa0] sm:$0xff] %v3897
      %3934 = vst [vmem:[#allocation3 + $0xa8] sm:$0xff] %v3898
      %3935 = vst [vmem:[#allocation3 + $0xb0] sm:$0xff] %v3899
      %3936 = vst [vmem:[#allocation3 + $0xb8] sm:$0xff] %v3900
      %3937 = vst [vmem:[#allocation3 + $0xc0] sm:$0xff] %v3901
      %3938 = vst [vmem:[#allocation3 + $0xc8] sm:$0xff] %v3902
      %3939 = vst [vmem:[#allocation3 + $0xd0] sm:$0xff] %v3903
      %3940 = vst [vmem:[#allocation3 + $0xd8] sm:$0xff] %v3904
      %3941 = vst [vmem:[#allocation3 + $0xe0] sm:$0xff] %v3905
      %3942 = vst [vmem:[#allocation3 + $0xe8] sm:$0xff] %v3906
      %3943 = vst [vmem:[#allocation3 + $0xf0] sm:$0xff] %v3907
      %3944 = vst [vmem:[#allocation3 + $0xf8] sm:$0xff] %v3908
      %3945 = vst [vmem:[#allocation3 + $0x100] sm:$0xff] %v3909
      %3946 = vst [vmem:[#allocation3 + $0x108] sm:$0xff] %v3910
      %3947 = vst [vmem:[#allocation3 + $0x110] sm:$0xff] %v3911
      %3948 = vst [vmem:[#allocation3 + $0x118] sm:$0xff] %v3912
      %v3949 = vld [vmem:[#allocation2 + $0x14] sm:$0xe]
      %v3950 = vld [vmem:[#allocation2 + $0x18] sm:$0xf]
      %v3951 = vld [vmem:[#allocation2 + $0x1c] sm:$0xf]
      %v3952 = vld [vmem:[#allocation2 + $0x20] sm:$0xf]
      %v3953 = vld [vmem:[#allocation2 + $0x24] sm:$0xf]
      %v3954 = vld [vmem:[#allocation2 + $0x28] sm:$0xf]
      %v3955 = vld [vmem:[#allocation2 + $0x2c] sm:$0xf]
      %v3956 = vld [vmem:[#allocation2 + $0x30] sm:$0xf]
      %v3957 = vld [vmem:[#allocation2 + $0x34] sm:$0xf]
      %v3958 = vld [vmem:[#allocation2 + $0x38] sm:$0xf]
      %v3959 = vld [vmem:[#allocation2 + $0x3c] sm:$0xf]
      %v3960 = vld [vmem:[#allocation2 + $0x40] sm:$0xf]
      %v3961 = vld [vmem:[#allocation2 + $0x44] sm:$0xf]
      %v3962 = vld [vmem:[#allocation2 + $0x48] sm:$0xf]
      %v3963 = vld [vmem:[#allocation2 + $0x4c] sm:$0xf]
      %v3964 = vld [vmem:[#allocation2 + $0x50] sm:$0xf]
      %v3965 = vld [vmem:[#allocation2 + $0x54] sm:$0xf]
      %v3966 = vld [vmem:[#allocation2 + $0x58] sm:$0xf]
      %v3967 = vld [vmem:[#allocation2 + $0x5c] sm:$0xf]
      %v3968 = vld [vmem:[#allocation2 + $0x60] sm:$0xf]
      %v3969 = vld [vmem:[#allocation2 + $0x64] sm:$0xf]
      %v3970 = vld [vmem:[#allocation2 + $0x68] sm:$0xf]
      %v3971 = vld [vmem:[#allocation2 + $0x6c] sm:$0xf]
      %v3972 = vld [vmem:[#allocation2 + $0x70] sm:$0xf]
      %v3973 = vld [vmem:[#allocation2 + $0x74] sm:$0xf]
      %v3974 = vld [vmem:[#allocation2 + $0x78] sm:$0xf]
      %v3975 = vld [vmem:[#allocation2 + $0x7c] sm:$0xf]
      %v3976 = vld [vmem:[#allocation2 + $0x80] sm:$0xf]
      %v3977 = vld [vmem:[#allocation2 + $0x84] sm:$0xf]
      %v3978 = vld [vmem:[#allocation2 + $0x88] sm:$0xf]
      %v3979 = vld [vmem:[#allocation2 + $0x8c] sm:$0xf]
      %v3980 = vld [vmem:[#allocation2 + $0x90] sm:$0xf]
      %v3981 = vld [vmem:[#allocation2 + $0x94] sm:$0xf]
      %v3982 = vld [vmem:[#allocation2 + $0x98] sm:$0xf]
      %v3983 = vld [vmem:[#allocation2 + $0x9c] sm:$0xf]
      %v3984 = vld [vmem:[#allocation2 + $0xa0] sm:$0xf]
      %v3985 = vld [vmem:[#allocation2 + $0xa4] sm:$0x3]
      %s3986 = scalar_lea.vmem %s4, 24
      %v3987 = vld [vmem:[%s3986] sm:$0xf]
      %v4025 = vunpack.c.l.b16 %v3949
      %v4026 = vunpack.c.l.b16 %v3950
      %v4027 = vunpack.c.l.b16 %v3951
      %v4028 = vunpack.c.l.b16 %v3952
      %v4029 = vunpack.c.l.b16 %v3953
      %v4030 = vunpack.c.l.b16 %v3954
      %v4031 = vunpack.c.l.b16 %v3955
      %v4032 = vunpack.c.l.b16 %v3956
      %v4033 = vunpack.c.l.b16 %v3957
      %v4034 = vunpack.c.l.b16 %v3958
      %v4035 = vunpack.c.l.b16 %v3959
      %v4036 = vunpack.c.l.b16 %v3960
      %v4037 = vunpack.c.l.b16 %v3961
      %v4038 = vunpack.c.l.b16 %v3962
      %v4039 = vunpack.c.l.b16 %v3963
      %v4040 = vunpack.c.l.b16 %v3964
      %v4041 = vunpack.c.l.b16 %v3965
      %v4042 = vunpack.c.l.b16 %v3966
      %v4043 = vunpack.c.l.b16 %v3967
      %v4044 = vunpack.c.l.b16 %v3968
      %v4045 = vunpack.c.l.b16 %v3969
      %v4046 = vunpack.c.l.b16 %v3970
      %v4047 = vunpack.c.l.b16 %v3971
      %v4048 = vunpack.c.l.b16 %v3972
      %v4049 = vunpack.c.l.b16 %v3973
      %v4050 = vunpack.c.l.b16 %v3974
      %v4051 = vunpack.c.l.b16 %v3975
      %v4052 = vunpack.c.l.b16 %v3976
      %v4053 = vunpack.c.l.b16 %v3977
      %v4054 = vunpack.c.l.b16 %v3978
      %v4055 = vunpack.c.l.b16 %v3979
      %v4056 = vunpack.c.l.b16 %v3980
      %v4057 = vunpack.c.l.b16 %v3981
      %v4058 = vunpack.c.l.b16 %v3982
      %v4059 = vunpack.c.l.b16 %v3983
      %v4060 = vunpack.c.l.b16 %v3984
      %v4061 = vunpack.c.l.b16 %v3985
      %v4062 = vpack.c.b16 %v4026, %v4025
      %v4063 = vpack.c.b16 %v4028, %v4027
      %v4064 = vpack.c.b16 %v4030, %v4029
      %v4065 = vpack.c.b16 %v4032, %v4031
      %v4066 = vpack.c.b16 %v4034, %v4033
      %v4067 = vpack.c.b16 %v4036, %v4035
      %v4068 = vpack.c.b16 %v4038, %v4037
      %v4069 = vpack.c.b16 %v4040, %v4039
      %v4070 = vpack.c.b16 %v4042, %v4041
      %v4071 = vpack.c.b16 %v4044, %v4043
      %v4072 = vpack.c.b16 %v4046, %v4045
      %v4073 = vpack.c.b16 %v4048, %v4047
      %v4074 = vpack.c.b16 %v4050, %v4049
      %v4075 = vpack.c.b16 %v4052, %v4051
      %v4076 = vpack.c.b16 %v4054, %v4053
      %v4077 = vpack.c.b16 %v4056, %v4055
      %v4078 = vpack.c.b16 %v4058, %v4057
      %v4079 = vpack.c.b16 %v4060, %v4059
      %v4080 = vpack.c.b16 %v4061, %v4061
      %v4082 = vshrl.u32 %v4062, 16
      %v4084 = vrot.slane %v4082, 1
      %v4085 = vshll.u32 %v4062, 16
      %v4087 = vrot.slane %v4085, 2
      %v4088 = vor.u32 %v4084, %v4087
      %v4090 = vshrl.u32 %v4063, 16
      %v4092 = vrot.slane %v4090, 1
      %v4093 = vshll.u32 %v4063, 16
      %v4095 = vrot.slane %v4093, 2
      %v4096 = vor.u32 %v4092, %v4095
      %v4097 = vsel %vm3514, %v4088, %v4096
      %v4099 = vshrl.u32 %v4064, 16
      %v4101 = vrot.slane %v4099, 1
      %v4102 = vshll.u32 %v4064, 16
      %v4104 = vrot.slane %v4102, 2
      %v4105 = vor.u32 %v4101, %v4104
      %v4106 = vsel %vm3514, %v4096, %v4105
      %v4108 = vshrl.u32 %v4065, 16
      %v4110 = vrot.slane %v4108, 1
      %v4111 = vshll.u32 %v4065, 16
      %v4113 = vrot.slane %v4111, 2
      %v4114 = vor.u32 %v4110, %v4113
      %v4115 = vsel %vm3514, %v4105, %v4114
      %v4117 = vshrl.u32 %v4066, 16
      %v4119 = vrot.slane %v4117, 1
      %v4120 = vshll.u32 %v4066, 16
      %v4122 = vrot.slane %v4120, 2
      %v4123 = vor.u32 %v4119, %v4122
      %v4124 = vsel %vm3514, %v4114, %v4123
      %v4126 = vshrl.u32 %v4067, 16
      %v4128 = vrot.slane %v4126, 1
      %v4129 = vshll.u32 %v4067, 16
      %v4131 = vrot.slane %v4129, 2
      %v4132 = vor.u32 %v4128, %v4131
      %v4133 = vsel %vm3514, %v4123, %v4132
      %v4135 = vshrl.u32 %v4068, 16
      %v4137 = vrot.slane %v4135, 1
      %v4138 = vshll.u32 %v4068, 16
      %v4140 = vrot.slane %v4138, 2
      %v4141 = vor.u32 %v4137, %v4140
      %v4142 = vsel %vm3514, %v4132, %v4141
      %v4144 = vshrl.u32 %v4069, 16
      %v4146 = vrot.slane %v4144, 1
      %v4147 = vshll.u32 %v4069, 16
      %v4149 = vrot.slane %v4147, 2
      %v4150 = vor.u32 %v4146, %v4149
      %v4151 = vsel %vm3514, %v4141, %v4150
      %v4153 = vshrl.u32 %v4070, 16
      %v4155 = vrot.slane %v4153, 1
      %v4156 = vshll.u32 %v4070, 16
      %v4158 = vrot.slane %v4156, 2
      %v4159 = vor.u32 %v4155, %v4158
      %v4160 = vsel %vm3514, %v4150, %v4159
      %v4162 = vshrl.u32 %v4071, 16
      %v4164 = vrot.slane %v4162, 1
      %v4165 = vshll.u32 %v4071, 16
      %v4167 = vrot.slane %v4165, 2
      %v4168 = vor.u32 %v4164, %v4167
      %v4169 = vsel %vm3514, %v4159, %v4168
      %v4171 = vshrl.u32 %v4072, 16
      %v4173 = vrot.slane %v4171, 1
      %v4174 = vshll.u32 %v4072, 16
      %v4176 = vrot.slane %v4174, 2
      %v4177 = vor.u32 %v4173, %v4176
      %v4178 = vsel %vm3514, %v4168, %v4177
      %v4180 = vshrl.u32 %v4073, 16
      %v4182 = vrot.slane %v4180, 1
      %v4183 = vshll.u32 %v4073, 16
      %v4185 = vrot.slane %v4183, 2
      %v4186 = vor.u32 %v4182, %v4185
      %v4187 = vsel %vm3514, %v4177, %v4186
      %v4189 = vshrl.u32 %v4074, 16
      %v4191 = vrot.slane %v4189, 1
      %v4192 = vshll.u32 %v4074, 16
      %v4194 = vrot.slane %v4192, 2
      %v4195 = vor.u32 %v4191, %v4194
      %v4196 = vsel %vm3514, %v4186, %v4195
      %v4198 = vshrl.u32 %v4075, 16
      %v4200 = vrot.slane %v4198, 1
      %v4201 = vshll.u32 %v4075, 16
      %v4203 = vrot.slane %v4201, 2
      %v4204 = vor.u32 %v4200, %v4203
      %v4205 = vsel %vm3514, %v4195, %v4204
      %v4207 = vshrl.u32 %v4076, 16
      %v4209 = vrot.slane %v4207, 1
      %v4210 = vshll.u32 %v4076, 16
      %v4212 = vrot.slane %v4210, 2
      %v4213 = vor.u32 %v4209, %v4212
      %v4214 = vsel %vm3514, %v4204, %v4213
      %v4216 = vshrl.u32 %v4077, 16
      %v4218 = vrot.slane %v4216, 1
      %v4219 = vshll.u32 %v4077, 16
      %v4221 = vrot.slane %v4219, 2
      %v4222 = vor.u32 %v4218, %v4221
      %v4223 = vsel %vm3514, %v4213, %v4222
      %v4225 = vshrl.u32 %v4078, 16
      %v4227 = vrot.slane %v4225, 1
      %v4228 = vshll.u32 %v4078, 16
      %v4230 = vrot.slane %v4228, 2
      %v4231 = vor.u32 %v4227, %v4230
      %v4232 = vsel %vm3514, %v4222, %v4231
      %v4234 = vshrl.u32 %v4079, 16
      %v4236 = vrot.slane %v4234, 1
      %v4237 = vshll.u32 %v4079, 16
      %v4239 = vrot.slane %v4237, 2
      %v4240 = vor.u32 %v4236, %v4239
      %v4241 = vsel %vm3514, %v4231, %v4240
      %v4243 = vshrl.u32 %v4080, 16
      %v4245 = vrot.slane %v4243, 1
      %v4246 = vshll.u32 %v4080, 16
      %v4248 = vrot.slane %v4246, 2
      %v4249 = vor.u32 %v4245, %v4248
      %v4250 = vsel %vm3514, %v4240, %v4249
      %v4252 = vsel %vm1273, %v4097, 0
      %v4255 = vsel %vm1273, %v4106, 0
      %v4258 = vsel %vm1273, %v4115, 0
      %v4261 = vsel %vm1273, %v4124, 0
      %v4264 = vsel %vm1273, %v4133, 0
      %v4267 = vsel %vm1273, %v4142, 0
      %v4270 = vsel %vm1273, %v4151, 0
      %v4273 = vsel %vm1273, %v4160, 0
      %v4276 = vsel %vm1273, %v4169, 0
      %v4279 = vsel %vm1273, %v4178, 0
      %v4282 = vsel %vm1273, %v4187, 0
      %v4285 = vsel %vm1273, %v4196, 0
      %v4288 = vsel %vm1273, %v4205, 0
      %v4291 = vsel %vm1273, %v4214, 0
      %v4294 = vsel %vm1273, %v4223, 0
      %v4297 = vsel %vm1273, %v4232, 0
      %v4300 = vsel %vm1273, %v4241, 0
      %v4303 = vsel %vm1273, %v4250, 0
      %v4306 = vsel %vm1328, %v3987, 0
      %4308 = vmatpush.bf16.msra.mxu0 0
      %4309 = vmatpush.bf16.msra.mxu0 0
      %4310 = vmatpush.bf16.msra.mxu0 0
      %4311 = vmatpush.bf16.msra.mxu0 0
      %4312 = vmatpush.bf16.msra.mxu0 0
      %4313 = vmatpush.bf16.msra.mxu0 0
      %4314 = vmatpush.bf16.msra.mxu0 0
      %4315 = vmatpush.bf16.msra.mxu0 %v4306
      %4316 = vmatmul.bf16.gmra.mxu0 %v4252
      %v4317 = vpop.f32.mrf.mxu0
      %v4318 = vadd.f32 0.0, %v4317
      %v4319 = vpop.f32.mrf.mxu0
      %v4320 = vadd.f32 0.0, %v4319
      %4321 = vmatmul.bf16.gmra.mxu0 %v4255
      %v4322 = vpop.f32.mrf.mxu0
      %v4323 = vadd.f32 0.0, %v4322
      %v4324 = vpop.f32.mrf.mxu0
      %v4325 = vadd.f32 0.0, %v4324
      %4326 = vmatmul.bf16.gmra.mxu0 %v4258
      %v4327 = vpop.f32.mrf.mxu0
      %v4328 = vadd.f32 0.0, %v4327
      %v4329 = vpop.f32.mrf.mxu0
      %v4330 = vadd.f32 0.0, %v4329
      %4331 = vmatmul.bf16.gmra.mxu0 %v4261
      %v4332 = vpop.f32.mrf.mxu0
      %v4333 = vadd.f32 0.0, %v4332
      %v4334 = vpop.f32.mrf.mxu0
      %v4335 = vadd.f32 0.0, %v4334
      %4336 = vmatmul.bf16.gmra.mxu0 %v4264
      %v4337 = vpop.f32.mrf.mxu0
      %v4338 = vadd.f32 0.0, %v4337
      %v4339 = vpop.f32.mrf.mxu0
      %v4340 = vadd.f32 0.0, %v4339
      %4341 = vmatmul.bf16.gmra.mxu0 %v4267
      %v4342 = vpop.f32.mrf.mxu0
      %v4343 = vadd.f32 0.0, %v4342
      %v4344 = vpop.f32.mrf.mxu0
      %v4345 = vadd.f32 0.0, %v4344
      %4346 = vmatmul.bf16.gmra.mxu0 %v4270
      %v4347 = vpop.f32.mrf.mxu0
      %v4348 = vadd.f32 0.0, %v4347
      %v4349 = vpop.f32.mrf.mxu0
      %v4350 = vadd.f32 0.0, %v4349
      %4351 = vmatmul.bf16.gmra.mxu0 %v4273
      %v4352 = vpop.f32.mrf.mxu0
      %v4353 = vadd.f32 0.0, %v4352
      %v4354 = vpop.f32.mrf.mxu0
      %v4355 = vadd.f32 0.0, %v4354
      %4356 = vmatmul.bf16.gmra.mxu0 %v4276
      %v4357 = vpop.f32.mrf.mxu0
      %v4358 = vadd.f32 0.0, %v4357
      %v4359 = vpop.f32.mrf.mxu0
      %v4360 = vadd.f32 0.0, %v4359
      %4361 = vmatmul.bf16.gmra.mxu0 %v4279
      %v4362 = vpop.f32.mrf.mxu0
      %v4363 = vadd.f32 0.0, %v4362
      %v4364 = vpop.f32.mrf.mxu0
      %v4365 = vadd.f32 0.0, %v4364
      %4366 = vmatmul.bf16.gmra.mxu0 %v4282
      %v4367 = vpop.f32.mrf.mxu0
      %v4368 = vadd.f32 0.0, %v4367
      %v4369 = vpop.f32.mrf.mxu0
      %v4370 = vadd.f32 0.0, %v4369
      %4371 = vmatmul.bf16.gmra.mxu0 %v4285
      %v4372 = vpop.f32.mrf.mxu0
      %v4373 = vadd.f32 0.0, %v4372
      %v4374 = vpop.f32.mrf.mxu0
      %v4375 = vadd.f32 0.0, %v4374
      %4376 = vmatmul.bf16.gmra.mxu0 %v4288
      %v4377 = vpop.f32.mrf.mxu0
      %v4378 = vadd.f32 0.0, %v4377
      %v4379 = vpop.f32.mrf.mxu0
      %v4380 = vadd.f32 0.0, %v4379
      %4381 = vmatmul.bf16.gmra.mxu0 %v4291
      %v4382 = vpop.f32.mrf.mxu0
      %v4383 = vadd.f32 0.0, %v4382
      %v4384 = vpop.f32.mrf.mxu0
      %v4385 = vadd.f32 0.0, %v4384
      %4386 = vmatmul.bf16.gmra.mxu0 %v4294
      %v4387 = vpop.f32.mrf.mxu0
      %v4388 = vadd.f32 0.0, %v4387
      %v4389 = vpop.f32.mrf.mxu0
      %v4390 = vadd.f32 0.0, %v4389
      %4391 = vmatmul.bf16.gmra.mxu0 %v4297
      %v4392 = vpop.f32.mrf.mxu0
      %v4393 = vadd.f32 0.0, %v4392
      %v4394 = vpop.f32.mrf.mxu0
      %v4395 = vadd.f32 0.0, %v4394
      %4396 = vmatmul.bf16.gmra.mxu0 %v4300
      %v4397 = vpop.f32.mrf.mxu0
      %v4398 = vadd.f32 0.0, %v4397
      %v4399 = vpop.f32.mrf.mxu0
      %v4400 = vadd.f32 0.0, %v4399
      %4401 = vmatmul.bf16.gmra.mxu0 %v4303
      %v4402 = vpop.f32.mrf.mxu0
      %v4403 = vadd.f32 0.0, %v4402
      %v4404 = vpop.f32.mrf.mxu0
      %v4405 = vadd.f32 0.0, %v4404
      %4406 = vdwg.mxu0
      %v4407 = vld [vmem:[#allocation3] sm:$0xff]
      %v4408 = vld [vmem:[#allocation3 + $0x8] sm:$0xff]
      %v4409 = vld [vmem:[#allocation3 + $0x10] sm:$0xff]
      %v4410 = vld [vmem:[#allocation3 + $0x18] sm:$0xff]
      %v4411 = vld [vmem:[#allocation3 + $0x20] sm:$0xff]
      %v4412 = vld [vmem:[#allocation3 + $0x28] sm:$0xff]
      %v4413 = vld [vmem:[#allocation3 + $0x30] sm:$0xff]
      %v4414 = vld [vmem:[#allocation3 + $0x38] sm:$0xff]
      %v4415 = vld [vmem:[#allocation3 + $0x40] sm:$0xff]
      %v4416 = vld [vmem:[#allocation3 + $0x48] sm:$0xff]
      %v4417 = vld [vmem:[#allocation3 + $0x50] sm:$0xff]
      %v4418 = vld [vmem:[#allocation3 + $0x58] sm:$0xff]
      %v4419 = vld [vmem:[#allocation3 + $0x60] sm:$0xff]
      %v4420 = vld [vmem:[#allocation3 + $0x68] sm:$0xff]
      %v4421 = vld [vmem:[#allocation3 + $0x70] sm:$0xff]
      %v4422 = vld [vmem:[#allocation3 + $0x78] sm:$0xff]
      %v4423 = vld [vmem:[#allocation3 + $0x80] sm:$0xff]
      %v4424 = vld [vmem:[#allocation3 + $0x88] sm:$0xff]
      %v4425 = vld [vmem:[#allocation3 + $0x90] sm:$0xff]
      %v4426 = vld [vmem:[#allocation3 + $0x98] sm:$0xff]
      %v4427 = vld [vmem:[#allocation3 + $0xa0] sm:$0xff]
      %v4428 = vld [vmem:[#allocation3 + $0xa8] sm:$0xff]
      %v4429 = vld [vmem:[#allocation3 + $0xb0] sm:$0xff]
      %v4430 = vld [vmem:[#allocation3 + $0xb8] sm:$0xff]
      %v4431 = vld [vmem:[#allocation3 + $0xc0] sm:$0xff]
      %v4432 = vld [vmem:[#allocation3 + $0xc8] sm:$0xff]
      %v4433 = vld [vmem:[#allocation3 + $0xd0] sm:$0xff]
      %v4434 = vld [vmem:[#allocation3 + $0xd8] sm:$0xff]
      %v4435 = vld [vmem:[#allocation3 + $0xe0] sm:$0xff]
      %v4436 = vld [vmem:[#allocation3 + $0xe8] sm:$0xff]
      %v4437 = vld [vmem:[#allocation3 + $0xf0] sm:$0xff]
      %v4438 = vld [vmem:[#allocation3 + $0xf8] sm:$0xff]
      %v4439 = vld [vmem:[#allocation3 + $0x100] sm:$0xff]
      %v4440 = vld [vmem:[#allocation3 + $0x108] sm:$0xff]
      %v4441 = vld [vmem:[#allocation3 + $0x110] sm:$0xff]
      %v4442 = vld [vmem:[#allocation3 + $0x118] sm:$0xff]
      %v4443 = vadd.f32 %v4407, %v4318
      %v4444 = vadd.f32 %v4408, %v4320
      %v4445 = vadd.f32 %v4409, %v4323
      %v4446 = vadd.f32 %v4410, %v4325
      %v4447 = vadd.f32 %v4411, %v4328
      %v4448 = vadd.f32 %v4412, %v4330
      %v4449 = vadd.f32 %v4413, %v4333
      %v4450 = vadd.f32 %v4414, %v4335
      %v4451 = vadd.f32 %v4415, %v4338
      %v4452 = vadd.f32 %v4416, %v4340
      %v4453 = vadd.f32 %v4417, %v4343
      %v4454 = vadd.f32 %v4418, %v4345
      %v4455 = vadd.f32 %v4419, %v4348
      %v4456 = vadd.f32 %v4420, %v4350
      %v4457 = vadd.f32 %v4421, %v4353
      %v4458 = vadd.f32 %v4422, %v4355
      %v4459 = vadd.f32 %v4423, %v4358
      %v4460 = vadd.f32 %v4424, %v4360
      %v4461 = vadd.f32 %v4425, %v4363
      %v4462 = vadd.f32 %v4426, %v4365
      %v4463 = vadd.f32 %v4427, %v4368
      %v4464 = vadd.f32 %v4428, %v4370
      %v4465 = vadd.f32 %v4429, %v4373
      %v4466 = vadd.f32 %v4430, %v4375
      %v4467 = vadd.f32 %v4431, %v4378
      %v4468 = vadd.f32 %v4432, %v4380
      %v4469 = vadd.f32 %v4433, %v4383
      %v4470 = vadd.f32 %v4434, %v4385
      %v4471 = vadd.f32 %v4435, %v4388
      %v4472 = vadd.f32 %v4436, %v4390
      %v4473 = vadd.f32 %v4437, %v4393
      %v4474 = vadd.f32 %v4438, %v4395
      %v4475 = vadd.f32 %v4439, %v4398
      %v4476 = vadd.f32 %v4440, %v4400
      %v4477 = vadd.f32 %v4441, %v4403
      %v4478 = vadd.f32 %v4442, %v4405
      %4479 = vst [vmem:[#allocation3] sm:$0xff] %v4443
      %4480 = vst [vmem:[#allocation3 + $0x8] sm:$0xff] %v4444
      %4481 = vst [vmem:[#allocation3 + $0x10] sm:$0xff] %v4445
      %4482 = vst [vmem:[#allocation3 + $0x18] sm:$0xff] %v4446
      %4483 = vst [vmem:[#allocation3 + $0x20] sm:$0xff] %v4447
      %4484 = vst [vmem:[#allocation3 + $0x28] sm:$0xff] %v4448
      %4485 = vst [vmem:[#allocation3 + $0x30] sm:$0xff] %v4449
      %4486 = vst [vmem:[#allocation3 + $0x38] sm:$0xff] %v4450
      %4487 = vst [vmem:[#allocation3 + $0x40] sm:$0xff] %v4451
      %4488 = vst [vmem:[#allocation3 + $0x48] sm:$0xff] %v4452
      %4489 = vst [vmem:[#allocation3 + $0x50] sm:$0xff] %v4453
      %4490 = vst [vmem:[#allocation3 + $0x58] sm:$0xff] %v4454
      %4491 = vst [vmem:[#allocation3 + $0x60] sm:$0xff] %v4455
      %4492 = vst [vmem:[#allocation3 + $0x68] sm:$0xff] %v4456
      %4493 = vst [vmem:[#allocation3 + $0x70] sm:$0xff] %v4457
      %4494 = vst [vmem:[#allocation3 + $0x78] sm:$0xff] %v4458
      %4495 = vst [vmem:[#allocation3 + $0x80] sm:$0xff] %v4459
      %4496 = vst [vmem:[#allocation3 + $0x88] sm:$0xff] %v4460
      %4497 = vst [vmem:[#allocation3 + $0x90] sm:$0xff] %v4461
      %4498 = vst [vmem:[#allocation3 + $0x98] sm:$0xff] %v4462
      %4499 = vst [vmem:[#allocation3 + $0xa0] sm:$0xff] %v4463
      %4500 = vst [vmem:[#allocation3 + $0xa8] sm:$0xff] %v4464
      %4501 = vst [vmem:[#allocation3 + $0xb0] sm:$0xff] %v4465
      %4502 = vst [vmem:[#allocation3 + $0xb8] sm:$0xff] %v4466
      %4503 = vst [vmem:[#allocation3 + $0xc0] sm:$0xff] %v4467
      %4504 = vst [vmem:[#allocation3 + $0xc8] sm:$0xff] %v4468
      %4505 = vst [vmem:[#allocation3 + $0xd0] sm:$0xff] %v4469
      %4506 = vst [vmem:[#allocation3 + $0xd8] sm:$0xff] %v4470
      %4507 = vst [vmem:[#allocation3 + $0xe0] sm:$0xff] %v4471
      %4508 = vst [vmem:[#allocation3 + $0xe8] sm:$0xff] %v4472
      %4509 = vst [vmem:[#allocation3 + $0xf0] sm:$0xff] %v4473
      %4510 = vst [vmem:[#allocation3 + $0xf8] sm:$0xff] %v4474
      %4511 = vst [vmem:[#allocation3 + $0x100] sm:$0xff] %v4475
      %4512 = vst [vmem:[#allocation3 + $0x108] sm:$0xff] %v4476
      %4513 = vst [vmem:[#allocation3 + $0x110] sm:$0xff] %v4477
      %4514 = vst [vmem:[#allocation3 + $0x118] sm:$0xff] %v4478
      %v4515 = vld [vmem:[#allocation2 + $0x14] sm:$0xc]
      %v4516 = vld [vmem:[#allocation2 + $0x18] sm:$0xf]
      %v4517 = vld [vmem:[#allocation2 + $0x1c] sm:$0xf]
      %v4518 = vld [vmem:[#allocation2 + $0x20] sm:$0xf]
      %v4519 = vld [vmem:[#allocation2 + $0x24] sm:$0xf]
      %v4520 = vld [vmem:[#allocation2 + $0x28] sm:$0xf]
      %v4521 = vld [vmem:[#allocation2 + $0x2c] sm:$0xf]
      %v4522 = vld [vmem:[#allocation2 + $0x30] sm:$0xf]
      %v4523 = vld [vmem:[#allocation2 + $0x34] sm:$0xf]
      %v4524 = vld [vmem:[#allocation2 + $0x38] sm:$0xf]
      %v4525 = vld [vmem:[#allocation2 + $0x3c] sm:$0xf]
      %v4526 = vld [vmem:[#allocation2 + $0x40] sm:$0xf]
      %v4527 = vld [vmem:[#allocation2 + $0x44] sm:$0xf]
      %v4528 = vld [vmem:[#allocation2 + $0x48] sm:$0xf]
      %v4529 = vld [vmem:[#allocation2 + $0x4c] sm:$0xf]
      %v4530 = vld [vmem:[#allocation2 + $0x50] sm:$0xf]
      %v4531 = vld [vmem:[#allocation2 + $0x54] sm:$0xf]
      %v4532 = vld [vmem:[#allocation2 + $0x58] sm:$0xf]
      %v4533 = vld [vmem:[#allocation2 + $0x5c] sm:$0xf]
      %v4534 = vld [vmem:[#allocation2 + $0x60] sm:$0xf]
      %v4535 = vld [vmem:[#allocation2 + $0x64] sm:$0xf]
      %v4536 = vld [vmem:[#allocation2 + $0x68] sm:$0xf]
      %v4537 = vld [vmem:[#allocation2 + $0x6c] sm:$0xf]
      %v4538 = vld [vmem:[#allocation2 + $0x70] sm:$0xf]
      %v4539 = vld [vmem:[#allocation2 + $0x74] sm:$0xf]
      %v4540 = vld [vmem:[#allocation2 + $0x78] sm:$0xf]
      %v4541 = vld [vmem:[#allocation2 + $0x7c] sm:$0xf]
      %v4542 = vld [vmem:[#allocation2 + $0x80] sm:$0xf]
      %v4543 = vld [vmem:[#allocation2 + $0x84] sm:$0xf]
      %v4544 = vld [vmem:[#allocation2 + $0x88] sm:$0xf]
      %v4545 = vld [vmem:[#allocation2 + $0x8c] sm:$0xf]
      %v4546 = vld [vmem:[#allocation2 + $0x90] sm:$0xf]
      %v4547 = vld [vmem:[#allocation2 + $0x94] sm:$0xf]
      %v4548 = vld [vmem:[#allocation2 + $0x98] sm:$0xf]
      %v4549 = vld [vmem:[#allocation2 + $0x9c] sm:$0xf]
      %v4550 = vld [vmem:[#allocation2 + $0xa0] sm:$0xf]
      %v4551 = vld [vmem:[#allocation2 + $0xa4] sm:$0x3]
      %s4552 = scalar_lea.vmem %s4, 28
      %v4553 = vld [vmem:[%s4552] sm:$0xf]
      %v4591 = vunpack.c.l.b16 %v4515
      %v4592 = vunpack.c.l.b16 %v4516
      %v4593 = vunpack.c.l.b16 %v4517
      %v4594 = vunpack.c.l.b16 %v4518
      %v4595 = vunpack.c.l.b16 %v4519
      %v4596 = vunpack.c.l.b16 %v4520
      %v4597 = vunpack.c.l.b16 %v4521
      %v4598 = vunpack.c.l.b16 %v4522
      %v4599 = vunpack.c.l.b16 %v4523
      %v4600 = vunpack.c.l.b16 %v4524
      %v4601 = vunpack.c.l.b16 %v4525
      %v4602 = vunpack.c.l.b16 %v4526
      %v4603 = vunpack.c.l.b16 %v4527
      %v4604 = vunpack.c.l.b16 %v4528
      %v4605 = vunpack.c.l.b16 %v4529
      %v4606 = vunpack.c.l.b16 %v4530
      %v4607 = vunpack.c.l.b16 %v4531
      %v4608 = vunpack.c.l.b16 %v4532
      %v4609 = vunpack.c.l.b16 %v4533
      %v4610 = vunpack.c.l.b16 %v4534
      %v4611 = vunpack.c.l.b16 %v4535
      %v4612 = vunpack.c.l.b16 %v4536
      %v4613 = vunpack.c.l.b16 %v4537
      %v4614 = vunpack.c.l.b16 %v4538
      %v4615 = vunpack.c.l.b16 %v4539
      %v4616 = vunpack.c.l.b16 %v4540
      %v4617 = vunpack.c.l.b16 %v4541
      %v4618 = vunpack.c.l.b16 %v4542
      %v4619 = vunpack.c.l.b16 %v4543
      %v4620 = vunpack.c.l.b16 %v4544
      %v4621 = vunpack.c.l.b16 %v4545
      %v4622 = vunpack.c.l.b16 %v4546
      %v4623 = vunpack.c.l.b16 %v4547
      %v4624 = vunpack.c.l.b16 %v4548
      %v4625 = vunpack.c.l.b16 %v4549
      %v4626 = vunpack.c.l.b16 %v4550
      %v4627 = vunpack.c.l.b16 %v4551
      %v4628 = vpack.c.b16 %v4592, %v4591
      %v4629 = vpack.c.b16 %v4594, %v4593
      %v4630 = vpack.c.b16 %v4596, %v4595
      %v4631 = vpack.c.b16 %v4598, %v4597
      %v4632 = vpack.c.b16 %v4600, %v4599
      %v4633 = vpack.c.b16 %v4602, %v4601
      %v4634 = vpack.c.b16 %v4604, %v4603
      %v4635 = vpack.c.b16 %v4606, %v4605
      %v4636 = vpack.c.b16 %v4608, %v4607
      %v4637 = vpack.c.b16 %v4610, %v4609
      %v4638 = vpack.c.b16 %v4612, %v4611
      %v4639 = vpack.c.b16 %v4614, %v4613
      %v4640 = vpack.c.b16 %v4616, %v4615
      %v4641 = vpack.c.b16 %v4618, %v4617
      %v4642 = vpack.c.b16 %v4620, %v4619
      %v4643 = vpack.c.b16 %v4622, %v4621
      %v4644 = vpack.c.b16 %v4624, %v4623
      %v4645 = vpack.c.b16 %v4626, %v4625
      %v4646 = vpack.c.b16 %v4627, %v4627
      %vm4647 = vcmask 1045504
      %v4648 = vrot.slane %v4628, 2
      %v4649 = vrot.slane %v4629, 2
      %v4650 = vsel %vm4647, %v4648, %v4649
      %v4651 = vrot.slane %v4630, 2
      %v4652 = vsel %vm4647, %v4649, %v4651
      %v4653 = vrot.slane %v4631, 2
      %v4654 = vsel %vm4647, %v4651, %v4653
      %v4655 = vrot.slane %v4632, 2
      %v4656 = vsel %vm4647, %v4653, %v4655
      %v4657 = vrot.slane %v4633, 2
      %v4658 = vsel %vm4647, %v4655, %v4657
      %v4659 = vrot.slane %v4634, 2
      %v4660 = vsel %vm4647, %v4657, %v4659
      %v4661 = vrot.slane %v4635, 2
      %v4662 = vsel %vm4647, %v4659, %v4661
      %v4663 = vrot.slane %v4636, 2
      %v4664 = vsel %vm4647, %v4661, %v4663
      %v4665 = vrot.slane %v4637, 2
      %v4666 = vsel %vm4647, %v4663, %v4665
      %v4667 = vrot.slane %v4638, 2
      %v4668 = vsel %vm4647, %v4665, %v4667
      %v4669 = vrot.slane %v4639, 2
      %v4670 = vsel %vm4647, %v4667, %v4669
      %v4671 = vrot.slane %v4640, 2
      %v4672 = vsel %vm4647, %v4669, %v4671
      %v4673 = vrot.slane %v4641, 2
      %v4674 = vsel %vm4647, %v4671, %v4673
      %v4675 = vrot.slane %v4642, 2
      %v4676 = vsel %vm4647, %v4673, %v4675
      %v4677 = vrot.slane %v4643, 2
      %v4678 = vsel %vm4647, %v4675, %v4677
      %v4679 = vrot.slane %v4644, 2
      %v4680 = vsel %vm4647, %v4677, %v4679
      %v4681 = vrot.slane %v4645, 2
      %v4682 = vsel %vm4647, %v4679, %v4681
      %v4683 = vrot.slane %v4646, 2
      %v4684 = vsel %vm4647, %v4681, %v4683
      %v4686 = vsel %vm1273, %v4650, 0
      %v4689 = vsel %vm1273, %v4652, 0
      %v4692 = vsel %vm1273, %v4654, 0
      %v4695 = vsel %vm1273, %v4656, 0
      %v4698 = vsel %vm1273, %v4658, 0
      %v4701 = vsel %vm1273, %v4660, 0
      %v4704 = vsel %vm1273, %v4662, 0
      %v4707 = vsel %vm1273, %v4664, 0
      %v4710 = vsel %vm1273, %v4666, 0
      %v4713 = vsel %vm1273, %v4668, 0
      %v4716 = vsel %vm1273, %v4670, 0
      %v4719 = vsel %vm1273, %v4672, 0
      %v4722 = vsel %vm1273, %v4674, 0
      %v4725 = vsel %vm1273, %v4676, 0
      %v4728 = vsel %vm1273, %v4678, 0
      %v4731 = vsel %vm1273, %v4680, 0
      %v4734 = vsel %vm1273, %v4682, 0
      %v4737 = vsel %vm1273, %v4684, 0
      %v4740 = vsel %vm1328, %v4553, 0
      %4742 = vmatpush.bf16.msra.mxu0 0
      %4743 = vmatpush.bf16.msra.mxu0 0
      %4744 = vmatpush.bf16.msra.mxu0 0
      %4745 = vmatpush.bf16.msra.mxu0 0
      %4746 = vmatpush.bf16.msra.mxu0 0
      %4747 = vmatpush.bf16.msra.mxu0 0
      %4748 = vmatpush.bf16.msra.mxu0 0
      %4749 = vmatpush.bf16.msra.mxu0 %v4740
      %4750 = vmatmul.bf16.gmra.mxu0 %v4686
      %v4751 = vpop.f32.mrf.mxu0
      %v4752 = vadd.f32 0.0, %v4751
      %v4753 = vpop.f32.mrf.mxu0
      %v4754 = vadd.f32 0.0, %v4753
      %4755 = vmatmul.bf16.gmra.mxu0 %v4689
      %v4756 = vpop.f32.mrf.mxu0
      %v4757 = vadd.f32 0.0, %v4756
      %v4758 = vpop.f32.mrf.mxu0
      %v4759 = vadd.f32 0.0, %v4758
      %4760 = vmatmul.bf16.gmra.mxu0 %v4692
      %v4761 = vpop.f32.mrf.mxu0
      %v4762 = vadd.f32 0.0, %v4761
      %v4763 = vpop.f32.mrf.mxu0
      %v4764 = vadd.f32 0.0, %v4763
      %4765 = vmatmul.bf16.gmra.mxu0 %v4695
      %v4766 = vpop.f32.mrf.mxu0
      %v4767 = vadd.f32 0.0, %v4766
      %v4768 = vpop.f32.mrf.mxu0
      %v4769 = vadd.f32 0.0, %v4768
      %4770 = vmatmul.bf16.gmra.mxu0 %v4698
      %v4771 = vpop.f32.mrf.mxu0
      %v4772 = vadd.f32 0.0, %v4771
      %v4773 = vpop.f32.mrf.mxu0
      %v4774 = vadd.f32 0.0, %v4773
      %4775 = vmatmul.bf16.gmra.mxu0 %v4701
      %v4776 = vpop.f32.mrf.mxu0
      %v4777 = vadd.f32 0.0, %v4776
      %v4778 = vpop.f32.mrf.mxu0
      %v4779 = vadd.f32 0.0, %v4778
      %4780 = vmatmul.bf16.gmra.mxu0 %v4704
      %v4781 = vpop.f32.mrf.mxu0
      %v4782 = vadd.f32 0.0, %v4781
      %v4783 = vpop.f32.mrf.mxu0
      %v4784 = vadd.f32 0.0, %v4783
      %4785 = vmatmul.bf16.gmra.mxu0 %v4707
      %v4786 = vpop.f32.mrf.mxu0
      %v4787 = vadd.f32 0.0, %v4786
      %v4788 = vpop.f32.mrf.mxu0
      %v4789 = vadd.f32 0.0, %v4788
      %4790 = vmatmul.bf16.gmra.mxu0 %v4710
      %v4791 = vpop.f32.mrf.mxu0
      %v4792 = vadd.f32 0.0, %v4791
      %v4793 = vpop.f32.mrf.mxu0
      %v4794 = vadd.f32 0.0, %v4793
      %4795 = vmatmul.bf16.gmra.mxu0 %v4713
      %v4796 = vpop.f32.mrf.mxu0
      %v4797 = vadd.f32 0.0, %v4796
      %v4798 = vpop.f32.mrf.mxu0
      %v4799 = vadd.f32 0.0, %v4798
      %4800 = vmatmul.bf16.gmra.mxu0 %v4716
      %v4801 = vpop.f32.mrf.mxu0
      %v4802 = vadd.f32 0.0, %v4801
      %v4803 = vpop.f32.mrf.mxu0
      %v4804 = vadd.f32 0.0, %v4803
      %4805 = vmatmul.bf16.gmra.mxu0 %v4719
      %v4806 = vpop.f32.mrf.mxu0
      %v4807 = vadd.f32 0.0, %v4806
      %v4808 = vpop.f32.mrf.mxu0
      %v4809 = vadd.f32 0.0, %v4808
      %4810 = vmatmul.bf16.gmra.mxu0 %v4722
      %v4811 = vpop.f32.mrf.mxu0
      %v4812 = vadd.f32 0.0, %v4811
      %v4813 = vpop.f32.mrf.mxu0
      %v4814 = vadd.f32 0.0, %v4813
      %4815 = vmatmul.bf16.gmra.mxu0 %v4725
      %v4816 = vpop.f32.mrf.mxu0
      %v4817 = vadd.f32 0.0, %v4816
      %v4818 = vpop.f32.mrf.mxu0
      %v4819 = vadd.f32 0.0, %v4818
      %4820 = vmatmul.bf16.gmra.mxu0 %v4728
      %v4821 = vpop.f32.mrf.mxu0
      %v4822 = vadd.f32 0.0, %v4821
      %v4823 = vpop.f32.mrf.mxu0
      %v4824 = vadd.f32 0.0, %v4823
      %4825 = vmatmul.bf16.gmra.mxu0 %v4731
      %v4826 = vpop.f32.mrf.mxu0
      %v4827 = vadd.f32 0.0, %v4826
      %v4828 = vpop.f32.mrf.mxu0
      %v4829 = vadd.f32 0.0, %v4828
      %4830 = vmatmul.bf16.gmra.mxu0 %v4734
      %v4831 = vpop.f32.mrf.mxu0
      %v4832 = vadd.f32 0.0, %v4831
      %v4833 = vpop.f32.mrf.mxu0
      %v4834 = vadd.f32 0.0, %v4833
      %4835 = vmatmul.bf16.gmra.mxu0 %v4737
      %v4836 = vpop.f32.mrf.mxu0
      %v4837 = vadd.f32 0.0, %v4836
      %v4838 = vpop.f32.mrf.mxu0
      %v4839 = vadd.f32 0.0, %v4838
      %4840 = vdwg.mxu0
      %v4841 = vld [vmem:[#allocation3] sm:$0xff]
      %v4842 = vld [vmem:[#allocation3 + $0x8] sm:$0xff]
      %v4843 = vld [vmem:[#allocation3 + $0x10] sm:$0xff]
      %v4844 = vld [vmem:[#allocation3 + $0x18] sm:$0xff]
      %v4845 = vld [vmem:[#allocation3 + $0x20] sm:$0xff]
      %v4846 = vld [vmem:[#allocation3 + $0x28] sm:$0xff]
      %v4847 = vld [vmem:[#allocation3 + $0x30] sm:$0xff]
      %v4848 = vld [vmem:[#allocation3 + $0x38] sm:$0xff]
      %v4849 = vld [vmem:[#allocation3 + $0x40] sm:$0xff]
      %v4850 = vld [vmem:[#allocation3 + $0x48] sm:$0xff]
      %v4851 = vld [vmem:[#allocation3 + $0x50] sm:$0xff]
      %v4852 = vld [vmem:[#allocation3 + $0x58] sm:$0xff]
      %v4853 = vld [vmem:[#allocation3 + $0x60] sm:$0xff]
      %v4854 = vld [vmem:[#allocation3 + $0x68] sm:$0xff]
      %v4855 = vld [vmem:[#allocation3 + $0x70] sm:$0xff]
      %v4856 = vld [vmem:[#allocation3 + $0x78] sm:$0xff]
      %v4857 = vld [vmem:[#allocation3 + $0x80] sm:$0xff]
      %v4858 = vld [vmem:[#allocation3 + $0x88] sm:$0xff]
      %v4859 = vld [vmem:[#allocation3 + $0x90] sm:$0xff]
      %v4860 = vld [vmem:[#allocation3 + $0x98] sm:$0xff]
      %v4861 = vld [vmem:[#allocation3 + $0xa0] sm:$0xff]
      %v4862 = vld [vmem:[#allocation3 + $0xa8] sm:$0xff]
      %v4863 = vld [vmem:[#allocation3 + $0xb0] sm:$0xff]
      %v4864 = vld [vmem:[#allocation3 + $0xb8] sm:$0xff]
      %v4865 = vld [vmem:[#allocation3 + $0xc0] sm:$0xff]
      %v4866 = vld [vmem:[#allocation3 + $0xc8] sm:$0xff]
      %v4867 = vld [vmem:[#allocation3 + $0xd0] sm:$0xff]
      %v4868 = vld [vmem:[#allocation3 + $0xd8] sm:$0xff]
      %v4869 = vld [vmem:[#allocation3 + $0xe0] sm:$0xff]
      %v4870 = vld [vmem:[#allocation3 + $0xe8] sm:$0xff]
      %v4871 = vld [vmem:[#allocation3 + $0xf0] sm:$0xff]
      %v4872 = vld [vmem:[#allocation3 + $0xf8] sm:$0xff]
      %v4873 = vld [vmem:[#allocation3 + $0x100] sm:$0xff]
      %v4874 = vld [vmem:[#allocation3 + $0x108] sm:$0xff]
      %v4875 = vld [vmem:[#allocation3 + $0x110] sm:$0xff]
      %v4876 = vld [vmem:[#allocation3 + $0x118] sm:$0xff]
      %v4877 = vadd.f32 %v4841, %v4752
      %v4878 = vadd.f32 %v4842, %v4754
      %v4879 = vadd.f32 %v4843, %v4757
      %v4880 = vadd.f32 %v4844, %v4759
      %v4881 = vadd.f32 %v4845, %v4762
      %v4882 = vadd.f32 %v4846, %v4764
      %v4883 = vadd.f32 %v4847, %v4767
      %v4884 = vadd.f32 %v4848, %v4769
      %v4885 = vadd.f32 %v4849, %v4772
      %v4886 = vadd.f32 %v4850, %v4774
      %v4887 = vadd.f32 %v4851, %v4777
      %v4888 = vadd.f32 %v4852, %v4779
      %v4889 = vadd.f32 %v4853, %v4782
      %v4890 = vadd.f32 %v4854, %v4784
      %v4891 = vadd.f32 %v4855, %v4787
      %v4892 = vadd.f32 %v4856, %v4789
      %v4893 = vadd.f32 %v4857, %v4792
      %v4894 = vadd.f32 %v4858, %v4794
      %v4895 = vadd.f32 %v4859, %v4797
      %v4896 = vadd.f32 %v4860, %v4799
      %v4897 = vadd.f32 %v4861, %v4802
      %v4898 = vadd.f32 %v4862, %v4804
      %v4899 = vadd.f32 %v4863, %v4807
      %v4900 = vadd.f32 %v4864, %v4809
      %v4901 = vadd.f32 %v4865, %v4812
      %v4902 = vadd.f32 %v4866, %v4814
      %v4903 = vadd.f32 %v4867, %v4817
      %v4904 = vadd.f32 %v4868, %v4819
      %v4905 = vadd.f32 %v4869, %v4822
      %v4906 = vadd.f32 %v4870, %v4824
      %v4907 = vadd.f32 %v4871, %v4827
      %v4908 = vadd.f32 %v4872, %v4829
      %v4909 = vadd.f32 %v4873, %v4832
      %v4910 = vadd.f32 %v4874, %v4834
      %v4911 = vadd.f32 %v4875, %v4837
      %v4912 = vadd.f32 %v4876, %v4839
      %4913 = vst [vmem:[#allocation3] sm:$0xff] %v4877
      %4914 = vst [vmem:[#allocation3 + $0x8] sm:$0xff] %v4878
      %4915 = vst [vmem:[#allocation3 + $0x10] sm:$0xff] %v4879
      %4916 = vst [vmem:[#allocation3 + $0x18] sm:$0xff] %v4880
      %4917 = vst [vmem:[#allocation3 + $0x20] sm:$0xff] %v4881
      %4918 = vst [vmem:[#allocation3 + $0x28] sm:$0xff] %v4882
      %4919 = vst [vmem:[#allocation3 + $0x30] sm:$0xff] %v4883
      %4920 = vst [vmem:[#allocation3 + $0x38] sm:$0xff] %v4884
      %4921 = vst [vmem:[#allocation3 + $0x40] sm:$0xff] %v4885
      %4922 = vst [vmem:[#allocation3 + $0x48] sm:$0xff] %v4886
      %4923 = vst [vmem:[#allocation3 + $0x50] sm:$0xff] %v4887
      %4924 = vst [vmem:[#allocation3 + $0x58] sm:$0xff] %v4888
      %4925 = vst [vmem:[#allocation3 + $0x60] sm:$0xff] %v4889
      %4926 = vst [vmem:[#allocation3 + $0x68] sm:$0xff] %v4890
      %4927 = vst [vmem:[#allocation3 + $0x70] sm:$0xff] %v4891
      %4928 = vst [vmem:[#allocation3 + $0x78] sm:$0xff] %v4892
      %4929 = vst [vmem:[#allocation3 + $0x80] sm:$0xff] %v4893
      %4930 = vst [vmem:[#allocation3 + $0x88] sm:$0xff] %v4894
      %4931 = vst [vmem:[#allocation3 + $0x90] sm:$0xff] %v4895
      %4932 = vst [vmem:[#allocation3 + $0x98] sm:$0xff] %v4896
      %4933 = vst [vmem:[#allocation3 + $0xa0] sm:$0xff] %v4897
      %4934 = vst [vmem:[#allocation3 + $0xa8] sm:$0xff] %v4898
      %4935 = vst [vmem:[#allocation3 + $0xb0] sm:$0xff] %v4899
      %4936 = vst [vmem:[#allocation3 + $0xb8] sm:$0xff] %v4900
      %4937 = vst [vmem:[#allocation3 + $0xc0] sm:$0xff] %v4901
      %4938 = vst [vmem:[#allocation3 + $0xc8] sm:$0xff] %v4902
      %4939 = vst [vmem:[#allocation3 + $0xd0] sm:$0xff] %v4903
      %4940 = vst [vmem:[#allocation3 + $0xd8] sm:$0xff] %v4904
      %4941 = vst [vmem:[#allocation3 + $0xe0] sm:$0xff] %v4905
      %4942 = vst [vmem:[#allocation3 + $0xe8] sm:$0xff] %v4906
      %4943 = vst [vmem:[#allocation3 + $0xf0] sm:$0xff] %v4907
      %4944 = vst [vmem:[#allocation3 + $0xf8] sm:$0xff] %v4908
      %4945 = vst [vmem:[#allocation3 + $0x100] sm:$0xff] %v4909
      %4946 = vst [vmem:[#allocation3 + $0x108] sm:$0xff] %v4910
      %4947 = vst [vmem:[#allocation3 + $0x110] sm:$0xff] %v4911
      %4948 = vst [vmem:[#allocation3 + $0x118] sm:$0xff] %v4912
      %v4949 = vld [vmem:[#allocation2 + $0x14] sm:$0xc]
      %v4950 = vld [vmem:[#allocation2 + $0x18] sm:$0xf]
      %v4951 = vld [vmem:[#allocation2 + $0x1c] sm:$0xf]
      %v4952 = vld [vmem:[#allocation2 + $0x20] sm:$0xf]
      %v4953 = vld [vmem:[#allocation2 + $0x24] sm:$0xf]
      %v4954 = vld [vmem:[#allocation2 + $0x28] sm:$0xf]
      %v4955 = vld [vmem:[#allocation2 + $0x2c] sm:$0xf]
      %v4956 = vld [vmem:[#allocation2 + $0x30] sm:$0xf]
      %v4957 = vld [vmem:[#allocation2 + $0x34] sm:$0xf]
      %v4958 = vld [vmem:[#allocation2 + $0x38] sm:$0xf]
      %v4959 = vld [vmem:[#allocation2 + $0x3c] sm:$0xf]
      %v4960 = vld [vmem:[#allocation2 + $0x40] sm:$0xf]
      %v4961 = vld [vmem:[#allocation2 + $0x44] sm:$0xf]
      %v4962 = vld [vmem:[#allocation2 + $0x48] sm:$0xf]
      %v4963 = vld [vmem:[#allocation2 + $0x4c] sm:$0xf]
      %v4964 = vld [vmem:[#allocation2 + $0x50] sm:$0xf]
      %v4965 = vld [vmem:[#allocation2 + $0x54] sm:$0xf]
      %v4966 = vld [vmem:[#allocation2 + $0x58] sm:$0xf]
      %v4967 = vld [vmem:[#allocation2 + $0x5c] sm:$0xf]
      %v4968 = vld [vmem:[#allocation2 + $0x60] sm:$0xf]
      %v4969 = vld [vmem:[#allocation2 + $0x64] sm:$0xf]
      %v4970 = vld [vmem:[#allocation2 + $0x68] sm:$0xf]
      %v4971 = vld [vmem:[#allocation2 + $0x6c] sm:$0xf]
      %v4972 = vld [vmem:[#allocation2 + $0x70] sm:$0xf]
      %v4973 = vld [vmem:[#allocation2 + $0x74] sm:$0xf]
      %v4974 = vld [vmem:[#allocation2 + $0x78] sm:$0xf]
      %v4975 = vld [vmem:[#allocation2 + $0x7c] sm:$0xf]
      %v4976 = vld [vmem:[#allocation2 + $0x80] sm:$0xf]
      %v4977 = vld [vmem:[#allocation2 + $0x84] sm:$0xf]
      %v4978 = vld [vmem:[#allocation2 + $0x88] sm:$0xf]
      %v4979 = vld [vmem:[#allocation2 + $0x8c] sm:$0xf]
      %v4980 = vld [vmem:[#allocation2 + $0x90] sm:$0xf]
      %v4981 = vld [vmem:[#allocation2 + $0x94] sm:$0xf]
      %v4982 = vld [vmem:[#allocation2 + $0x98] sm:$0xf]
      %v4983 = vld [vmem:[#allocation2 + $0x9c] sm:$0xf]
      %v4984 = vld [vmem:[#allocation2 + $0xa0] sm:$0xf]
      %v4985 = vld [vmem:[#allocation2 + $0xa4] sm:$0x7]
      %s4986 = scalar_lea.vmem %s4, 32
      %v4987 = vld [vmem:[%s4986] sm:$0xf]
      %v5025 = vunpack.c.l.b16 %v4949
      %v5026 = vunpack.c.l.b16 %v4950
      %v5027 = vunpack.c.l.b16 %v4951
      %v5028 = vunpack.c.l.b16 %v4952
      %v5029 = vunpack.c.l.b16 %v4953
      %v5030 = vunpack.c.l.b16 %v4954
      %v5031 = vunpack.c.l.b16 %v4955
      %v5032 = vunpack.c.l.b16 %v4956
      %v5033 = vunpack.c.l.b16 %v4957
      %v5034 = vunpack.c.l.b16 %v4958
      %v5035 = vunpack.c.l.b16 %v4959
      %v5036 = vunpack.c.l.b16 %v4960
      %v5037 = vunpack.c.l.b16 %v4961
      %v5038 = vunpack.c.l.b16 %v4962
      %v5039 = vunpack.c.l.b16 %v4963
      %v5040 = vunpack.c.l.b16 %v4964
      %v5041 = vunpack.c.l.b16 %v4965
      %v5042 = vunpack.c.l.b16 %v4966
      %v5043 = vunpack.c.l.b16 %v4967
      %v5044 = vunpack.c.l.b16 %v4968
      %v5045 = vunpack.c.l.b16 %v4969
      %v5046 = vunpack.c.l.b16 %v4970
      %v5047 = vunpack.c.l.b16 %v4971
      %v5048 = vunpack.c.l.b16 %v4972
      %v5049 = vunpack.c.l.b16 %v4973
      %v5050 = vunpack.c.l.b16 %v4974
      %v5051 = vunpack.c.l.b16 %v4975
      %v5052 = vunpack.c.l.b16 %v4976
      %v5053 = vunpack.c.l.b16 %v4977
      %v5054 = vunpack.c.l.b16 %v4978
      %v5055 = vunpack.c.l.b16 %v4979
      %v5056 = vunpack.c.l.b16 %v4980
      %v5057 = vunpack.c.l.b16 %v4981
      %v5058 = vunpack.c.l.b16 %v4982
      %v5059 = vunpack.c.l.b16 %v4983
      %v5060 = vunpack.c.l.b16 %v4984
      %v5061 = vunpack.c.l.b16 %v4985
      %v5062 = vpack.c.b16 %v5026, %v5025
      %v5063 = vpack.c.b16 %v5028, %v5027
      %v5064 = vpack.c.b16 %v5030, %v5029
      %v5065 = vpack.c.b16 %v5032, %v5031
      %v5066 = vpack.c.b16 %v5034, %v5033
      %v5067 = vpack.c.b16 %v5036, %v5035
      %v5068 = vpack.c.b16 %v5038, %v5037
      %v5069 = vpack.c.b16 %v5040, %v5039
      %v5070 = vpack.c.b16 %v5042, %v5041
      %v5071 = vpack.c.b16 %v5044, %v5043
      %v5072 = vpack.c.b16 %v5046, %v5045
      %v5073 = vpack.c.b16 %v5048, %v5047
      %v5074 = vpack.c.b16 %v5050, %v5049
      %v5075 = vpack.c.b16 %v5052, %v5051
      %v5076 = vpack.c.b16 %v5054, %v5053
      %v5077 = vpack.c.b16 %v5056, %v5055
      %v5078 = vpack.c.b16 %v5058, %v5057
      %v5079 = vpack.c.b16 %v5060, %v5059
      %v5080 = vpack.c.b16 %v5061, %v5061
      %vm5081 = vsmask.f32 5376
      %v5083 = vshrl.u32 %v5062, 16
      %v5085 = vrot.slane %v5083, 2
      %v5086 = vshll.u32 %v5062, 16
      %v5088 = vrot.slane %v5086, 3
      %v5089 = vor.u32 %v5085, %v5088
      %v5091 = vshrl.u32 %v5063, 16
      %v5093 = vrot.slane %v5091, 2
      %v5094 = vshll.u32 %v5063, 16
      %v5096 = vrot.slane %v5094, 3
      %v5097 = vor.u32 %v5093, %v5096
      %v5098 = vsel %vm5081, %v5089, %v5097
      %v5100 = vshrl.u32 %v5064, 16
      %v5102 = vrot.slane %v5100, 2
      %v5103 = vshll.u32 %v5064, 16
      %v5105 = vrot.slane %v5103, 3
      %v5106 = vor.u32 %v5102, %v5105
      %v5107 = vsel %vm5081, %v5097, %v5106
      %v5109 = vshrl.u32 %v5065, 16
      %v5111 = vrot.slane %v5109, 2
      %v5112 = vshll.u32 %v5065, 16
      %v5114 = vrot.slane %v5112, 3
      %v5115 = vor.u32 %v5111, %v5114
      %v5116 = vsel %vm5081, %v5106, %v5115
      %v5118 = vshrl.u32 %v5066, 16
      %v5120 = vrot.slane %v5118, 2
      %v5121 = vshll.u32 %v5066, 16
      %v5123 = vrot.slane %v5121, 3
      %v5124 = vor.u32 %v5120, %v5123
      %v5125 = vsel %vm5081, %v5115, %v5124
      %v5127 = vshrl.u32 %v5067, 16
      %v5129 = vrot.slane %v5127, 2
      %v5130 = vshll.u32 %v5067, 16
      %v5132 = vrot.slane %v5130, 3
      %v5133 = vor.u32 %v5129, %v5132
      %v5134 = vsel %vm5081, %v5124, %v5133
      %v5136 = vshrl.u32 %v5068, 16
      %v5138 = vrot.slane %v5136, 2
      %v5139 = vshll.u32 %v5068, 16
      %v5141 = vrot.slane %v5139, 3
      %v5142 = vor.u32 %v5138, %v5141
      %v5143 = vsel %vm5081, %v5133, %v5142
      %v5145 = vshrl.u32 %v5069, 16
      %v5147 = vrot.slane %v5145, 2
      %v5148 = vshll.u32 %v5069, 16
      %v5150 = vrot.slane %v5148, 3
      %v5151 = vor.u32 %v5147, %v5150
      %v5152 = vsel %vm5081, %v5142, %v5151
      %v5154 = vshrl.u32 %v5070, 16
      %v5156 = vrot.slane %v5154, 2
      %v5157 = vshll.u32 %v5070, 16
      %v5159 = vrot.slane %v5157, 3
      %v5160 = vor.u32 %v5156, %v5159
      %v5161 = vsel %vm5081, %v5151, %v5160
      %v5163 = vshrl.u32 %v5071, 16
      %v5165 = vrot.slane %v5163, 2
      %v5166 = vshll.u32 %v5071, 16
      %v5168 = vrot.slane %v5166, 3
      %v5169 = vor.u32 %v5165, %v5168
      %v5170 = vsel %vm5081, %v5160, %v5169
      %v5172 = vshrl.u32 %v5072, 16
      %v5174 = vrot.slane %v5172, 2
      %v5175 = vshll.u32 %v5072, 16
      %v5177 = vrot.slane %v5175, 3
      %v5178 = vor.u32 %v5174, %v5177
      %v5179 = vsel %vm5081, %v5169, %v5178
      %v5181 = vshrl.u32 %v5073, 16
      %v5183 = vrot.slane %v5181, 2
      %v5184 = vshll.u32 %v5073, 16
      %v5186 = vrot.slane %v5184, 3
      %v5187 = vor.u32 %v5183, %v5186
      %v5188 = vsel %vm5081, %v5178, %v5187
      %v5190 = vshrl.u32 %v5074, 16
      %v5192 = vrot.slane %v5190, 2
      %v5193 = vshll.u32 %v5074, 16
      %v5195 = vrot.slane %v5193, 3
      %v5196 = vor.u32 %v5192, %v5195
      %v5197 = vsel %vm5081, %v5187, %v5196
      %v5199 = vshrl.u32 %v5075, 16
      %v5201 = vrot.slane %v5199, 2
      %v5202 = vshll.u32 %v5075, 16
      %v5204 = vrot.slane %v5202, 3
      %v5205 = vor.u32 %v5201, %v5204
      %v5206 = vsel %vm5081, %v5196, %v5205
      %v5208 = vshrl.u32 %v5076, 16
      %v5210 = vrot.slane %v5208, 2
      %v5211 = vshll.u32 %v5076, 16
      %v5213 = vrot.slane %v5211, 3
      %v5214 = vor.u32 %v5210, %v5213
      %v5215 = vsel %vm5081, %v5205, %v5214
      %v5217 = vshrl.u32 %v5077, 16
      %v5219 = vrot.slane %v5217, 2
      %v5220 = vshll.u32 %v5077, 16
      %v5222 = vrot.slane %v5220, 3
      %v5223 = vor.u32 %v5219, %v5222
      %v5224 = vsel %vm5081, %v5214, %v5223
      %v5226 = vshrl.u32 %v5078, 16
      %v5228 = vrot.slane %v5226, 2
      %v5229 = vshll.u32 %v5078, 16
      %v5231 = vrot.slane %v5229, 3
      %v5232 = vor.u32 %v5228, %v5231
      %v5233 = vsel %vm5081, %v5223, %v5232
      %v5235 = vshrl.u32 %v5079, 16
      %v5237 = vrot.slane %v5235, 2
      %v5238 = vshll.u32 %v5079, 16
      %v5240 = vrot.slane %v5238, 3
      %v5241 = vor.u32 %v5237, %v5240
      %v5242 = vsel %vm5081, %v5232, %v5241
      %v5244 = vshrl.u32 %v5080, 16
      %v5246 = vrot.slane %v5244, 2
      %v5247 = vshll.u32 %v5080, 16
      %v5249 = vrot.slane %v5247, 3
      %v5250 = vor.u32 %v5246, %v5249
      %v5251 = vsel %vm5081, %v5241, %v5250
      %v5253 = vsel %vm1273, %v5098, 0
      %v5256 = vsel %vm1273, %v5107, 0
      %v5259 = vsel %vm1273, %v5116, 0
      %v5262 = vsel %vm1273, %v5125, 0
      %v5265 = vsel %vm1273, %v5134, 0
      %v5268 = vsel %vm1273, %v5143, 0
      %v5271 = vsel %vm1273, %v5152, 0
      %v5274 = vsel %vm1273, %v5161, 0
      %v5277 = vsel %vm1273, %v5170, 0
      %v5280 = vsel %vm1273, %v5179, 0
      %v5283 = vsel %vm1273, %v5188, 0
      %v5286 = vsel %vm1273, %v5197, 0
      %v5289 = vsel %vm1273, %v5206, 0
      %v5292 = vsel %vm1273, %v5215, 0
      %v5295 = vsel %vm1273, %v5224, 0
      %v5298 = vsel %vm1273, %v5233, 0
      %v5301 = vsel %vm1273, %v5242, 0
      %v5304 = vsel %vm1273, %v5251, 0
      %v5307 = vsel %vm1328, %v4987, 0
      %5309 = vmatpush.bf16.msra.mxu0 0
      %5310 = vmatpush.bf16.msra.mxu0 0
      %5311 = vmatpush.bf16.msra.mxu0 0
      %5312 = vmatpush.bf16.msra.mxu0 0
      %5313 = vmatpush.bf16.msra.mxu0 0
      %5314 = vmatpush.bf16.msra.mxu0 0
      %5315 = vmatpush.bf16.msra.mxu0 0
      %5316 = vmatpush.bf16.msra.mxu0 %v5307
      %5317 = vmatmul.bf16.gmra.mxu0 %v5253
      %v5318 = vpop.f32.mrf.mxu0
      %v5319 = vadd.f32 0.0, %v5318
      %v5320 = vpop.f32.mrf.mxu0
      %v5321 = vadd.f32 0.0, %v5320
      %5322 = vmatmul.bf16.gmra.mxu0 %v5256
      %v5323 = vpop.f32.mrf.mxu0
      %v5324 = vadd.f32 0.0, %v5323
      %v5325 = vpop.f32.mrf.mxu0
      %v5326 = vadd.f32 0.0, %v5325
      %5327 = vmatmul.bf16.gmra.mxu0 %v5259
      %v5328 = vpop.f32.mrf.mxu0
      %v5329 = vadd.f32 0.0, %v5328
      %v5330 = vpop.f32.mrf.mxu0
      %v5331 = vadd.f32 0.0, %v5330
      %5332 = vmatmul.bf16.gmra.mxu0 %v5262
      %v5333 = vpop.f32.mrf.mxu0
      %v5334 = vadd.f32 0.0, %v5333
      %v5335 = vpop.f32.mrf.mxu0
      %v5336 = vadd.f32 0.0, %v5335
      %5337 = vmatmul.bf16.gmra.mxu0 %v5265
      %v5338 = vpop.f32.mrf.mxu0
      %v5339 = vadd.f32 0.0, %v5338
      %v5340 = vpop.f32.mrf.mxu0
      %v5341 = vadd.f32 0.0, %v5340
      %5342 = vmatmul.bf16.gmra.mxu0 %v5268
      %v5343 = vpop.f32.mrf.mxu0
      %v5344 = vadd.f32 0.0, %v5343
      %v5345 = vpop.f32.mrf.mxu0
      %v5346 = vadd.f32 0.0, %v5345
      %5347 = vmatmul.bf16.gmra.mxu0 %v5271
      %v5348 = vpop.f32.mrf.mxu0
      %v5349 = vadd.f32 0.0, %v5348
      %v5350 = vpop.f32.mrf.mxu0
      %v5351 = vadd.f32 0.0, %v5350
      %5352 = vmatmul.bf16.gmra.mxu0 %v5274
      %v5353 = vpop.f32.mrf.mxu0
      %v5354 = vadd.f32 0.0, %v5353
      %v5355 = vpop.f32.mrf.mxu0
      %v5356 = vadd.f32 0.0, %v5355
      %5357 = vmatmul.bf16.gmra.mxu0 %v5277
      %v5358 = vpop.f32.mrf.mxu0
      %v5359 = vadd.f32 0.0, %v5358
      %v5360 = vpop.f32.mrf.mxu0
      %v5361 = vadd.f32 0.0, %v5360
      %5362 = vmatmul.bf16.gmra.mxu0 %v5280
      %v5363 = vpop.f32.mrf.mxu0
      %v5364 = vadd.f32 0.0, %v5363
      %v5365 = vpop.f32.mrf.mxu0
      %v5366 = vadd.f32 0.0, %v5365
      %5367 = vmatmul.bf16.gmra.mxu0 %v5283
      %v5368 = vpop.f32.mrf.mxu0
      %v5369 = vadd.f32 0.0, %v5368
      %v5370 = vpop.f32.mrf.mxu0
      %v5371 = vadd.f32 0.0, %v5370
      %5372 = vmatmul.bf16.gmra.mxu0 %v5286
      %v5373 = vpop.f32.mrf.mxu0
      %v5374 = vadd.f32 0.0, %v5373
      %v5375 = vpop.f32.mrf.mxu0
      %v5376 = vadd.f32 0.0, %v5375
      %5377 = vmatmul.bf16.gmra.mxu0 %v5289
      %v5378 = vpop.f32.mrf.mxu0
      %v5379 = vadd.f32 0.0, %v5378
      %v5380 = vpop.f32.mrf.mxu0
      %v5381 = vadd.f32 0.0, %v5380
      %5382 = vmatmul.bf16.gmra.mxu0 %v5292
      %v5383 = vpop.f32.mrf.mxu0
      %v5384 = vadd.f32 0.0, %v5383
      %v5385 = vpop.f32.mrf.mxu0
      %v5386 = vadd.f32 0.0, %v5385
      %5387 = vmatmul.bf16.gmra.mxu0 %v5295
      %v5388 = vpop.f32.mrf.mxu0
      %v5389 = vadd.f32 0.0, %v5388
      %v5390 = vpop.f32.mrf.mxu0
      %v5391 = vadd.f32 0.0, %v5390
      %5392 = vmatmul.bf16.gmra.mxu0 %v5298
      %v5393 = vpop.f32.mrf.mxu0
      %v5394 = vadd.f32 0.0, %v5393
      %v5395 = vpop.f32.mrf.mxu0
      %v5396 = vadd.f32 0.0, %v5395
      %5397 = vmatmul.bf16.gmra.mxu0 %v5301
      %v5398 = vpop.f32.mrf.mxu0
      %v5399 = vadd.f32 0.0, %v5398
      %v5400 = vpop.f32.mrf.mxu0
      %v5401 = vadd.f32 0.0, %v5400
      %5402 = vmatmul.bf16.gmra.mxu0 %v5304
      %v5403 = vpop.f32.mrf.mxu0
      %v5404 = vadd.f32 0.0, %v5403
      %v5405 = vpop.f32.mrf.mxu0
      %v5406 = vadd.f32 0.0, %v5405
      %5407 = vdwg.mxu0
      %v5408 = vld [vmem:[#allocation3] sm:$0xff]
      %v5409 = vld [vmem:[#allocation3 + $0x8] sm:$0xff]
      %v5410 = vld [vmem:[#allocation3 + $0x10] sm:$0xff]
      %v5411 = vld [vmem:[#allocation3 + $0x18] sm:$0xff]
      %v5412 = vld [vmem:[#allocation3 + $0x20] sm:$0xff]
      %v5413 = vld [vmem:[#allocation3 + $0x28] sm:$0xff]
      %v5414 = vld [vmem:[#allocation3 + $0x30] sm:$0xff]
      %v5415 = vld [vmem:[#allocation3 + $0x38] sm:$0xff]
      %v5416 = vld [vmem:[#allocation3 + $0x40] sm:$0xff]
      %v5417 = vld [vmem:[#allocation3 + $0x48] sm:$0xff]
      %v5418 = vld [vmem:[#allocation3 + $0x50] sm:$0xff]
      %v5419 = vld [vmem:[#allocation3 + $0x58] sm:$0xff]
      %v5420 = vld [vmem:[#allocation3 + $0x60] sm:$0xff]
      %v5421 = vld [vmem:[#allocation3 + $0x68] sm:$0xff]
      %v5422 = vld [vmem:[#allocation3 + $0x70] sm:$0xff]
      %v5423 = vld [vmem:[#allocation3 + $0x78] sm:$0xff]
      %v5424 = vld [vmem:[#allocation3 + $0x80] sm:$0xff]
      %v5425 = vld [vmem:[#allocation3 + $0x88] sm:$0xff]
      %v5426 = vld [vmem:[#allocation3 + $0x90] sm:$0xff]
      %v5427 = vld [vmem:[#allocation3 + $0x98] sm:$0xff]
      %v5428 = vld [vmem:[#allocation3 + $0xa0] sm:$0xff]
      %v5429 = vld [vmem:[#allocation3 + $0xa8] sm:$0xff]
      %v5430 = vld [vmem:[#allocation3 + $0xb0] sm:$0xff]
      %v5431 = vld [vmem:[#allocation3 + $0xb8] sm:$0xff]
      %v5432 = vld [vmem:[#allocation3 + $0xc0] sm:$0xff]
      %v5433 = vld [vmem:[#allocation3 + $0xc8] sm:$0xff]
      %v5434 = vld [vmem:[#allocation3 + $0xd0] sm:$0xff]
      %v5435 = vld [vmem:[#allocation3 + $0xd8] sm:$0xff]
      %v5436 = vld [vmem:[#allocation3 + $0xe0] sm:$0xff]
      %v5437 = vld [vmem:[#allocation3 + $0xe8] sm:$0xff]
      %v5438 = vld [vmem:[#allocation3 + $0xf0] sm:$0xff]
      %v5439 = vld [vmem:[#allocation3 + $0xf8] sm:$0xff]
      %v5440 = vld [vmem:[#allocation3 + $0x100] sm:$0xff]
      %v5441 = vld [vmem:[#allocation3 + $0x108] sm:$0xff]
      %v5442 = vld [vmem:[#allocation3 + $0x110] sm:$0xff]
      %v5443 = vld [vmem:[#allocation3 + $0x118] sm:$0xff]
      %v5444 = vadd.f32 %v5408, %v5319
      %v5445 = vadd.f32 %v5409, %v5321
      %v5446 = vadd.f32 %v5410, %v5324
      %v5447 = vadd.f32 %v5411, %v5326
      %v5448 = vadd.f32 %v5412, %v5329
      %v5449 = vadd.f32 %v5413, %v5331
      %v5450 = vadd.f32 %v5414, %v5334
      %v5451 = vadd.f32 %v5415, %v5336
      %v5452 = vadd.f32 %v5416, %v5339
      %v5453 = vadd.f32 %v5417, %v5341
      %v5454 = vadd.f32 %v5418, %v5344
      %v5455 = vadd.f32 %v5419, %v5346
      %v5456 = vadd.f32 %v5420, %v5349
      %v5457 = vadd.f32 %v5421, %v5351
      %v5458 = vadd.f32 %v5422, %v5354
      %v5459 = vadd.f32 %v5423, %v5356
      %v5460 = vadd.f32 %v5424, %v5359
      %v5461 = vadd.f32 %v5425, %v5361
      %v5462 = vadd.f32 %v5426, %v5364
      %v5463 = vadd.f32 %v5427, %v5366
      %v5464 = vadd.f32 %v5428, %v5369
      %v5465 = vadd.f32 %v5429, %v5371
      %v5466 = vadd.f32 %v5430, %v5374
      %v5467 = vadd.f32 %v5431, %v5376
      %v5468 = vadd.f32 %v5432, %v5379
      %v5469 = vadd.f32 %v5433, %v5381
      %v5470 = vadd.f32 %v5434, %v5384
      %v5471 = vadd.f32 %v5435, %v5386
      %v5472 = vadd.f32 %v5436, %v5389
      %v5473 = vadd.f32 %v5437, %v5391
      %v5474 = vadd.f32 %v5438, %v5394
      %v5475 = vadd.f32 %v5439, %v5396
      %v5476 = vadd.f32 %v5440, %v5399
      %v5477 = vadd.f32 %v5441, %v5401
      %v5478 = vadd.f32 %v5442, %v5404
      %v5479 = vadd.f32 %v5443, %v5406
      %5480 = vst [vmem:[#allocation3] sm:$0xff] %v5444
      %5481 = vst [vmem:[#allocation3 + $0x8] sm:$0xff] %v5445
      %5482 = vst [vmem:[#allocation3 + $0x10] sm:$0xff] %v5446
      %5483 = vst [vmem:[#allocation3 + $0x18] sm:$0xff] %v5447
      %5484 = vst [vmem:[#allocation3 + $0x20] sm:$0xff] %v5448
      %5485 = vst [vmem:[#allocation3 + $0x28] sm:$0xff] %v5449
      %5486 = vst [vmem:[#allocation3 + $0x30] sm:$0xff] %v5450
      %5487 = vst [vmem:[#allocation3 + $0x38] sm:$0xff] %v5451
      %5488 = vst [vmem:[#allocation3 + $0x40] sm:$0xff] %v5452
      %5489 = vst [vmem:[#allocation3 + $0x48] sm:$0xff] %v5453
      %5490 = vst [vmem:[#allocation3 + $0x50] sm:$0xff] %v5454
      %5491 = vst [vmem:[#allocation3 + $0x58] sm:$0xff] %v5455
      %5492 = vst [vmem:[#allocation3 + $0x60] sm:$0xff] %v5456
      %5493 = vst [vmem:[#allocation3 + $0x68] sm:$0xff] %v5457
      %5494 = vst [vmem:[#allocation3 + $0x70] sm:$0xff] %v5458
      %5495 = vst [vmem:[#allocation3 + $0x78] sm:$0xff] %v5459
      %5496 = vst [vmem:[#allocation3 + $0x80] sm:$0xff] %v5460
      %5497 = vst [vmem:[#allocation3 + $0x88] sm:$0xff] %v5461
      %5498 = vst [vmem:[#allocation3 + $0x90] sm:$0xff] %v5462
      %5499 = vst [vmem:[#allocation3 + $0x98] sm:$0xff] %v5463
      %5500 = vst [vmem:[#allocation3 + $0xa0] sm:$0xff] %v5464
      %5501 = vst [vmem:[#allocation3 + $0xa8] sm:$0xff] %v5465
      %5502 = vst [vmem:[#allocation3 + $0xb0] sm:$0xff] %v5466
      %5503 = vst [vmem:[#allocation3 + $0xb8] sm:$0xff] %v5467
      %5504 = vst [vmem:[#allocation3 + $0xc0] sm:$0xff] %v5468
      %5505 = vst [vmem:[#allocation3 + $0xc8] sm:$0xff] %v5469
      %5506 = vst [vmem:[#allocation3 + $0xd0] sm:$0xff] %v5470
      %5507 = vst [vmem:[#allocation3 + $0xd8] sm:$0xff] %v5471
      %5508 = vst [vmem:[#allocation3 + $0xe0] sm:$0xff] %v5472
      %5509 = vst [vmem:[#allocation3 + $0xe8] sm:$0xff] %v5473
      %5510 = vst [vmem:[#allocation3 + $0xf0] sm:$0xff] %v5474
      %5511 = vst [vmem:[#allocation3 + $0xf8] sm:$0xff] %v5475
      %5512 = vst [vmem:[#allocation3 + $0x100] sm:$0xff] %v5476
      %5513 = vst [vmem:[#allocation3 + $0x108] sm:$0xff] %v5477
      %5514 = vst [vmem:[#allocation3 + $0x110] sm:$0xff] %v5478
      %5515 = vst [vmem:[#allocation3 + $0x118] sm:$0xff] %v5479
      %v5516 = vld [vmem:[#allocation3] sm:$0xff]
      %v5517 = vld [vmem:[#allocation3 + $0x8] sm:$0xff]
      %v5518 = vld [vmem:[#allocation3 + $0x10] sm:$0xff]
      %v5519 = vld [vmem:[#allocation3 + $0x18] sm:$0xff]
      %v5520 = vld [vmem:[#allocation3 + $0x20] sm:$0xff]
      %v5521 = vld [vmem:[#allocation3 + $0x28] sm:$0xff]
      %v5522 = vld [vmem:[#allocation3 + $0x30] sm:$0xff]
      %v5523 = vld [vmem:[#allocation3 + $0x38] sm:$0xff]
      %v5524 = vld [vmem:[#allocation3 + $0x40] sm:$0xff]
      %v5525 = vld [vmem:[#allocation3 + $0x48] sm:$0xff]
      %v5526 = vld [vmem:[#allocation3 + $0x50] sm:$0xff]
      %v5527 = vld [vmem:[#allocation3 + $0x58] sm:$0xff]
      %v5528 = vld [vmem:[#allocation3 + $0x60] sm:$0xff]
      %v5529 = vld [vmem:[#allocation3 + $0x68] sm:$0xff]
      %v5530 = vld [vmem:[#allocation3 + $0x70] sm:$0xff]
      %v5531 = vld [vmem:[#allocation3 + $0x78] sm:$0xff]
      %v5532 = vld [vmem:[#allocation3 + $0x80] sm:$0xff]
      %v5533 = vld [vmem:[#allocation3 + $0x88] sm:$0xff]
      %v5534 = vld [vmem:[#allocation3 + $0x90] sm:$0xff]
      %v5535 = vld [vmem:[#allocation3 + $0x98] sm:$0xff]
      %v5536 = vld [vmem:[#allocation3 + $0xa0] sm:$0xff]
      %v5537 = vld [vmem:[#allocation3 + $0xa8] sm:$0xff]
      %v5538 = vld [vmem:[#allocation3 + $0xb0] sm:$0xff]
      %v5539 = vld [vmem:[#allocation3 + $0xb8] sm:$0xff]
      %v5540 = vld [vmem:[#allocation3 + $0xc0] sm:$0xff]
      %v5541 = vld [vmem:[#allocation3 + $0xc8] sm:$0xff]
      %v5542 = vld [vmem:[#allocation3 + $0xd0] sm:$0xff]
      %v5543 = vld [vmem:[#allocation3 + $0xd8] sm:$0xff]
      %v5544 = vld [vmem:[#allocation3 + $0xe0] sm:$0xff]
      %v5545 = vld [vmem:[#allocation3 + $0xe8] sm:$0xff]
      %v5546 = vld [vmem:[#allocation3 + $0xf0] sm:$0xff]
      %v5547 = vld [vmem:[#allocation3 + $0xf8] sm:$0xff]
      %v5548 = vld [vmem:[#allocation3 + $0x100] sm:$0xff]
      %v5549 = vld [vmem:[#allocation3 + $0x108] sm:$0xff]
      %v5550 = vld [vmem:[#allocation3 + $0x110] sm:$0xff]
      %v5551 = vld [vmem:[#allocation3 + $0x118] sm:$0xff]
      %v5552 = vld [vmem:[%s1] sm:$0xff]
      %v5553 = vld [vmem:[%s1 + $0x8] sm:$0xff]
      %v5554 = vld [vmem:[%s1 + $0x10] sm:$0xff]
      %v5555 = vld [vmem:[%s1 + $0x18] sm:$0xff]
      %v5556 = vld [vmem:[%s1 + $0x20] sm:$0xff]
      %v5557 = vld [vmem:[%s1 + $0x28] sm:$0xff]
      %v5558 = vld [vmem:[%s1 + $0x30] sm:$0xff]
      %v5559 = vld [vmem:[%s1 + $0x38] sm:$0xff]
      %v5560 = vld [vmem:[%s1 + $0x40] sm:$0xff]
      %v5561 = vld [vmem:[%s1 + $0x48] sm:$0xff]
      %v5562 = vld [vmem:[%s1 + $0x50] sm:$0xff]
      %v5563 = vld [vmem:[%s1 + $0x58] sm:$0xff]
      %v5564 = vld [vmem:[%s1 + $0x60] sm:$0xff]
      %v5565 = vld [vmem:[%s1 + $0x68] sm:$0xff]
      %v5566 = vld [vmem:[%s1 + $0x70] sm:$0xff]
      %v5567 = vld [vmem:[%s1 + $0x78] sm:$0xff]
      %v5568 = vld [vmem:[%s1 + $0x80] sm:$0xff]
      %v5569 = vld [vmem:[%s1 + $0x88] sm:$0xff]
      %v5570 = vld [vmem:[%s1 + $0x90] sm:$0xff]
      %v5571 = vld [vmem:[%s1 + $0x98] sm:$0xff]
      %v5572 = vld [vmem:[%s1 + $0xa0] sm:$0xff]
      %v5573 = vld [vmem:[%s1 + $0xa8] sm:$0xff]
      %v5574 = vld [vmem:[%s1 + $0xb0] sm:$0xff]
      %v5575 = vld [vmem:[%s1 + $0xb8] sm:$0xff]
      %v5576 = vld [vmem:[%s1 + $0xc0] sm:$0xff]
      %v5577 = vld [vmem:[%s1 + $0xc8] sm:$0xff]
      %v5578 = vld [vmem:[%s1 + $0xd0] sm:$0xff]
      %v5579 = vld [vmem:[%s1 + $0xd8] sm:$0xff]
      %v5580 = vld [vmem:[%s1 + $0xe0] sm:$0xff]
      %v5581 = vld [vmem:[%s1 + $0xe8] sm:$0xff]
      %v5582 = vld [vmem:[%s1 + $0xf0] sm:$0xff]
      %v5583 = vld [vmem:[%s1 + $0xf8] sm:$0xff]
      %v5584 = vld [vmem:[%s1 + $0x100] sm:$0xff]
      %v5585 = vld [vmem:[%s1 + $0x108] sm:$0xff]
      %v5586 = vld [vmem:[%s1 + $0x110] sm:$0xff]
      %v5587 = vld [vmem:[%s1 + $0x118] sm:$0xff]
      %5589 = vset.pattern.permute.xlu0 0
      %5590 = vperm.xlu0 %5589, %v5552
      %v5591 = vpop.permute.xlu0 %5590
      %5594 = vset.pattern.permute.xlu0 0
      %5595 = vperm.xlu0 %5594, %v5553
      %v5596 = vpop.permute.xlu0 %5595
      %5599 = vset.pattern.permute.xlu0 0
      %5600 = vperm.xlu0 %5599, %v5554
      %v5601 = vpop.permute.xlu0 %5600
      %5604 = vset.pattern.permute.xlu0 0
      %5605 = vperm.xlu0 %5604, %v5555
      %v5606 = vpop.permute.xlu0 %5605
      %5609 = vset.pattern.permute.xlu0 0
      %5610 = vperm.xlu0 %5609, %v5556
      %v5611 = vpop.permute.xlu0 %5610
      %5614 = vset.pattern.permute.xlu0 0
      %5615 = vperm.xlu0 %5614, %v5557
      %v5616 = vpop.permute.xlu0 %5615
      %5619 = vset.pattern.permute.xlu0 0
      %5620 = vperm.xlu0 %5619, %v5558
      %v5621 = vpop.permute.xlu0 %5620
      %5624 = vset.pattern.permute.xlu0 0
      %5625 = vperm.xlu0 %5624, %v5559
      %v5626 = vpop.permute.xlu0 %5625
      %5629 = vset.pattern.permute.xlu0 0
      %5630 = vperm.xlu0 %5629, %v5560
      %v5631 = vpop.permute.xlu0 %5630
      %5634 = vset.pattern.permute.xlu0 0
      %5635 = vperm.xlu0 %5634, %v5561
      %v5636 = vpop.permute.xlu0 %5635
      %5639 = vset.pattern.permute.xlu0 0
      %5640 = vperm.xlu0 %5639, %v5562
      %v5641 = vpop.permute.xlu0 %5640
      %5644 = vset.pattern.permute.xlu0 0
      %5645 = vperm.xlu0 %5644, %v5563
      %v5646 = vpop.permute.xlu0 %5645
      %5649 = vset.pattern.permute.xlu0 0
      %5650 = vperm.xlu0 %5649, %v5564
      %v5651 = vpop.permute.xlu0 %5650
      %5654 = vset.pattern.permute.xlu0 0
      %5655 = vperm.xlu0 %5654, %v5565
      %v5656 = vpop.permute.xlu0 %5655
      %5659 = vset.pattern.permute.xlu0 0
      %5660 = vperm.xlu0 %5659, %v5566
      %v5661 = vpop.permute.xlu0 %5660
      %5664 = vset.pattern.permute.xlu0 0
      %5665 = vperm.xlu0 %5664, %v5567
      %v5666 = vpop.permute.xlu0 %5665
      %5669 = vset.pattern.permute.xlu0 0
      %5670 = vperm.xlu0 %5669, %v5568
      %v5671 = vpop.permute.xlu0 %5670
      %5674 = vset.pattern.permute.xlu0 0
      %5675 = vperm.xlu0 %5674, %v5569
      %v5676 = vpop.permute.xlu0 %5675
      %5679 = vset.pattern.permute.xlu0 0
      %5680 = vperm.xlu0 %5679, %v5570
      %v5681 = vpop.permute.xlu0 %5680
      %5684 = vset.pattern.permute.xlu0 0
      %5685 = vperm.xlu0 %5684, %v5571
      %v5686 = vpop.permute.xlu0 %5685
      %5689 = vset.pattern.permute.xlu0 0
      %5690 = vperm.xlu0 %5689, %v5572
      %v5691 = vpop.permute.xlu0 %5690
      %5694 = vset.pattern.permute.xlu0 0
      %5695 = vperm.xlu0 %5694, %v5573
      %v5696 = vpop.permute.xlu0 %5695
      %5699 = vset.pattern.permute.xlu0 0
      %5700 = vperm.xlu0 %5699, %v5574
      %v5701 = vpop.permute.xlu0 %5700
      %5704 = vset.pattern.permute.xlu0 0
      %5705 = vperm.xlu0 %5704, %v5575
      %v5706 = vpop.permute.xlu0 %5705
      %5709 = vset.pattern.permute.xlu0 0
      %5710 = vperm.xlu0 %5709, %v5576
      %v5711 = vpop.permute.xlu0 %5710
      %5714 = vset.pattern.permute.xlu0 0
      %5715 = vperm.xlu0 %5714, %v5577
      %v5716 = vpop.permute.xlu0 %5715
      %5719 = vset.pattern.permute.xlu0 0
      %5720 = vperm.xlu0 %5719, %v5578
      %v5721 = vpop.permute.xlu0 %5720
      %5724 = vset.pattern.permute.xlu0 0
      %5725 = vperm.xlu0 %5724, %v5579
      %v5726 = vpop.permute.xlu0 %5725
      %5729 = vset.pattern.permute.xlu0 0
      %5730 = vperm.xlu0 %5729, %v5580
      %v5731 = vpop.permute.xlu0 %5730
      %5734 = vset.pattern.permute.xlu0 0
      %5735 = vperm.xlu0 %5734, %v5581
      %v5736 = vpop.permute.xlu0 %5735
      %5739 = vset.pattern.permute.xlu0 0
      %5740 = vperm.xlu0 %5739, %v5582
      %v5741 = vpop.permute.xlu0 %5740
      %5744 = vset.pattern.permute.xlu0 0
      %5745 = vperm.xlu0 %5744, %v5583
      %v5746 = vpop.permute.xlu0 %5745
      %5749 = vset.pattern.permute.xlu0 0
      %5750 = vperm.xlu0 %5749, %v5584
      %v5751 = vpop.permute.xlu0 %5750
      %5754 = vset.pattern.permute.xlu0 0
      %5755 = vperm.xlu0 %5754, %v5585
      %v5756 = vpop.permute.xlu0 %5755
      %5759 = vset.pattern.permute.xlu0 0
      %5760 = vperm.xlu0 %5759, %v5586
      %v5761 = vpop.permute.xlu0 %5760
      %5764 = vset.pattern.permute.xlu0 0
      %5765 = vperm.xlu0 %5764, %v5587
      %v5766 = vpop.permute.xlu0 %5765
      %v5768 = vmul.f32 %v5516, %v5591
      %v5769 = vmul.f32 %v5517, %v5596
      %v5770 = vmul.f32 %v5518, %v5601
      %v5771 = vmul.f32 %v5519, %v5606
      %v5772 = vmul.f32 %v5520, %v5611
      %v5773 = vmul.f32 %v5521, %v5616
      %v5774 = vmul.f32 %v5522, %v5621
      %v5775 = vmul.f32 %v5523, %v5626
      %v5776 = vmul.f32 %v5524, %v5631
      %v5777 = vmul.f32 %v5525, %v5636
      %v5778 = vmul.f32 %v5526, %v5641
      %v5779 = vmul.f32 %v5527, %v5646
      %v5780 = vmul.f32 %v5528, %v5651
      %v5781 = vmul.f32 %v5529, %v5656
      %v5782 = vmul.f32 %v5530, %v5661
      %v5783 = vmul.f32 %v5531, %v5666
      %v5784 = vmul.f32 %v5532, %v5671
      %v5785 = vmul.f32 %v5533, %v5676
      %v5786 = vmul.f32 %v5534, %v5681
      %v5787 = vmul.f32 %v5535, %v5686
      %v5788 = vmul.f32 %v5536, %v5691
      %v5789 = vmul.f32 %v5537, %v5696
      %v5790 = vmul.f32 %v5538, %v5701
      %v5791 = vmul.f32 %v5539, %v5706
      %v5792 = vmul.f32 %v5540, %v5711
      %v5793 = vmul.f32 %v5541, %v5716
      %v5794 = vmul.f32 %v5542, %v5721
      %v5795 = vmul.f32 %v5543, %v5726
      %v5796 = vmul.f32 %v5544, %v5731
      %v5797 = vmul.f32 %v5545, %v5736
      %v5798 = vmul.f32 %v5546, %v5741
      %v5799 = vmul.f32 %v5547, %v5746
      %v5800 = vmul.f32 %v5548, %v5751
      %v5801 = vmul.f32 %v5549, %v5756
      %v5802 = vmul.f32 %v5550, %v5761
      %v5803 = vmul.f32 %v5551, %v5766
      %v5804 = vsel %vm1273, %v5768, 0.0
      %v5805 = vsel %vm1273, %v5769, 0.0
      %v5806 = vadd.f32 %v5804, %v5805
      %v5807 = vsel %vm1273, %v5770, 0.0
      %v5808 = vadd.f32 %v5806, %v5807
      %v5809 = vsel %vm1273, %v5771, 0.0
      %v5810 = vadd.f32 %v5808, %v5809
      %v5811 = vsel %vm1273, %v5772, 0.0
      %v5812 = vadd.f32 %v5810, %v5811
      %v5813 = vsel %vm1273, %v5773, 0.0
      %v5814 = vadd.f32 %v5812, %v5813
      %v5815 = vsel %vm1273, %v5774, 0.0
      %v5816 = vadd.f32 %v5814, %v5815
      %v5817 = vsel %vm1273, %v5775, 0.0
      %v5818 = vadd.f32 %v5816, %v5817
      %v5819 = vsel %vm1273, %v5776, 0.0
      %v5820 = vadd.f32 %v5818, %v5819
      %v5821 = vsel %vm1273, %v5777, 0.0
      %v5822 = vadd.f32 %v5820, %v5821
      %v5823 = vsel %vm1273, %v5778, 0.0
      %v5824 = vadd.f32 %v5822, %v5823
      %v5825 = vsel %vm1273, %v5779, 0.0
      %v5826 = vadd.f32 %v5824, %v5825
      %v5827 = vsel %vm1273, %v5780, 0.0
      %v5828 = vadd.f32 %v5826, %v5827
      %v5829 = vsel %vm1273, %v5781, 0.0
      %v5830 = vadd.f32 %v5828, %v5829
      %v5831 = vsel %vm1273, %v5782, 0.0
      %v5832 = vadd.f32 %v5830, %v5831
      %v5833 = vsel %vm1273, %v5783, 0.0
      %v5834 = vadd.f32 %v5832, %v5833
      %v5835 = vsel %vm1273, %v5784, 0.0
      %v5836 = vadd.f32 %v5834, %v5835
      %v5837 = vsel %vm1273, %v5785, 0.0
      %v5838 = vadd.f32 %v5836, %v5837
      %v5839 = vsel %vm1273, %v5786, 0.0
      %v5840 = vadd.f32 %v5838, %v5839
      %v5841 = vsel %vm1273, %v5787, 0.0
      %v5842 = vadd.f32 %v5840, %v5841
      %v5843 = vsel %vm1273, %v5788, 0.0
      %v5844 = vadd.f32 %v5842, %v5843
      %v5845 = vsel %vm1273, %v5789, 0.0
      %v5846 = vadd.f32 %v5844, %v5845
      %v5847 = vsel %vm1273, %v5790, 0.0
      %v5848 = vadd.f32 %v5846, %v5847
      %v5849 = vsel %vm1273, %v5791, 0.0
      %v5850 = vadd.f32 %v5848, %v5849
      %v5851 = vsel %vm1273, %v5792, 0.0
      %v5852 = vadd.f32 %v5850, %v5851
      %v5853 = vsel %vm1273, %v5793, 0.0
      %v5854 = vadd.f32 %v5852, %v5853
      %v5855 = vsel %vm1273, %v5794, 0.0
      %v5856 = vadd.f32 %v5854, %v5855
      %v5857 = vsel %vm1273, %v5795, 0.0
      %v5858 = vadd.f32 %v5856, %v5857
      %v5859 = vsel %vm1273, %v5796, 0.0
      %v5860 = vadd.f32 %v5858, %v5859
      %v5861 = vsel %vm1273, %v5797, 0.0
      %v5862 = vadd.f32 %v5860, %v5861
      %v5863 = vsel %vm1273, %v5798, 0.0
      %v5864 = vadd.f32 %v5862, %v5863
      %v5865 = vsel %vm1273, %v5799, 0.0
      %v5866 = vadd.f32 %v5864, %v5865
      %v5867 = vsel %vm1273, %v5800, 0.0
      %v5868 = vadd.f32 %v5866, %v5867
      %v5869 = vsel %vm1273, %v5801, 0.0
      %v5870 = vadd.f32 %v5868, %v5869
      %v5871 = vsel %vm1273, %v5802, 0.0
      %v5872 = vadd.f32 %v5870, %v5871
      %v5873 = vsel %vm1273, %v5803, 0.0
      %v5874 = vadd.f32 %v5872, %v5873
      %v5875 = vrot.slane %v5874, 4
      %v5876 = vadd.f32 %v5874, %v5875
      %v5877 = vrot.slane %v5876, 2
      %v5878 = vadd.f32 %v5876, %v5877
      %v5879 = vrot.slane %v5878, 1
      %v5880 = vadd.f32 %v5878, %v5879
      %5881 = vst.msk [vmem:[%s262] sm:$0x1] %vm744, %v5880
      %v5882 = vmul.f32 %v5768, %v5768
      %v5883 = vmul.f32 %v5769, %v5769
      %v5884 = vmul.f32 %v5770, %v5770
      %v5885 = vmul.f32 %v5771, %v5771
      %v5886 = vmul.f32 %v5772, %v5772
      %v5887 = vmul.f32 %v5773, %v5773
      %v5888 = vmul.f32 %v5774, %v5774
      %v5889 = vmul.f32 %v5775, %v5775
      %v5890 = vmul.f32 %v5776, %v5776
      %v5891 = vmul.f32 %v5777, %v5777
      %v5892 = vmul.f32 %v5778, %v5778
      %v5893 = vmul.f32 %v5779, %v5779
      %v5894 = vmul.f32 %v5780, %v5780
      %v5895 = vmul.f32 %v5781, %v5781
      %v5896 = vmul.f32 %v5782, %v5782
      %v5897 = vmul.f32 %v5783, %v5783
      %v5898 = vmul.f32 %v5784, %v5784
      %v5899 = vmul.f32 %v5785, %v5785
      %v5900 = vmul.f32 %v5786, %v5786
      %v5901 = vmul.f32 %v5787, %v5787
      %v5902 = vmul.f32 %v5788, %v5788
      %v5903 = vmul.f32 %v5789, %v5789
      %v5904 = vmul.f32 %v5790, %v5790
      %v5905 = vmul.f32 %v5791, %v5791
      %v5906 = vmul.f32 %v5792, %v5792
      %v5907 = vmul.f32 %v5793, %v5793
      %v5908 = vmul.f32 %v5794, %v5794
      %v5909 = vmul.f32 %v5795, %v5795
      %v5910 = vmul.f32 %v5796, %v5796
      %v5911 = vmul.f32 %v5797, %v5797
      %v5912 = vmul.f32 %v5798, %v5798
      %v5913 = vmul.f32 %v5799, %v5799
      %v5914 = vmul.f32 %v5800, %v5800
      %v5915 = vmul.f32 %v5801, %v5801
      %v5916 = vmul.f32 %v5802, %v5802
      %v5917 = vmul.f32 %v5803, %v5803
      %v5918 = vsel %vm1273, %v5882, 0.0
      %v5919 = vsel %vm1273, %v5883, 0.0
      %v5920 = vadd.f32 %v5918, %v5919
      %v5921 = vsel %vm1273, %v5884, 0.0
      %v5922 = vadd.f32 %v5920, %v5921
      %v5923 = vsel %vm1273, %v5885, 0.0
      %v5924 = vadd.f32 %v5922, %v5923
      %v5925 = vsel %vm1273, %v5886, 0.0
      %v5926 = vadd.f32 %v5924, %v5925
      %v5927 = vsel %vm1273, %v5887, 0.0
      %v5928 = vadd.f32 %v5926, %v5927
      %v5929 = vsel %vm1273, %v5888, 0.0
      %v5930 = vadd.f32 %v5928, %v5929
      %v5931 = vsel %vm1273, %v5889, 0.0
      %v5932 = vadd.f32 %v5930, %v5931
      %v5933 = vsel %vm1273, %v5890, 0.0
      %v5934 = vadd.f32 %v5932, %v5933
      %v5935 = vsel %vm1273, %v5891, 0.0
      %v5936 = vadd.f32 %v5934, %v5935
      %v5937 = vsel %vm1273, %v5892, 0.0
      %v5938 = vadd.f32 %v5936, %v5937
      %v5939 = vsel %vm1273, %v5893, 0.0
      %v5940 = vadd.f32 %v5938, %v5939
      %v5941 = vsel %vm1273, %v5894, 0.0
      %v5942 = vadd.f32 %v5940, %v5941
      %v5943 = vsel %vm1273, %v5895, 0.0
      %v5944 = vadd.f32 %v5942, %v5943
      %v5945 = vsel %vm1273, %v5896, 0.0
      %v5946 = vadd.f32 %v5944, %v5945
      %v5947 = vsel %vm1273, %v5897, 0.0
      %v5948 = vadd.f32 %v5946, %v5947
      %v5949 = vsel %vm1273, %v5898, 0.0
      %v5950 = vadd.f32 %v5948, %v5949
      %v5951 = vsel %vm1273, %v5899, 0.0
      %v5952 = vadd.f32 %v5950, %v5951
      %v5953 = vsel %vm1273, %v5900, 0.0
      %v5954 = vadd.f32 %v5952, %v5953
      %v5955 = vsel %vm1273, %v5901, 0.0
      %v5956 = vadd.f32 %v5954, %v5955
      %v5957 = vsel %vm1273, %v5902, 0.0
      %v5958 = vadd.f32 %v5956, %v5957
      %v5959 = vsel %vm1273, %v5903, 0.0
      %v5960 = vadd.f32 %v5958, %v5959
      %v5961 = vsel %vm1273, %v5904, 0.0
      %v5962 = vadd.f32 %v5960, %v5961
      %v5963 = vsel %vm1273, %v5905, 0.0
      %v5964 = vadd.f32 %v5962, %v5963
      %v5965 = vsel %vm1273, %v5906, 0.0
      %v5966 = vadd.f32 %v5964, %v5965
      %v5967 = vsel %vm1273, %v5907, 0.0
      %v5968 = vadd.f32 %v5966, %v5967
      %v5969 = vsel %vm1273, %v5908, 0.0
      %v5970 = vadd.f32 %v5968, %v5969
      %v5971 = vsel %vm1273, %v5909, 0.0
      %v5972 = vadd.f32 %v5970, %v5971
      %v5973 = vsel %vm1273, %v5910, 0.0
      %v5974 = vadd.f32 %v5972, %v5973
      %v5975 = vsel %vm1273, %v5911, 0.0
      %v5976 = vadd.f32 %v5974, %v5975
      %v5977 = vsel %vm1273, %v5912, 0.0
      %v5978 = vadd.f32 %v5976, %v5977
      %v5979 = vsel %vm1273, %v5913, 0.0
      %v5980 = vadd.f32 %v5978, %v5979
      %v5981 = vsel %vm1273, %v5914, 0.0
      %v5982 = vadd.f32 %v5980, %v5981
      %v5983 = vsel %vm1273, %v5915, 0.0
      %v5984 = vadd.f32 %v5982, %v5983
      %v5985 = vsel %vm1273, %v5916, 0.0
      %v5986 = vadd.f32 %v5984, %v5985
      %v5987 = vsel %vm1273, %v5917, 0.0
      %v5988 = vadd.f32 %v5986, %v5987
      %v5989 = vrot.slane %v5988, 4
      %v5990 = vadd.f32 %v5988, %v5989
      %v5991 = vrot.slane %v5990, 2
      %v5992 = vadd.f32 %v5990, %v5991
      %v5993 = vrot.slane %v5992, 1
      %v5994 = vadd.f32 %v5992, %v5993
      %5995 = vst.msk [vmem:[%s262 + $0x1] sm:$0x1] %vm744, %v5994
      %v5996 = vpack.c.bf16 %v5768, %v5768
      %v5997 = vpack.c.bf16 %v5769, %v5769
      %v5998 = vpack.c.bf16 %v5770, %v5770
      %v5999 = vpack.c.bf16 %v5771, %v5771
      %v6000 = vpack.c.bf16 %v5772, %v5772
      %v6001 = vpack.c.bf16 %v5773, %v5773
      %v6002 = vpack.c.bf16 %v5774, %v5774
      %v6003 = vpack.c.bf16 %v5775, %v5775
      %v6004 = vpack.c.bf16 %v5776, %v5776
      %v6005 = vpack.c.bf16 %v5777, %v5777
      %v6006 = vpack.c.bf16 %v5778, %v5778
      %v6007 = vpack.c.bf16 %v5779, %v5779
      %v6008 = vpack.c.bf16 %v5780, %v5780
      %v6009 = vpack.c.bf16 %v5781, %v5781
      %v6010 = vpack.c.bf16 %v5782, %v5782
      %v6011 = vpack.c.bf16 %v5783, %v5783
      %v6012 = vpack.c.bf16 %v5784, %v5784
      %v6013 = vpack.c.bf16 %v5785, %v5785
      %v6014 = vpack.c.bf16 %v5786, %v5786
      %v6015 = vpack.c.bf16 %v5787, %v5787
      %v6016 = vpack.c.bf16 %v5788, %v5788
      %v6017 = vpack.c.bf16 %v5789, %v5789
      %v6018 = vpack.c.bf16 %v5790, %v5790
      %v6019 = vpack.c.bf16 %v5791, %v5791
      %v6020 = vpack.c.bf16 %v5792, %v5792
      %v6021 = vpack.c.bf16 %v5793, %v5793
      %v6022 = vpack.c.bf16 %v5794, %v5794
      %v6023 = vpack.c.bf16 %v5795, %v5795
      %v6024 = vpack.c.bf16 %v5796, %v5796
      %v6025 = vpack.c.bf16 %v5797, %v5797
      %v6026 = vpack.c.bf16 %v5798, %v5798
      %v6027 = vpack.c.bf16 %v5799, %v5799
      %v6028 = vpack.c.bf16 %v5800, %v5800
      %v6029 = vpack.c.bf16 %v5801, %v5801
      %v6030 = vpack.c.bf16 %v5802, %v5802
      %v6031 = vpack.c.bf16 %v5803, %v5803
      %6032 = vst [vmem:[%s258] sm:$0xf] %v5996
      %6033 = vst [vmem:[%s258 + $0x4] sm:$0xf] %v5997
      %6034 = vst [vmem:[%s258 + $0x8] sm:$0xf] %v5998
      %6035 = vst [vmem:[%s258 + $0xc] sm:$0xf] %v5999
      %6036 = vst [vmem:[%s258 + $0x10] sm:$0xf] %v6000
      %6037 = vst [vmem:[%s258 + $0x14] sm:$0xf] %v6001
      %6038 = vst [vmem:[%s258 + $0x18] sm:$0xf] %v6002
      %6039 = vst [vmem:[%s258 + $0x1c] sm:$0xf] %v6003
      %6040 = vst [vmem:[%s258 + $0x20] sm:$0xf] %v6004
      %6041 = vst [vmem:[%s258 + $0x24] sm:$0xf] %v6005
      %6042 = vst [vmem:[%s258 + $0x28] sm:$0xf] %v6006
      %6043 = vst [vmem:[%s258 + $0x2c] sm:$0xf] %v6007
      %6044 = vst [vmem:[%s258 + $0x30] sm:$0xf] %v6008
      %6045 = vst [vmem:[%s258 + $0x34] sm:$0xf] %v6009
      %6046 = vst [vmem:[%s258 + $0x38] sm:$0xf] %v6010
      %6047 = vst [vmem:[%s258 + $0x3c] sm:$0xf] %v6011
      %6048 = vst [vmem:[%s258 + $0x40] sm:$0xf] %v6012
      %6049 = vst [vmem:[%s258 + $0x44] sm:$0xf] %v6013
      %6050 = vst [vmem:[%s258 + $0x48] sm:$0xf] %v6014
      %6051 = vst [vmem:[%s258 + $0x4c] sm:$0xf] %v6015
      %6052 = vst [vmem:[%s258 + $0x50] sm:$0xf] %v6016
      %6053 = vst [vmem:[%s258 + $0x54] sm:$0xf] %v6017
      %6054 = vst [vmem:[%s258 + $0x58] sm:$0xf] %v6018
      %6055 = vst [vmem:[%s258 + $0x5c] sm:$0xf] %v6019
      %6056 = vst [vmem:[%s258 + $0x60] sm:$0xf] %v6020
      %6057 = vst [vmem:[%s258 + $0x64] sm:$0xf] %v6021
      %6058 = vst [vmem:[%s258 + $0x68] sm:$0xf] %v6022
      %6059 = vst [vmem:[%s258 + $0x6c] sm:$0xf] %v6023
      %6060 = vst [vmem:[%s258 + $0x70] sm:$0xf] %v6024
      %6061 = vst [vmem:[%s258 + $0x74] sm:$0xf] %v6025
      %6062 = vst [vmem:[%s258 + $0x78] sm:$0xf] %v6026
      %6063 = vst [vmem:[%s258 + $0x7c] sm:$0xf] %v6027
      %6064 = vst [vmem:[%s258 + $0x80] sm:$0xf] %v6028
      %6065 = vst [vmem:[%s258 + $0x84] sm:$0xf] %v6029
      %6066 = vst [vmem:[%s258 + $0x88] sm:$0xf] %v6030
      %6067 = vst [vmem:[%s258 + $0x8c] sm:$0xf] %v6031
      %p6068 = scmp.lt.s32.totalorder %s18, 1
      %s6069 = scalar_select %p6068, %s18, 1
      %s6070 = smul.addr %s6069, 36
      %s6071 = smul.addr %s6070, 4
      %s6072 = scalar_lea.vmem %s5, %s6071
      %p6073 = scmp.lt.s32.totalorder %s18, 1
      %s6074 = scalar_select %p6073, %s18, 1
      %s6075 = smul.addr %s6074, 2
      %s6076 = scalar_lea.vmem %s6, %s6075
      // Predicated region
      $region41: #{resblock_forward.4} parent=39 // pred_check
        %p6077 = pneg %p146
      $region42: #{resblock_forward.4} parent=39 // pred_check_branch
        %6079 = sbr.rel (%p6077) target = $region44
      $region43: #{resblock_forward.4} parent=39 // pred_region
        _
      $region44: #{resblock_forward.4} parent=39 // pred_fallthru
        _
      // Predicated region
      $region45: #{resblock_forward.4} parent=39 // pred_check
        %p6080 = pneg %p172
      $region46: #{resblock_forward.4} parent=39 // pred_check_branch
        %6082 = sbr.rel (%p6080) target = $region48
      $region47: #{resblock_forward.4} parent=39 // pred_region
        _
      $region48: #{resblock_forward.4} parent=39 // pred_fallthru
        _
    $region40: #{resblock_forward.4} parent=5 // pred_fallthru
      _
    %p6083 = scmp.le.s32.totalorder 2, %s13
    // Predicated region
    $region49: #{resblock_forward.4} parent=5 // pred_check
      %p6084 = pneg %p6083
    $region50: #{resblock_forward.4} parent=5 // pred_check_branch
      %6086 = sbr.rel (%p6084) target = $region52
    $region51: #{resblock_forward.4} parent=5 // pred_region
      %s6087 = ssub.s32 %s13, 2
      // Predicated region
      $region53: #{resblock_forward.4} parent=51 // pred_check
        %p6088 = pneg %p152
      $region54: #{resblock_forward.4} parent=51 // pred_check_branch
        %6090 = sbr.rel (%p6088) target = $region56
      $region55: #{resblock_forward.4} parent=51 // pred_region
        %p6091 = scmp.lt.s32.totalorder %s19, 1
        %s6092 = scalar_select %p6091, %s19, 1
        %s6093 = smul.addr %s6092, 36
        %s6094 = smul.addr %s6093, 4
        %s6095 = scalar_lea.vmem %s5, %s6094
      $region56: #{resblock_forward.4} parent=51 // pred_fallthru
        _
      // Predicated region
      $region57: #{resblock_forward.4} parent=51 // pred_check
        %p6096 = pneg %p178
      $region58: #{resblock_forward.4} parent=51 // pred_check_branch
        %6098 = sbr.rel (%p6096) target = $region60
      $region59: #{resblock_forward.4} parent=51 // pred_region
        %p6099 = scmp.lt.s32.totalorder %s19, 1
        %s6100 = scalar_select %p6099, %s19, 1
        %s6101 = smul.addr %s6100, 2
        %s6102 = scalar_lea.vmem %s6, %s6101
      $region60: #{resblock_forward.4} parent=51 // pred_fallthru
        _
    $region52: #{resblock_forward.4} parent=5 // pred_fallthru
      _
  $region6: #{resblock_forward.4} parent=0 // loop_footer
    %s17 = sadd.s32 1, %s13
  $region7: #{resblock_forward.4} parent=0 // loop_footer_branch
    %12 = sbr.rel target = $region3
  $region8: #{resblock_forward.4} parent=0 // loop_exit
    _

</llo_original>
